<compile_context>
chip_gen: v5e
topology: v5e:2x2
jax: 0.10.0
libtpu: 0.0.40
codegen_flags: <defaults>
</compile_context>

<pallas_src>
import jax
import jax.numpy as jnp
from jax import lax
from jax.experimental import pallas as pl
from jax.experimental.pallas import tpu as pltpu


# ------------------------------ fused kernel --------------------------------
def fused_kernel(sel_ref, emb_ref, img_ref, wimg_ref, bimg_ref,
                 wcls_ref, bcls_ref, out_ref):
    # sel_ref : (Bp, Bp*L)  bf16  0/1 block-diagonal selection matrix
    # emb_ref : (Bp*L, E)   bf16  gathered question embeddings (flat)
    # img_ref : (Bp, Dimg)  bf16  image features
    # wimg_ref: (Dimg, E)   bf16  bimg_ref: (1, E)      f32
    # wcls_ref: (E, TN)     bf16  bcls_ref: (1, TN)     f32
    # out_ref : (Bp, TN)    f32
    #
    # Text branch: masked sequence sum as one 2-D MXU matmul (bf16 operands,
    # f32 accumulation, exact 0/1 mask); tanh stays f32 on the EUP.
    txt = jnp.tanh(jnp.dot(sel_ref[...], emb_ref[...],
                           preferred_element_type=jnp.float32))          # (Bp, E)

    # Image projection + tanh, elementwise fusion (f32 accumulate / elementwise).
    # Recomputed per class tile (tiny, MXU-resident) so the grid axis carries no
    # scratch dependency and can be sharded across cores on v7x.
    proj = jnp.dot(img_ref[...], wimg_ref[...],
                   preferred_element_type=jnp.float32) + bimg_ref[...]   # (Bp, E)
    h = jnp.tanh(proj) * txt                                             # (Bp, E)

    # Classifier tile (bf16 weight stream, f32 accumulation).
    out_ref[...] = jnp.dot(h.astype(jnp.bfloat16), wcls_ref[...],
                           preferred_element_type=jnp.float32) + bcls_ref[...]


# ------------------------------ host wrapper --------------------------------
def baseline_forward(params, tokens, img_vec, q_len, *, tile_n=768):
    emb_table = params["emb_table"]        # (V, E)        bf16
    w_img = params["w_img"]                # (Dimg, E)     bf16
    b_img = params["b_img"]                # (1, E)        f32  (pre-reshaped)
    w_cls = params["w_cls"]                # (E, n_pad)    bf16 (pre-padded)
    b_cls = params["b_cls"]                # (1, n_pad)    f32  (pre-padded)
    num_classes = params["num_classes"]

    B, L = tokens.shape
    E = emb_table.shape[1]
    d_img = img_vec.shape[1]
    n_pad = w_cls.shape[1]
    if n_pad % tile_n != 0:                # keep the grid exact
        tile_n = n_pad

    # Pad the batch to a multiple of 8 BEFORE the gather (sublane-aligned blocks,
    # padded rows are fully masked out by the selection matrix).
    b_pad = pl.cdiv(B, 8) * 8
    tokens_p = jnp.pad(tokens, ((0, b_pad - B), (0, 0)))
    img_p = jnp.pad(img_vec, ((0, b_pad - B), (0, 0))).astype(jnp.bfloat16)
    qlen_p = jnp.pad(q_len.astype(jnp.int32), (0, b_pad - B))

    # Embedding gather stays as XLA glue; the flat (b_pad*L, E) result is exactly
    # the layout the kernel consumes (no extra pad/reshape copy).
    # TODO(synk): fuse the gather in-kernel (scalar-prefetched token ids + manual
    # row DMAs from the HBM-resident table) to drop this HBM round trip at L=300.
    emb_flat = jnp.take(emb_table, tokens_p.reshape(-1), axis=0)   # (b_pad*L, E)

    # Block-diagonal 0/1 selection matrix: sel[b, b*L + l] = (l < q_len[b]).
    # Exact in bf16; turns the masked sequence-sum into one MXU matmul.
    col = lax.broadcasted_iota(jnp.int32, (b_pad, b_pad * L), 1)
    row = lax.broadcasted_iota(jnp.int32, (b_pad, b_pad * L), 0)
    sel = ((col // L == row) & ((col % L) < qlen_p[:, None])).astype(jnp.bfloat16)

    def build_call(single_buffer_invariant):
        inv_kw = ({"pipeline_mode": pl.Buffered(1)}
                  if single_buffer_invariant else {})
        in_specs = [
            pl.BlockSpec((b_pad, b_pad * L), lambda j: (0, 0), **inv_kw),  # sel
            pl.BlockSpec((b_pad * L, E), lambda j: (0, 0), **inv_kw),      # emb
            pl.BlockSpec((b_pad, d_img), lambda j: (0, 0), **inv_kw),      # img
            pl.BlockSpec((d_img, E), lambda j: (0, 0), **inv_kw),          # W_img
            pl.BlockSpec((1, E), lambda j: (0, 0), **inv_kw),              # b_img
            pl.BlockSpec((E, tile_n), lambda j: (0, j)),                   # W_cls tile
            pl.BlockSpec((1, tile_n), lambda j: (0, j)),                   # b_cls tile
        ]
        return pl.pallas_call(
            fused_kernel,
            out_shape=jax.ShapeDtypeStruct((b_pad, n_pad), jnp.float32),
            grid_spec=pltpu.PrefetchScalarGridSpec(
                num_scalar_prefetch=0,
                grid=(n_pad // tile_n,),
                in_specs=in_specs,
                out_specs=pl.BlockSpec((b_pad, tile_n), lambda j: (0, j)),
            ),
            compiler_params=pltpu.CompilerParams(
                # Class tiles are independent; on v7x this lets megacore split the
                # dominant W_cls stream across both TensorCores.
                # TODO(synk): if a v7x profile shows one TC running all tiles,
                # switch this axis to pltpu.CORE_PARALLEL.
                dimension_semantics=("parallel",),
                vmem_limit_bytes=32 << 20,     # fits v7x's 64 MiB per-TC VMEM
            ),
        )

    args = (sel, emb_flat, img_p, w_img, b_img, w_cls, b_cls)
    try:
        out = build_call(True)(*args)
    except Exception:
        # pipeline_mode / Buffered(1) not supported by this jax build: fall back
        # to default double-buffering (correctness identical).
        out = build_call(False)(*args)
    return out[:B, :num_classes]


def init_params(key, vocab, emb_size, d_img, num_classes):
    # Weights stored bf16 (weight-only low precision, f32 accumulation in-kernel);
    # biases f32. Classifier weight/bias pre-padded to a lane-friendly multiple of
    # 256 once here, so the forward path never touches jnp.pad on weights.
    k1, k2, k3 = jax.random.split(key, 3)
    n_pad = pl.cdiv(num_classes, 256) * 256          # 3001 -> 3072
    w_cls = (jax.random.normal(k3, (emb_size, num_classes), jnp.float32) * 0.02
             ).astype(jnp.bfloat16)
    return {
        "emb_table": (jax.random.normal(k1, (vocab, emb_size), jnp.float32) * 0.02
                      ).astype(jnp.bfloat16),
        "w_img": (jax.random.normal(k2, (d_img, emb_size), jnp.float32) * 0.02
                  ).astype(jnp.bfloat16),
        "b_img": jnp.zeros((1, emb_size), jnp.float32),
        "w_cls": jnp.pad(w_cls, ((0, 0), (0, n_pad - num_classes))),
        "b_cls": jnp.zeros((1, n_pad), jnp.float32),
        "num_classes": num_classes,
    }


if __name__ == "__main__":
    # Small shapes consistent with the module's forward:
    #   batch=2, question length=8 (scaled down from ques_len=300),
    #   text_vec_size=1024 (hardcoded in module), img feature dim=512,
    #   num_classes=3001 (module default).
    B, L, V = 2, 8, 64
    E, D_IMG, NUM_CLASSES = 1024, 512, 3001

    key = jax.random.PRNGKey(0)
    kp, kt, ki, kq = jax.random.split(key, 4)

    params = init_params(kp, V, E, D_IMG, NUM_CLASSES)
    tokens = jax.random.randint(kt, (B, L), 0, V, dtype=jnp.int32)     # text_vec ids
    img_vec = jax.random.normal(ki, (B, D_IMG), jnp.float32)           # img_vec
    q_len = jax.random.randint(kq, (B,), 1, L + 1, dtype=jnp.int32)    # q_len

    pred = baseline_forward(params, tokens, img_vec, q_len)
    jax.block_until_ready(pred)
    assert pred.shape == (B, NUM_CLASSES), pred.shape

    # Pure-JAX reference (f32 math on the same bf16-stored weights); loose
    # tolerance covers the deliberate bf16 operand rounding in the kernel.
    emb_f32 = jnp.take(params["emb_table"].astype(jnp.float32), tokens, axis=0)
    mask = (jnp.arange(L)[None, :] < q_len[:, None]).astype(jnp.float32)
    txt_ref = jnp.tanh(jnp.sum(emb_f32 * mask[:, :, None], axis=1))
    h_ref = jnp.tanh(img_vec @ params["w_img"].astype(jnp.float32)
                     + params["b_img"][0]) * txt_ref
    pred_ref = (h_ref @ params["w_cls"].astype(jnp.float32)[:, :NUM_CLASSES]
                + params["b_cls"][0, :NUM_CLASSES])
    assert float(jnp.max(jnp.abs(pred - pred_ref))) < 2e-2

    print("KERNEL_OK")
</pallas_src>

<mosaic_0001>
module attributes {stable_mosaic.version = 11 : i64} {
  func.func @fused_kernel(%arg0: i32, %arg1: memref<8x64xbf16, #tpu.memory_space<vmem>>, %arg2: memref<64x1024xbf16, #tpu.memory_space<vmem>>, %arg3: memref<8x512xbf16, #tpu.memory_space<vmem>>, %arg4: memref<512x1024xbf16, #tpu.memory_space<vmem>>, %arg5: memref<1x1024xf32, #tpu.memory_space<vmem>>, %arg6: memref<1024x768xbf16, #tpu.memory_space<vmem>>, %arg7: memref<1x768xf32, #tpu.memory_space<vmem>>, %arg8: memref<8x768xf32, #tpu.memory_space<vmem>>) attributes {dimension_semantics = [#tpu.dimension_semantics<parallel>], iteration_bounds = array<i64: 4>, scalar_prefetch = 0 : i64, scratch_operands = 0 : i64, tpu.core_type = #tpu.core_type<tc>, window_params = [{pipeline_mode = #tpu.pipeline_mode<synchronous>, transform_indices = @transform_0, window_bounds = array<i64: 8, 64>}, {pipeline_mode = #tpu.pipeline_mode<synchronous>, transform_indices = @transform_1, window_bounds = array<i64: 64, 1024>}, {pipeline_mode = #tpu.pipeline_mode<synchronous>, transform_indices = @transform_2, window_bounds = array<i64: 8, 512>}, {pipeline_mode = #tpu.pipeline_mode<synchronous>, transform_indices = @transform_3, window_bounds = array<i64: 512, 1024>}, {pipeline_mode = #tpu.pipeline_mode<synchronous>, transform_indices = @transform_4, window_bounds = array<i64: 1, 1024>}, {transform_indices = @transform_5, window_bounds = array<i64: 1024, 768>}, {transform_indices = @transform_6, window_bounds = array<i64: 1, 768>}, {transform_indices = @transform_7, window_bounds = array<i64: 8, 768>}]} {
    %c0 = arith.constant 0 : index
    %c0_0 = arith.constant 0 : index
    %0 = vector.load %arg1[%c0, %c0_0] : memref<8x64xbf16, #tpu.memory_space<vmem>>, vector<8x64xbf16>
    %c0_1 = arith.constant 0 : index
    %c0_2 = arith.constant 0 : index
    %1 = vector.load %arg2[%c0_1, %c0_2] : memref<64x1024xbf16, #tpu.memory_space<vmem>>, vector<64x1024xbf16>
    %cst = arith.constant dense<0.000000e+00> : vector<8x1024xf32>
    %2 = tpu.matmul %0, %1, %cst {dimension_numbers = #tpu.dot_dimension_numbers<[1], [0], [0], [1], [0, 0, 1, 1], [], []>} : vector<8x64xbf16>, vector<64x1024xbf16>, vector<8x1024xf32> -> vector<8x1024xf32>
    %3 = math.tanh %2 : vector<8x1024xf32>
    %c0_3 = arith.constant 0 : index
    %c0_4 = arith.constant 0 : index
    %4 = vector.load %arg3[%c0_3, %c0_4] : memref<8x512xbf16, #tpu.memory_space<vmem>>, vector<8x512xbf16>
    %c0_5 = arith.constant 0 : index
    %c0_6 = arith.constant 0 : index
    %5 = vector.load %arg4[%c0_5, %c0_6] : memref<512x1024xbf16, #tpu.memory_space<vmem>>, vector<512x1024xbf16>
    %cst_7 = arith.constant dense<0.000000e+00> : vector<8x1024xf32>
    %6 = tpu.matmul %4, %5, %cst_7 {dimension_numbers = #tpu.dot_dimension_numbers<[1], [0], [0], [1], [0, 0, 1, 1], [], []>} : vector<8x512xbf16>, vector<512x1024xbf16>, vector<8x1024xf32> -> vector<8x1024xf32>
    %c0_8 = arith.constant 0 : index
    %c0_9 = arith.constant 0 : index
    %7 = vector.load %arg5[%c0_8, %c0_9] : memref<1x1024xf32, #tpu.memory_space<vmem>>, vector<1x1024xf32>
    %8 = vector.broadcast %7 : vector<1x1024xf32> to vector<8x1024xf32>
    %9 = arith.addf %6, %8 : vector<8x1024xf32>
    %10 = math.tanh %9 : vector<8x1024xf32>
    %11 = arith.mulf %10, %3 : vector<8x1024xf32>
    %12 = arith.truncf %11 : vector<8x1024xf32> to vector<8x1024xbf16>
    %c0_10 = arith.constant 0 : index
    %c0_11 = arith.constant 0 : index
    %13 = vector.load %arg6[%c0_10, %c0_11] : memref<1024x768xbf16, #tpu.memory_space<vmem>>, vector<1024x768xbf16>
    %cst_12 = arith.constant dense<0.000000e+00> : vector<8x768xf32>
    %14 = tpu.matmul %12, %13, %cst_12 {dimension_numbers = #tpu.dot_dimension_numbers<[1], [0], [0], [1], [0, 0, 1, 1], [], []>} : vector<8x1024xbf16>, vector<1024x768xbf16>, vector<8x768xf32> -> vector<8x768xf32>
    %c0_13 = arith.constant 0 : index
    %c0_14 = arith.constant 0 : index
    %15 = vector.load %arg7[%c0_13, %c0_14] : memref<1x768xf32, #tpu.memory_space<vmem>>, vector<1x768xf32>
    %16 = vector.broadcast %15 : vector<1x768xf32> to vector<8x768xf32>
    %17 = arith.addf %14, %16 : vector<8x768xf32>
    %c0_15 = arith.constant 0 : index
    %c0_16 = arith.constant 0 : index
    %18 = vector.load %arg8[%c0_15, %c0_16] : memref<8x768xf32, #tpu.memory_space<vmem>>, vector<8x768xf32>
    tpu.vector_store %arg8[%c0_15, %c0_16], %17 {strides = array<i32>} : memref<8x768xf32, #tpu.memory_space<vmem>>, vector<8x768xf32>,
    return
  }
  func.func @transform_0(%arg0: i32) -> (i32, i32) {
    %c0_i32 = arith.constant 0 : i32
    %c0_i32_0 = arith.constant 0 : i32
    %c0_i32_1 = arith.constant 0 : i32
    return %c0_i32, %c0_i32_0 : i32, i32
  }
  func.func @transform_1(%arg0: i32) -> (i32, i32) {
    %c0_i32 = arith.constant 0 : i32
    %c0_i32_0 = arith.constant 0 : i32
    %c0_i32_1 = arith.constant 0 : i32
    return %c0_i32, %c0_i32_0 : i32, i32
  }
  func.func @transform_2(%arg0: i32) -> (i32, i32) {
    %c0_i32 = arith.constant 0 : i32
    %c0_i32_0 = arith.constant 0 : i32
    %c0_i32_1 = arith.constant 0 : i32
    return %c0_i32, %c0_i32_0 : i32, i32
  }
  func.func @transform_3(%arg0: i32) -> (i32, i32) {
    %c0_i32 = arith.constant 0 : i32
    %c0_i32_0 = arith.constant 0 : i32
    %c0_i32_1 = arith.constant 0 : i32
    return %c0_i32, %c0_i32_0 : i32, i32
  }
  func.func @transform_4(%arg0: i32) -> (i32, i32) {
    %c0_i32 = arith.constant 0 : i32
    %c0_i32_0 = arith.constant 0 : i32
    %c0_i32_1 = arith.constant 0 : i32
    return %c0_i32, %c0_i32_0 : i32, i32
  }
  func.func @transform_5(%arg0: i32) -> (i32, i32) {
    %c0_i32 = arith.constant 0 : i32
    %c0_i32_0 = arith.constant 0 : i32
    return %c0_i32, %arg0 : i32, i32
  }
  func.func @transform_6(%arg0: i32) -> (i32, i32) {
    %c0_i32 = arith.constant 0 : i32
    %c0_i32_0 = arith.constant 0 : i32
    return %c0_i32, %arg0 : i32, i32
  }
  func.func @transform_7(%arg0: i32) -> (i32, i32) {
    %c0_i32 = arith.constant 0 : i32
    %c0_i32_0 = arith.constant 0 : i32
    return %c0_i32, %arg0 : i32, i32
  }
}

module attributes {stable_mosaic.version = 11 : i64} {
  func.func @fused_kernel(%arg0: i32, %arg1: memref<8x64xbf16, #tpu.memory_space<vmem>>, %arg2: memref<64x1024xbf16, #tpu.memory_space<vmem>>, %arg3: memref<8x512xbf16, #tpu.memory_space<vmem>>, %arg4: memref<512x1024xbf16, #tpu.memory_space<vmem>>, %arg5: memref<1x1024xf32, #tpu.memory_space<vmem>>, %arg6: memref<1024x768xbf16, #tpu.memory_space<vmem>>, %arg7: memref<1x768xf32, #tpu.memory_space<vmem>>, %arg8: memref<8x768xf32, #tpu.memory_space<vmem>>) attributes {dimension_semantics = [#tpu.dimension_semantics<parallel>], iteration_bounds = array<i64: 4>, scalar_prefetch = 0 : i64, scratch_operands = 0 : i64, tpu.core_type = #tpu.core_type<tc>, window_params = [{pipeline_mode = #tpu.pipeline_mode<synchronous>, transform_indices = @transform_0, window_bounds = array<i64: 8, 64>}, {pipeline_mode = #tpu.pipeline_mode<synchronous>, transform_indices = @transform_1, window_bounds = array<i64: 64, 1024>}, {pipeline_mode = #tpu.pipeline_mode<synchronous>, transform_indices = @transform_2, window_bounds = array<i64: 8, 512>}, {pipeline_mode = #tpu.pipeline_mode<synchronous>, transform_indices = @transform_3, window_bounds = array<i64: 512, 1024>}, {pipeline_mode = #tpu.pipeline_mode<synchronous>, transform_indices = @transform_4, window_bounds = array<i64: 1, 1024>}, {transform_indices = @transform_5, window_bounds = array<i64: 1024, 768>}, {transform_indices = @transform_6, window_bounds = array<i64: 1, 768>}, {transform_indices = @transform_7, window_bounds = array<i64: 8, 768>}]} {
    %c0 = arith.constant 0 : index
    %c0_0 = arith.constant 0 : index
    %0 = vector.load %arg1[%c0, %c0_0] : memref<8x64xbf16, #tpu.memory_space<vmem>>, vector<8x64xbf16>
    %c0_1 = arith.constant 0 : index
    %c0_2 = arith.constant 0 : index
    %1 = vector.load %arg2[%c0_1, %c0_2] : memref<64x1024xbf16, #tpu.memory_space<vmem>>, vector<64x1024xbf16>
    %cst = arith.constant dense<0.000000e+00> : vector<8x1024xf32>
    %2 = tpu.matmul %0, %1, %cst {dimension_numbers = #tpu.dot_dimension_numbers<[1], [0], [0], [1], [0, 0, 1, 1], [], []>} : vector<8x64xbf16>, vector<64x1024xbf16>, vector<8x1024xf32> -> vector<8x1024xf32>
    %3 = math.tanh %2 : vector<8x1024xf32>
    %c0_3 = arith.constant 0 : index
    %c0_4 = arith.constant 0 : index
    %4 = vector.load %arg3[%c0_3, %c0_4] : memref<8x512xbf16, #tpu.memory_space<vmem>>, vector<8x512xbf16>
    %c0_5 = arith.constant 0 : index
    %c0_6 = arith.constant 0 : index
    %5 = vector.load %arg4[%c0_5, %c0_6] : memref<512x1024xbf16, #tpu.memory_space<vmem>>, vector<512x1024xbf16>
    %cst_7 = arith.constant dense<0.000000e+00> : vector<8x1024xf32>
    %6 = tpu.matmul %4, %5, %cst_7 {dimension_numbers = #tpu.dot_dimension_numbers<[1], [0], [0], [1], [0, 0, 1, 1], [], []>} : vector<8x512xbf16>, vector<512x1024xbf16>, vector<8x1024xf32> -> vector<8x1024xf32>
    %c0_8 = arith.constant 0 : index
    %c0_9 = arith.constant 0 : index
    %7 = vector.load %arg5[%c0_8, %c0_9] : memref<1x1024xf32, #tpu.memory_space<vmem>>, vector<1x1024xf32>
    %8 = vector.broadcast %7 : vector<1x1024xf32> to vector<8x1024xf32>
    %9 = arith.addf %6, %8 : vector<8x1024xf32>
    %10 = math.tanh %9 : vector<8x1024xf32>
    %11 = arith.mulf %10, %3 : vector<8x1024xf32>
    %12 = arith.truncf %11 : vector<8x1024xf32> to vector<8x1024xbf16>
    %c0_10 = arith.constant 0 : index
    %c0_11 = arith.constant 0 : index
    %13 = vector.load %arg6[%c0_10, %c0_11] : memref<1024x768xbf16, #tpu.memory_space<vmem>>, vector<1024x768xbf16>
    %cst_12 = arith.constant dense<0.000000e+00> : vector<8x768xf32>
    %14 = tpu.matmul %12, %13, %cst_12 {dimension_numbers = #tpu.dot_dimension_numbers<[1], [0], [0], [1], [0, 0, 1, 1], [], []>} : vector<8x1024xbf16>, vector<1024x768xbf16>, vector<8x768xf32> -> vector<8x768xf32>
    %c0_13 = arith.constant 0 : index
    %c0_14 = arith.constant 0 : index
    %15 = vector.load %arg7[%c0_13, %c0_14] : memref<1x768xf32, #tpu.memory_space<vmem>>, vector<1x768xf32>
    %16 = vector.broadcast %15 : vector<1x768xf32> to vector<8x768xf32>
    %17 = arith.addf %14, %16 : vector<8x768xf32>
    %c0_15 = arith.constant 0 : index
    %c0_16 = arith.constant 0 : index
    %18 = vector.load %arg8[%c0_15, %c0_16] : memref<8x768xf32, #tpu.memory_space<vmem>>, vector<8x768xf32>
    tpu.vector_store %arg8[%c0_15, %c0_16], %17 {strides = array<i32>} : memref<8x768xf32, #tpu.memory_space<vmem>>, vector<8x768xf32>,
    return
  }
  func.func @transform_0(%arg0: i32) -> (i32, i32) {
    %c0_i32 = arith.constant 0 : i32
    %c0_i32_0 = arith.constant 0 : i32
    %c0_i32_1 = arith.constant 0 : i32
    return %c0_i32, %c0_i32_0 : i32, i32
  }
  func.func @transform_1(%arg0: i32) -> (i32, i32) {
    %c0_i32 = arith.constant 0 : i32
    %c0_i32_0 = arith.constant 0 : i32
    %c0_i32_1 = arith.constant 0 : i32
    return %c0_i32, %c0_i32_0 : i32, i32
  }
  func.func @transform_2(%arg0: i32) -> (i32, i32) {
    %c0_i32 = arith.constant 0 : i32
    %c0_i32_0 = arith.constant 0 : i32
    %c0_i32_1 = arith.constant 0 : i32
    return %c0_i32, %c0_i32_0 : i32, i32
  }
  func.func @transform_3(%arg0: i32) -> (i32, i32) {
    %c0_i32 = arith.constant 0 : i32
    %c0_i32_0 = arith.constant 0 : i32
    %c0_i32_1 = arith.constant 0 : i32
    return %c0_i32, %c0_i32_0 : i32, i32
  }
  func.func @transform_4(%arg0: i32) -> (i32, i32) {
    %c0_i32 = arith.constant 0 : i32
    %c0_i32_0 = arith.constant 0 : i32
    %c0_i32_1 = arith.constant 0 : i32
    return %c0_i32, %c0_i32_0 : i32, i32
  }
  func.func @transform_5(%arg0: i32) -> (i32, i32) {
    %c0_i32 = arith.constant 0 : i32
    %c0_i32_0 = arith.constant 0 : i32
    return %c0_i32, %arg0 : i32, i32
  }
  func.func @transform_6(%arg0: i32) -> (i32, i32) {
    %c0_i32 = arith.constant 0 : i32
    %c0_i32_0 = arith.constant 0 : i32
    return %c0_i32, %arg0 : i32, i32
  }
  func.func @transform_7(%arg0: i32) -> (i32, i32) {
    %c0_i32 = arith.constant 0 : i32
    %c0_i32_0 = arith.constant 0 : i32
    return %c0_i32, %arg0 : i32, i32
  }
}

</mosaic_0001>

<llo_original>
// kernel: tpu_custom_call.1
$region0: #{tpu_custom_call.1}
  #allocation0 [shape = 'u32[]', space=smem, size = 0x4, offset = 0x4, fixed_abs, tag = 'smem constant byte address 0x4 - core index']
  #allocation1 [shape = 'u32[72,128]{1,0:T(1,128)}', space=vmem, size = 0x9000, scoped, tag = 'internal scratch']
  %s0 = inlined_call_operand.hbm [shape: bf16[8,64], index: 0, kind: input, shape index: {}]
  %s1 = inlined_call_operand.hbm [shape: bf16[64,1024], index: 1, kind: input, shape index: {}]
  %s2 = inlined_call_operand.hbm [shape: bf16[8,512], index: 2, kind: input, shape index: {}]
  %s3 = inlined_call_operand.hbm [shape: bf16[512,1024], index: 3, kind: input, shape index: {}]
  %s4 = inlined_call_operand.hbm [shape: f32[1,1024], index: 4, kind: input, shape index: {}]
  %s5 = inlined_call_operand.hbm [shape: bf16[1024,3072], index: 5, kind: input, shape index: {}]
  %s6 = inlined_call_operand.hbm [shape: f32[1,3072], index: 6, kind: input, shape index: {}]
  %s7 = inlined_call_operand.hbm [shape: f32[8,3072], index: 7, kind: output, shape index: {}]
  %s8 = sld [smem:[#allocation0]]
  $region89: #{tpu_custom_call.1} parent=0
    _
  %s10 = ssub.s32 1, %s8
  %s11 = scalar_select 0, %s10, %s8
  $region1: #{tpu_custom_call.1} parent=0
    #allocation2 [shape = 'u8[2048]{0}', space=vmem, size = 0x800, scoped, tag = 'input window, operand 0, single buffered']
    #allocation3 [shape = 's32[2]{0}', space=sflag, size = 0x8, scoped, tag = 'scoped memory for tpu_custom_call.1']
    #allocation4 [shape = 's32[2]{0}', space=sflag, size = 0x8, scoped, tag = 'scoped memory for tpu_custom_call.1']
    #allocation5 [shape = 'u8[131072]{0}', space=vmem, size = 0x20000, scoped, tag = 'input window, operand 1, single buffered']
    #allocation6 [shape = 's32[1]{0}', space=sflag, size = 0x4, scoped, tag = 'scoped memory for tpu_custom_call.1']
    #allocation7 [shape = 'u8[8192]{0}', space=vmem, size = 0x2000, scoped, tag = 'input window, operand 2, single buffered']
    #allocation8 [shape = 'u8[1048576]{0}', space=vmem, size = 0x100000, scoped, tag = 'input window, operand 3, single buffered']
    #allocation9 [shape = 's32[1]{0}', space=sflag, size = 0x4, scoped, tag = 'scoped memory for tpu_custom_call.1']
    #allocation10 [shape = 'u8[4096]{0}', space=vmem, size = 0x1000, scoped, tag = 'input window, operand 4, single buffered']
    #allocation11 [shape = 'u8[3145728]{0}', space=vmem, size = 0x300000, scoped, tag = 'input window, operand 5']
    #allocation12 [shape = 's32[2]{0}', space=sflag, size = 0x8, scoped, tag = 'scoped memory for tpu_custom_call.1']
    #allocation13 [shape = 'u8[6144]{0}', space=vmem, size = 0x1800, scoped, tag = 'input window, operand 6']
    #allocation14 [shape = 'u8[49152]{0}', space=vmem, size = 0xc000, scoped, tag = 'output window, operand 0']
    %12 = vsyncpa [#allocation3], 0
    %13 = vsyncpa [#allocation6], 0
    %14 = vsyncpa [#allocation9], 0
    %15 = vsyncpa [#allocation12], 0
    %s16 = scalar_lea.sflag [#allocation12], 1
    %17 = vsyncpa %s16, 0
    %18 = vsyncpa [#allocation4], 0
    %s19 = scalar_lea.sflag [#allocation4], 1
    %20 = vsyncpa %s19, 0
    loop: start=0, step=1, limit=6
    $region2: #{tpu_custom_call.1} parent=1 // loop_pre_header
      _
    $region3: #{tpu_custom_call.1} parent=1 // loop_header
      %s22 = sphi 0, %s26
      %p23 = scmp.ge.s32.totalorder %s22, 6
      %s30 = sphi 0, %s30
      %s32 = sphi 0, %s30
      %s33 = sphi 0, %s32
      %s47 = sphi 0, %s33
      %s51 = sphi 0, %s51
      %s53 = sphi 0, %s51
      %s54 = sphi 0, %s53
      %s68 = sphi 0, %s54
      %s72 = sphi 0, %s72
      %s74 = sphi 0, %s72
      %s75 = sphi 0, %s74
      %s89 = sphi 0, %s75
      %s93 = sphi 0, %s93
      %s95 = sphi 0, %s93
      %s96 = sphi 0, %s95
      %s110 = sphi 0, %s96
      %s114 = sphi 0, %s114
      %s116 = sphi 0, %s114
      %s117 = sphi 0, %s116
      %s131 = sphi 0, %s117
      %s137 = sphi 0, %s139
      %s140 = sphi 0, %s137
      %s141 = sphi 0, %s140
      %s157 = sphi 0, %s141
      %s163 = sphi 0, %s165
      %s166 = sphi 0, %s163
      %s167 = sphi 0, %s166
      %s183 = sphi 0, %s167
      %s189 = sphi 0, %s191
      %s192 = sphi 0, %s189
      %s193 = sphi 0, %s192
      %s209 = sphi 0, %s193
    $region4: #{tpu_custom_call.1} parent=1 // loop_header_branch
      %25 = sbr.rel (%p23) target = $region8
    $region5: #{tpu_custom_call.1} parent=1 // loop_body
      %s27 = ssub.s32 %s22, 1
      %s28 = ssub.s32 %s22, 2
      %s29 = sadd.s32 %s22, 1
      %s31 = sadd.s32 %s30, 1
      %p34 = scmp.eq.s32.totalorder %s22, 3
      %p35 = scmp.ne.s32.totalorder %s30, %s32
      %p36 = scmp.eq.s32.totalorder %s22, 0
      %p37 = por %p35, %p36
      %p38 = scmp.ne.s32.totalorder %s30, %s32
      %p39 = scmp.eq.s32.totalorder %s27, 3
      %p40 = por %p38, %p39
      %p41 = scmp.ne.s32.totalorder %s32, %s33
      %p42 = scmp.eq.s32.totalorder %s27, 0
      %p43 = por %p41, %p42
      %p44 = scmp.ne.s32.totalorder %s32, %s33
      %p45 = scmp.eq.s32.totalorder %s28, 3
      %p46 = por %p44, %p45
      %p48 = scmp.ne.s32.totalorder %s33, %s47
      %p49 = scmp.eq.s32.totalorder %s28, 0
      %p50 = por %p48, %p49
      %s52 = sadd.s32 %s51, 1
      %p55 = scmp.eq.s32.totalorder %s22, 3
      %p56 = scmp.ne.s32.totalorder %s51, %s53
      %p57 = scmp.eq.s32.totalorder %s22, 0
      %p58 = por %p56, %p57
      %p59 = scmp.ne.s32.totalorder %s51, %s53
      %p60 = scmp.eq.s32.totalorder %s27, 3
      %p61 = por %p59, %p60
      %p62 = scmp.ne.s32.totalorder %s53, %s54
      %p63 = scmp.eq.s32.totalorder %s27, 0
      %p64 = por %p62, %p63
      %p65 = scmp.ne.s32.totalorder %s53, %s54
      %p66 = scmp.eq.s32.totalorder %s28, 3
      %p67 = por %p65, %p66
      %p69 = scmp.ne.s32.totalorder %s54, %s68
      %p70 = scmp.eq.s32.totalorder %s28, 0
      %p71 = por %p69, %p70
      %s73 = sadd.s32 %s72, 1
      %p76 = scmp.eq.s32.totalorder %s22, 3
      %p77 = scmp.ne.s32.totalorder %s72, %s74
      %p78 = scmp.eq.s32.totalorder %s22, 0
      %p79 = por %p77, %p78
      %p80 = scmp.ne.s32.totalorder %s72, %s74
      %p81 = scmp.eq.s32.totalorder %s27, 3
      %p82 = por %p80, %p81
      %p83 = scmp.ne.s32.totalorder %s74, %s75
      %p84 = scmp.eq.s32.totalorder %s27, 0
      %p85 = por %p83, %p84
      %p86 = scmp.ne.s32.totalorder %s74, %s75
      %p87 = scmp.eq.s32.totalorder %s28, 3
      %p88 = por %p86, %p87
      %p90 = scmp.ne.s32.totalorder %s75, %s89
      %p91 = scmp.eq.s32.totalorder %s28, 0
      %p92 = por %p90, %p91
      %s94 = sadd.s32 %s93, 1
      %p97 = scmp.eq.s32.totalorder %s22, 3
      %p98 = scmp.ne.s32.totalorder %s93, %s95
      %p99 = scmp.eq.s32.totalorder %s22, 0
      %p100 = por %p98, %p99
      %p101 = scmp.ne.s32.totalorder %s93, %s95
      %p102 = scmp.eq.s32.totalorder %s27, 3
      %p103 = por %p101, %p102
      %p104 = scmp.ne.s32.totalorder %s95, %s96
      %p105 = scmp.eq.s32.totalorder %s27, 0
      %p106 = por %p104, %p105
      %p107 = scmp.ne.s32.totalorder %s95, %s96
      %p108 = scmp.eq.s32.totalorder %s28, 3
      %p109 = por %p107, %p108
      %p111 = scmp.ne.s32.totalorder %s96, %s110
      %p112 = scmp.eq.s32.totalorder %s28, 0
      %p113 = por %p111, %p112
      %s115 = sadd.s32 %s114, 1
      %p118 = scmp.eq.s32.totalorder %s22, 3
      %p119 = scmp.ne.s32.totalorder %s114, %s116
      %p120 = scmp.eq.s32.totalorder %s22, 0
      %p121 = por %p119, %p120
      %p122 = scmp.ne.s32.totalorder %s114, %s116
      %p123 = scmp.eq.s32.totalorder %s27, 3
      %p124 = por %p122, %p123
      %p125 = scmp.ne.s32.totalorder %s116, %s117
      %p126 = scmp.eq.s32.totalorder %s27, 0
      %p127 = por %p125, %p126
      %p128 = scmp.ne.s32.totalorder %s116, %s117
      %p129 = scmp.eq.s32.totalorder %s28, 3
      %p130 = por %p128, %p129
      %p132 = scmp.ne.s32.totalorder %s117, %s131
      %p133 = scmp.eq.s32.totalorder %s28, 0
      %p134 = por %p132, %p133
      %s135 = ssub.s32 %s22, %s29
      %p136 = scmp.eq.s32.totalorder %s135, 0
      %s138 = sadd.s32 %s137, 1
      %s139 = scalar_select %p136, %s137, %s138
      %p142 = pneg %p136
      %p143 = scmp.eq.s32.totalorder %s22, 3
      %p144 = por %p142, %p143
      %p145 = scmp.ne.s32.totalorder %s137, %s140
      %p146 = scmp.eq.s32.totalorder %s22, 0
      %p147 = por %p145, %p146
      %p148 = scmp.ne.s32.totalorder %s137, %s140
      %p149 = scmp.eq.s32.totalorder %s27, 3
      %p150 = por %p148, %p149
      %p151 = scmp.ne.s32.totalorder %s140, %s141
      %p152 = scmp.eq.s32.totalorder %s27, 0
      %p153 = por %p151, %p152
      %p154 = scmp.ne.s32.totalorder %s140, %s141
      %p155 = scmp.eq.s32.totalorder %s28, 3
      %p156 = por %p154, %p155
      %p158 = scmp.ne.s32.totalorder %s141, %s157
      %p159 = scmp.eq.s32.totalorder %s28, 0
      %p160 = por %p158, %p159
      %s161 = ssub.s32 %s22, %s29
      %p162 = scmp.eq.s32.totalorder %s161, 0
      %s164 = sadd.s32 %s163, 1
      %s165 = scalar_select %p162, %s163, %s164
      %p168 = pneg %p162
      %p169 = scmp.eq.s32.totalorder %s22, 3
      %p170 = por %p168, %p169
      %p171 = scmp.ne.s32.totalorder %s163, %s166
      %p172 = scmp.eq.s32.totalorder %s22, 0
      %p173 = por %p171, %p172
      %p174 = scmp.ne.s32.totalorder %s163, %s166
      %p175 = scmp.eq.s32.totalorder %s27, 3
      %p176 = por %p174, %p175
      %p177 = scmp.ne.s32.totalorder %s166, %s167
      %p178 = scmp.eq.s32.totalorder %s27, 0
      %p179 = por %p177, %p178
      %p180 = scmp.ne.s32.totalorder %s166, %s167
      %p181 = scmp.eq.s32.totalorder %s28, 3
      %p182 = por %p180, %p181
      %p184 = scmp.ne.s32.totalorder %s167, %s183
      %p185 = scmp.eq.s32.totalorder %s28, 0
      %p186 = por %p184, %p185
      %s187 = ssub.s32 %s22, %s29
      %p188 = scmp.eq.s32.totalorder %s187, 0
      %s190 = sadd.s32 %s189, 1
      %s191 = scalar_select %p188, %s189, %s190
      %p194 = pneg %p188
      %p195 = scmp.eq.s32.totalorder %s22, 3
      %p196 = por %p194, %p195
      %p197 = scmp.ne.s32.totalorder %s189, %s192
      %p198 = scmp.eq.s32.totalorder %s22, 0
      %p199 = por %p197, %p198
      %p200 = scmp.ne.s32.totalorder %s189, %s192
      %p201 = scmp.eq.s32.totalorder %s27, 3
      %p202 = por %p200, %p201
      %p203 = scmp.ne.s32.totalorder %s192, %s193
      %p204 = scmp.eq.s32.totalorder %s27, 0
      %p205 = por %p203, %p204
      %p206 = scmp.ne.s32.totalorder %s192, %s193
      %p207 = scmp.eq.s32.totalorder %s28, 3
      %p208 = por %p206, %p207
      %p210 = scmp.ne.s32.totalorder %s193, %s209
      %p211 = scmp.eq.s32.totalorder %s28, 0
      %p212 = por %p210, %p211
      %p213 = scmp.le.s32.totalorder 1, %s22
      %p214 = scmp.lt.s32.totalorder %s22, 5
      %p215 = pnand %p213, %p214
      %p216 = pneg %p215
      // Predicated region
      $region9: #{tpu_custom_call.1} parent=5 // pred_check
        _
      $region10: #{tpu_custom_call.1} parent=5 // pred_check_branch
        %218 = sbr.rel (%p215) target = $region12
      $region11: #{tpu_custom_call.1} parent=5 // pred_region
        %s219 = ssub.s32 %s22, 1
        // Predicated region
        $region13: #{tpu_custom_call.1} parent=11 // pred_check
          %p220 = pneg %p43
        $region14: #{tpu_custom_call.1} parent=11 // pred_check_branch
          %222 = sbr.rel (%p220) target = $region16
        $region15: #{tpu_custom_call.1} parent=11 // pred_region
          %224 = vsyncadd [#allocation3], 0
          %s226 = sshll.u32 %s0, 4
          %s227 = int_to_ptr.hbm [resolvable:$true] %s226
          %s228 = sshll.u32 [#allocation2], 4
          %s229 = int_to_ptr.vmem [resolvable:$true] %s228
          %231 = dma.hbm_to_vmem [thread:$0]  %s227, 64, %s229, [#allocation3]
        $region16: #{tpu_custom_call.1} parent=11 // pred_fallthru
          _
        // Predicated region
        $region17: #{tpu_custom_call.1} parent=11 // pred_check
          %p232 = pneg %p64
        $region18: #{tpu_custom_call.1} parent=11 // pred_check_branch
          %234 = sbr.rel (%p232) target = $region20
        $region19: #{tpu_custom_call.1} parent=11 // pred_region
          %236 = vsyncadd [#allocation6], 0
          %s237 = sshll.u32 %s1, 4
          %s238 = int_to_ptr.hbm [resolvable:$true] %s237
          %s239 = sshll.u32 [#allocation5], 4
          %s240 = int_to_ptr.vmem [resolvable:$true] %s239
          %245 = dma.hbm_to_vmem [thread:$0]  %s238, 4096, %s240, [#allocation6], 512, 512, 32
        $region20: #{tpu_custom_call.1} parent=11 // pred_fallthru
          _
        // Predicated region
        $region21: #{tpu_custom_call.1} parent=11 // pred_check
          %p246 = pneg %p85
        $region22: #{tpu_custom_call.1} parent=11 // pred_check_branch
          %248 = sbr.rel (%p246) target = $region24
        $region23: #{tpu_custom_call.1} parent=11 // pred_region
          %250 = vsyncadd [#allocation6], 0
          %s252 = sshll.u32 %s2, 4
          %s253 = int_to_ptr.hbm [resolvable:$true] %s252
          %s254 = sshll.u32 [#allocation7], 4
          %s255 = int_to_ptr.vmem [resolvable:$true] %s254
          %257 = dma.hbm_to_vmem [thread:$0]  %s253, 256, %s255, [#allocation6]
        $region24: #{tpu_custom_call.1} parent=11 // pred_fallthru
          _
        // Predicated region
        $region25: #{tpu_custom_call.1} parent=11 // pred_check
          %p258 = pneg %p106
        $region26: #{tpu_custom_call.1} parent=11 // pred_check_branch
          %260 = sbr.rel (%p258) target = $region28
        $region27: #{tpu_custom_call.1} parent=11 // pred_region
          %262 = vsyncadd [#allocation9], 0
          %s263 = sshll.u32 %s3, 4
          %s264 = int_to_ptr.hbm [resolvable:$true] %s263
          %s265 = sshll.u32 [#allocation8], 4
          %s266 = int_to_ptr.vmem [resolvable:$true] %s265
          %271 = dma.hbm_to_vmem [thread:$0]  %s264, 32768, %s266, [#allocation9], 512, 512, 32
        $region28: #{tpu_custom_call.1} parent=11 // pred_fallthru
          _
        // Predicated region
        $region29: #{tpu_custom_call.1} parent=11 // pred_check
          %p272 = pneg %p127
        $region30: #{tpu_custom_call.1} parent=11 // pred_check_branch
          %274 = sbr.rel (%p272) target = $region32
        $region31: #{tpu_custom_call.1} parent=11 // pred_region
          %276 = vsyncadd [#allocation9], 0
          %s278 = sshll.u32 %s4, 4
          %s279 = int_to_ptr.hbm [resolvable:$true] %s278
          %s280 = sshll.u32 [#allocation10], 4
          %s281 = int_to_ptr.vmem [resolvable:$true] %s280
          %283 = dma.hbm_to_vmem [thread:$0]  %s279, 128, %s281, [#allocation9]
        $region32: #{tpu_custom_call.1} parent=11 // pred_fallthru
          _
      $region12: #{tpu_custom_call.1} parent=5 // pred_fallthru
        _
      %p284 = scmp.lt.s32.totalorder %s22, 4
      // Predicated region
      $region33: #{tpu_custom_call.1} parent=5 // pred_check
        %p285 = pneg %p284
      $region34: #{tpu_custom_call.1} parent=5 // pred_check_branch
        %287 = sbr.rel (%p285) target = $region36
      $region35: #{tpu_custom_call.1} parent=5 // pred_region
        // Predicated region
        $region37: #{tpu_custom_call.1} parent=35 // pred_check
          %p288 = pneg %p147
        $region38: #{tpu_custom_call.1} parent=35 // pred_check_branch
          %290 = sbr.rel (%p288) target = $region40
        $region39: #{tpu_custom_call.1} parent=35 // pred_region
          %s291 = sand.u32 %s22, 1
          %s292 = scalar_lea.sflag [#allocation12], %s291
          %s293 = sand.u32 %s137, 1
          %s294 = smul.addr %s293, 3072
          %s295 = scalar_lea.vmem [#allocation11], %s294
          %s296 = smul.u32 6, %s22
          %298 = vsyncadd %s292, 0
          %s299 = smul.addr %s296, 4
          %s300 = scalar_lea.hbm %s5, %s299
          %s301 = sshll.u32 %s300, 4
          %s302 = int_to_ptr.hbm [resolvable:$true] %s301
          %s303 = sshll.u32 %s295, 4
          %s304 = int_to_ptr.vmem [resolvable:$true] %s303
          %309 = dma.hbm_to_vmem [thread:$0]  %s302, 49152, %s304, %s292, 1536, 384, 24
        $region40: #{tpu_custom_call.1} parent=35 // pred_fallthru
          _
        // Predicated region
        $region41: #{tpu_custom_call.1} parent=35 // pred_check
          %p310 = pneg %p173
        $region42: #{tpu_custom_call.1} parent=35 // pred_check_branch
          %312 = sbr.rel (%p310) target = $region44
        $region43: #{tpu_custom_call.1} parent=35 // pred_region
          %s313 = sand.u32 %s22, 1
          %s314 = scalar_lea.sflag [#allocation12], %s313
          %s315 = sand.u32 %s163, 1
          %s316 = smul.addr %s315, 6
          %s317 = scalar_lea.vmem [#allocation13], %s316
          %s318 = smul.u32 6, %s22
          %320 = vsyncadd %s314, 0
          %s321 = scalar_lea.hbm %s6, %s318
          %s323 = sshll.u32 %s321, 4
          %s324 = int_to_ptr.hbm [resolvable:$true] %s323
          %s325 = sshll.u32 %s317, 4
          %s326 = int_to_ptr.vmem [resolvable:$true] %s325
          %328 = dma.hbm_to_vmem [thread:$0]  %s324, 96, %s326, %s314
        $region44: #{tpu_custom_call.1} parent=35 // pred_fallthru
          _
      $region36: #{tpu_custom_call.1} parent=5 // pred_fallthru
        _
      %p329 = scmp.le.s32.totalorder 1, %s22
      %p330 = scmp.lt.s32.totalorder %s22, 5
      %p331 = pnand %p329, %p330
      %p332 = pneg %p331
      // Predicated region
      $region45: #{tpu_custom_call.1} parent=5 // pred_check
        _
      $region46: #{tpu_custom_call.1} parent=5 // pred_check_branch
        %334 = sbr.rel (%p331) target = $region48
      $region47: #{tpu_custom_call.1} parent=5 // pred_region
        %s335 = ssub.s32 %s22, 1
        // Predicated region
        $region49: #{tpu_custom_call.1} parent=47 // pred_check
          %p336 = pneg %p43
        $region50: #{tpu_custom_call.1} parent=47 // pred_check_branch
          %338 = sbr.rel (%p336) target = $region52
        $region51: #{tpu_custom_call.1} parent=47 // pred_region
          %340 = dma.done [#allocation3], 64
        $region52: #{tpu_custom_call.1} parent=47 // pred_fallthru
          _
        // Predicated region
        $region53: #{tpu_custom_call.1} parent=47 // pred_check
          %p341 = pneg %p64
        $region54: #{tpu_custom_call.1} parent=47 // pred_check_branch
          %343 = sbr.rel (%p341) target = $region56
        $region55: #{tpu_custom_call.1} parent=47 // pred_region
          %345 = dma.done [#allocation6], 4096
        $region56: #{tpu_custom_call.1} parent=47 // pred_fallthru
          _
        // Predicated region
        $region57: #{tpu_custom_call.1} parent=47 // pred_check
          %p346 = pneg %p85
        $region58: #{tpu_custom_call.1} parent=47 // pred_check_branch
          %348 = sbr.rel (%p346) target = $region60
        $region59: #{tpu_custom_call.1} parent=47 // pred_region
          %350 = dma.done [#allocation6], 256
        $region60: #{tpu_custom_call.1} parent=47 // pred_fallthru
          _
        // Predicated region
        $region61: #{tpu_custom_call.1} parent=47 // pred_check
          %p351 = pneg %p106
        $region62: #{tpu_custom_call.1} parent=47 // pred_check_branch
          %353 = sbr.rel (%p351) target = $region64
        $region63: #{tpu_custom_call.1} parent=47 // pred_region
          %355 = dma.done [#allocation9], 32768
        $region64: #{tpu_custom_call.1} parent=47 // pred_fallthru
          _
        // Predicated region
        $region65: #{tpu_custom_call.1} parent=47 // pred_check
          %p356 = pneg %p127
        $region66: #{tpu_custom_call.1} parent=47 // pred_check_branch
          %358 = sbr.rel (%p356) target = $region68
        $region67: #{tpu_custom_call.1} parent=47 // pred_region
          %360 = dma.done [#allocation9], 128
        $region68: #{tpu_custom_call.1} parent=47 // pred_fallthru
          _
        %s361 = sand.u32 %s27, 1
        %s362 = scalar_lea.sflag [#allocation12], %s361
        %s363 = sand.u32 %s140, 1
        %s364 = smul.addr %s363, 3072
        %s365 = scalar_lea.vmem [#allocation11], %s364
        // Predicated region
        $region69: #{tpu_custom_call.1} parent=47 // pred_check
          %p366 = pneg %p153
        $region70: #{tpu_custom_call.1} parent=47 // pred_check_branch
          %368 = sbr.rel (%p366) target = $region72
        $region71: #{tpu_custom_call.1} parent=47 // pred_region
          %370 = dma.done %s362, 49152
        $region72: #{tpu_custom_call.1} parent=47 // pred_fallthru
          _
        %s371 = sand.u32 %s27, 1
        %s372 = scalar_lea.sflag [#allocation12], %s371
        %s373 = sand.u32 %s166, 1
        %s374 = smul.addr %s373, 6
        %s375 = scalar_lea.vmem [#allocation13], %s374
        // Predicated region
        $region73: #{tpu_custom_call.1} parent=47 // pred_check
          %p376 = pneg %p179
        $region74: #{tpu_custom_call.1} parent=47 // pred_check_branch
          %378 = sbr.rel (%p376) target = $region76
        $region75: #{tpu_custom_call.1} parent=47 // pred_region
          %380 = dma.done %s372, 96
        $region76: #{tpu_custom_call.1} parent=47 // pred_fallthru
          _
        %p381 = pneg %p43
        %p382 = pneg %p40
        %p383 = pneg %p64
        %p384 = pneg %p61
        %p385 = pneg %p85
        %p386 = pneg %p82
        %p387 = pneg %p106
        %p388 = pneg %p103
        %p389 = pneg %p127
        %p390 = pneg %p124
        %s391 = sand.u32 %s27, 1
        %s392 = scalar_lea.sflag [#allocation12], %s391
        %s393 = sand.u32 %s140, 1
        %s394 = smul.addr %s393, 3072
        %s395 = scalar_lea.vmem [#allocation11], %s394
        %p396 = pneg %p153
        %p397 = pneg %p150
        %s398 = sand.u32 %s27, 1
        %s399 = scalar_lea.sflag [#allocation12], %s398
        %s400 = sand.u32 %s166, 1
        %s401 = smul.addr %s400, 6
        %s402 = scalar_lea.vmem [#allocation13], %s401
        %p403 = pneg %p179
        %p404 = pneg %p176
        %p405 = pneg %p205
        %p406 = pneg %p202
        %s407 = sand.u32 %s192, 1
        %s408 = scalar_lea.sflag [#allocation4], %s407
        %s409 = sand.u32 %s192, 1
        %s410 = smul.addr %s409, 48
        %s411 = scalar_lea.vmem [#allocation14], %s410
        %s412 = smul.u32 6, %s27
        %s413 = smul.u32 6, %s27
        %s414 = smul.u32 6, %s27
        %v416 = vld [vmem:[#allocation2] sm:$0xf]
        %v417 = vld [vmem:[#allocation5] sm:$0xff]
        %v418 = vld [vmem:[#allocation5 + $0x8] sm:$0xff]
        %v419 = vld [vmem:[#allocation5 + $0x10] sm:$0xff]
        %v420 = vld [vmem:[#allocation5 + $0x18] sm:$0xff]
        %v421 = vld [vmem:[#allocation5 + $0x20] sm:$0xff]
        %v422 = vld [vmem:[#allocation5 + $0x28] sm:$0xff]
        %v423 = vld [vmem:[#allocation5 + $0x30] sm:$0xff]
        %v424 = vld [vmem:[#allocation5 + $0x38] sm:$0xff]
        %v425 = vld [vmem:[#allocation5 + $0x40] sm:$0xff]
        %v426 = vld [vmem:[#allocation5 + $0x48] sm:$0xff]
        %v427 = vld [vmem:[#allocation5 + $0x50] sm:$0xff]
        %v428 = vld [vmem:[#allocation5 + $0x58] sm:$0xff]
        %v429 = vld [vmem:[#allocation5 + $0x60] sm:$0xff]
        %v430 = vld [vmem:[#allocation5 + $0x68] sm:$0xff]
        %v431 = vld [vmem:[#allocation5 + $0x70] sm:$0xff]
        %v432 = vld [vmem:[#allocation5 + $0x78] sm:$0xff]
        %v433 = vld [vmem:[#allocation5 + $0x80] sm:$0xff]
        %v434 = vld [vmem:[#allocation5 + $0x88] sm:$0xff]
        %v435 = vld [vmem:[#allocation5 + $0x90] sm:$0xff]
        %v436 = vld [vmem:[#allocation5 + $0x98] sm:$0xff]
        %v437 = vld [vmem:[#allocation5 + $0xa0] sm:$0xff]
        %v438 = vld [vmem:[#allocation5 + $0xa8] sm:$0xff]
        %v439 = vld [vmem:[#allocation5 + $0xb0] sm:$0xff]
        %v440 = vld [vmem:[#allocation5 + $0xb8] sm:$0xff]
        %v441 = vld [vmem:[#allocation5 + $0xc0] sm:$0xff]
        %v442 = vld [vmem:[#allocation5 + $0xc8] sm:$0xff]
        %v443 = vld [vmem:[#allocation5 + $0xd0] sm:$0xff]
        %v444 = vld [vmem:[#allocation5 + $0xd8] sm:$0xff]
        %v445 = vld [vmem:[#allocation5 + $0xe0] sm:$0xff]
        %v446 = vld [vmem:[#allocation5 + $0xe8] sm:$0xff]
        %v447 = vld [vmem:[#allocation5 + $0xf0] sm:$0xff]
        %v448 = vld [vmem:[#allocation5 + $0xf8] sm:$0xff]
        %v481 = vunpack.c.l.b16 %v417
        %v482 = vunpack.c.h.b16 %v417
        %v483 = vunpack.c.l.b16 %v418
        %v484 = vunpack.c.h.b16 %v418
        %v485 = vunpack.c.l.b16 %v419
        %v486 = vunpack.c.h.b16 %v419
        %v487 = vunpack.c.l.b16 %v420
        %v488 = vunpack.c.h.b16 %v420
        %v489 = vunpack.c.l.b16 %v421
        %v490 = vunpack.c.h.b16 %v421
        %v491 = vunpack.c.l.b16 %v422
        %v492 = vunpack.c.h.b16 %v422
        %v493 = vunpack.c.l.b16 %v423
        %v494 = vunpack.c.h.b16 %v423
        %v495 = vunpack.c.l.b16 %v424
        %v496 = vunpack.c.h.b16 %v424
        %v497 = vunpack.c.l.b16 %v425
        %v498 = vunpack.c.h.b16 %v425
        %v499 = vunpack.c.l.b16 %v426
        %v500 = vunpack.c.h.b16 %v426
        %v501 = vunpack.c.l.b16 %v427
        %v502 = vunpack.c.h.b16 %v427
        %v503 = vunpack.c.l.b16 %v428
        %v504 = vunpack.c.h.b16 %v428
        %v505 = vunpack.c.l.b16 %v429
        %v506 = vunpack.c.h.b16 %v429
        %v507 = vunpack.c.l.b16 %v430
        %v508 = vunpack.c.h.b16 %v430
        %v509 = vunpack.c.l.b16 %v431
        %v510 = vunpack.c.h.b16 %v431
        %v511 = vunpack.c.l.b16 %v432
        %v512 = vunpack.c.h.b16 %v432
        %v513 = vunpack.c.l.b16 %v433
        %v514 = vunpack.c.h.b16 %v433
        %v515 = vunpack.c.l.b16 %v434
        %v516 = vunpack.c.h.b16 %v434
        %v517 = vunpack.c.l.b16 %v435
        %v518 = vunpack.c.h.b16 %v435
        %v519 = vunpack.c.l.b16 %v436
        %v520 = vunpack.c.h.b16 %v436
        %v521 = vunpack.c.l.b16 %v437
        %v522 = vunpack.c.h.b16 %v437
        %v523 = vunpack.c.l.b16 %v438
        %v524 = vunpack.c.h.b16 %v438
        %v525 = vunpack.c.l.b16 %v439
        %v526 = vunpack.c.h.b16 %v439
        %v527 = vunpack.c.l.b16 %v440
        %v528 = vunpack.c.h.b16 %v440
        %v529 = vunpack.c.l.b16 %v441
        %v530 = vunpack.c.h.b16 %v441
        %v531 = vunpack.c.l.b16 %v442
        %v532 = vunpack.c.h.b16 %v442
        %v533 = vunpack.c.l.b16 %v443
        %v534 = vunpack.c.h.b16 %v443
        %v535 = vunpack.c.l.b16 %v444
        %v536 = vunpack.c.h.b16 %v444
        %v537 = vunpack.c.l.b16 %v445
        %v538 = vunpack.c.h.b16 %v445
        %v539 = vunpack.c.l.b16 %v446
        %v540 = vunpack.c.h.b16 %v446
        %v541 = vunpack.c.l.b16 %v447
        %v542 = vunpack.c.h.b16 %v447
        %v543 = vunpack.c.l.b16 %v448
        %v544 = vunpack.c.h.b16 %v448
        %v545 = vpack.c.b16 %v489, %v481
        %v546 = vpack.c.b16 %v490, %v482
        %v547 = vpack.c.b16 %v491, %v483
        %v548 = vpack.c.b16 %v492, %v484
        %v549 = vpack.c.b16 %v493, %v485
        %v550 = vpack.c.b16 %v494, %v486
        %v551 = vpack.c.b16 %v495, %v487
        %v552 = vpack.c.b16 %v496, %v488
        %v553 = vpack.c.b16 %v505, %v497
        %v554 = vpack.c.b16 %v506, %v498
        %v555 = vpack.c.b16 %v507, %v499
        %v556 = vpack.c.b16 %v508, %v500
        %v557 = vpack.c.b16 %v509, %v501
        %v558 = vpack.c.b16 %v510, %v502
        %v559 = vpack.c.b16 %v511, %v503
        %v560 = vpack.c.b16 %v512, %v504
        %v561 = vpack.c.b16 %v521, %v513
        %v562 = vpack.c.b16 %v522, %v514
        %v563 = vpack.c.b16 %v523, %v515
        %v564 = vpack.c.b16 %v524, %v516
        %v565 = vpack.c.b16 %v525, %v517
        %v566 = vpack.c.b16 %v526, %v518
        %v567 = vpack.c.b16 %v527, %v519
        %v568 = vpack.c.b16 %v528, %v520
        %v569 = vpack.c.b16 %v537, %v529
        %v570 = vpack.c.b16 %v538, %v530
        %v571 = vpack.c.b16 %v539, %v531
        %v572 = vpack.c.b16 %v540, %v532
        %v573 = vpack.c.b16 %v541, %v533
        %v574 = vpack.c.b16 %v542, %v534
        %v575 = vpack.c.b16 %v543, %v535
        %v576 = vpack.c.b16 %v544, %v536
        %vm609 = vcmask 523264
        %v611 = vsel %vm609, %v416, 0
        %613 = vmatpush.bf16.msra.mxu0 0
        %614 = vmatpush.bf16.msra.mxu0 0
        %615 = vmatpush.bf16.msra.mxu0 0
        %616 = vmatpush.bf16.msra.mxu0 0
        %617 = vmatpush.bf16.msra.mxu0 %v569
        %618 = vmatpush.bf16.msra.mxu0 %v561
        %619 = vmatpush.bf16.msra.mxu0 %v553
        %620 = vmatpush.bf16.msra.mxu0 %v545
        %621 = vmatmul.bf16.gmra.mxu0 %v611
        %v622 = vpop.f32.mrf.mxu0
        %v623 = vadd.f32 0.0, %v622
        %v624 = vpop.f32.mrf.mxu0
        %625 = vdwg.mxu0
        %626 = vmatpush.bf16.msra.mxu0 0
        %627 = vmatpush.bf16.msra.mxu0 0
        %628 = vmatpush.bf16.msra.mxu0 0
        %629 = vmatpush.bf16.msra.mxu0 0
        %630 = vmatpush.bf16.msra.mxu0 %v570
        %631 = vmatpush.bf16.msra.mxu0 %v562
        %632 = vmatpush.bf16.msra.mxu0 %v554
        %633 = vmatpush.bf16.msra.mxu0 %v546
        %634 = vmatmul.bf16.gmra.mxu0 %v611
        %v635 = vpop.f32.mrf.mxu0
        %v636 = vadd.f32 0.0, %v635
        %v637 = vpop.f32.mrf.mxu0
        %638 = vdwg.mxu0
        %639 = vmatpush.bf16.msra.mxu0 0
        %640 = vmatpush.bf16.msra.mxu0 0
        %641 = vmatpush.bf16.msra.mxu0 0
        %642 = vmatpush.bf16.msra.mxu0 0
        %643 = vmatpush.bf16.msra.mxu0 %v571
        %644 = vmatpush.bf16.msra.mxu0 %v563
        %645 = vmatpush.bf16.msra.mxu0 %v555
        %646 = vmatpush.bf16.msra.mxu0 %v547
        %647 = vmatmul.bf16.gmra.mxu0 %v611
        %v648 = vpop.f32.mrf.mxu0
        %v649 = vadd.f32 0.0, %v648
        %v650 = vpop.f32.mrf.mxu0
        %651 = vdwg.mxu0
        %652 = vmatpush.bf16.msra.mxu0 0
        %653 = vmatpush.bf16.msra.mxu0 0
        %654 = vmatpush.bf16.msra.mxu0 0
        %655 = vmatpush.bf16.msra.mxu0 0
        %656 = vmatpush.bf16.msra.mxu0 %v572
        %657 = vmatpush.bf16.msra.mxu0 %v564
        %658 = vmatpush.bf16.msra.mxu0 %v556
        %659 = vmatpush.bf16.msra.mxu0 %v548
        %660 = vmatmul.bf16.gmra.mxu0 %v611
        %v661 = vpop.f32.mrf.mxu0
        %v662 = vadd.f32 0.0, %v661
        %v663 = vpop.f32.mrf.mxu0
        %664 = vdwg.mxu0
        %665 = vmatpush.bf16.msra.mxu0 0
        %666 = vmatpush.bf16.msra.mxu0 0
        %667 = vmatpush.bf16.msra.mxu0 0
        %668 = vmatpush.bf16.msra.mxu0 0
        %669 = vmatpush.bf16.msra.mxu0 %v573
        %670 = vmatpush.bf16.msra.mxu0 %v565
        %671 = vmatpush.bf16.msra.mxu0 %v557
        %672 = vmatpush.bf16.msra.mxu0 %v549
        %673 = vmatmul.bf16.gmra.mxu0 %v611
        %v674 = vpop.f32.mrf.mxu0
        %v675 = vadd.f32 0.0, %v674
        %v676 = vpop.f32.mrf.mxu0
        %677 = vdwg.mxu0
        %678 = vmatpush.bf16.msra.mxu0 0
        %679 = vmatpush.bf16.msra.mxu0 0
        %680 = vmatpush.bf16.msra.mxu0 0
        %681 = vmatpush.bf16.msra.mxu0 0
        %682 = vmatpush.bf16.msra.mxu0 %v574
        %683 = vmatpush.bf16.msra.mxu0 %v566
        %684 = vmatpush.bf16.msra.mxu0 %v558
        %685 = vmatpush.bf16.msra.mxu0 %v550
        %686 = vmatmul.bf16.gmra.mxu0 %v611
        %v687 = vpop.f32.mrf.mxu0
        %v688 = vadd.f32 0.0, %v687
        %v689 = vpop.f32.mrf.mxu0
        %690 = vdwg.mxu0
        %691 = vmatpush.bf16.msra.mxu0 0
        %692 = vmatpush.bf16.msra.mxu0 0
        %693 = vmatpush.bf16.msra.mxu0 0
        %694 = vmatpush.bf16.msra.mxu0 0
        %695 = vmatpush.bf16.msra.mxu0 %v575
        %696 = vmatpush.bf16.msra.mxu0 %v567
        %697 = vmatpush.bf16.msra.mxu0 %v559
        %698 = vmatpush.bf16.msra.mxu0 %v551
        %699 = vmatmul.bf16.gmra.mxu0 %v611
        %v700 = vpop.f32.mrf.mxu0
        %v701 = vadd.f32 0.0, %v700
        %v702 = vpop.f32.mrf.mxu0
        %703 = vdwg.mxu0
        %704 = vmatpush.bf16.msra.mxu0 0
        %705 = vmatpush.bf16.msra.mxu0 0
        %706 = vmatpush.bf16.msra.mxu0 0
        %707 = vmatpush.bf16.msra.mxu0 0
        %708 = vmatpush.bf16.msra.mxu0 %v576
        %709 = vmatpush.bf16.msra.mxu0 %v568
        %710 = vmatpush.bf16.msra.mxu0 %v560
        %711 = vmatpush.bf16.msra.mxu0 %v552
        %712 = vmatmul.bf16.gmra.mxu0 %v611
        %v713 = vpop.f32.mrf.mxu0
        %v714 = vadd.f32 0.0, %v713
        %v715 = vpop.f32.mrf.mxu0
        %716 = vdwg.mxu0
        %v717 = vtanh.pop %v623
        %v718 = vtanh.pop %v636
        %v719 = vtanh.pop %v649
        %v720 = vtanh.pop %v662
        %v721 = vtanh.pop %v675
        %v722 = vtanh.pop %v688
        %v723 = vtanh.pop %v701
        %v724 = vtanh.pop %v714
        %v725 = vld [vmem:[#allocation7] sm:$0xff]
        %v726 = vld [vmem:[#allocation7 + $0x8] sm:$0xff]
        %v727 = vld [vmem:[#allocation8] sm:$0xff]
        %v728 = vld [vmem:[#allocation8 + $0x8] sm:$0xff]
        %v729 = vld [vmem:[#allocation8 + $0x10] sm:$0xff]
        %v730 = vld [vmem:[#allocation8 + $0x18] sm:$0xff]
        %v731 = vld [vmem:[#allocation8 + $0x20] sm:$0xff]
        %v732 = vld [vmem:[#allocation8 + $0x28] sm:$0xff]
        %v733 = vld [vmem:[#allocation8 + $0x30] sm:$0xff]
        %v734 = vld [vmem:[#allocation8 + $0x38] sm:$0xff]
        %v735 = vld [vmem:[#allocation8 + $0x40] sm:$0xff]
        %v736 = vld [vmem:[#allocation8 + $0x48] sm:$0xff]
        %v737 = vld [vmem:[#allocation8 + $0x50] sm:$0xff]
        %v738 = vld [vmem:[#allocation8 + $0x58] sm:$0xff]
        %v739 = vld [vmem:[#allocation8 + $0x60] sm:$0xff]
        %v740 = vld [vmem:[#allocation8 + $0x68] sm:$0xff]
        %v741 = vld [vmem:[#allocation8 + $0x70] sm:$0xff]
        %v742 = vld [vmem:[#allocation8 + $0x78] sm:$0xff]
        %v743 = vld [vmem:[#allocation8 + $0x80] sm:$0xff]
        %v744 = vld [vmem:[#allocation8 + $0x88] sm:$0xff]
        %v745 = vld [vmem:[#allocation8 + $0x90] sm:$0xff]
        %v746 = vld [vmem:[#allocation8 + $0x98] sm:$0xff]
        %v747 = vld [vmem:[#allocation8 + $0xa0] sm:$0xff]
        %v748 = vld [vmem:[#allocation8 + $0xa8] sm:$0xff]
        %v749 = vld [vmem:[#allocation8 + $0xb0] sm:$0xff]
        %v750 = vld [vmem:[#allocation8 + $0xb8] sm:$0xff]
        %v751 = vld [vmem:[#allocation8 + $0xc0] sm:$0xff]
        %v752 = vld [vmem:[#allocation8 + $0xc8] sm:$0xff]
        %v753 = vld [vmem:[#allocation8 + $0xd0] sm:$0xff]
        %v754 = vld [vmem:[#allocation8 + $0xd8] sm:$0xff]
        %v755 = vld [vmem:[#allocation8 + $0xe0] sm:$0xff]
        %v756 = vld [vmem:[#allocation8 + $0xe8] sm:$0xff]
        %v757 = vld [vmem:[#allocation8 + $0xf0] sm:$0xff]
        %v758 = vld [vmem:[#allocation8 + $0xf8] sm:$0xff]
        %v759 = vld [vmem:[#allocation8 + $0x100] sm:$0xff]
        %v760 = vld [vmem:[#allocation8 + $0x108] sm:$0xff]
        %v761 = vld [vmem:[#allocation8 + $0x110] sm:$0xff]
        %v762 = vld [vmem:[#allocation8 + $0x118] sm:$0xff]
        %v763 = vld [vmem:[#allocation8 + $0x120] sm:$0xff]
        %v764 = vld [vmem:[#allocation8 + $0x128] sm:$0xff]
        %v765 = vld [vmem:[#allocation8 + $0x130] sm:$0xff]
        %v766 = vld [vmem:[#allocation8 + $0x138] sm:$0xff]
        %v767 = vld [vmem:[#allocation8 + $0x140] sm:$0xff]
        %v768 = vld [vmem:[#allocation8 + $0x148] sm:$0xff]
        %v769 = vld [vmem:[#allocation8 + $0x150] sm:$0xff]
        %v770 = vld [vmem:[#allocation8 + $0x158] sm:$0xff]
        %v771 = vld [vmem:[#allocation8 + $0x160] sm:$0xff]
        %v772 = vld [vmem:[#allocation8 + $0x168] sm:$0xff]
        %v773 = vld [vmem:[#allocation8 + $0x170] sm:$0xff]
        %v774 = vld [vmem:[#allocation8 + $0x178] sm:$0xff]
        %v775 = vld [vmem:[#allocation8 + $0x180] sm:$0xff]
        %v776 = vld [vmem:[#allocation8 + $0x188] sm:$0xff]
        %v777 = vld [vmem:[#allocation8 + $0x190] sm:$0xff]
        %v778 = vld [vmem:[#allocation8 + $0x198] sm:$0xff]
        %v779 = vld [vmem:[#allocation8 + $0x1a0] sm:$0xff]
        %v780 = vld [vmem:[#allocation8 + $0x1a8] sm:$0xff]
        %v781 = vld [vmem:[#allocation8 + $0x1b0] sm:$0xff]
        %v782 = vld [vmem:[#allocation8 + $0x1b8] sm:$0xff]
        %v783 = vld [vmem:[#allocation8 + $0x1c0] sm:$0xff]
        %v784 = vld [vmem:[#allocation8 + $0x1c8] sm:$0xff]
        %v785 = vld [vmem:[#allocation8 + $0x1d0] sm:$0xff]
        %v786 = vld [vmem:[#allocation8 + $0x1d8] sm:$0xff]
        %v787 = vld [vmem:[#allocation8 + $0x1e0] sm:$0xff]
        %v788 = vld [vmem:[#allocation8 + $0x1e8] sm:$0xff]
        %v789 = vld [vmem:[#allocation8 + $0x1f0] sm:$0xff]
        %v790 = vld [vmem:[#allocation8 + $0x1f8] sm:$0xff]
        %v791 = vld [vmem:[#allocation8 + $0x200] sm:$0xff]
        %v792 = vld [vmem:[#allocation8 + $0x208] sm:$0xff]
        %v793 = vld [vmem:[#allocation8 + $0x210] sm:$0xff]
        %v794 = vld [vmem:[#allocation8 + $0x218] sm:$0xff]
        %v795 = vld [vmem:[#allocation8 + $0x220] sm:$0xff]
        %v796 = vld [vmem:[#allocation8 + $0x228] sm:$0xff]
        %v797 = vld [vmem:[#allocation8 + $0x230] sm:$0xff]
        %v798 = vld [vmem:[#allocation8 + $0x238] sm:$0xff]
        %v799 = vld [vmem:[#allocation8 + $0x240] sm:$0xff]
        %v800 = vld [vmem:[#allocation8 + $0x248] sm:$0xff]
        %v801 = vld [vmem:[#allocation8 + $0x250] sm:$0xff]
        %v802 = vld [vmem:[#allocation8 + $0x258] sm:$0xff]
        %v803 = vld [vmem:[#allocation8 + $0x260] sm:$0xff]
        %v804 = vld [vmem:[#allocation8 + $0x268] sm:$0xff]
        %v805 = vld [vmem:[#allocation8 + $0x270] sm:$0xff]
        %v806 = vld [vmem:[#allocation8 + $0x278] sm:$0xff]
        %v807 = vld [vmem:[#allocation8 + $0x280] sm:$0xff]
        %v808 = vld [vmem:[#allocation8 + $0x288] sm:$0xff]
        %v809 = vld [vmem:[#allocation8 + $0x290] sm:$0xff]
        %v810 = vld [vmem:[#allocation8 + $0x298] sm:$0xff]
        %v811 = vld [vmem:[#allocation8 + $0x2a0] sm:$0xff]
        %v812 = vld [vmem:[#allocation8 + $0x2a8] sm:$0xff]
        %v813 = vld [vmem:[#allocation8 + $0x2b0] sm:$0xff]
        %v814 = vld [vmem:[#allocation8 + $0x2b8] sm:$0xff]
        %v815 = vld [vmem:[#allocation8 + $0x2c0] sm:$0xff]
        %v816 = vld [vmem:[#allocation8 + $0x2c8] sm:$0xff]
        %v817 = vld [vmem:[#allocation8 + $0x2d0] sm:$0xff]
        %v818 = vld [vmem:[#allocation8 + $0x2d8] sm:$0xff]
        %v819 = vld [vmem:[#allocation8 + $0x2e0] sm:$0xff]
        %v820 = vld [vmem:[#allocation8 + $0x2e8] sm:$0xff]
        %v821 = vld [vmem:[#allocation8 + $0x2f0] sm:$0xff]
        %v822 = vld [vmem:[#allocation8 + $0x2f8] sm:$0xff]
        %v823 = vld [vmem:[#allocation8 + $0x300] sm:$0xff]
        %v824 = vld [vmem:[#allocation8 + $0x308] sm:$0xff]
        %v825 = vld [vmem:[#allocation8 + $0x310] sm:$0xff]
        %v826 = vld [vmem:[#allocation8 + $0x318] sm:$0xff]
        %v827 = vld [vmem:[#allocation8 + $0x320] sm:$0xff]
        %v828 = vld [vmem:[#allocation8 + $0x328] sm:$0xff]
        %v829 = vld [vmem:[#allocation8 + $0x330] sm:$0xff]
        %v830 = vld [vmem:[#allocation8 + $0x338] sm:$0xff]
        %v831 = vld [vmem:[#allocation8 + $0x340] sm:$0xff]
        %v832 = vld [vmem:[#allocation8 + $0x348] sm:$0xff]
        %v833 = vld [vmem:[#allocation8 + $0x350] sm:$0xff]
        %v834 = vld [vmem:[#allocation8 + $0x358] sm:$0xff]
        %v835 = vld [vmem:[#allocation8 + $0x360] sm:$0xff]
        %v836 = vld [vmem:[#allocation8 + $0x368] sm:$0xff]
        %v837 = vld [vmem:[#allocation8 + $0x370] sm:$0xff]
        %v838 = vld [vmem:[#allocation8 + $0x378] sm:$0xff]
        %v839 = vld [vmem:[#allocation8 + $0x380] sm:$0xff]
        %v840 = vld [vmem:[#allocation8 + $0x388] sm:$0xff]
        %v841 = vld [vmem:[#allocation8 + $0x390] sm:$0xff]
        %v842 = vld [vmem:[#allocation8 + $0x398] sm:$0xff]
        %v843 = vld [vmem:[#allocation8 + $0x3a0] sm:$0xff]
        %v844 = vld [vmem:[#allocation8 + $0x3a8] sm:$0xff]
        %v845 = vld [vmem:[#allocation8 + $0x3b0] sm:$0xff]
        %v846 = vld [vmem:[#allocation8 + $0x3b8] sm:$0xff]
        %v847 = vld [vmem:[#allocation8 + $0x3c0] sm:$0xff]
        %v848 = vld [vmem:[#allocation8 + $0x3c8] sm:$0xff]
        %v849 = vld [vmem:[#allocation8 + $0x3d0] sm:$0xff]
        %v850 = vld [vmem:[#allocation8 + $0x3d8] sm:$0xff]
        %v851 = vld [vmem:[#allocation8 + $0x3e0] sm:$0xff]
        %v852 = vld [vmem:[#allocation8 + $0x3e8] sm:$0xff]
        %v853 = vld [vmem:[#allocation8 + $0x3f0] sm:$0xff]
        %v854 = vld [vmem:[#allocation8 + $0x3f8] sm:$0xff]
        %v855 = vld [vmem:[#allocation8 + $0x400] sm:$0xff]
        %v856 = vld [vmem:[#allocation8 + $0x408] sm:$0xff]
        %v857 = vld [vmem:[#allocation8 + $0x410] sm:$0xff]
        %v858 = vld [vmem:[#allocation8 + $0x418] sm:$0xff]
        %v859 = vld [vmem:[#allocation8 + $0x420] sm:$0xff]
        %v860 = vld [vmem:[#allocation8 + $0x428] sm:$0xff]
        %v861 = vld [vmem:[#allocation8 + $0x430] sm:$0xff]
        %v862 = vld [vmem:[#allocation8 + $0x438] sm:$0xff]
        %v863 = vld [vmem:[#allocation8 + $0x440] sm:$0xff]
        %v864 = vld [vmem:[#allocation8 + $0x448] sm:$0xff]
        %v865 = vld [vmem:[#allocation8 + $0x450] sm:$0xff]
        %v866 = vld [vmem:[#allocation8 + $0x458] sm:$0xff]
        %v867 = vld [vmem:[#allocation8 + $0x460] sm:$0xff]
        %v868 = vld [vmem:[#allocation8 + $0x468] sm:$0xff]
        %v869 = vld [vmem:[#allocation8 + $0x470] sm:$0xff]
        %v870 = vld [vmem:[#allocation8 + $0x478] sm:$0xff]
        %v871 = vld [vmem:[#allocation8 + $0x480] sm:$0xff]
        %v872 = vld [vmem:[#allocation8 + $0x488] sm:$0xff]
        %v873 = vld [vmem:[#allocation8 + $0x490] sm:$0xff]
        %v874 = vld [vmem:[#allocation8 + $0x498] sm:$0xff]
        %v875 = vld [vmem:[#allocation8 + $0x4a0] sm:$0xff]
        %v876 = vld [vmem:[#allocation8 + $0x4a8] sm:$0xff]
        %v877 = vld [vmem:[#allocation8 + $0x4b0] sm:$0xff]
        %v878 = vld [vmem:[#allocation8 + $0x4b8] sm:$0xff]
        %v879 = vld [vmem:[#allocation8 + $0x4c0] sm:$0xff]
        %v880 = vld [vmem:[#allocation8 + $0x4c8] sm:$0xff]
        %v881 = vld [vmem:[#allocation8 + $0x4d0] sm:$0xff]
        %v882 = vld [vmem:[#allocation8 + $0x4d8] sm:$0xff]
        %v883 = vld [vmem:[#allocation8 + $0x4e0] sm:$0xff]
        %v884 = vld [vmem:[#allocation8 + $0x4e8] sm:$0xff]
        %v885 = vld [vmem:[#allocation8 + $0x4f0] sm:$0xff]
        %v886 = vld [vmem:[#allocation8 + $0x4f8] sm:$0xff]
        %v887 = vld [vmem:[#allocation8 + $0x500] sm:$0xff]
        %v888 = vld [vmem:[#allocation8 + $0x508] sm:$0xff]
        %v889 = vld [vmem:[#allocation8 + $0x510] sm:$0xff]
        %v890 = vld [vmem:[#allocation8 + $0x518] sm:$0xff]
        %v891 = vld [vmem:[#allocation8 + $0x520] sm:$0xff]
        %v892 = vld [vmem:[#allocation8 + $0x528] sm:$0xff]
        %v893 = vld [vmem:[#allocation8 + $0x530] sm:$0xff]
        %v894 = vld [vmem:[#allocation8 + $0x538] sm:$0xff]
        %v895 = vld [vmem:[#allocation8 + $0x540] sm:$0xff]
        %v896 = vld [vmem:[#allocation8 + $0x548] sm:$0xff]
        %v897 = vld [vmem:[#allocation8 + $0x550] sm:$0xff]
        %v898 = vld [vmem:[#allocation8 + $0x558] sm:$0xff]
        %v899 = vld [vmem:[#allocation8 + $0x560] sm:$0xff]
        %v900 = vld [vmem:[#allocation8 + $0x568] sm:$0xff]
        %v901 = vld [vmem:[#allocation8 + $0x570] sm:$0xff]
        %v902 = vld [vmem:[#allocation8 + $0x578] sm:$0xff]
        %v903 = vld [vmem:[#allocation8 + $0x580] sm:$0xff]
        %v904 = vld [vmem:[#allocation8 + $0x588] sm:$0xff]
        %v905 = vld [vmem:[#allocation8 + $0x590] sm:$0xff]
        %v906 = vld [vmem:[#allocation8 + $0x598] sm:$0xff]
        %v907 = vld [vmem:[#allocation8 + $0x5a0] sm:$0xff]
        %v908 = vld [vmem:[#allocation8 + $0x5a8] sm:$0xff]
        %v909 = vld [vmem:[#allocation8 + $0x5b0] sm:$0xff]
        %v910 = vld [vmem:[#allocation8 + $0x5b8] sm:$0xff]
        %v911 = vld [vmem:[#allocation8 + $0x5c0] sm:$0xff]
        %v912 = vld [vmem:[#allocation8 + $0x5c8] sm:$0xff]
        %v913 = vld [vmem:[#allocation8 + $0x5d0] sm:$0xff]
        %v914 = vld [vmem:[#allocation8 + $0x5d8] sm:$0xff]
        %v915 = vld [vmem:[#allocation8 + $0x5e0] sm:$0xff]
        %v916 = vld [vmem:[#allocation8 + $0x5e8] sm:$0xff]
        %v917 = vld [vmem:[#allocation8 + $0x5f0] sm:$0xff]
        %v918 = vld [vmem:[#allocation8 + $0x5f8] sm:$0xff]
        %v919 = vld [vmem:[#allocation8 + $0x600] sm:$0xff]
        %v920 = vld [vmem:[#allocation8 + $0x608] sm:$0xff]
        %v921 = vld [vmem:[#allocation8 + $0x610] sm:$0xff]
        %v922 = vld [vmem:[#allocation8 + $0x618] sm:$0xff]
        %v923 = vld [vmem:[#allocation8 + $0x620] sm:$0xff]
        %v924 = vld [vmem:[#allocation8 + $0x628] sm:$0xff]
        %v925 = vld [vmem:[#allocation8 + $0x630] sm:$0xff]
        %v926 = vld [vmem:[#allocation8 + $0x638] sm:$0xff]
        %v927 = vld [vmem:[#allocation8 + $0x640] sm:$0xff]
        %v928 = vld [vmem:[#allocation8 + $0x648] sm:$0xff]
        %v929 = vld [vmem:[#allocation8 + $0x650] sm:$0xff]
        %v930 = vld [vmem:[#allocation8 + $0x658] sm:$0xff]
        %v931 = vld [vmem:[#allocation8 + $0x660] sm:$0xff]
        %v932 = vld [vmem:[#allocation8 + $0x668] sm:$0xff]
        %v933 = vld [vmem:[#allocation8 + $0x670] sm:$0xff]
        %v934 = vld [vmem:[#allocation8 + $0x678] sm:$0xff]
        %v935 = vld [vmem:[#allocation8 + $0x680] sm:$0xff]
        %v936 = vld [vmem:[#allocation8 + $0x688] sm:$0xff]
        %v937 = vld [vmem:[#allocation8 + $0x690] sm:$0xff]
        %v938 = vld [vmem:[#allocation8 + $0x698] sm:$0xff]
        %v939 = vld [vmem:[#allocation8 + $0x6a0] sm:$0xff]
        %v940 = vld [vmem:[#allocation8 + $0x6a8] sm:$0xff]
        %v941 = vld [vmem:[#allocation8 + $0x6b0] sm:$0xff]
        %v942 = vld [vmem:[#allocation8 + $0x6b8] sm:$0xff]
        %v943 = vld [vmem:[#allocation8 + $0x6c0] sm:$0xff]
        %v944 = vld [vmem:[#allocation8 + $0x6c8] sm:$0xff]
        %v945 = vld [vmem:[#allocation8 + $0x6d0] sm:$0xff]
        %v946 = vld [vmem:[#allocation8 + $0x6d8] sm:$0xff]
        %v947 = vld [vmem:[#allocation8 + $0x6e0] sm:$0xff]
        %v948 = vld [vmem:[#allocation8 + $0x6e8] sm:$0xff]
        %v949 = vld [vmem:[#allocation8 + $0x6f0] sm:$0xff]
        %v950 = vld [vmem:[#allocation8 + $0x6f8] sm:$0xff]
        %v951 = vld [vmem:[#allocation8 + $0x700] sm:$0xff]
        %v952 = vld [vmem:[#allocation8 + $0x708] sm:$0xff]
        %v953 = vld [vmem:[#allocation8 + $0x710] sm:$0xff]
        %v954 = vld [vmem:[#allocation8 + $0x718] sm:$0xff]
        %v955 = vld [vmem:[#allocation8 + $0x720] sm:$0xff]
        %v956 = vld [vmem:[#allocation8 + $0x728] sm:$0xff]
        %v957 = vld [vmem:[#allocation8 + $0x730] sm:$0xff]
        %v958 = vld [vmem:[#allocation8 + $0x738] sm:$0xff]
        %v959 = vld [vmem:[#allocation8 + $0x740] sm:$0xff]
        %v960 = vld [vmem:[#allocation8 + $0x748] sm:$0xff]
        %v961 = vld [vmem:[#allocation8 + $0x750] sm:$0xff]
        %v962 = vld [vmem:[#allocation8 + $0x758] sm:$0xff]
        %v963 = vld [vmem:[#allocation8 + $0x760] sm:$0xff]
        %v964 = vld [vmem:[#allocation8 + $0x768] sm:$0xff]
        %v965 = vld [vmem:[#allocation8 + $0x770] sm:$0xff]
        %v966 = vld [vmem:[#allocation8 + $0x778] sm:$0xff]
        %v967 = vld [vmem:[#allocation8 + $0x780] sm:$0xff]
        %v968 = vld [vmem:[#allocation8 + $0x788] sm:$0xff]
        %v969 = vld [vmem:[#allocation8 + $0x790] sm:$0xff]
        %v970 = vld [vmem:[#allocation8 + $0x798] sm:$0xff]
        %v971 = vld [vmem:[#allocation8 + $0x7a0] sm:$0xff]
        %v972 = vld [vmem:[#allocation8 + $0x7a8] sm:$0xff]
        %v973 = vld [vmem:[#allocation8 + $0x7b0] sm:$0xff]
        %v974 = vld [vmem:[#allocation8 + $0x7b8] sm:$0xff]
        %v975 = vld [vmem:[#allocation8 + $0x7c0] sm:$0xff]
        %v976 = vld [vmem:[#allocation8 + $0x7c8] sm:$0xff]
        %v977 = vld [vmem:[#allocation8 + $0x7d0] sm:$0xff]
        %v978 = vld [vmem:[#allocation8 + $0x7d8] sm:$0xff]
        %v979 = vld [vmem:[#allocation8 + $0x7e0] sm:$0xff]
        %v980 = vld [vmem:[#allocation8 + $0x7e8] sm:$0xff]
        %v981 = vld [vmem:[#allocation8 + $0x7f0] sm:$0xff]
        %v982 = vld [vmem:[#allocation8 + $0x7f8] sm:$0xff]
        %v983 = vld [vmem:[#allocation10] sm:$0xff]
        %v985 = vperm.slane %v983, 0
        %v986 = vperm.slane %v983, 1
        %v987 = vperm.slane %v983, 2
        %v988 = vperm.slane %v983, 3
        %v989 = vperm.slane %v983, 4
        %v990 = vperm.slane %v983, 5
        %v991 = vperm.slane %v983, 6
        %v992 = vperm.slane %v983, 7
        %v1003 = vunpack.c.l.b16 %v725
        %v1004 = vunpack.c.h.b16 %v725
        %v1005 = vunpack.c.l.b16 %v726
        %v1006 = vunpack.c.h.b16 %v726
        %v1007 = vpack.c.b16 %v1003, %v1003
        %v1008 = vpack.c.b16 %v1004, %v1004
        %v1009 = vpack.c.b16 %v1005, %v1005
        %v1010 = vpack.c.b16 %v1006, %v1006
        %v1271 = vunpack.c.l.b16 %v727
        %v1272 = vunpack.c.h.b16 %v727
        %v1273 = vunpack.c.l.b16 %v728
        %v1274 = vunpack.c.h.b16 %v728
        %v1275 = vunpack.c.l.b16 %v729
        %v1276 = vunpack.c.h.b16 %v729
        %v1277 = vunpack.c.l.b16 %v730
        %v1278 = vunpack.c.h.b16 %v730
        %v1279 = vunpack.c.l.b16 %v731
        %v1280 = vunpack.c.h.b16 %v731
        %v1281 = vunpack.c.l.b16 %v732
        %v1282 = vunpack.c.h.b16 %v732
        %v1283 = vunpack.c.l.b16 %v733
        %v1284 = vunpack.c.h.b16 %v733
        %v1285 = vunpack.c.l.b16 %v734
        %v1286 = vunpack.c.h.b16 %v734
        %v1287 = vunpack.c.l.b16 %v735
        %v1288 = vunpack.c.h.b16 %v735
        %v1289 = vunpack.c.l.b16 %v736
        %v1290 = vunpack.c.h.b16 %v736
        %v1291 = vunpack.c.l.b16 %v737
        %v1292 = vunpack.c.h.b16 %v737
        %v1293 = vunpack.c.l.b16 %v738
        %v1294 = vunpack.c.h.b16 %v738
        %v1295 = vunpack.c.l.b16 %v739
        %v1296 = vunpack.c.h.b16 %v739
        %v1297 = vunpack.c.l.b16 %v740
        %v1298 = vunpack.c.h.b16 %v740
        %v1299 = vunpack.c.l.b16 %v741
        %v1300 = vunpack.c.h.b16 %v741
        %v1301 = vunpack.c.l.b16 %v742
        %v1302 = vunpack.c.h.b16 %v742
        %v1303 = vunpack.c.l.b16 %v743
        %v1304 = vunpack.c.h.b16 %v743
        %v1305 = vunpack.c.l.b16 %v744
        %v1306 = vunpack.c.h.b16 %v744
        %v1307 = vunpack.c.l.b16 %v745
        %v1308 = vunpack.c.h.b16 %v745
        %v1309 = vunpack.c.l.b16 %v746
        %v1310 = vunpack.c.h.b16 %v746
        %v1311 = vunpack.c.l.b16 %v747
        %v1312 = vunpack.c.h.b16 %v747
        %v1313 = vunpack.c.l.b16 %v748
        %v1314 = vunpack.c.h.b16 %v748
        %v1315 = vunpack.c.l.b16 %v749
        %v1316 = vunpack.c.h.b16 %v749
        %v1317 = vunpack.c.l.b16 %v750
        %v1318 = vunpack.c.h.b16 %v750
        %v1319 = vunpack.c.l.b16 %v751
        %v1320 = vunpack.c.h.b16 %v751
        %v1321 = vunpack.c.l.b16 %v752
        %v1322 = vunpack.c.h.b16 %v752
        %v1323 = vunpack.c.l.b16 %v753
        %v1324 = vunpack.c.h.b16 %v753
        %v1325 = vunpack.c.l.b16 %v754
        %v1326 = vunpack.c.h.b16 %v754
        %v1327 = vunpack.c.l.b16 %v755
        %v1328 = vunpack.c.h.b16 %v755
        %v1329 = vunpack.c.l.b16 %v756
        %v1330 = vunpack.c.h.b16 %v756
        %v1331 = vunpack.c.l.b16 %v757
        %v1332 = vunpack.c.h.b16 %v757
        %v1333 = vunpack.c.l.b16 %v758
        %v1334 = vunpack.c.h.b16 %v758
        %v1335 = vunpack.c.l.b16 %v759
        %v1336 = vunpack.c.h.b16 %v759
        %v1337 = vunpack.c.l.b16 %v760
        %v1338 = vunpack.c.h.b16 %v760
        %v1339 = vunpack.c.l.b16 %v761
        %v1340 = vunpack.c.h.b16 %v761
        %v1341 = vunpack.c.l.b16 %v762
        %v1342 = vunpack.c.h.b16 %v762
        %v1343 = vunpack.c.l.b16 %v763
        %v1344 = vunpack.c.h.b16 %v763
        %v1345 = vunpack.c.l.b16 %v764
        %v1346 = vunpack.c.h.b16 %v764
        %v1347 = vunpack.c.l.b16 %v765
        %v1348 = vunpack.c.h.b16 %v765
        %v1349 = vunpack.c.l.b16 %v766
        %v1350 = vunpack.c.h.b16 %v766
        %v1351 = vunpack.c.l.b16 %v767
        %v1352 = vunpack.c.h.b16 %v767
        %v1353 = vunpack.c.l.b16 %v768
        %v1354 = vunpack.c.h.b16 %v768
        %v1355 = vunpack.c.l.b16 %v769
        %v1356 = vunpack.c.h.b16 %v769
        %v1357 = vunpack.c.l.b16 %v770
        %v1358 = vunpack.c.h.b16 %v770
        %v1359 = vunpack.c.l.b16 %v771
        %v1360 = vunpack.c.h.b16 %v771
        %v1361 = vunpack.c.l.b16 %v772
        %v1362 = vunpack.c.h.b16 %v772
        %v1363 = vunpack.c.l.b16 %v773
        %v1364 = vunpack.c.h.b16 %v773
        %v1365 = vunpack.c.l.b16 %v774
        %v1366 = vunpack.c.h.b16 %v774
        %v1367 = vunpack.c.l.b16 %v775
        %v1368 = vunpack.c.h.b16 %v775
        %v1369 = vunpack.c.l.b16 %v776
        %v1370 = vunpack.c.h.b16 %v776
        %v1371 = vunpack.c.l.b16 %v777
        %v1372 = vunpack.c.h.b16 %v777
        %v1373 = vunpack.c.l.b16 %v778
        %v1374 = vunpack.c.h.b16 %v778
        %v1375 = vunpack.c.l.b16 %v779
        %v1376 = vunpack.c.h.b16 %v779
        %v1377 = vunpack.c.l.b16 %v780
        %v1378 = vunpack.c.h.b16 %v780
        %v1379 = vunpack.c.l.b16 %v781
        %v1380 = vunpack.c.h.b16 %v781
        %v1381 = vunpack.c.l.b16 %v782
        %v1382 = vunpack.c.h.b16 %v782
        %v1383 = vunpack.c.l.b16 %v783
        %v1384 = vunpack.c.h.b16 %v783
        %v1385 = vunpack.c.l.b16 %v784
        %v1386 = vunpack.c.h.b16 %v784
        %v1387 = vunpack.c.l.b16 %v785
        %v1388 = vunpack.c.h.b16 %v785
        %v1389 = vunpack.c.l.b16 %v786
        %v1390 = vunpack.c.h.b16 %v786
        %v1391 = vunpack.c.l.b16 %v787
        %v1392 = vunpack.c.h.b16 %v787
        %v1393 = vunpack.c.l.b16 %v788
        %v1394 = vunpack.c.h.b16 %v788
        %v1395 = vunpack.c.l.b16 %v789
        %v1396 = vunpack.c.h.b16 %v789
        %v1397 = vunpack.c.l.b16 %v790
        %v1398 = vunpack.c.h.b16 %v790
        %v1399 = vunpack.c.l.b16 %v791
        %v1400 = vunpack.c.h.b16 %v791
        %v1401 = vunpack.c.l.b16 %v792
        %v1402 = vunpack.c.h.b16 %v792
        %v1403 = vunpack.c.l.b16 %v793
        %v1404 = vunpack.c.h.b16 %v793
        %v1405 = vunpack.c.l.b16 %v794
        %v1406 = vunpack.c.h.b16 %v794
        %v1407 = vunpack.c.l.b16 %v795
        %v1408 = vunpack.c.h.b16 %v795
        %v1409 = vunpack.c.l.b16 %v796
        %v1410 = vunpack.c.h.b16 %v796
        %v1411 = vunpack.c.l.b16 %v797
        %v1412 = vunpack.c.h.b16 %v797
        %v1413 = vunpack.c.l.b16 %v798
        %v1414 = vunpack.c.h.b16 %v798
        %v1415 = vunpack.c.l.b16 %v799
        %v1416 = vunpack.c.h.b16 %v799
        %v1417 = vunpack.c.l.b16 %v800
        %v1418 = vunpack.c.h.b16 %v800
        %v1419 = vunpack.c.l.b16 %v801
        %v1420 = vunpack.c.h.b16 %v801
        %v1421 = vunpack.c.l.b16 %v802
        %v1422 = vunpack.c.h.b16 %v802
        %v1423 = vunpack.c.l.b16 %v803
        %v1424 = vunpack.c.h.b16 %v803
        %v1425 = vunpack.c.l.b16 %v804
        %v1426 = vunpack.c.h.b16 %v804
        %v1427 = vunpack.c.l.b16 %v805
        %v1428 = vunpack.c.h.b16 %v805
        %v1429 = vunpack.c.l.b16 %v806
        %v1430 = vunpack.c.h.b16 %v806
        %v1431 = vunpack.c.l.b16 %v807
        %v1432 = vunpack.c.h.b16 %v807
        %v1433 = vunpack.c.l.b16 %v808
        %v1434 = vunpack.c.h.b16 %v808
        %v1435 = vunpack.c.l.b16 %v809
        %v1436 = vunpack.c.h.b16 %v809
        %v1437 = vunpack.c.l.b16 %v810
        %v1438 = vunpack.c.h.b16 %v810
        %v1439 = vunpack.c.l.b16 %v811
        %v1440 = vunpack.c.h.b16 %v811
        %v1441 = vunpack.c.l.b16 %v812
        %v1442 = vunpack.c.h.b16 %v812
        %v1443 = vunpack.c.l.b16 %v813
        %v1444 = vunpack.c.h.b16 %v813
        %v1445 = vunpack.c.l.b16 %v814
        %v1446 = vunpack.c.h.b16 %v814
        %v1447 = vunpack.c.l.b16 %v815
        %v1448 = vunpack.c.h.b16 %v815
        %v1449 = vunpack.c.l.b16 %v816
        %v1450 = vunpack.c.h.b16 %v816
        %v1451 = vunpack.c.l.b16 %v817
        %v1452 = vunpack.c.h.b16 %v817
        %v1453 = vunpack.c.l.b16 %v818
        %v1454 = vunpack.c.h.b16 %v818
        %v1455 = vunpack.c.l.b16 %v819
        %v1456 = vunpack.c.h.b16 %v819
        %v1457 = vunpack.c.l.b16 %v820
        %v1458 = vunpack.c.h.b16 %v820
        %v1459 = vunpack.c.l.b16 %v821
        %v1460 = vunpack.c.h.b16 %v821
        %v1461 = vunpack.c.l.b16 %v822
        %v1462 = vunpack.c.h.b16 %v822
        %v1463 = vunpack.c.l.b16 %v823
        %v1464 = vunpack.c.h.b16 %v823
        %v1465 = vunpack.c.l.b16 %v824
        %v1466 = vunpack.c.h.b16 %v824
        %v1467 = vunpack.c.l.b16 %v825
        %v1468 = vunpack.c.h.b16 %v825
        %v1469 = vunpack.c.l.b16 %v826
        %v1470 = vunpack.c.h.b16 %v826
        %v1471 = vunpack.c.l.b16 %v827
        %v1472 = vunpack.c.h.b16 %v827
        %v1473 = vunpack.c.l.b16 %v828
        %v1474 = vunpack.c.h.b16 %v828
        %v1475 = vunpack.c.l.b16 %v829
        %v1476 = vunpack.c.h.b16 %v829
        %v1477 = vunpack.c.l.b16 %v830
        %v1478 = vunpack.c.h.b16 %v830
        %v1479 = vunpack.c.l.b16 %v831
        %v1480 = vunpack.c.h.b16 %v831
        %v1481 = vunpack.c.l.b16 %v832
        %v1482 = vunpack.c.h.b16 %v832
        %v1483 = vunpack.c.l.b16 %v833
        %v1484 = vunpack.c.h.b16 %v833
        %v1485 = vunpack.c.l.b16 %v834
        %v1486 = vunpack.c.h.b16 %v834
        %v1487 = vunpack.c.l.b16 %v835
        %v1488 = vunpack.c.h.b16 %v835
        %v1489 = vunpack.c.l.b16 %v836
        %v1490 = vunpack.c.h.b16 %v836
        %v1491 = vunpack.c.l.b16 %v837
        %v1492 = vunpack.c.h.b16 %v837
        %v1493 = vunpack.c.l.b16 %v838
        %v1494 = vunpack.c.h.b16 %v838
        %v1495 = vunpack.c.l.b16 %v839
        %v1496 = vunpack.c.h.b16 %v839
        %v1497 = vunpack.c.l.b16 %v840
        %v1498 = vunpack.c.h.b16 %v840
        %v1499 = vunpack.c.l.b16 %v841
        %v1500 = vunpack.c.h.b16 %v841
        %v1501 = vunpack.c.l.b16 %v842
        %v1502 = vunpack.c.h.b16 %v842
        %v1503 = vunpack.c.l.b16 %v843
        %v1504 = vunpack.c.h.b16 %v843
        %v1505 = vunpack.c.l.b16 %v844
        %v1506 = vunpack.c.h.b16 %v844
        %v1507 = vunpack.c.l.b16 %v845
        %v1508 = vunpack.c.h.b16 %v845
        %v1509 = vunpack.c.l.b16 %v846
        %v1510 = vunpack.c.h.b16 %v846
        %v1511 = vunpack.c.l.b16 %v847
        %v1512 = vunpack.c.h.b16 %v847
        %v1513 = vunpack.c.l.b16 %v848
        %v1514 = vunpack.c.h.b16 %v848
        %v1515 = vunpack.c.l.b16 %v849
        %v1516 = vunpack.c.h.b16 %v849
        %v1517 = vunpack.c.l.b16 %v850
        %v1518 = vunpack.c.h.b16 %v850
        %v1519 = vunpack.c.l.b16 %v851
        %v1520 = vunpack.c.h.b16 %v851
        %v1521 = vunpack.c.l.b16 %v852
        %v1522 = vunpack.c.h.b16 %v852
        %v1523 = vunpack.c.l.b16 %v853
        %v1524 = vunpack.c.h.b16 %v853
        %v1525 = vunpack.c.l.b16 %v854
        %v1526 = vunpack.c.h.b16 %v854
        %v1527 = vunpack.c.l.b16 %v855
        %v1528 = vunpack.c.h.b16 %v855
        %v1529 = vunpack.c.l.b16 %v856
        %v1530 = vunpack.c.h.b16 %v856
        %v1531 = vunpack.c.l.b16 %v857
        %v1532 = vunpack.c.h.b16 %v857
        %v1533 = vunpack.c.l.b16 %v858
        %v1534 = vunpack.c.h.b16 %v858
        %v1535 = vunpack.c.l.b16 %v859
        %v1536 = vunpack.c.h.b16 %v859
        %v1537 = vunpack.c.l.b16 %v860
        %v1538 = vunpack.c.h.b16 %v860
        %v1539 = vunpack.c.l.b16 %v861
        %v1540 = vunpack.c.h.b16 %v861
        %v1541 = vunpack.c.l.b16 %v862
        %v1542 = vunpack.c.h.b16 %v862
        %v1543 = vunpack.c.l.b16 %v863
        %v1544 = vunpack.c.h.b16 %v863
        %v1545 = vunpack.c.l.b16 %v864
        %v1546 = vunpack.c.h.b16 %v864
        %v1547 = vunpack.c.l.b16 %v865
        %v1548 = vunpack.c.h.b16 %v865
        %v1549 = vunpack.c.l.b16 %v866
        %v1550 = vunpack.c.h.b16 %v866
        %v1551 = vunpack.c.l.b16 %v867
        %v1552 = vunpack.c.h.b16 %v867
        %v1553 = vunpack.c.l.b16 %v868
        %v1554 = vunpack.c.h.b16 %v868
        %v1555 = vunpack.c.l.b16 %v869
        %v1556 = vunpack.c.h.b16 %v869
        %v1557 = vunpack.c.l.b16 %v870
        %v1558 = vunpack.c.h.b16 %v870
        %v1559 = vunpack.c.l.b16 %v871
        %v1560 = vunpack.c.h.b16 %v871
        %v1561 = vunpack.c.l.b16 %v872
        %v1562 = vunpack.c.h.b16 %v872
        %v1563 = vunpack.c.l.b16 %v873
        %v1564 = vunpack.c.h.b16 %v873
        %v1565 = vunpack.c.l.b16 %v874
        %v1566 = vunpack.c.h.b16 %v874
        %v1567 = vunpack.c.l.b16 %v875
        %v1568 = vunpack.c.h.b16 %v875
        %v1569 = vunpack.c.l.b16 %v876
        %v1570 = vunpack.c.h.b16 %v876
        %v1571 = vunpack.c.l.b16 %v877
        %v1572 = vunpack.c.h.b16 %v877
        %v1573 = vunpack.c.l.b16 %v878
        %v1574 = vunpack.c.h.b16 %v878
        %v1575 = vunpack.c.l.b16 %v879
        %v1576 = vunpack.c.h.b16 %v879
        %v1577 = vunpack.c.l.b16 %v880
        %v1578 = vunpack.c.h.b16 %v880
        %v1579 = vunpack.c.l.b16 %v881
        %v1580 = vunpack.c.h.b16 %v881
        %v1581 = vunpack.c.l.b16 %v882
        %v1582 = vunpack.c.h.b16 %v882
        %v1583 = vunpack.c.l.b16 %v883
        %v1584 = vunpack.c.h.b16 %v883
        %v1585 = vunpack.c.l.b16 %v884
        %v1586 = vunpack.c.h.b16 %v884
        %v1587 = vunpack.c.l.b16 %v885
        %v1588 = vunpack.c.h.b16 %v885
        %v1589 = vunpack.c.l.b16 %v886
        %v1590 = vunpack.c.h.b16 %v886
        %v1591 = vunpack.c.l.b16 %v887
        %v1592 = vunpack.c.h.b16 %v887
        %v1593 = vunpack.c.l.b16 %v888
        %v1594 = vunpack.c.h.b16 %v888
        %v1595 = vunpack.c.l.b16 %v889
        %v1596 = vunpack.c.h.b16 %v889
        %v1597 = vunpack.c.l.b16 %v890
        %v1598 = vunpack.c.h.b16 %v890
        %v1599 = vunpack.c.l.b16 %v891
        %v1600 = vunpack.c.h.b16 %v891
        %v1601 = vunpack.c.l.b16 %v892
        %v1602 = vunpack.c.h.b16 %v892
        %v1603 = vunpack.c.l.b16 %v893
        %v1604 = vunpack.c.h.b16 %v893
        %v1605 = vunpack.c.l.b16 %v894
        %v1606 = vunpack.c.h.b16 %v894
        %v1607 = vunpack.c.l.b16 %v895
        %v1608 = vunpack.c.h.b16 %v895
        %v1609 = vunpack.c.l.b16 %v896
        %v1610 = vunpack.c.h.b16 %v896
        %v1611 = vunpack.c.l.b16 %v897
        %v1612 = vunpack.c.h.b16 %v897
        %v1613 = vunpack.c.l.b16 %v898
        %v1614 = vunpack.c.h.b16 %v898
        %v1615 = vunpack.c.l.b16 %v899
        %v1616 = vunpack.c.h.b16 %v899
        %v1617 = vunpack.c.l.b16 %v900
        %v1618 = vunpack.c.h.b16 %v900
        %v1619 = vunpack.c.l.b16 %v901
        %v1620 = vunpack.c.h.b16 %v901
        %v1621 = vunpack.c.l.b16 %v902
        %v1622 = vunpack.c.h.b16 %v902
        %v1623 = vunpack.c.l.b16 %v903
        %v1624 = vunpack.c.h.b16 %v903
        %v1625 = vunpack.c.l.b16 %v904
        %v1626 = vunpack.c.h.b16 %v904
        %v1627 = vunpack.c.l.b16 %v905
        %v1628 = vunpack.c.h.b16 %v905
        %v1629 = vunpack.c.l.b16 %v906
        %v1630 = vunpack.c.h.b16 %v906
        %v1631 = vunpack.c.l.b16 %v907
        %v1632 = vunpack.c.h.b16 %v907
        %v1633 = vunpack.c.l.b16 %v908
        %v1634 = vunpack.c.h.b16 %v908
        %v1635 = vunpack.c.l.b16 %v909
        %v1636 = vunpack.c.h.b16 %v909
        %v1637 = vunpack.c.l.b16 %v910
        %v1638 = vunpack.c.h.b16 %v910
        %v1639 = vunpack.c.l.b16 %v911
        %v1640 = vunpack.c.h.b16 %v911
        %v1641 = vunpack.c.l.b16 %v912
        %v1642 = vunpack.c.h.b16 %v912
        %v1643 = vunpack.c.l.b16 %v913
        %v1644 = vunpack.c.h.b16 %v913
        %v1645 = vunpack.c.l.b16 %v914
        %v1646 = vunpack.c.h.b16 %v914
        %v1647 = vunpack.c.l.b16 %v915
        %v1648 = vunpack.c.h.b16 %v915
        %v1649 = vunpack.c.l.b16 %v916
        %v1650 = vunpack.c.h.b16 %v916
        %v1651 = vunpack.c.l.b16 %v917
        %v1652 = vunpack.c.h.b16 %v917
        %v1653 = vunpack.c.l.b16 %v918
        %v1654 = vunpack.c.h.b16 %v918
        %v1655 = vunpack.c.l.b16 %v919
        %v1656 = vunpack.c.h.b16 %v919
        %v1657 = vunpack.c.l.b16 %v920
        %v1658 = vunpack.c.h.b16 %v920
        %v1659 = vunpack.c.l.b16 %v921
        %v1660 = vunpack.c.h.b16 %v921
        %v1661 = vunpack.c.l.b16 %v922
        %v1662 = vunpack.c.h.b16 %v922
        %v1663 = vunpack.c.l.b16 %v923
        %v1664 = vunpack.c.h.b16 %v923
        %v1665 = vunpack.c.l.b16 %v924
        %v1666 = vunpack.c.h.b16 %v924
        %v1667 = vunpack.c.l.b16 %v925
        %v1668 = vunpack.c.h.b16 %v925
        %v1669 = vunpack.c.l.b16 %v926
        %v1670 = vunpack.c.h.b16 %v926
        %v1671 = vunpack.c.l.b16 %v927
        %v1672 = vunpack.c.h.b16 %v927
        %v1673 = vunpack.c.l.b16 %v928
        %v1674 = vunpack.c.h.b16 %v928
        %v1675 = vunpack.c.l.b16 %v929
        %v1676 = vunpack.c.h.b16 %v929
        %v1677 = vunpack.c.l.b16 %v930
        %v1678 = vunpack.c.h.b16 %v930
        %v1679 = vunpack.c.l.b16 %v931
        %v1680 = vunpack.c.h.b16 %v931
        %v1681 = vunpack.c.l.b16 %v932
        %v1682 = vunpack.c.h.b16 %v932
        %v1683 = vunpack.c.l.b16 %v933
        %v1684 = vunpack.c.h.b16 %v933
        %v1685 = vunpack.c.l.b16 %v934
        %v1686 = vunpack.c.h.b16 %v934
        %v1687 = vunpack.c.l.b16 %v935
        %v1688 = vunpack.c.h.b16 %v935
        %v1689 = vunpack.c.l.b16 %v936
        %v1690 = vunpack.c.h.b16 %v936
        %v1691 = vunpack.c.l.b16 %v937
        %v1692 = vunpack.c.h.b16 %v937
        %v1693 = vunpack.c.l.b16 %v938
        %v1694 = vunpack.c.h.b16 %v938
        %v1695 = vunpack.c.l.b16 %v939
        %v1696 = vunpack.c.h.b16 %v939
        %v1697 = vunpack.c.l.b16 %v940
        %v1698 = vunpack.c.h.b16 %v940
        %v1699 = vunpack.c.l.b16 %v941
        %v1700 = vunpack.c.h.b16 %v941
        %v1701 = vunpack.c.l.b16 %v942
        %v1702 = vunpack.c.h.b16 %v942
        %v1703 = vunpack.c.l.b16 %v943
        %v1704 = vunpack.c.h.b16 %v943
        %v1705 = vunpack.c.l.b16 %v944
        %v1706 = vunpack.c.h.b16 %v944
        %v1707 = vunpack.c.l.b16 %v945
        %v1708 = vunpack.c.h.b16 %v945
        %v1709 = vunpack.c.l.b16 %v946
        %v1710 = vunpack.c.h.b16 %v946
        %v1711 = vunpack.c.l.b16 %v947
        %v1712 = vunpack.c.h.b16 %v947
        %v1713 = vunpack.c.l.b16 %v948
        %v1714 = vunpack.c.h.b16 %v948
        %v1715 = vunpack.c.l.b16 %v949
        %v1716 = vunpack.c.h.b16 %v949
        %v1717 = vunpack.c.l.b16 %v950
        %v1718 = vunpack.c.h.b16 %v950
        %v1719 = vunpack.c.l.b16 %v951
        %v1720 = vunpack.c.h.b16 %v951
        %v1721 = vunpack.c.l.b16 %v952
        %v1722 = vunpack.c.h.b16 %v952
        %v1723 = vunpack.c.l.b16 %v953
        %v1724 = vunpack.c.h.b16 %v953
        %v1725 = vunpack.c.l.b16 %v954
        %v1726 = vunpack.c.h.b16 %v954
        %v1727 = vunpack.c.l.b16 %v955
        %v1728 = vunpack.c.h.b16 %v955
        %v1729 = vunpack.c.l.b16 %v956
        %v1730 = vunpack.c.h.b16 %v956
        %v1731 = vunpack.c.l.b16 %v957
        %v1732 = vunpack.c.h.b16 %v957
        %v1733 = vunpack.c.l.b16 %v958
        %v1734 = vunpack.c.h.b16 %v958
        %v1735 = vunpack.c.l.b16 %v959
        %v1736 = vunpack.c.h.b16 %v959
        %v1737 = vunpack.c.l.b16 %v960
        %v1738 = vunpack.c.h.b16 %v960
        %v1739 = vunpack.c.l.b16 %v961
        %v1740 = vunpack.c.h.b16 %v961
        %v1741 = vunpack.c.l.b16 %v962
        %v1742 = vunpack.c.h.b16 %v962
        %v1743 = vunpack.c.l.b16 %v963
        %v1744 = vunpack.c.h.b16 %v963
        %v1745 = vunpack.c.l.b16 %v964
        %v1746 = vunpack.c.h.b16 %v964
        %v1747 = vunpack.c.l.b16 %v965
        %v1748 = vunpack.c.h.b16 %v965
        %v1749 = vunpack.c.l.b16 %v966
        %v1750 = vunpack.c.h.b16 %v966
        %v1751 = vunpack.c.l.b16 %v967
        %v1752 = vunpack.c.h.b16 %v967
        %v1753 = vunpack.c.l.b16 %v968
        %v1754 = vunpack.c.h.b16 %v968
        %v1755 = vunpack.c.l.b16 %v969
        %v1756 = vunpack.c.h.b16 %v969
        %v1757 = vunpack.c.l.b16 %v970
        %v1758 = vunpack.c.h.b16 %v970
        %v1759 = vunpack.c.l.b16 %v971
        %v1760 = vunpack.c.h.b16 %v971
        %v1761 = vunpack.c.l.b16 %v972
        %v1762 = vunpack.c.h.b16 %v972
        %v1763 = vunpack.c.l.b16 %v973
        %v1764 = vunpack.c.h.b16 %v973
        %v1765 = vunpack.c.l.b16 %v974
        %v1766 = vunpack.c.h.b16 %v974
        %v1767 = vunpack.c.l.b16 %v975
        %v1768 = vunpack.c.h.b16 %v975
        %v1769 = vunpack.c.l.b16 %v976
        %v1770 = vunpack.c.h.b16 %v976
        %v1771 = vunpack.c.l.b16 %v977
        %v1772 = vunpack.c.h.b16 %v977
        %v1773 = vunpack.c.l.b16 %v978
        %v1774 = vunpack.c.h.b16 %v978
        %v1775 = vunpack.c.l.b16 %v979
        %v1776 = vunpack.c.h.b16 %v979
        %v1777 = vunpack.c.l.b16 %v980
        %v1778 = vunpack.c.h.b16 %v980
        %v1779 = vunpack.c.l.b16 %v981
        %v1780 = vunpack.c.h.b16 %v981
        %v1781 = vunpack.c.l.b16 %v982
        %v1782 = vunpack.c.h.b16 %v982
        %v1783 = vpack.c.b16 %v1279, %v1271
        %v1784 = vpack.c.b16 %v1280, %v1272
        %v1785 = vpack.c.b16 %v1281, %v1273
        %v1786 = vpack.c.b16 %v1282, %v1274
        %v1787 = vpack.c.b16 %v1283, %v1275
        %v1788 = vpack.c.b16 %v1284, %v1276
        %v1789 = vpack.c.b16 %v1285, %v1277
        %v1790 = vpack.c.b16 %v1286, %v1278
        %v1791 = vpack.c.b16 %v1295, %v1287
        %v1792 = vpack.c.b16 %v1296, %v1288
        %v1793 = vpack.c.b16 %v1297, %v1289
        %v1794 = vpack.c.b16 %v1298, %v1290
        %v1795 = vpack.c.b16 %v1299, %v1291
        %v1796 = vpack.c.b16 %v1300, %v1292
        %v1797 = vpack.c.b16 %v1301, %v1293
        %v1798 = vpack.c.b16 %v1302, %v1294
        %v1799 = vpack.c.b16 %v1311, %v1303
        %v1800 = vpack.c.b16 %v1312, %v1304
        %v1801 = vpack.c.b16 %v1313, %v1305
        %v1802 = vpack.c.b16 %v1314, %v1306
        %v1803 = vpack.c.b16 %v1315, %v1307
        %v1804 = vpack.c.b16 %v1316, %v1308
        %v1805 = vpack.c.b16 %v1317, %v1309
        %v1806 = vpack.c.b16 %v1318, %v1310
        %v1807 = vpack.c.b16 %v1327, %v1319
        %v1808 = vpack.c.b16 %v1328, %v1320
        %v1809 = vpack.c.b16 %v1329, %v1321
        %v1810 = vpack.c.b16 %v1330, %v1322
        %v1811 = vpack.c.b16 %v1331, %v1323
        %v1812 = vpack.c.b16 %v1332, %v1324
        %v1813 = vpack.c.b16 %v1333, %v1325
        %v1814 = vpack.c.b16 %v1334, %v1326
        %v1815 = vpack.c.b16 %v1343, %v1335
        %v1816 = vpack.c.b16 %v1344, %v1336
        %v1817 = vpack.c.b16 %v1345, %v1337
        %v1818 = vpack.c.b16 %v1346, %v1338
        %v1819 = vpack.c.b16 %v1347, %v1339
        %v1820 = vpack.c.b16 %v1348, %v1340
        %v1821 = vpack.c.b16 %v1349, %v1341
        %v1822 = vpack.c.b16 %v1350, %v1342
        %v1823 = vpack.c.b16 %v1359, %v1351
        %v1824 = vpack.c.b16 %v1360, %v1352
        %v1825 = vpack.c.b16 %v1361, %v1353
        %v1826 = vpack.c.b16 %v1362, %v1354
        %v1827 = vpack.c.b16 %v1363, %v1355
        %v1828 = vpack.c.b16 %v1364, %v1356
        %v1829 = vpack.c.b16 %v1365, %v1357
        %v1830 = vpack.c.b16 %v1366, %v1358
        %v1831 = vpack.c.b16 %v1375, %v1367
        %v1832 = vpack.c.b16 %v1376, %v1368
        %v1833 = vpack.c.b16 %v1377, %v1369
        %v1834 = vpack.c.b16 %v1378, %v1370
        %v1835 = vpack.c.b16 %v1379, %v1371
        %v1836 = vpack.c.b16 %v1380, %v1372
        %v1837 = vpack.c.b16 %v1381, %v1373
        %v1838 = vpack.c.b16 %v1382, %v1374
        %v1839 = vpack.c.b16 %v1391, %v1383
        %v1840 = vpack.c.b16 %v1392, %v1384
        %v1841 = vpack.c.b16 %v1393, %v1385
        %v1842 = vpack.c.b16 %v1394, %v1386
        %v1843 = vpack.c.b16 %v1395, %v1387
        %v1844 = vpack.c.b16 %v1396, %v1388
        %v1845 = vpack.c.b16 %v1397, %v1389
        %v1846 = vpack.c.b16 %v1398, %v1390
        %v1847 = vpack.c.b16 %v1407, %v1399
        %v1848 = vpack.c.b16 %v1408, %v1400
        %v1849 = vpack.c.b16 %v1409, %v1401
        %v1850 = vpack.c.b16 %v1410, %v1402
        %v1851 = vpack.c.b16 %v1411, %v1403
        %v1852 = vpack.c.b16 %v1412, %v1404
        %v1853 = vpack.c.b16 %v1413, %v1405
        %v1854 = vpack.c.b16 %v1414, %v1406
        %v1855 = vpack.c.b16 %v1423, %v1415
        %v1856 = vpack.c.b16 %v1424, %v1416
        %v1857 = vpack.c.b16 %v1425, %v1417
        %v1858 = vpack.c.b16 %v1426, %v1418
        %v1859 = vpack.c.b16 %v1427, %v1419
        %v1860 = vpack.c.b16 %v1428, %v1420
        %v1861 = vpack.c.b16 %v1429, %v1421
        %v1862 = vpack.c.b16 %v1430, %v1422
        %v1863 = vpack.c.b16 %v1439, %v1431
        %v1864 = vpack.c.b16 %v1440, %v1432
        %v1865 = vpack.c.b16 %v1441, %v1433
        %v1866 = vpack.c.b16 %v1442, %v1434
        %v1867 = vpack.c.b16 %v1443, %v1435
        %v1868 = vpack.c.b16 %v1444, %v1436
        %v1869 = vpack.c.b16 %v1445, %v1437
        %v1870 = vpack.c.b16 %v1446, %v1438
        %v1871 = vpack.c.b16 %v1455, %v1447
        %v1872 = vpack.c.b16 %v1456, %v1448
        %v1873 = vpack.c.b16 %v1457, %v1449
        %v1874 = vpack.c.b16 %v1458, %v1450
        %v1875 = vpack.c.b16 %v1459, %v1451
        %v1876 = vpack.c.b16 %v1460, %v1452
        %v1877 = vpack.c.b16 %v1461, %v1453
        %v1878 = vpack.c.b16 %v1462, %v1454
        %v1879 = vpack.c.b16 %v1471, %v1463
        %v1880 = vpack.c.b16 %v1472, %v1464
        %v1881 = vpack.c.b16 %v1473, %v1465
        %v1882 = vpack.c.b16 %v1474, %v1466
        %v1883 = vpack.c.b16 %v1475, %v1467
        %v1884 = vpack.c.b16 %v1476, %v1468
        %v1885 = vpack.c.b16 %v1477, %v1469
        %v1886 = vpack.c.b16 %v1478, %v1470
        %v1887 = vpack.c.b16 %v1487, %v1479
        %v1888 = vpack.c.b16 %v1488, %v1480
        %v1889 = vpack.c.b16 %v1489, %v1481
        %v1890 = vpack.c.b16 %v1490, %v1482
        %v1891 = vpack.c.b16 %v1491, %v1483
        %v1892 = vpack.c.b16 %v1492, %v1484
        %v1893 = vpack.c.b16 %v1493, %v1485
        %v1894 = vpack.c.b16 %v1494, %v1486
        %v1895 = vpack.c.b16 %v1503, %v1495
        %v1896 = vpack.c.b16 %v1504, %v1496
        %v1897 = vpack.c.b16 %v1505, %v1497
        %v1898 = vpack.c.b16 %v1506, %v1498
        %v1899 = vpack.c.b16 %v1507, %v1499
        %v1900 = vpack.c.b16 %v1508, %v1500
        %v1901 = vpack.c.b16 %v1509, %v1501
        %v1902 = vpack.c.b16 %v1510, %v1502
        %v1903 = vpack.c.b16 %v1519, %v1511
        %v1904 = vpack.c.b16 %v1520, %v1512
        %v1905 = vpack.c.b16 %v1521, %v1513
        %v1906 = vpack.c.b16 %v1522, %v1514
        %v1907 = vpack.c.b16 %v1523, %v1515
        %v1908 = vpack.c.b16 %v1524, %v1516
        %v1909 = vpack.c.b16 %v1525, %v1517
        %v1910 = vpack.c.b16 %v1526, %v1518
        %v1911 = vpack.c.b16 %v1535, %v1527
        %v1912 = vpack.c.b16 %v1536, %v1528
        %v1913 = vpack.c.b16 %v1537, %v1529
        %v1914 = vpack.c.b16 %v1538, %v1530
        %v1915 = vpack.c.b16 %v1539, %v1531
        %v1916 = vpack.c.b16 %v1540, %v1532
        %v1917 = vpack.c.b16 %v1541, %v1533
        %v1918 = vpack.c.b16 %v1542, %v1534
        %v1919 = vpack.c.b16 %v1551, %v1543
        %v1920 = vpack.c.b16 %v1552, %v1544
        %v1921 = vpack.c.b16 %v1553, %v1545
        %v1922 = vpack.c.b16 %v1554, %v1546
        %v1923 = vpack.c.b16 %v1555, %v1547
        %v1924 = vpack.c.b16 %v1556, %v1548
        %v1925 = vpack.c.b16 %v1557, %v1549
        %v1926 = vpack.c.b16 %v1558, %v1550
        %v1927 = vpack.c.b16 %v1567, %v1559
        %v1928 = vpack.c.b16 %v1568, %v1560
        %v1929 = vpack.c.b16 %v1569, %v1561
        %v1930 = vpack.c.b16 %v1570, %v1562
        %v1931 = vpack.c.b16 %v1571, %v1563
        %v1932 = vpack.c.b16 %v1572, %v1564
        %v1933 = vpack.c.b16 %v1573, %v1565
        %v1934 = vpack.c.b16 %v1574, %v1566
        %v1935 = vpack.c.b16 %v1583, %v1575
        %v1936 = vpack.c.b16 %v1584, %v1576
        %v1937 = vpack.c.b16 %v1585, %v1577
        %v1938 = vpack.c.b16 %v1586, %v1578
        %v1939 = vpack.c.b16 %v1587, %v1579
        %v1940 = vpack.c.b16 %v1588, %v1580
        %v1941 = vpack.c.b16 %v1589, %v1581
        %v1942 = vpack.c.b16 %v1590, %v1582
        %v1943 = vpack.c.b16 %v1599, %v1591
        %v1944 = vpack.c.b16 %v1600, %v1592
        %v1945 = vpack.c.b16 %v1601, %v1593
        %v1946 = vpack.c.b16 %v1602, %v1594
        %v1947 = vpack.c.b16 %v1603, %v1595
        %v1948 = vpack.c.b16 %v1604, %v1596
        %v1949 = vpack.c.b16 %v1605, %v1597
        %v1950 = vpack.c.b16 %v1606, %v1598
        %v1951 = vpack.c.b16 %v1615, %v1607
        %v1952 = vpack.c.b16 %v1616, %v1608
        %v1953 = vpack.c.b16 %v1617, %v1609
        %v1954 = vpack.c.b16 %v1618, %v1610
        %v1955 = vpack.c.b16 %v1619, %v1611
        %v1956 = vpack.c.b16 %v1620, %v1612
        %v1957 = vpack.c.b16 %v1621, %v1613
        %v1958 = vpack.c.b16 %v1622, %v1614
        %v1959 = vpack.c.b16 %v1631, %v1623
        %v1960 = vpack.c.b16 %v1632, %v1624
        %v1961 = vpack.c.b16 %v1633, %v1625
        %v1962 = vpack.c.b16 %v1634, %v1626
        %v1963 = vpack.c.b16 %v1635, %v1627
        %v1964 = vpack.c.b16 %v1636, %v1628
        %v1965 = vpack.c.b16 %v1637, %v1629
        %v1966 = vpack.c.b16 %v1638, %v1630
        %v1967 = vpack.c.b16 %v1647, %v1639
        %v1968 = vpack.c.b16 %v1648, %v1640
        %v1969 = vpack.c.b16 %v1649, %v1641
        %v1970 = vpack.c.b16 %v1650, %v1642
        %v1971 = vpack.c.b16 %v1651, %v1643
        %v1972 = vpack.c.b16 %v1652, %v1644
        %v1973 = vpack.c.b16 %v1653, %v1645
        %v1974 = vpack.c.b16 %v1654, %v1646
        %v1975 = vpack.c.b16 %v1663, %v1655
        %v1976 = vpack.c.b16 %v1664, %v1656
        %v1977 = vpack.c.b16 %v1665, %v1657
        %v1978 = vpack.c.b16 %v1666, %v1658
        %v1979 = vpack.c.b16 %v1667, %v1659
        %v1980 = vpack.c.b16 %v1668, %v1660
        %v1981 = vpack.c.b16 %v1669, %v1661
        %v1982 = vpack.c.b16 %v1670, %v1662
        %v1983 = vpack.c.b16 %v1679, %v1671
        %v1984 = vpack.c.b16 %v1680, %v1672
        %v1985 = vpack.c.b16 %v1681, %v1673
        %v1986 = vpack.c.b16 %v1682, %v1674
        %v1987 = vpack.c.b16 %v1683, %v1675
        %v1988 = vpack.c.b16 %v1684, %v1676
        %v1989 = vpack.c.b16 %v1685, %v1677
        %v1990 = vpack.c.b16 %v1686, %v1678
        %v1991 = vpack.c.b16 %v1695, %v1687
        %v1992 = vpack.c.b16 %v1696, %v1688
        %v1993 = vpack.c.b16 %v1697, %v1689
        %v1994 = vpack.c.b16 %v1698, %v1690
        %v1995 = vpack.c.b16 %v1699, %v1691
        %v1996 = vpack.c.b16 %v1700, %v1692
        %v1997 = vpack.c.b16 %v1701, %v1693
        %v1998 = vpack.c.b16 %v1702, %v1694
        %v1999 = vpack.c.b16 %v1711, %v1703
        %v2000 = vpack.c.b16 %v1712, %v1704
        %v2001 = vpack.c.b16 %v1713, %v1705
        %v2002 = vpack.c.b16 %v1714, %v1706
        %v2003 = vpack.c.b16 %v1715, %v1707
        %v2004 = vpack.c.b16 %v1716, %v1708
        %v2005 = vpack.c.b16 %v1717, %v1709
        %v2006 = vpack.c.b16 %v1718, %v1710
        %v2007 = vpack.c.b16 %v1727, %v1719
        %v2008 = vpack.c.b16 %v1728, %v1720
        %v2009 = vpack.c.b16 %v1729, %v1721
        %v2010 = vpack.c.b16 %v1730, %v1722
        %v2011 = vpack.c.b16 %v1731, %v1723
        %v2012 = vpack.c.b16 %v1732, %v1724
        %v2013 = vpack.c.b16 %v1733, %v1725
        %v2014 = vpack.c.b16 %v1734, %v1726
        %v2015 = vpack.c.b16 %v1743, %v1735
        %v2016 = vpack.c.b16 %v1744, %v1736
        %v2017 = vpack.c.b16 %v1745, %v1737
        %v2018 = vpack.c.b16 %v1746, %v1738
        %v2019 = vpack.c.b16 %v1747, %v1739
        %v2020 = vpack.c.b16 %v1748, %v1740
        %v2021 = vpack.c.b16 %v1749, %v1741
        %v2022 = vpack.c.b16 %v1750, %v1742
        %v2023 = vpack.c.b16 %v1759, %v1751
        %v2024 = vpack.c.b16 %v1760, %v1752
        %v2025 = vpack.c.b16 %v1761, %v1753
        %v2026 = vpack.c.b16 %v1762, %v1754
        %v2027 = vpack.c.b16 %v1763, %v1755
        %v2028 = vpack.c.b16 %v1764, %v1756
        %v2029 = vpack.c.b16 %v1765, %v1757
        %v2030 = vpack.c.b16 %v1766, %v1758
        %v2031 = vpack.c.b16 %v1775, %v1767
        %v2032 = vpack.c.b16 %v1776, %v1768
        %v2033 = vpack.c.b16 %v1777, %v1769
        %v2034 = vpack.c.b16 %v1778, %v1770
        %v2035 = vpack.c.b16 %v1779, %v1771
        %v2036 = vpack.c.b16 %v1780, %v1772
        %v2037 = vpack.c.b16 %v1781, %v1773
        %v2038 = vpack.c.b16 %v1782, %v1774
        %2295 = vmatpush.bf16.msra.mxu0 %v1839
        %2296 = vmatpush.bf16.msra.mxu0 %v1831
        %2297 = vmatpush.bf16.msra.mxu0 %v1823
        %2298 = vmatpush.bf16.msra.mxu0 %v1815
        %2299 = vmatpush.bf16.msra.mxu0 %v1807
        %2300 = vmatpush.bf16.msra.mxu0 %v1799
        %2301 = vmatpush.bf16.msra.mxu0 %v1791
        %2302 = vmatpush.bf16.msra.mxu0 %v1783
        %2303 = vmatmul.bf16.gmra.mxu0 %v1007
        %v2304 = vpop.f32.mrf.mxu0
        %v2305 = vadd.f32 %v985, %v2304
        %v2306 = vpop.f32.mrf.mxu0
        %2307 = vdwg.mxu0
        %2308 = vmatpush.bf16.msra.mxu0 %v1903
        %2309 = vmatpush.bf16.msra.mxu0 %v1895
        %2310 = vmatpush.bf16.msra.mxu0 %v1887
        %2311 = vmatpush.bf16.msra.mxu0 %v1879
        %2312 = vmatpush.bf16.msra.mxu0 %v1871
        %2313 = vmatpush.bf16.msra.mxu0 %v1863
        %2314 = vmatpush.bf16.msra.mxu0 %v1855
        %2315 = vmatpush.bf16.msra.mxu0 %v1847
        %2316 = vmatmul.bf16.gmra.mxu0 %v1008
        %v2317 = vpop.f32.mrf.mxu0
        %v2318 = vadd.f32 %v2305, %v2317
        %v2319 = vpop.f32.mrf.mxu0
        %2320 = vdwg.mxu0
        %2321 = vmatpush.bf16.msra.mxu0 %v1967
        %2322 = vmatpush.bf16.msra.mxu0 %v1959
        %2323 = vmatpush.bf16.msra.mxu0 %v1951
        %2324 = vmatpush.bf16.msra.mxu0 %v1943
        %2325 = vmatpush.bf16.msra.mxu0 %v1935
        %2326 = vmatpush.bf16.msra.mxu0 %v1927
        %2327 = vmatpush.bf16.msra.mxu0 %v1919
        %2328 = vmatpush.bf16.msra.mxu0 %v1911
        %2329 = vmatmul.bf16.gmra.mxu0 %v1009
        %v2330 = vpop.f32.mrf.mxu0
        %v2331 = vadd.f32 %v2318, %v2330
        %v2332 = vpop.f32.mrf.mxu0
        %2333 = vdwg.mxu0
        %2334 = vmatpush.bf16.msra.mxu0 %v2031
        %2335 = vmatpush.bf16.msra.mxu0 %v2023
        %2336 = vmatpush.bf16.msra.mxu0 %v2015
        %2337 = vmatpush.bf16.msra.mxu0 %v2007
        %2338 = vmatpush.bf16.msra.mxu0 %v1999
        %2339 = vmatpush.bf16.msra.mxu0 %v1991
        %2340 = vmatpush.bf16.msra.mxu0 %v1983
        %2341 = vmatpush.bf16.msra.mxu0 %v1975
        %2342 = vmatmul.bf16.gmra.mxu0 %v1010
        %v2343 = vpop.f32.mrf.mxu0
        %v2344 = vadd.f32 %v2331, %v2343
        %v2345 = vpop.f32.mrf.mxu0
        %2346 = vdwg.mxu0
        %2347 = vmatpush.bf16.msra.mxu0 %v1840
        %2348 = vmatpush.bf16.msra.mxu0 %v1832
        %2349 = vmatpush.bf16.msra.mxu0 %v1824
        %2350 = vmatpush.bf16.msra.mxu0 %v1816
        %2351 = vmatpush.bf16.msra.mxu0 %v1808
        %2352 = vmatpush.bf16.msra.mxu0 %v1800
        %2353 = vmatpush.bf16.msra.mxu0 %v1792
        %2354 = vmatpush.bf16.msra.mxu0 %v1784
        %2355 = vmatmul.bf16.gmra.mxu0 %v1007
        %v2356 = vpop.f32.mrf.mxu0
        %v2357 = vadd.f32 %v986, %v2356
        %v2358 = vpop.f32.mrf.mxu0
        %2359 = vdwg.mxu0
        %2360 = vmatpush.bf16.msra.mxu0 %v1904
        %2361 = vmatpush.bf16.msra.mxu0 %v1896
        %2362 = vmatpush.bf16.msra.mxu0 %v1888
        %2363 = vmatpush.bf16.msra.mxu0 %v1880
        %2364 = vmatpush.bf16.msra.mxu0 %v1872
        %2365 = vmatpush.bf16.msra.mxu0 %v1864
        %2366 = vmatpush.bf16.msra.mxu0 %v1856
        %2367 = vmatpush.bf16.msra.mxu0 %v1848
        %2368 = vmatmul.bf16.gmra.mxu0 %v1008
        %v2369 = vpop.f32.mrf.mxu0
        %v2370 = vadd.f32 %v2357, %v2369
        %v2371 = vpop.f32.mrf.mxu0
        %2372 = vdwg.mxu0
        %2373 = vmatpush.bf16.msra.mxu0 %v1968
        %2374 = vmatpush.bf16.msra.mxu0 %v1960
        %2375 = vmatpush.bf16.msra.mxu0 %v1952
        %2376 = vmatpush.bf16.msra.mxu0 %v1944
        %2377 = vmatpush.bf16.msra.mxu0 %v1936
        %2378 = vmatpush.bf16.msra.mxu0 %v1928
        %2379 = vmatpush.bf16.msra.mxu0 %v1920
        %2380 = vmatpush.bf16.msra.mxu0 %v1912
        %2381 = vmatmul.bf16.gmra.mxu0 %v1009
        %v2382 = vpop.f32.mrf.mxu0
        %v2383 = vadd.f32 %v2370, %v2382
        %v2384 = vpop.f32.mrf.mxu0
        %2385 = vdwg.mxu0
        %2386 = vmatpush.bf16.msra.mxu0 %v2032
        %2387 = vmatpush.bf16.msra.mxu0 %v2024
        %2388 = vmatpush.bf16.msra.mxu0 %v2016
        %2389 = vmatpush.bf16.msra.mxu0 %v2008
        %2390 = vmatpush.bf16.msra.mxu0 %v2000
        %2391 = vmatpush.bf16.msra.mxu0 %v1992
        %2392 = vmatpush.bf16.msra.mxu0 %v1984
        %2393 = vmatpush.bf16.msra.mxu0 %v1976
        %2394 = vmatmul.bf16.gmra.mxu0 %v1010
        %v2395 = vpop.f32.mrf.mxu0
        %v2396 = vadd.f32 %v2383, %v2395
        %v2397 = vpop.f32.mrf.mxu0
        %2398 = vdwg.mxu0
        %2399 = vmatpush.bf16.msra.mxu0 %v1841
        %2400 = vmatpush.bf16.msra.mxu0 %v1833
        %2401 = vmatpush.bf16.msra.mxu0 %v1825
        %2402 = vmatpush.bf16.msra.mxu0 %v1817
        %2403 = vmatpush.bf16.msra.mxu0 %v1809
        %2404 = vmatpush.bf16.msra.mxu0 %v1801
        %2405 = vmatpush.bf16.msra.mxu0 %v1793
        %2406 = vmatpush.bf16.msra.mxu0 %v1785
        %2407 = vmatmul.bf16.gmra.mxu0 %v1007
        %v2408 = vpop.f32.mrf.mxu0
        %v2409 = vadd.f32 %v987, %v2408
        %v2410 = vpop.f32.mrf.mxu0
        %2411 = vdwg.mxu0
        %2412 = vmatpush.bf16.msra.mxu0 %v1905
        %2413 = vmatpush.bf16.msra.mxu0 %v1897
        %2414 = vmatpush.bf16.msra.mxu0 %v1889
        %2415 = vmatpush.bf16.msra.mxu0 %v1881
        %2416 = vmatpush.bf16.msra.mxu0 %v1873
        %2417 = vmatpush.bf16.msra.mxu0 %v1865
        %2418 = vmatpush.bf16.msra.mxu0 %v1857
        %2419 = vmatpush.bf16.msra.mxu0 %v1849
        %2420 = vmatmul.bf16.gmra.mxu0 %v1008
        %v2421 = vpop.f32.mrf.mxu0
        %v2422 = vadd.f32 %v2409, %v2421
        %v2423 = vpop.f32.mrf.mxu0
        %2424 = vdwg.mxu0
        %2425 = vmatpush.bf16.msra.mxu0 %v1969
        %2426 = vmatpush.bf16.msra.mxu0 %v1961
        %2427 = vmatpush.bf16.msra.mxu0 %v1953
        %2428 = vmatpush.bf16.msra.mxu0 %v1945
        %2429 = vmatpush.bf16.msra.mxu0 %v1937
        %2430 = vmatpush.bf16.msra.mxu0 %v1929
        %2431 = vmatpush.bf16.msra.mxu0 %v1921
        %2432 = vmatpush.bf16.msra.mxu0 %v1913
        %2433 = vmatmul.bf16.gmra.mxu0 %v1009
        %v2434 = vpop.f32.mrf.mxu0
        %v2435 = vadd.f32 %v2422, %v2434
        %v2436 = vpop.f32.mrf.mxu0
        %2437 = vdwg.mxu0
        %2438 = vmatpush.bf16.msra.mxu0 %v2033
        %2439 = vmatpush.bf16.msra.mxu0 %v2025
        %2440 = vmatpush.bf16.msra.mxu0 %v2017
        %2441 = vmatpush.bf16.msra.mxu0 %v2009
        %2442 = vmatpush.bf16.msra.mxu0 %v2001
        %2443 = vmatpush.bf16.msra.mxu0 %v1993
        %2444 = vmatpush.bf16.msra.mxu0 %v1985
        %2445 = vmatpush.bf16.msra.mxu0 %v1977
        %2446 = vmatmul.bf16.gmra.mxu0 %v1010
        %v2447 = vpop.f32.mrf.mxu0
        %v2448 = vadd.f32 %v2435, %v2447
        %v2449 = vpop.f32.mrf.mxu0
        %2450 = vdwg.mxu0
        %2451 = vmatpush.bf16.msra.mxu0 %v1842
        %2452 = vmatpush.bf16.msra.mxu0 %v1834
        %2453 = vmatpush.bf16.msra.mxu0 %v1826
        %2454 = vmatpush.bf16.msra.mxu0 %v1818
        %2455 = vmatpush.bf16.msra.mxu0 %v1810
        %2456 = vmatpush.bf16.msra.mxu0 %v1802
        %2457 = vmatpush.bf16.msra.mxu0 %v1794
        %2458 = vmatpush.bf16.msra.mxu0 %v1786
        %2459 = vmatmul.bf16.gmra.mxu0 %v1007
        %v2460 = vpop.f32.mrf.mxu0
        %v2461 = vadd.f32 %v988, %v2460
        %v2462 = vpop.f32.mrf.mxu0
        %2463 = vdwg.mxu0
        %2464 = vmatpush.bf16.msra.mxu0 %v1906
        %2465 = vmatpush.bf16.msra.mxu0 %v1898
        %2466 = vmatpush.bf16.msra.mxu0 %v1890
        %2467 = vmatpush.bf16.msra.mxu0 %v1882
        %2468 = vmatpush.bf16.msra.mxu0 %v1874
        %2469 = vmatpush.bf16.msra.mxu0 %v1866
        %2470 = vmatpush.bf16.msra.mxu0 %v1858
        %2471 = vmatpush.bf16.msra.mxu0 %v1850
        %2472 = vmatmul.bf16.gmra.mxu0 %v1008
        %v2473 = vpop.f32.mrf.mxu0
        %v2474 = vadd.f32 %v2461, %v2473
        %v2475 = vpop.f32.mrf.mxu0
        %2476 = vdwg.mxu0
        %2477 = vmatpush.bf16.msra.mxu0 %v1970
        %2478 = vmatpush.bf16.msra.mxu0 %v1962
        %2479 = vmatpush.bf16.msra.mxu0 %v1954
        %2480 = vmatpush.bf16.msra.mxu0 %v1946
        %2481 = vmatpush.bf16.msra.mxu0 %v1938
        %2482 = vmatpush.bf16.msra.mxu0 %v1930
        %2483 = vmatpush.bf16.msra.mxu0 %v1922
        %2484 = vmatpush.bf16.msra.mxu0 %v1914
        %2485 = vmatmul.bf16.gmra.mxu0 %v1009
        %v2486 = vpop.f32.mrf.mxu0
        %v2487 = vadd.f32 %v2474, %v2486
        %v2488 = vpop.f32.mrf.mxu0
        %2489 = vdwg.mxu0
        %2490 = vmatpush.bf16.msra.mxu0 %v2034
        %2491 = vmatpush.bf16.msra.mxu0 %v2026
        %2492 = vmatpush.bf16.msra.mxu0 %v2018
        %2493 = vmatpush.bf16.msra.mxu0 %v2010
        %2494 = vmatpush.bf16.msra.mxu0 %v2002
        %2495 = vmatpush.bf16.msra.mxu0 %v1994
        %2496 = vmatpush.bf16.msra.mxu0 %v1986
        %2497 = vmatpush.bf16.msra.mxu0 %v1978
        %2498 = vmatmul.bf16.gmra.mxu0 %v1010
        %v2499 = vpop.f32.mrf.mxu0
        %v2500 = vadd.f32 %v2487, %v2499
        %v2501 = vpop.f32.mrf.mxu0
        %2502 = vdwg.mxu0
        %2503 = vmatpush.bf16.msra.mxu0 %v1843
        %2504 = vmatpush.bf16.msra.mxu0 %v1835
        %2505 = vmatpush.bf16.msra.mxu0 %v1827
        %2506 = vmatpush.bf16.msra.mxu0 %v1819
        %2507 = vmatpush.bf16.msra.mxu0 %v1811
        %2508 = vmatpush.bf16.msra.mxu0 %v1803
        %2509 = vmatpush.bf16.msra.mxu0 %v1795
        %2510 = vmatpush.bf16.msra.mxu0 %v1787
        %2511 = vmatmul.bf16.gmra.mxu0 %v1007
        %v2512 = vpop.f32.mrf.mxu0
        %v2513 = vadd.f32 %v989, %v2512
        %v2514 = vpop.f32.mrf.mxu0
        %2515 = vdwg.mxu0
        %2516 = vmatpush.bf16.msra.mxu0 %v1907
        %2517 = vmatpush.bf16.msra.mxu0 %v1899
        %2518 = vmatpush.bf16.msra.mxu0 %v1891
        %2519 = vmatpush.bf16.msra.mxu0 %v1883
        %2520 = vmatpush.bf16.msra.mxu0 %v1875
        %2521 = vmatpush.bf16.msra.mxu0 %v1867
        %2522 = vmatpush.bf16.msra.mxu0 %v1859
        %2523 = vmatpush.bf16.msra.mxu0 %v1851
        %2524 = vmatmul.bf16.gmra.mxu0 %v1008
        %v2525 = vpop.f32.mrf.mxu0
        %v2526 = vadd.f32 %v2513, %v2525
        %v2527 = vpop.f32.mrf.mxu0
        %2528 = vdwg.mxu0
        %2529 = vmatpush.bf16.msra.mxu0 %v1971
        %2530 = vmatpush.bf16.msra.mxu0 %v1963
        %2531 = vmatpush.bf16.msra.mxu0 %v1955
        %2532 = vmatpush.bf16.msra.mxu0 %v1947
        %2533 = vmatpush.bf16.msra.mxu0 %v1939
        %2534 = vmatpush.bf16.msra.mxu0 %v1931
        %2535 = vmatpush.bf16.msra.mxu0 %v1923
        %2536 = vmatpush.bf16.msra.mxu0 %v1915
        %2537 = vmatmul.bf16.gmra.mxu0 %v1009
        %v2538 = vpop.f32.mrf.mxu0
        %v2539 = vadd.f32 %v2526, %v2538
        %v2540 = vpop.f32.mrf.mxu0
        %2541 = vdwg.mxu0
        %2542 = vmatpush.bf16.msra.mxu0 %v2035
        %2543 = vmatpush.bf16.msra.mxu0 %v2027
        %2544 = vmatpush.bf16.msra.mxu0 %v2019
        %2545 = vmatpush.bf16.msra.mxu0 %v2011
        %2546 = vmatpush.bf16.msra.mxu0 %v2003
        %2547 = vmatpush.bf16.msra.mxu0 %v1995
        %2548 = vmatpush.bf16.msra.mxu0 %v1987
        %2549 = vmatpush.bf16.msra.mxu0 %v1979
        %2550 = vmatmul.bf16.gmra.mxu0 %v1010
        %v2551 = vpop.f32.mrf.mxu0
        %v2552 = vadd.f32 %v2539, %v2551
        %v2553 = vpop.f32.mrf.mxu0
        %2554 = vdwg.mxu0
        %2555 = vmatpush.bf16.msra.mxu0 %v1844
        %2556 = vmatpush.bf16.msra.mxu0 %v1836
        %2557 = vmatpush.bf16.msra.mxu0 %v1828
        %2558 = vmatpush.bf16.msra.mxu0 %v1820
        %2559 = vmatpush.bf16.msra.mxu0 %v1812
        %2560 = vmatpush.bf16.msra.mxu0 %v1804
        %2561 = vmatpush.bf16.msra.mxu0 %v1796
        %2562 = vmatpush.bf16.msra.mxu0 %v1788
        %2563 = vmatmul.bf16.gmra.mxu0 %v1007
        %v2564 = vpop.f32.mrf.mxu0
        %v2565 = vadd.f32 %v990, %v2564
        %v2566 = vpop.f32.mrf.mxu0
        %2567 = vdwg.mxu0
        %2568 = vmatpush.bf16.msra.mxu0 %v1908
        %2569 = vmatpush.bf16.msra.mxu0 %v1900
        %2570 = vmatpush.bf16.msra.mxu0 %v1892
        %2571 = vmatpush.bf16.msra.mxu0 %v1884
        %2572 = vmatpush.bf16.msra.mxu0 %v1876
        %2573 = vmatpush.bf16.msra.mxu0 %v1868
        %2574 = vmatpush.bf16.msra.mxu0 %v1860
        %2575 = vmatpush.bf16.msra.mxu0 %v1852
        %2576 = vmatmul.bf16.gmra.mxu0 %v1008
        %v2577 = vpop.f32.mrf.mxu0
        %v2578 = vadd.f32 %v2565, %v2577
        %v2579 = vpop.f32.mrf.mxu0
        %2580 = vdwg.mxu0
        %2581 = vmatpush.bf16.msra.mxu0 %v1972
        %2582 = vmatpush.bf16.msra.mxu0 %v1964
        %2583 = vmatpush.bf16.msra.mxu0 %v1956
        %2584 = vmatpush.bf16.msra.mxu0 %v1948
        %2585 = vmatpush.bf16.msra.mxu0 %v1940
        %2586 = vmatpush.bf16.msra.mxu0 %v1932
        %2587 = vmatpush.bf16.msra.mxu0 %v1924
        %2588 = vmatpush.bf16.msra.mxu0 %v1916
        %2589 = vmatmul.bf16.gmra.mxu0 %v1009
        %v2590 = vpop.f32.mrf.mxu0
        %v2591 = vadd.f32 %v2578, %v2590
        %v2592 = vpop.f32.mrf.mxu0
        %2593 = vdwg.mxu0
        %2594 = vmatpush.bf16.msra.mxu0 %v2036
        %2595 = vmatpush.bf16.msra.mxu0 %v2028
        %2596 = vmatpush.bf16.msra.mxu0 %v2020
        %2597 = vmatpush.bf16.msra.mxu0 %v2012
        %2598 = vmatpush.bf16.msra.mxu0 %v2004
        %2599 = vmatpush.bf16.msra.mxu0 %v1996
        %2600 = vmatpush.bf16.msra.mxu0 %v1988
        %2601 = vmatpush.bf16.msra.mxu0 %v1980
        %2602 = vmatmul.bf16.gmra.mxu0 %v1010
        %v2603 = vpop.f32.mrf.mxu0
        %v2604 = vadd.f32 %v2591, %v2603
        %v2605 = vpop.f32.mrf.mxu0
        %2606 = vdwg.mxu0
        %2607 = vmatpush.bf16.msra.mxu0 %v1845
        %2608 = vmatpush.bf16.msra.mxu0 %v1837
        %2609 = vmatpush.bf16.msra.mxu0 %v1829
        %2610 = vmatpush.bf16.msra.mxu0 %v1821
        %2611 = vmatpush.bf16.msra.mxu0 %v1813
        %2612 = vmatpush.bf16.msra.mxu0 %v1805
        %2613 = vmatpush.bf16.msra.mxu0 %v1797
        %2614 = vmatpush.bf16.msra.mxu0 %v1789
        %2615 = vmatmul.bf16.gmra.mxu0 %v1007
        %v2616 = vpop.f32.mrf.mxu0
        %v2617 = vadd.f32 %v991, %v2616
        %v2618 = vpop.f32.mrf.mxu0
        %2619 = vdwg.mxu0
        %2620 = vmatpush.bf16.msra.mxu0 %v1909
        %2621 = vmatpush.bf16.msra.mxu0 %v1901
        %2622 = vmatpush.bf16.msra.mxu0 %v1893
        %2623 = vmatpush.bf16.msra.mxu0 %v1885
        %2624 = vmatpush.bf16.msra.mxu0 %v1877
        %2625 = vmatpush.bf16.msra.mxu0 %v1869
        %2626 = vmatpush.bf16.msra.mxu0 %v1861
        %2627 = vmatpush.bf16.msra.mxu0 %v1853
        %2628 = vmatmul.bf16.gmra.mxu0 %v1008
        %v2629 = vpop.f32.mrf.mxu0
        %v2630 = vadd.f32 %v2617, %v2629
        %v2631 = vpop.f32.mrf.mxu0
        %2632 = vdwg.mxu0
        %2633 = vmatpush.bf16.msra.mxu0 %v1973
        %2634 = vmatpush.bf16.msra.mxu0 %v1965
        %2635 = vmatpush.bf16.msra.mxu0 %v1957
        %2636 = vmatpush.bf16.msra.mxu0 %v1949
        %2637 = vmatpush.bf16.msra.mxu0 %v1941
        %2638 = vmatpush.bf16.msra.mxu0 %v1933
        %2639 = vmatpush.bf16.msra.mxu0 %v1925
        %2640 = vmatpush.bf16.msra.mxu0 %v1917
        %2641 = vmatmul.bf16.gmra.mxu0 %v1009
        %v2642 = vpop.f32.mrf.mxu0
        %v2643 = vadd.f32 %v2630, %v2642
        %v2644 = vpop.f32.mrf.mxu0
        %2645 = vdwg.mxu0
        %2646 = vmatpush.bf16.msra.mxu0 %v2037
        %2647 = vmatpush.bf16.msra.mxu0 %v2029
        %2648 = vmatpush.bf16.msra.mxu0 %v2021
        %2649 = vmatpush.bf16.msra.mxu0 %v2013
        %2650 = vmatpush.bf16.msra.mxu0 %v2005
        %2651 = vmatpush.bf16.msra.mxu0 %v1997
        %2652 = vmatpush.bf16.msra.mxu0 %v1989
        %2653 = vmatpush.bf16.msra.mxu0 %v1981
        %2654 = vmatmul.bf16.gmra.mxu0 %v1010
        %v2655 = vpop.f32.mrf.mxu0
        %v2656 = vadd.f32 %v2643, %v2655
        %v2657 = vpop.f32.mrf.mxu0
        %2658 = vdwg.mxu0
        %2659 = vmatpush.bf16.msra.mxu0 %v1846
        %2660 = vmatpush.bf16.msra.mxu0 %v1838
        %2661 = vmatpush.bf16.msra.mxu0 %v1830
        %2662 = vmatpush.bf16.msra.mxu0 %v1822
        %2663 = vmatpush.bf16.msra.mxu0 %v1814
        %2664 = vmatpush.bf16.msra.mxu0 %v1806
        %2665 = vmatpush.bf16.msra.mxu0 %v1798
        %2666 = vmatpush.bf16.msra.mxu0 %v1790
        %2667 = vmatmul.bf16.gmra.mxu0 %v1007
        %v2668 = vpop.f32.mrf.mxu0
        %v2669 = vadd.f32 %v992, %v2668
        %v2670 = vpop.f32.mrf.mxu0
        %2671 = vdwg.mxu0
        %2672 = vmatpush.bf16.msra.mxu0 %v1910
        %2673 = vmatpush.bf16.msra.mxu0 %v1902
        %2674 = vmatpush.bf16.msra.mxu0 %v1894
        %2675 = vmatpush.bf16.msra.mxu0 %v1886
        %2676 = vmatpush.bf16.msra.mxu0 %v1878
        %2677 = vmatpush.bf16.msra.mxu0 %v1870
        %2678 = vmatpush.bf16.msra.mxu0 %v1862
        %2679 = vmatpush.bf16.msra.mxu0 %v1854
        %2680 = vmatmul.bf16.gmra.mxu0 %v1008
        %v2681 = vpop.f32.mrf.mxu0
        %v2682 = vadd.f32 %v2669, %v2681
        %v2683 = vpop.f32.mrf.mxu0
        %2684 = vdwg.mxu0
        %2685 = vmatpush.bf16.msra.mxu0 %v1974
        %2686 = vmatpush.bf16.msra.mxu0 %v1966
        %2687 = vmatpush.bf16.msra.mxu0 %v1958
        %2688 = vmatpush.bf16.msra.mxu0 %v1950
        %2689 = vmatpush.bf16.msra.mxu0 %v1942
        %2690 = vmatpush.bf16.msra.mxu0 %v1934
        %2691 = vmatpush.bf16.msra.mxu0 %v1926
        %2692 = vmatpush.bf16.msra.mxu0 %v1918
        %2693 = vmatmul.bf16.gmra.mxu0 %v1009
        %v2694 = vpop.f32.mrf.mxu0
        %v2695 = vadd.f32 %v2682, %v2694
        %v2696 = vpop.f32.mrf.mxu0
        %2697 = vdwg.mxu0
        %2698 = vmatpush.bf16.msra.mxu0 %v2038
        %2699 = vmatpush.bf16.msra.mxu0 %v2030
        %2700 = vmatpush.bf16.msra.mxu0 %v2022
        %2701 = vmatpush.bf16.msra.mxu0 %v2014
        %2702 = vmatpush.bf16.msra.mxu0 %v2006
        %2703 = vmatpush.bf16.msra.mxu0 %v1998
        %2704 = vmatpush.bf16.msra.mxu0 %v1990
        %2705 = vmatpush.bf16.msra.mxu0 %v1982
        %2706 = vmatmul.bf16.gmra.mxu0 %v1010
        %v2707 = vpop.f32.mrf.mxu0
        %v2708 = vadd.f32 %v2695, %v2707
        %v2709 = vpop.f32.mrf.mxu0
        %2710 = vdwg.mxu0
        %v2711 = vtanh.pop %v2344
        %v2712 = vtanh.pop %v2396
        %v2713 = vtanh.pop %v2448
        %v2714 = vtanh.pop %v2500
        %v2715 = vtanh.pop %v2552
        %v2716 = vtanh.pop %v2604
        %v2717 = vtanh.pop %v2656
        %v2718 = vtanh.pop %v2708
        %v2719 = vmul.f32 %v2711, %v717
        %v2720 = vmul.f32 %v2712, %v718
        %v2721 = vmul.f32 %v2713, %v719
        %v2722 = vmul.f32 %v2714, %v720
        %v2723 = vmul.f32 %v2715, %v721
        %v2724 = vmul.f32 %v2716, %v722
        %v2725 = vmul.f32 %v2717, %v723
        %v2726 = vmul.f32 %v2718, %v724
        %v2727 = vpack.c.bf16 %v2719, %v2719
        %v2728 = vpack.c.bf16 %v2720, %v2720
        %v2729 = vpack.c.bf16 %v2721, %v2721
        %v2730 = vpack.c.bf16 %v2722, %v2722
        %v2731 = vpack.c.bf16 %v2723, %v2723
        %v2732 = vpack.c.bf16 %v2724, %v2724
        %v2733 = vpack.c.bf16 %v2725, %v2725
        %v2734 = vpack.c.bf16 %v2726, %v2726
        %v2735 = vld [vmem:[%s365] sm:$0xff]
        %v2736 = vld [vmem:[%s365 + $0x8] sm:$0xff]
        %v2737 = vld [vmem:[%s365 + $0x10] sm:$0xff]
        %v2738 = vld [vmem:[%s365 + $0x18] sm:$0xff]
        %v2739 = vld [vmem:[%s365 + $0x20] sm:$0xff]
        %v2740 = vld [vmem:[%s365 + $0x28] sm:$0xff]
        %v2741 = vld [vmem:[%s365 + $0x30] sm:$0xff]
        %v2742 = vld [vmem:[%s365 + $0x38] sm:$0xff]
        %v2743 = vld [vmem:[%s365 + $0x40] sm:$0xff]
        %v2744 = vld [vmem:[%s365 + $0x48] sm:$0xff]
        %v2745 = vld [vmem:[%s365 + $0x50] sm:$0xff]
        %v2746 = vld [vmem:[%s365 + $0x58] sm:$0xff]
        %v2747 = vld [vmem:[%s365 + $0x60] sm:$0xff]
        %v2748 = vld [vmem:[%s365 + $0x68] sm:$0xff]
        %v2749 = vld [vmem:[%s365 + $0x70] sm:$0xff]
        %v2750 = vld [vmem:[%s365 + $0x78] sm:$0xff]
        %v2751 = vld [vmem:[%s365 + $0x80] sm:$0xff]
        %v2752 = vld [vmem:[%s365 + $0x88] sm:$0xff]
        %v2753 = vld [vmem:[%s365 + $0x90] sm:$0xff]
        %v2754 = vld [vmem:[%s365 + $0x98] sm:$0xff]
        %v2755 = vld [vmem:[%s365 + $0xa0] sm:$0xff]
        %v2756 = vld [vmem:[%s365 + $0xa8] sm:$0xff]
        %v2757 = vld [vmem:[%s365 + $0xb0] sm:$0xff]
        %v2758 = vld [vmem:[%s365 + $0xb8] sm:$0xff]
        %v2759 = vld [vmem:[%s365 + $0xc0] sm:$0xff]
        %v2760 = vld [vmem:[%s365 + $0xc8] sm:$0xff]
        %v2761 = vld [vmem:[%s365 + $0xd0] sm:$0xff]
        %v2762 = vld [vmem:[%s365 + $0xd8] sm:$0xff]
        %v2763 = vld [vmem:[%s365 + $0xe0] sm:$0xff]
        %v2764 = vld [vmem:[%s365 + $0xe8] sm:$0xff]
        %v2765 = vld [vmem:[%s365 + $0xf0] sm:$0xff]
        %v2766 = vld [vmem:[%s365 + $0xf8] sm:$0xff]
        %v2767 = vld [vmem:[%s365 + $0x100] sm:$0xff]
        %v2768 = vld [vmem:[%s365 + $0x108] sm:$0xff]
        %v2769 = vld [vmem:[%s365 + $0x110] sm:$0xff]
        %v2770 = vld [vmem:[%s365 + $0x118] sm:$0xff]
        %v2771 = vld [vmem:[%s365 + $0x120] sm:$0xff]
        %v2772 = vld [vmem:[%s365 + $0x128] sm:$0xff]
        %v2773 = vld [vmem:[%s365 + $0x130] sm:$0xff]
        %v2774 = vld [vmem:[%s365 + $0x138] sm:$0xff]
        %v2775 = vld [vmem:[%s365 + $0x140] sm:$0xff]
        %v2776 = vld [vmem:[%s365 + $0x148] sm:$0xff]
        %v2777 = vld [vmem:[%s365 + $0x150] sm:$0xff]
        %v2778 = vld [vmem:[%s365 + $0x158] sm:$0xff]
        %v2779 = vld [vmem:[%s365 + $0x160] sm:$0xff]
        %v2780 = vld [vmem:[%s365 + $0x168] sm:$0xff]
        %v2781 = vld [vmem:[%s365 + $0x170] sm:$0xff]
        %v2782 = vld [vmem:[%s365 + $0x178] sm:$0xff]
        %v2783 = vld [vmem:[%s365 + $0x180] sm:$0xff]
        %v2784 = vld [vmem:[%s365 + $0x188] sm:$0xff]
        %v2785 = vld [vmem:[%s365 + $0x190] sm:$0xff]
        %v2786 = vld [vmem:[%s365 + $0x198] sm:$0xff]
        %v2787 = vld [vmem:[%s365 + $0x1a0] sm:$0xff]
        %v2788 = vld [vmem:[%s365 + $0x1a8] sm:$0xff]
        %v2789 = vld [vmem:[%s365 + $0x1b0] sm:$0xff]
        %v2790 = vld [vmem:[%s365 + $0x1b8] sm:$0xff]
        %v2791 = vld [vmem:[%s365 + $0x1c0] sm:$0xff]
        %v2792 = vld [vmem:[%s365 + $0x1c8] sm:$0xff]
        %v2793 = vld [vmem:[%s365 + $0x1d0] sm:$0xff]
        %v2794 = vld [vmem:[%s365 + $0x1d8] sm:$0xff]
        %v2795 = vld [vmem:[%s365 + $0x1e0] sm:$0xff]
        %v2796 = vld [vmem:[%s365 + $0x1e8] sm:$0xff]
        %v2797 = vld [vmem:[%s365 + $0x1f0] sm:$0xff]
        %v2798 = vld [vmem:[%s365 + $0x1f8] sm:$0xff]
        %v2799 = vld [vmem:[%s365 + $0x200] sm:$0xff]
        %v2800 = vld [vmem:[%s365 + $0x208] sm:$0xff]
        %v2801 = vld [vmem:[%s365 + $0x210] sm:$0xff]
        %v2802 = vld [vmem:[%s365 + $0x218] sm:$0xff]
        %v2803 = vld [vmem:[%s365 + $0x220] sm:$0xff]
        %v2804 = vld [vmem:[%s365 + $0x228] sm:$0xff]
        %v2805 = vld [vmem:[%s365 + $0x230] sm:$0xff]
        %v2806 = vld [vmem:[%s365 + $0x238] sm:$0xff]
        %v2807 = vld [vmem:[%s365 + $0x240] sm:$0xff]
        %v2808 = vld [vmem:[%s365 + $0x248] sm:$0xff]
        %v2809 = vld [vmem:[%s365 + $0x250] sm:$0xff]
        %v2810 = vld [vmem:[%s365 + $0x258] sm:$0xff]
        %v2811 = vld [vmem:[%s365 + $0x260] sm:$0xff]
        %v2812 = vld [vmem:[%s365 + $0x268] sm:$0xff]
        %v2813 = vld [vmem:[%s365 + $0x270] sm:$0xff]
        %v2814 = vld [vmem:[%s365 + $0x278] sm:$0xff]
        %v2815 = vld [vmem:[%s365 + $0x280] sm:$0xff]
        %v2816 = vld [vmem:[%s365 + $0x288] sm:$0xff]
        %v2817 = vld [vmem:[%s365 + $0x290] sm:$0xff]
        %v2818 = vld [vmem:[%s365 + $0x298] sm:$0xff]
        %v2819 = vld [vmem:[%s365 + $0x2a0] sm:$0xff]
        %v2820 = vld [vmem:[%s365 + $0x2a8] sm:$0xff]
        %v2821 = vld [vmem:[%s365 + $0x2b0] sm:$0xff]
        %v2822 = vld [vmem:[%s365 + $0x2b8] sm:$0xff]
        %v2823 = vld [vmem:[%s365 + $0x2c0] sm:$0xff]
        %v2824 = vld [vmem:[%s365 + $0x2c8] sm:$0xff]
        %v2825 = vld [vmem:[%s365 + $0x2d0] sm:$0xff]
        %v2826 = vld [vmem:[%s365 + $0x2d8] sm:$0xff]
        %v2827 = vld [vmem:[%s365 + $0x2e0] sm:$0xff]
        %v2828 = vld [vmem:[%s365 + $0x2e8] sm:$0xff]
        %v2829 = vld [vmem:[%s365 + $0x2f0] sm:$0xff]
        %v2830 = vld [vmem:[%s365 + $0x2f8] sm:$0xff]
        %v2831 = vld [vmem:[%s365 + $0x300] sm:$0xff]
        %v2832 = vld [vmem:[%s365 + $0x308] sm:$0xff]
        %v2833 = vld [vmem:[%s365 + $0x310] sm:$0xff]
        %v2834 = vld [vmem:[%s365 + $0x318] sm:$0xff]
        %v2835 = vld [vmem:[%s365 + $0x320] sm:$0xff]
        %v2836 = vld [vmem:[%s365 + $0x328] sm:$0xff]
        %v2837 = vld [vmem:[%s365 + $0x330] sm:$0xff]
        %v2838 = vld [vmem:[%s365 + $0x338] sm:$0xff]
        %v2839 = vld [vmem:[%s365 + $0x340] sm:$0xff]
        %v2840 = vld [vmem:[%s365 + $0x348] sm:$0xff]
        %v2841 = vld [vmem:[%s365 + $0x350] sm:$0xff]
        %v2842 = vld [vmem:[%s365 + $0x358] sm:$0xff]
        %v2843 = vld [vmem:[%s365 + $0x360] sm:$0xff]
        %v2844 = vld [vmem:[%s365 + $0x368] sm:$0xff]
        %v2845 = vld [vmem:[%s365 + $0x370] sm:$0xff]
        %v2846 = vld [vmem:[%s365 + $0x378] sm:$0xff]
        %v2847 = vld [vmem:[%s365 + $0x380] sm:$0xff]
        %v2848 = vld [vmem:[%s365 + $0x388] sm:$0xff]
        %v2849 = vld [vmem:[%s365 + $0x390] sm:$0xff]
        %v2850 = vld [vmem:[%s365 + $0x398] sm:$0xff]
        %v2851 = vld [vmem:[%s365 + $0x3a0] sm:$0xff]
        %v2852 = vld [vmem:[%s365 + $0x3a8] sm:$0xff]
        %v2853 = vld [vmem:[%s365 + $0x3b0] sm:$0xff]
        %v2854 = vld [vmem:[%s365 + $0x3b8] sm:$0xff]
        %v2855 = vld [vmem:[%s365 + $0x3c0] sm:$0xff]
        %v2856 = vld [vmem:[%s365 + $0x3c8] sm:$0xff]
        %v2857 = vld [vmem:[%s365 + $0x3d0] sm:$0xff]
        %v2858 = vld [vmem:[%s365 + $0x3d8] sm:$0xff]
        %v2859 = vld [vmem:[%s365 + $0x3e0] sm:$0xff]
        %v2860 = vld [vmem:[%s365 + $0x3e8] sm:$0xff]
        %v2861 = vld [vmem:[%s365 + $0x3f0] sm:$0xff]
        %v2862 = vld [vmem:[%s365 + $0x3f8] sm:$0xff]
        %v2863 = vld [vmem:[%s365 + $0x400] sm:$0xff]
        %v2864 = vld [vmem:[%s365 + $0x408] sm:$0xff]
        %v2865 = vld [vmem:[%s365 + $0x410] sm:$0xff]
        %v2866 = vld [vmem:[%s365 + $0x418] sm:$0xff]
        %v2867 = vld [vmem:[%s365 + $0x420] sm:$0xff]
        %v2868 = vld [vmem:[%s365 + $0x428] sm:$0xff]
        %v2869 = vld [vmem:[%s365 + $0x430] sm:$0xff]
        %v2870 = vld [vmem:[%s365 + $0x438] sm:$0xff]
        %v2871 = vld [vmem:[%s365 + $0x440] sm:$0xff]
        %v2872 = vld [vmem:[%s365 + $0x448] sm:$0xff]
        %v2873 = vld [vmem:[%s365 + $0x450] sm:$0xff]
        %v2874 = vld [vmem:[%s365 + $0x458] sm:$0xff]
        %v2875 = vld [vmem:[%s365 + $0x460] sm:$0xff]
        %v2876 = vld [vmem:[%s365 + $0x468] sm:$0xff]
        %v2877 = vld [vmem:[%s365 + $0x470] sm:$0xff]
        %v2878 = vld [vmem:[%s365 + $0x478] sm:$0xff]
        %v2879 = vld [vmem:[%s365 + $0x480] sm:$0xff]
        %v2880 = vld [vmem:[%s365 + $0x488] sm:$0xff]
        %v2881 = vld [vmem:[%s365 + $0x490] sm:$0xff]
        %v2882 = vld [vmem:[%s365 + $0x498] sm:$0xff]
        %v2883 = vld [vmem:[%s365 + $0x4a0] sm:$0xff]
        %v2884 = vld [vmem:[%s365 + $0x4a8] sm:$0xff]
        %v2885 = vld [vmem:[%s365 + $0x4b0] sm:$0xff]
        %v2886 = vld [vmem:[%s365 + $0x4b8] sm:$0xff]
        %v2887 = vld [vmem:[%s365 + $0x4c0] sm:$0xff]
        %v2888 = vld [vmem:[%s365 + $0x4c8] sm:$0xff]
        %v2889 = vld [vmem:[%s365 + $0x4d0] sm:$0xff]
        %v2890 = vld [vmem:[%s365 + $0x4d8] sm:$0xff]
        %v2891 = vld [vmem:[%s365 + $0x4e0] sm:$0xff]
        %v2892 = vld [vmem:[%s365 + $0x4e8] sm:$0xff]
        %v2893 = vld [vmem:[%s365 + $0x4f0] sm:$0xff]
        %v2894 = vld [vmem:[%s365 + $0x4f8] sm:$0xff]
        %v2895 = vld [vmem:[%s365 + $0x500] sm:$0xff]
        %v2896 = vld [vmem:[%s365 + $0x508] sm:$0xff]
        %v2897 = vld [vmem:[%s365 + $0x510] sm:$0xff]
        %v2898 = vld [vmem:[%s365 + $0x518] sm:$0xff]
        %v2899 = vld [vmem:[%s365 + $0x520] sm:$0xff]
        %v2900 = vld [vmem:[%s365 + $0x528] sm:$0xff]
        %v2901 = vld [vmem:[%s365 + $0x530] sm:$0xff]
        %v2902 = vld [vmem:[%s365 + $0x538] sm:$0xff]
        %v2903 = vld [vmem:[%s365 + $0x540] sm:$0xff]
        %v2904 = vld [vmem:[%s365 + $0x548] sm:$0xff]
        %v2905 = vld [vmem:[%s365 + $0x550] sm:$0xff]
        %v2906 = vld [vmem:[%s365 + $0x558] sm:$0xff]
        %v2907 = vld [vmem:[%s365 + $0x560] sm:$0xff]
        %v2908 = vld [vmem:[%s365 + $0x568] sm:$0xff]
        %v2909 = vld [vmem:[%s365 + $0x570] sm:$0xff]
        %v2910 = vld [vmem:[%s365 + $0x578] sm:$0xff]
        %v2911 = vld [vmem:[%s365 + $0x580] sm:$0xff]
        %v2912 = vld [vmem:[%s365 + $0x588] sm:$0xff]
        %v2913 = vld [vmem:[%s365 + $0x590] sm:$0xff]
        %v2914 = vld [vmem:[%s365 + $0x598] sm:$0xff]
        %v2915 = vld [vmem:[%s365 + $0x5a0] sm:$0xff]
        %v2916 = vld [vmem:[%s365 + $0x5a8] sm:$0xff]
        %v2917 = vld [vmem:[%s365 + $0x5b0] sm:$0xff]
        %v2918 = vld [vmem:[%s365 + $0x5b8] sm:$0xff]
        %v2919 = vld [vmem:[%s365 + $0x5c0] sm:$0xff]
        %v2920 = vld [vmem:[%s365 + $0x5c8] sm:$0xff]
        %v2921 = vld [vmem:[%s365 + $0x5d0] sm:$0xff]
        %v2922 = vld [vmem:[%s365 + $0x5d8] sm:$0xff]
        %v2923 = vld [vmem:[%s365 + $0x5e0] sm:$0xff]
        %v2924 = vld [vmem:[%s365 + $0x5e8] sm:$0xff]
        %v2925 = vld [vmem:[%s365 + $0x5f0] sm:$0xff]
        %v2926 = vld [vmem:[%s365 + $0x5f8] sm:$0xff]
        %v2927 = vld [vmem:[%s365 + $0x600] sm:$0xff]
        %v2928 = vld [vmem:[%s365 + $0x608] sm:$0xff]
        %v2929 = vld [vmem:[%s365 + $0x610] sm:$0xff]
        %v2930 = vld [vmem:[%s365 + $0x618] sm:$0xff]
        %v2931 = vld [vmem:[%s365 + $0x620] sm:$0xff]
        %v2932 = vld [vmem:[%s365 + $0x628] sm:$0xff]
        %v2933 = vld [vmem:[%s365 + $0x630] sm:$0xff]
        %v2934 = vld [vmem:[%s365 + $0x638] sm:$0xff]
        %v2935 = vld [vmem:[%s365 + $0x640] sm:$0xff]
        %v2936 = vld [vmem:[%s365 + $0x648] sm:$0xff]
        %v2937 = vld [vmem:[%s365 + $0x650] sm:$0xff]
        %v2938 = vld [vmem:[%s365 + $0x658] sm:$0xff]
        %v2939 = vld [vmem:[%s365 + $0x660] sm:$0xff]
        %v2940 = vld [vmem:[%s365 + $0x668] sm:$0xff]
        %v2941 = vld [vmem:[%s365 + $0x670] sm:$0xff]
        %v2942 = vld [vmem:[%s365 + $0x678] sm:$0xff]
        %v2943 = vld [vmem:[%s365 + $0x680] sm:$0xff]
        %v2944 = vld [vmem:[%s365 + $0x688] sm:$0xff]
        %v2945 = vld [vmem:[%s365 + $0x690] sm:$0xff]
        %v2946 = vld [vmem:[%s365 + $0x698] sm:$0xff]
        %v2947 = vld [vmem:[%s365 + $0x6a0] sm:$0xff]
        %v2948 = vld [vmem:[%s365 + $0x6a8] sm:$0xff]
        %v2949 = vld [vmem:[%s365 + $0x6b0] sm:$0xff]
        %v2950 = vld [vmem:[%s365 + $0x6b8] sm:$0xff]
        %v2951 = vld [vmem:[%s365 + $0x6c0] sm:$0xff]
        %v2952 = vld [vmem:[%s365 + $0x6c8] sm:$0xff]
        %v2953 = vld [vmem:[%s365 + $0x6d0] sm:$0xff]
        %v2954 = vld [vmem:[%s365 + $0x6d8] sm:$0xff]
        %v2955 = vld [vmem:[%s365 + $0x6e0] sm:$0xff]
        %v2956 = vld [vmem:[%s365 + $0x6e8] sm:$0xff]
        %v2957 = vld [vmem:[%s365 + $0x6f0] sm:$0xff]
        %v2958 = vld [vmem:[%s365 + $0x6f8] sm:$0xff]
        %v2959 = vld [vmem:[%s365 + $0x700] sm:$0xff]
        %v2960 = vld [vmem:[%s365 + $0x708] sm:$0xff]
        %v2961 = vld [vmem:[%s365 + $0x710] sm:$0xff]
        %v2962 = vld [vmem:[%s365 + $0x718] sm:$0xff]
        %v2963 = vld [vmem:[%s365 + $0x720] sm:$0xff]
        %v2964 = vld [vmem:[%s365 + $0x728] sm:$0xff]
        %v2965 = vld [vmem:[%s365 + $0x730] sm:$0xff]
        %v2966 = vld [vmem:[%s365 + $0x738] sm:$0xff]
        %v2967 = vld [vmem:[%s365 + $0x740] sm:$0xff]
        %v2968 = vld [vmem:[%s365 + $0x748] sm:$0xff]
        %v2969 = vld [vmem:[%s365 + $0x750] sm:$0xff]
        %v2970 = vld [vmem:[%s365 + $0x758] sm:$0xff]
        %v2971 = vld [vmem:[%s365 + $0x760] sm:$0xff]
        %v2972 = vld [vmem:[%s365 + $0x768] sm:$0xff]
        %v2973 = vld [vmem:[%s365 + $0x770] sm:$0xff]
        %v2974 = vld [vmem:[%s365 + $0x778] sm:$0xff]
        %v2975 = vld [vmem:[%s365 + $0x780] sm:$0xff]
        %v2976 = vld [vmem:[%s365 + $0x788] sm:$0xff]
        %v2977 = vld [vmem:[%s365 + $0x790] sm:$0xff]
        %v2978 = vld [vmem:[%s365 + $0x798] sm:$0xff]
        %v2979 = vld [vmem:[%s365 + $0x7a0] sm:$0xff]
        %v2980 = vld [vmem:[%s365 + $0x7a8] sm:$0xff]
        %v2981 = vld [vmem:[%s365 + $0x7b0] sm:$0xff]
        %v2982 = vld [vmem:[%s365 + $0x7b8] sm:$0xff]
        %v2983 = vld [vmem:[%s365 + $0x7c0] sm:$0xff]
        %v2984 = vld [vmem:[%s365 + $0x7c8] sm:$0xff]
        %v2985 = vld [vmem:[%s365 + $0x7d0] sm:$0xff]
        %v2986 = vld [vmem:[%s365 + $0x7d8] sm:$0xff]
        %v2987 = vld [vmem:[%s365 + $0x7e0] sm:$0xff]
        %v2988 = vld [vmem:[%s365 + $0x7e8] sm:$0xff]
        %v2989 = vld [vmem:[%s365 + $0x7f0] sm:$0xff]
        %v2990 = vld [vmem:[%s365 + $0x7f8] sm:$0xff]
        %v2991 = vld [vmem:[%s365 + $0x800] sm:$0xff]
        %v2992 = vld [vmem:[%s365 + $0x808] sm:$0xff]
        %v2993 = vld [vmem:[%s365 + $0x810] sm:$0xff]
        %v2994 = vld [vmem:[%s365 + $0x818] sm:$0xff]
        %v2995 = vld [vmem:[%s365 + $0x820] sm:$0xff]
        %v2996 = vld [vmem:[%s365 + $0x828] sm:$0xff]
        %v2997 = vld [vmem:[%s365 + $0x830] sm:$0xff]
        %v2998 = vld [vmem:[%s365 + $0x838] sm:$0xff]
        %v2999 = vld [vmem:[%s365 + $0x840] sm:$0xff]
        %v3000 = vld [vmem:[%s365 + $0x848] sm:$0xff]
        %v3001 = vld [vmem:[%s365 + $0x850] sm:$0xff]
        %v3002 = vld [vmem:[%s365 + $0x858] sm:$0xff]
        %v3003 = vld [vmem:[%s365 + $0x860] sm:$0xff]
        %v3004 = vld [vmem:[%s365 + $0x868] sm:$0xff]
        %v3005 = vld [vmem:[%s365 + $0x870] sm:$0xff]
        %v3006 = vld [vmem:[%s365 + $0x878] sm:$0xff]
        %v3007 = vld [vmem:[%s365 + $0x880] sm:$0xff]
        %v3008 = vld [vmem:[%s365 + $0x888] sm:$0xff]
        %v3009 = vld [vmem:[%s365 + $0x890] sm:$0xff]
        %v3010 = vld [vmem:[%s365 + $0x898] sm:$0xff]
        %v3011 = vld [vmem:[%s365 + $0x8a0] sm:$0xff]
        %v3012 = vld [vmem:[%s365 + $0x8a8] sm:$0xff]
        %v3013 = vld [vmem:[%s365 + $0x8b0] sm:$0xff]
        %v3014 = vld [vmem:[%s365 + $0x8b8] sm:$0xff]
        %v3015 = vld [vmem:[%s365 + $0x8c0] sm:$0xff]
        %v3016 = vld [vmem:[%s365 + $0x8c8] sm:$0xff]
        %v3017 = vld [vmem:[%s365 + $0x8d0] sm:$0xff]
        %v3018 = vld [vmem:[%s365 + $0x8d8] sm:$0xff]
        %v3019 = vld [vmem:[%s365 + $0x8e0] sm:$0xff]
        %v3020 = vld [vmem:[%s365 + $0x8e8] sm:$0xff]
        %v3021 = vld [vmem:[%s365 + $0x8f0] sm:$0xff]
        %v3022 = vld [vmem:[%s365 + $0x8f8] sm:$0xff]
        %v3023 = vld [vmem:[%s365 + $0x900] sm:$0xff]
        %v3024 = vld [vmem:[%s365 + $0x908] sm:$0xff]
        %v3025 = vld [vmem:[%s365 + $0x910] sm:$0xff]
        %v3026 = vld [vmem:[%s365 + $0x918] sm:$0xff]
        %v3027 = vld [vmem:[%s365 + $0x920] sm:$0xff]
        %v3028 = vld [vmem:[%s365 + $0x928] sm:$0xff]
        %v3029 = vld [vmem:[%s365 + $0x930] sm:$0xff]
        %v3030 = vld [vmem:[%s365 + $0x938] sm:$0xff]
        %v3031 = vld [vmem:[%s365 + $0x940] sm:$0xff]
        %v3032 = vld [vmem:[%s365 + $0x948] sm:$0xff]
        %v3033 = vld [vmem:[%s365 + $0x950] sm:$0xff]
        %v3034 = vld [vmem:[%s365 + $0x958] sm:$0xff]
        %v3035 = vld [vmem:[%s365 + $0x960] sm:$0xff]
        %v3036 = vld [vmem:[%s365 + $0x968] sm:$0xff]
        %v3037 = vld [vmem:[%s365 + $0x970] sm:$0xff]
        %v3038 = vld [vmem:[%s365 + $0x978] sm:$0xff]
        %v3039 = vld [vmem:[%s365 + $0x980] sm:$0xff]
        %v3040 = vld [vmem:[%s365 + $0x988] sm:$0xff]
        %v3041 = vld [vmem:[%s365 + $0x990] sm:$0xff]
        %v3042 = vld [vmem:[%s365 + $0x998] sm:$0xff]
        %v3043 = vld [vmem:[%s365 + $0x9a0] sm:$0xff]
        %v3044 = vld [vmem:[%s365 + $0x9a8] sm:$0xff]
        %v3045 = vld [vmem:[%s365 + $0x9b0] sm:$0xff]
        %v3046 = vld [vmem:[%s365 + $0x9b8] sm:$0xff]
        %v3047 = vld [vmem:[%s365 + $0x9c0] sm:$0xff]
        %v3048 = vld [vmem:[%s365 + $0x9c8] sm:$0xff]
        %v3049 = vld [vmem:[%s365 + $0x9d0] sm:$0xff]
        %v3050 = vld [vmem:[%s365 + $0x9d8] sm:$0xff]
        %v3051 = vld [vmem:[%s365 + $0x9e0] sm:$0xff]
        %v3052 = vld [vmem:[%s365 + $0x9e8] sm:$0xff]
        %v3053 = vld [vmem:[%s365 + $0x9f0] sm:$0xff]
        %v3054 = vld [vmem:[%s365 + $0x9f8] sm:$0xff]
        %v3055 = vld [vmem:[%s365 + $0xa00] sm:$0xff]
        %v3056 = vld [vmem:[%s365 + $0xa08] sm:$0xff]
        %v3057 = vld [vmem:[%s365 + $0xa10] sm:$0xff]
        %v3058 = vld [vmem:[%s365 + $0xa18] sm:$0xff]
        %v3059 = vld [vmem:[%s365 + $0xa20] sm:$0xff]
        %v3060 = vld [vmem:[%s365 + $0xa28] sm:$0xff]
        %v3061 = vld [vmem:[%s365 + $0xa30] sm:$0xff]
        %v3062 = vld [vmem:[%s365 + $0xa38] sm:$0xff]
        %v3063 = vld [vmem:[%s365 + $0xa40] sm:$0xff]
        %v3064 = vld [vmem:[%s365 + $0xa48] sm:$0xff]
        %v3065 = vld [vmem:[%s365 + $0xa50] sm:$0xff]
        %v3066 = vld [vmem:[%s365 + $0xa58] sm:$0xff]
        %v3067 = vld [vmem:[%s365 + $0xa60] sm:$0xff]
        %v3068 = vld [vmem:[%s365 + $0xa68] sm:$0xff]
        %v3069 = vld [vmem:[%s365 + $0xa70] sm:$0xff]
        %v3070 = vld [vmem:[%s365 + $0xa78] sm:$0xff]
        %v3071 = vld [vmem:[%s365 + $0xa80] sm:$0xff]
        %v3072 = vld [vmem:[%s365 + $0xa88] sm:$0xff]
        %v3073 = vld [vmem:[%s365 + $0xa90] sm:$0xff]
        %v3074 = vld [vmem:[%s365 + $0xa98] sm:$0xff]
        %v3075 = vld [vmem:[%s365 + $0xaa0] sm:$0xff]
        %v3076 = vld [vmem:[%s365 + $0xaa8] sm:$0xff]
        %v3077 = vld [vmem:[%s365 + $0xab0] sm:$0xff]
        %v3078 = vld [vmem:[%s365 + $0xab8] sm:$0xff]
        %v3079 = vld [vmem:[%s365 + $0xac0] sm:$0xff]
        %v3080 = vld [vmem:[%s365 + $0xac8] sm:$0xff]
        %v3081 = vld [vmem:[%s365 + $0xad0] sm:$0xff]
        %v3082 = vld [vmem:[%s365 + $0xad8] sm:$0xff]
        %v3083 = vld [vmem:[%s365 + $0xae0] sm:$0xff]
        %v3084 = vld [vmem:[%s365 + $0xae8] sm:$0xff]
        %v3085 = vld [vmem:[%s365 + $0xaf0] sm:$0xff]
        %v3086 = vld [vmem:[%s365 + $0xaf8] sm:$0xff]
        %v3087 = vld [vmem:[%s365 + $0xb00] sm:$0xff]
        %v3088 = vld [vmem:[%s365 + $0xb08] sm:$0xff]
        %v3089 = vld [vmem:[%s365 + $0xb10] sm:$0xff]
        %v3090 = vld [vmem:[%s365 + $0xb18] sm:$0xff]
        %v3091 = vld [vmem:[%s365 + $0xb20] sm:$0xff]
        %v3092 = vld [vmem:[%s365 + $0xb28] sm:$0xff]
        %v3093 = vld [vmem:[%s365 + $0xb30] sm:$0xff]
        %v3094 = vld [vmem:[%s365 + $0xb38] sm:$0xff]
        %v3095 = vld [vmem:[%s365 + $0xb40] sm:$0xff]
        %v3096 = vld [vmem:[%s365 + $0xb48] sm:$0xff]
        %v3097 = vld [vmem:[%s365 + $0xb50] sm:$0xff]
        %v3098 = vld [vmem:[%s365 + $0xb58] sm:$0xff]
        %v3099 = vld [vmem:[%s365 + $0xb60] sm:$0xff]
        %v3100 = vld [vmem:[%s365 + $0xb68] sm:$0xff]
        %v3101 = vld [vmem:[%s365 + $0xb70] sm:$0xff]
        %v3102 = vld [vmem:[%s365 + $0xb78] sm:$0xff]
        %v3103 = vld [vmem:[%s365 + $0xb80] sm:$0xff]
        %v3104 = vld [vmem:[%s365 + $0xb88] sm:$0xff]
        %v3105 = vld [vmem:[%s365 + $0xb90] sm:$0xff]
        %v3106 = vld [vmem:[%s365 + $0xb98] sm:$0xff]
        %v3107 = vld [vmem:[%s365 + $0xba0] sm:$0xff]
        %v3108 = vld [vmem:[%s365 + $0xba8] sm:$0xff]
        %v3109 = vld [vmem:[%s365 + $0xbb0] sm:$0xff]
        %v3110 = vld [vmem:[%s365 + $0xbb8] sm:$0xff]
        %v3111 = vld [vmem:[%s365 + $0xbc0] sm:$0xff]
        %v3112 = vld [vmem:[%s365 + $0xbc8] sm:$0xff]
        %v3113 = vld [vmem:[%s365 + $0xbd0] sm:$0xff]
        %v3114 = vld [vmem:[%s365 + $0xbd8] sm:$0xff]
        %v3115 = vld [vmem:[%s365 + $0xbe0] sm:$0xff]
        %v3116 = vld [vmem:[%s365 + $0xbe8] sm:$0xff]
        %v3117 = vld [vmem:[%s365 + $0xbf0] sm:$0xff]
        %v3118 = vld [vmem:[%s365 + $0xbf8] sm:$0xff]
        %v3119 = vld [vmem:[%s375] sm:$0x3f]
        %v3121 = vperm.slane %v3119, 0
        %v3122 = vperm.slane %v3119, 1
        %v3123 = vperm.slane %v3119, 2
        %v3124 = vperm.slane %v3119, 3
        %v3125 = vperm.slane %v3119, 4
        %v3126 = vperm.slane %v3119, 5
        %v3517 = vunpack.c.l.b16 %v2735
        %v3518 = vunpack.c.h.b16 %v2735
        %v3519 = vunpack.c.l.b16 %v2736
        %v3520 = vunpack.c.h.b16 %v2736
        %v3521 = vunpack.c.l.b16 %v2737
        %v3522 = vunpack.c.h.b16 %v2737
        %v3523 = vunpack.c.l.b16 %v2738
        %v3524 = vunpack.c.h.b16 %v2738
        %v3525 = vunpack.c.l.b16 %v2739
        %v3526 = vunpack.c.h.b16 %v2739
        %v3527 = vunpack.c.l.b16 %v2740
        %v3528 = vunpack.c.h.b16 %v2740
        %v3529 = vunpack.c.l.b16 %v2741
        %v3530 = vunpack.c.h.b16 %v2741
        %v3531 = vunpack.c.l.b16 %v2742
        %v3532 = vunpack.c.h.b16 %v2742
        %v3533 = vunpack.c.l.b16 %v2743
        %v3534 = vunpack.c.h.b16 %v2743
        %v3535 = vunpack.c.l.b16 %v2744
        %v3536 = vunpack.c.h.b16 %v2744
        %v3537 = vunpack.c.l.b16 %v2745
        %v3538 = vunpack.c.h.b16 %v2745
        %v3539 = vunpack.c.l.b16 %v2746
        %v3540 = vunpack.c.h.b16 %v2746
        %v3541 = vunpack.c.l.b16 %v2747
        %v3542 = vunpack.c.h.b16 %v2747
        %v3543 = vunpack.c.l.b16 %v2748
        %v3544 = vunpack.c.h.b16 %v2748
        %v3545 = vunpack.c.l.b16 %v2749
        %v3546 = vunpack.c.h.b16 %v2749
        %v3547 = vunpack.c.l.b16 %v2750
        %v3548 = vunpack.c.h.b16 %v2750
        %v3549 = vunpack.c.l.b16 %v2751
        %v3550 = vunpack.c.h.b16 %v2751
        %v3551 = vunpack.c.l.b16 %v2752
        %v3552 = vunpack.c.h.b16 %v2752
        %v3553 = vunpack.c.l.b16 %v2753
        %v3554 = vunpack.c.h.b16 %v2753
        %v3555 = vunpack.c.l.b16 %v2754
        %v3556 = vunpack.c.h.b16 %v2754
        %v3557 = vunpack.c.l.b16 %v2755
        %v3558 = vunpack.c.h.b16 %v2755
        %v3559 = vunpack.c.l.b16 %v2756
        %v3560 = vunpack.c.h.b16 %v2756
        %v3561 = vunpack.c.l.b16 %v2757
        %v3562 = vunpack.c.h.b16 %v2757
        %v3563 = vunpack.c.l.b16 %v2758
        %v3564 = vunpack.c.h.b16 %v2758
        %v3565 = vunpack.c.l.b16 %v2759
        %v3566 = vunpack.c.h.b16 %v2759
        %v3567 = vunpack.c.l.b16 %v2760
        %v3568 = vunpack.c.h.b16 %v2760
        %v3569 = vunpack.c.l.b16 %v2761
        %v3570 = vunpack.c.h.b16 %v2761
        %v3571 = vunpack.c.l.b16 %v2762
        %v3572 = vunpack.c.h.b16 %v2762
        %v3573 = vunpack.c.l.b16 %v2763
        %v3574 = vunpack.c.h.b16 %v2763
        %v3575 = vunpack.c.l.b16 %v2764
        %v3576 = vunpack.c.h.b16 %v2764
        %v3577 = vunpack.c.l.b16 %v2765
        %v3578 = vunpack.c.h.b16 %v2765
        %v3579 = vunpack.c.l.b16 %v2766
        %v3580 = vunpack.c.h.b16 %v2766
        %v3581 = vunpack.c.l.b16 %v2767
        %v3582 = vunpack.c.h.b16 %v2767
        %v3583 = vunpack.c.l.b16 %v2768
        %v3584 = vunpack.c.h.b16 %v2768
        %v3585 = vunpack.c.l.b16 %v2769
        %v3586 = vunpack.c.h.b16 %v2769
        %v3587 = vunpack.c.l.b16 %v2770
        %v3588 = vunpack.c.h.b16 %v2770
        %v3589 = vunpack.c.l.b16 %v2771
        %v3590 = vunpack.c.h.b16 %v2771
        %v3591 = vunpack.c.l.b16 %v2772
        %v3592 = vunpack.c.h.b16 %v2772
        %v3593 = vunpack.c.l.b16 %v2773
        %v3594 = vunpack.c.h.b16 %v2773
        %v3595 = vunpack.c.l.b16 %v2774
        %v3596 = vunpack.c.h.b16 %v2774
        %v3597 = vunpack.c.l.b16 %v2775
        %v3598 = vunpack.c.h.b16 %v2775
        %v3599 = vunpack.c.l.b16 %v2776
        %v3600 = vunpack.c.h.b16 %v2776
        %v3601 = vunpack.c.l.b16 %v2777
        %v3602 = vunpack.c.h.b16 %v2777
        %v3603 = vunpack.c.l.b16 %v2778
        %v3604 = vunpack.c.h.b16 %v2778
        %v3605 = vunpack.c.l.b16 %v2779
        %v3606 = vunpack.c.h.b16 %v2779
        %v3607 = vunpack.c.l.b16 %v2780
        %v3608 = vunpack.c.h.b16 %v2780
        %v3609 = vunpack.c.l.b16 %v2781
        %v3610 = vunpack.c.h.b16 %v2781
        %v3611 = vunpack.c.l.b16 %v2782
        %v3612 = vunpack.c.h.b16 %v2782
        %v3613 = vunpack.c.l.b16 %v2783
        %v3614 = vunpack.c.h.b16 %v2783
        %v3615 = vunpack.c.l.b16 %v2784
        %v3616 = vunpack.c.h.b16 %v2784
        %v3617 = vunpack.c.l.b16 %v2785
        %v3618 = vunpack.c.h.b16 %v2785
        %v3619 = vunpack.c.l.b16 %v2786
        %v3620 = vunpack.c.h.b16 %v2786
        %v3621 = vunpack.c.l.b16 %v2787
        %v3622 = vunpack.c.h.b16 %v2787
        %v3623 = vunpack.c.l.b16 %v2788
        %v3624 = vunpack.c.h.b16 %v2788
        %v3625 = vunpack.c.l.b16 %v2789
        %v3626 = vunpack.c.h.b16 %v2789
        %v3627 = vunpack.c.l.b16 %v2790
        %v3628 = vunpack.c.h.b16 %v2790
        %v3629 = vunpack.c.l.b16 %v2791
        %v3630 = vunpack.c.h.b16 %v2791
        %v3631 = vunpack.c.l.b16 %v2792
        %v3632 = vunpack.c.h.b16 %v2792
        %v3633 = vunpack.c.l.b16 %v2793
        %v3634 = vunpack.c.h.b16 %v2793
        %v3635 = vunpack.c.l.b16 %v2794
        %v3636 = vunpack.c.h.b16 %v2794
        %v3637 = vunpack.c.l.b16 %v2795
        %v3638 = vunpack.c.h.b16 %v2795
        %v3639 = vunpack.c.l.b16 %v2796
        %v3640 = vunpack.c.h.b16 %v2796
        %v3641 = vunpack.c.l.b16 %v2797
        %v3642 = vunpack.c.h.b16 %v2797
        %v3643 = vunpack.c.l.b16 %v2798
        %v3644 = vunpack.c.h.b16 %v2798
        %v3645 = vunpack.c.l.b16 %v2799
        %v3646 = vunpack.c.h.b16 %v2799
        %v3647 = vunpack.c.l.b16 %v2800
        %v3648 = vunpack.c.h.b16 %v2800
        %v3649 = vunpack.c.l.b16 %v2801
        %v3650 = vunpack.c.h.b16 %v2801
        %v3651 = vunpack.c.l.b16 %v2802
        %v3652 = vunpack.c.h.b16 %v2802
        %v3653 = vunpack.c.l.b16 %v2803
        %v3654 = vunpack.c.h.b16 %v2803
        %v3655 = vunpack.c.l.b16 %v2804
        %v3656 = vunpack.c.h.b16 %v2804
        %v3657 = vunpack.c.l.b16 %v2805
        %v3658 = vunpack.c.h.b16 %v2805
        %v3659 = vunpack.c.l.b16 %v2806
        %v3660 = vunpack.c.h.b16 %v2806
        %v3661 = vunpack.c.l.b16 %v2807
        %v3662 = vunpack.c.h.b16 %v2807
        %v3663 = vunpack.c.l.b16 %v2808
        %v3664 = vunpack.c.h.b16 %v2808
        %v3665 = vunpack.c.l.b16 %v2809
        %v3666 = vunpack.c.h.b16 %v2809
        %v3667 = vunpack.c.l.b16 %v2810
        %v3668 = vunpack.c.h.b16 %v2810
        %v3669 = vunpack.c.l.b16 %v2811
        %v3670 = vunpack.c.h.b16 %v2811
        %v3671 = vunpack.c.l.b16 %v2812
        %v3672 = vunpack.c.h.b16 %v2812
        %v3673 = vunpack.c.l.b16 %v2813
        %v3674 = vunpack.c.h.b16 %v2813
        %v3675 = vunpack.c.l.b16 %v2814
        %v3676 = vunpack.c.h.b16 %v2814
        %v3677 = vunpack.c.l.b16 %v2815
        %v3678 = vunpack.c.h.b16 %v2815
        %v3679 = vunpack.c.l.b16 %v2816
        %v3680 = vunpack.c.h.b16 %v2816
        %v3681 = vunpack.c.l.b16 %v2817
        %v3682 = vunpack.c.h.b16 %v2817
        %v3683 = vunpack.c.l.b16 %v2818
        %v3684 = vunpack.c.h.b16 %v2818
        %v3685 = vunpack.c.l.b16 %v2819
        %v3686 = vunpack.c.h.b16 %v2819
        %v3687 = vunpack.c.l.b16 %v2820
        %v3688 = vunpack.c.h.b16 %v2820
        %v3689 = vunpack.c.l.b16 %v2821
        %v3690 = vunpack.c.h.b16 %v2821
        %v3691 = vunpack.c.l.b16 %v2822
        %v3692 = vunpack.c.h.b16 %v2822
        %v3693 = vunpack.c.l.b16 %v2823
        %v3694 = vunpack.c.h.b16 %v2823
        %v3695 = vunpack.c.l.b16 %v2824
        %v3696 = vunpack.c.h.b16 %v2824
        %v3697 = vunpack.c.l.b16 %v2825
        %v3698 = vunpack.c.h.b16 %v2825
        %v3699 = vunpack.c.l.b16 %v2826
        %v3700 = vunpack.c.h.b16 %v2826
        %v3701 = vunpack.c.l.b16 %v2827
        %v3702 = vunpack.c.h.b16 %v2827
        %v3703 = vunpack.c.l.b16 %v2828
        %v3704 = vunpack.c.h.b16 %v2828
        %v3705 = vunpack.c.l.b16 %v2829
        %v3706 = vunpack.c.h.b16 %v2829
        %v3707 = vunpack.c.l.b16 %v2830
        %v3708 = vunpack.c.h.b16 %v2830
        %v3709 = vunpack.c.l.b16 %v2831
        %v3710 = vunpack.c.h.b16 %v2831
        %v3711 = vunpack.c.l.b16 %v2832
        %v3712 = vunpack.c.h.b16 %v2832
        %v3713 = vunpack.c.l.b16 %v2833
        %v3714 = vunpack.c.h.b16 %v2833
        %v3715 = vunpack.c.l.b16 %v2834
        %v3716 = vunpack.c.h.b16 %v2834
        %v3717 = vunpack.c.l.b16 %v2835
        %v3718 = vunpack.c.h.b16 %v2835
        %v3719 = vunpack.c.l.b16 %v2836
        %v3720 = vunpack.c.h.b16 %v2836
        %v3721 = vunpack.c.l.b16 %v2837
        %v3722 = vunpack.c.h.b16 %v2837
        %v3723 = vunpack.c.l.b16 %v2838
        %v3724 = vunpack.c.h.b16 %v2838
        %v3725 = vunpack.c.l.b16 %v2839
        %v3726 = vunpack.c.h.b16 %v2839
        %v3727 = vunpack.c.l.b16 %v2840
        %v3728 = vunpack.c.h.b16 %v2840
        %v3729 = vunpack.c.l.b16 %v2841
        %v3730 = vunpack.c.h.b16 %v2841
        %v3731 = vunpack.c.l.b16 %v2842
        %v3732 = vunpack.c.h.b16 %v2842
        %v3733 = vunpack.c.l.b16 %v2843
        %v3734 = vunpack.c.h.b16 %v2843
        %v3735 = vunpack.c.l.b16 %v2844
        %v3736 = vunpack.c.h.b16 %v2844
        %v3737 = vunpack.c.l.b16 %v2845
        %v3738 = vunpack.c.h.b16 %v2845
        %v3739 = vunpack.c.l.b16 %v2846
        %v3740 = vunpack.c.h.b16 %v2846
        %v3741 = vunpack.c.l.b16 %v2847
        %v3742 = vunpack.c.h.b16 %v2847
        %v3743 = vunpack.c.l.b16 %v2848
        %v3744 = vunpack.c.h.b16 %v2848
        %v3745 = vunpack.c.l.b16 %v2849
        %v3746 = vunpack.c.h.b16 %v2849
        %v3747 = vunpack.c.l.b16 %v2850
        %v3748 = vunpack.c.h.b16 %v2850
        %v3749 = vunpack.c.l.b16 %v2851
        %v3750 = vunpack.c.h.b16 %v2851
        %v3751 = vunpack.c.l.b16 %v2852
        %v3752 = vunpack.c.h.b16 %v2852
        %v3753 = vunpack.c.l.b16 %v2853
        %v3754 = vunpack.c.h.b16 %v2853
        %v3755 = vunpack.c.l.b16 %v2854
        %v3756 = vunpack.c.h.b16 %v2854
        %v3757 = vunpack.c.l.b16 %v2855
        %v3758 = vunpack.c.h.b16 %v2855
        %v3759 = vunpack.c.l.b16 %v2856
        %v3760 = vunpack.c.h.b16 %v2856
        %v3761 = vunpack.c.l.b16 %v2857
        %v3762 = vunpack.c.h.b16 %v2857
        %v3763 = vunpack.c.l.b16 %v2858
        %v3764 = vunpack.c.h.b16 %v2858
        %v3765 = vunpack.c.l.b16 %v2859
        %v3766 = vunpack.c.h.b16 %v2859
        %v3767 = vunpack.c.l.b16 %v2860
        %v3768 = vunpack.c.h.b16 %v2860
        %v3769 = vunpack.c.l.b16 %v2861
        %v3770 = vunpack.c.h.b16 %v2861
        %v3771 = vunpack.c.l.b16 %v2862
        %v3772 = vunpack.c.h.b16 %v2862
        %v3773 = vunpack.c.l.b16 %v2863
        %v3774 = vunpack.c.h.b16 %v2863
        %v3775 = vunpack.c.l.b16 %v2864
        %v3776 = vunpack.c.h.b16 %v2864
        %v3777 = vunpack.c.l.b16 %v2865
        %v3778 = vunpack.c.h.b16 %v2865
        %v3779 = vunpack.c.l.b16 %v2866
        %v3780 = vunpack.c.h.b16 %v2866
        %v3781 = vunpack.c.l.b16 %v2867
        %v3782 = vunpack.c.h.b16 %v2867
        %v3783 = vunpack.c.l.b16 %v2868
        %v3784 = vunpack.c.h.b16 %v2868
        %v3785 = vunpack.c.l.b16 %v2869
        %v3786 = vunpack.c.h.b16 %v2869
        %v3787 = vunpack.c.l.b16 %v2870
        %v3788 = vunpack.c.h.b16 %v2870
        %v3789 = vunpack.c.l.b16 %v2871
        %v3790 = vunpack.c.h.b16 %v2871
        %v3791 = vunpack.c.l.b16 %v2872
        %v3792 = vunpack.c.h.b16 %v2872
        %v3793 = vunpack.c.l.b16 %v2873
        %v3794 = vunpack.c.h.b16 %v2873
        %v3795 = vunpack.c.l.b16 %v2874
        %v3796 = vunpack.c.h.b16 %v2874
        %v3797 = vunpack.c.l.b16 %v2875
        %v3798 = vunpack.c.h.b16 %v2875
        %v3799 = vunpack.c.l.b16 %v2876
        %v3800 = vunpack.c.h.b16 %v2876
        %v3801 = vunpack.c.l.b16 %v2877
        %v3802 = vunpack.c.h.b16 %v2877
        %v3803 = vunpack.c.l.b16 %v2878
        %v3804 = vunpack.c.h.b16 %v2878
        %v3805 = vunpack.c.l.b16 %v2879
        %v3806 = vunpack.c.h.b16 %v2879
        %v3807 = vunpack.c.l.b16 %v2880
        %v3808 = vunpack.c.h.b16 %v2880
        %v3809 = vunpack.c.l.b16 %v2881
        %v3810 = vunpack.c.h.b16 %v2881
        %v3811 = vunpack.c.l.b16 %v2882
        %v3812 = vunpack.c.h.b16 %v2882
        %v3813 = vunpack.c.l.b16 %v2883
        %v3814 = vunpack.c.h.b16 %v2883
        %v3815 = vunpack.c.l.b16 %v2884
        %v3816 = vunpack.c.h.b16 %v2884
        %v3817 = vunpack.c.l.b16 %v2885
        %v3818 = vunpack.c.h.b16 %v2885
        %v3819 = vunpack.c.l.b16 %v2886
        %v3820 = vunpack.c.h.b16 %v2886
        %v3821 = vunpack.c.l.b16 %v2887
        %v3822 = vunpack.c.h.b16 %v2887
        %v3823 = vunpack.c.l.b16 %v2888
        %v3824 = vunpack.c.h.b16 %v2888
        %v3825 = vunpack.c.l.b16 %v2889
        %v3826 = vunpack.c.h.b16 %v2889
        %v3827 = vunpack.c.l.b16 %v2890
        %v3828 = vunpack.c.h.b16 %v2890
        %v3829 = vunpack.c.l.b16 %v2891
        %v3830 = vunpack.c.h.b16 %v2891
        %v3831 = vunpack.c.l.b16 %v2892
        %v3832 = vunpack.c.h.b16 %v2892
        %v3833 = vunpack.c.l.b16 %v2893
        %v3834 = vunpack.c.h.b16 %v2893
        %v3835 = vunpack.c.l.b16 %v2894
        %v3836 = vunpack.c.h.b16 %v2894
        %v3837 = vunpack.c.l.b16 %v2895
        %v3838 = vunpack.c.h.b16 %v2895
        %v3839 = vunpack.c.l.b16 %v2896
        %v3840 = vunpack.c.h.b16 %v2896
        %v3841 = vunpack.c.l.b16 %v2897
        %v3842 = vunpack.c.h.b16 %v2897
        %v3843 = vunpack.c.l.b16 %v2898
        %v3844 = vunpack.c.h.b16 %v2898
        %v3845 = vunpack.c.l.b16 %v2899
        %v3846 = vunpack.c.h.b16 %v2899
        %v3847 = vunpack.c.l.b16 %v2900
        %v3848 = vunpack.c.h.b16 %v2900
        %v3849 = vunpack.c.l.b16 %v2901
        %v3850 = vunpack.c.h.b16 %v2901
        %v3851 = vunpack.c.l.b16 %v2902
        %v3852 = vunpack.c.h.b16 %v2902
        %v3853 = vunpack.c.l.b16 %v2903
        %v3854 = vunpack.c.h.b16 %v2903
        %v3855 = vunpack.c.l.b16 %v2904
        %v3856 = vunpack.c.h.b16 %v2904
        %v3857 = vunpack.c.l.b16 %v2905
        %v3858 = vunpack.c.h.b16 %v2905
        %v3859 = vunpack.c.l.b16 %v2906
        %v3860 = vunpack.c.h.b16 %v2906
        %v3861 = vunpack.c.l.b16 %v2907
        %v3862 = vunpack.c.h.b16 %v2907
        %v3863 = vunpack.c.l.b16 %v2908
        %v3864 = vunpack.c.h.b16 %v2908
        %v3865 = vunpack.c.l.b16 %v2909
        %v3866 = vunpack.c.h.b16 %v2909
        %v3867 = vunpack.c.l.b16 %v2910
        %v3868 = vunpack.c.h.b16 %v2910
        %v3869 = vunpack.c.l.b16 %v2911
        %v3870 = vunpack.c.h.b16 %v2911
        %v3871 = vunpack.c.l.b16 %v2912
        %v3872 = vunpack.c.h.b16 %v2912
        %v3873 = vunpack.c.l.b16 %v2913
        %v3874 = vunpack.c.h.b16 %v2913
        %v3875 = vunpack.c.l.b16 %v2914
        %v3876 = vunpack.c.h.b16 %v2914
        %v3877 = vunpack.c.l.b16 %v2915
        %v3878 = vunpack.c.h.b16 %v2915
        %v3879 = vunpack.c.l.b16 %v2916
        %v3880 = vunpack.c.h.b16 %v2916
        %v3881 = vunpack.c.l.b16 %v2917
        %v3882 = vunpack.c.h.b16 %v2917
        %v3883 = vunpack.c.l.b16 %v2918
        %v3884 = vunpack.c.h.b16 %v2918
        %v3885 = vunpack.c.l.b16 %v2919
        %v3886 = vunpack.c.h.b16 %v2919
        %v3887 = vunpack.c.l.b16 %v2920
        %v3888 = vunpack.c.h.b16 %v2920
        %v3889 = vunpack.c.l.b16 %v2921
        %v3890 = vunpack.c.h.b16 %v2921
        %v3891 = vunpack.c.l.b16 %v2922
        %v3892 = vunpack.c.h.b16 %v2922
        %v3893 = vunpack.c.l.b16 %v2923
        %v3894 = vunpack.c.h.b16 %v2923
        %v3895 = vunpack.c.l.b16 %v2924
        %v3896 = vunpack.c.h.b16 %v2924
        %v3897 = vunpack.c.l.b16 %v2925
        %v3898 = vunpack.c.h.b16 %v2925
        %v3899 = vunpack.c.l.b16 %v2926
        %v3900 = vunpack.c.h.b16 %v2926
        %v3901 = vunpack.c.l.b16 %v2927
        %v3902 = vunpack.c.h.b16 %v2927
        %v3903 = vunpack.c.l.b16 %v2928
        %v3904 = vunpack.c.h.b16 %v2928
        %v3905 = vunpack.c.l.b16 %v2929
        %v3906 = vunpack.c.h.b16 %v2929
        %v3907 = vunpack.c.l.b16 %v2930
        %v3908 = vunpack.c.h.b16 %v2930
        %v3909 = vunpack.c.l.b16 %v2931
        %v3910 = vunpack.c.h.b16 %v2931
        %v3911 = vunpack.c.l.b16 %v2932
        %v3912 = vunpack.c.h.b16 %v2932
        %v3913 = vunpack.c.l.b16 %v2933
        %v3914 = vunpack.c.h.b16 %v2933
        %v3915 = vunpack.c.l.b16 %v2934
        %v3916 = vunpack.c.h.b16 %v2934
        %v3917 = vunpack.c.l.b16 %v2935
        %v3918 = vunpack.c.h.b16 %v2935
        %v3919 = vunpack.c.l.b16 %v2936
        %v3920 = vunpack.c.h.b16 %v2936
        %v3921 = vunpack.c.l.b16 %v2937
        %v3922 = vunpack.c.h.b16 %v2937
        %v3923 = vunpack.c.l.b16 %v2938
        %v3924 = vunpack.c.h.b16 %v2938
        %v3925 = vunpack.c.l.b16 %v2939
        %v3926 = vunpack.c.h.b16 %v2939
        %v3927 = vunpack.c.l.b16 %v2940
        %v3928 = vunpack.c.h.b16 %v2940
        %v3929 = vunpack.c.l.b16 %v2941
        %v3930 = vunpack.c.h.b16 %v2941
        %v3931 = vunpack.c.l.b16 %v2942
        %v3932 = vunpack.c.h.b16 %v2942
        %v3933 = vunpack.c.l.b16 %v2943
        %v3934 = vunpack.c.h.b16 %v2943
        %v3935 = vunpack.c.l.b16 %v2944
        %v3936 = vunpack.c.h.b16 %v2944
        %v3937 = vunpack.c.l.b16 %v2945
        %v3938 = vunpack.c.h.b16 %v2945
        %v3939 = vunpack.c.l.b16 %v2946
        %v3940 = vunpack.c.h.b16 %v2946
        %v3941 = vunpack.c.l.b16 %v2947
        %v3942 = vunpack.c.h.b16 %v2947
        %v3943 = vunpack.c.l.b16 %v2948
        %v3944 = vunpack.c.h.b16 %v2948
        %v3945 = vunpack.c.l.b16 %v2949
        %v3946 = vunpack.c.h.b16 %v2949
        %v3947 = vunpack.c.l.b16 %v2950
        %v3948 = vunpack.c.h.b16 %v2950
        %v3949 = vunpack.c.l.b16 %v2951
        %v3950 = vunpack.c.h.b16 %v2951
        %v3951 = vunpack.c.l.b16 %v2952
        %v3952 = vunpack.c.h.b16 %v2952
        %v3953 = vunpack.c.l.b16 %v2953
        %v3954 = vunpack.c.h.b16 %v2953
        %v3955 = vunpack.c.l.b16 %v2954
        %v3956 = vunpack.c.h.b16 %v2954
        %v3957 = vunpack.c.l.b16 %v2955
        %v3958 = vunpack.c.h.b16 %v2955
        %v3959 = vunpack.c.l.b16 %v2956
        %v3960 = vunpack.c.h.b16 %v2956
        %v3961 = vunpack.c.l.b16 %v2957
        %v3962 = vunpack.c.h.b16 %v2957
        %v3963 = vunpack.c.l.b16 %v2958
        %v3964 = vunpack.c.h.b16 %v2958
        %v3965 = vunpack.c.l.b16 %v2959
        %v3966 = vunpack.c.h.b16 %v2959
        %v3967 = vunpack.c.l.b16 %v2960
        %v3968 = vunpack.c.h.b16 %v2960
        %v3969 = vunpack.c.l.b16 %v2961
        %v3970 = vunpack.c.h.b16 %v2961
        %v3971 = vunpack.c.l.b16 %v2962
        %v3972 = vunpack.c.h.b16 %v2962
        %v3973 = vunpack.c.l.b16 %v2963
        %v3974 = vunpack.c.h.b16 %v2963
        %v3975 = vunpack.c.l.b16 %v2964
        %v3976 = vunpack.c.h.b16 %v2964
        %v3977 = vunpack.c.l.b16 %v2965
        %v3978 = vunpack.c.h.b16 %v2965
        %v3979 = vunpack.c.l.b16 %v2966
        %v3980 = vunpack.c.h.b16 %v2966
        %v3981 = vunpack.c.l.b16 %v2967
        %v3982 = vunpack.c.h.b16 %v2967
        %v3983 = vunpack.c.l.b16 %v2968
        %v3984 = vunpack.c.h.b16 %v2968
        %v3985 = vunpack.c.l.b16 %v2969
        %v3986 = vunpack.c.h.b16 %v2969
        %v3987 = vunpack.c.l.b16 %v2970
        %v3988 = vunpack.c.h.b16 %v2970
        %v3989 = vunpack.c.l.b16 %v2971
        %v3990 = vunpack.c.h.b16 %v2971
        %v3991 = vunpack.c.l.b16 %v2972
        %v3992 = vunpack.c.h.b16 %v2972
        %v3993 = vunpack.c.l.b16 %v2973
        %v3994 = vunpack.c.h.b16 %v2973
        %v3995 = vunpack.c.l.b16 %v2974
        %v3996 = vunpack.c.h.b16 %v2974
        %v3997 = vunpack.c.l.b16 %v2975
        %v3998 = vunpack.c.h.b16 %v2975
        %v3999 = vunpack.c.l.b16 %v2976
        %v4000 = vunpack.c.h.b16 %v2976
        %v4001 = vunpack.c.l.b16 %v2977
        %v4002 = vunpack.c.h.b16 %v2977
        %v4003 = vunpack.c.l.b16 %v2978
        %v4004 = vunpack.c.h.b16 %v2978
        %v4005 = vunpack.c.l.b16 %v2979
        %v4006 = vunpack.c.h.b16 %v2979
        %v4007 = vunpack.c.l.b16 %v2980
        %v4008 = vunpack.c.h.b16 %v2980
        %v4009 = vunpack.c.l.b16 %v2981
        %v4010 = vunpack.c.h.b16 %v2981
        %v4011 = vunpack.c.l.b16 %v2982
        %v4012 = vunpack.c.h.b16 %v2982
        %v4013 = vunpack.c.l.b16 %v2983
        %v4014 = vunpack.c.h.b16 %v2983
        %v4015 = vunpack.c.l.b16 %v2984
        %v4016 = vunpack.c.h.b16 %v2984
        %v4017 = vunpack.c.l.b16 %v2985
        %v4018 = vunpack.c.h.b16 %v2985
        %v4019 = vunpack.c.l.b16 %v2986
        %v4020 = vunpack.c.h.b16 %v2986
        %v4021 = vunpack.c.l.b16 %v2987
        %v4022 = vunpack.c.h.b16 %v2987
        %v4023 = vunpack.c.l.b16 %v2988
        %v4024 = vunpack.c.h.b16 %v2988
        %v4025 = vunpack.c.l.b16 %v2989
        %v4026 = vunpack.c.h.b16 %v2989
        %v4027 = vunpack.c.l.b16 %v2990
        %v4028 = vunpack.c.h.b16 %v2990
        %v4029 = vunpack.c.l.b16 %v2991
        %v4030 = vunpack.c.h.b16 %v2991
        %v4031 = vunpack.c.l.b16 %v2992
        %v4032 = vunpack.c.h.b16 %v2992
        %v4033 = vunpack.c.l.b16 %v2993
        %v4034 = vunpack.c.h.b16 %v2993
        %v4035 = vunpack.c.l.b16 %v2994
        %v4036 = vunpack.c.h.b16 %v2994
        %v4037 = vunpack.c.l.b16 %v2995
        %v4038 = vunpack.c.h.b16 %v2995
        %v4039 = vunpack.c.l.b16 %v2996
        %v4040 = vunpack.c.h.b16 %v2996
        %v4041 = vunpack.c.l.b16 %v2997
        %v4042 = vunpack.c.h.b16 %v2997
        %v4043 = vunpack.c.l.b16 %v2998
        %v4044 = vunpack.c.h.b16 %v2998
        %v4045 = vunpack.c.l.b16 %v2999
        %v4046 = vunpack.c.h.b16 %v2999
        %v4047 = vunpack.c.l.b16 %v3000
        %v4048 = vunpack.c.h.b16 %v3000
        %v4049 = vunpack.c.l.b16 %v3001
        %v4050 = vunpack.c.h.b16 %v3001
        %v4051 = vunpack.c.l.b16 %v3002
        %v4052 = vunpack.c.h.b16 %v3002
        %v4053 = vunpack.c.l.b16 %v3003
        %v4054 = vunpack.c.h.b16 %v3003
        %v4055 = vunpack.c.l.b16 %v3004
        %v4056 = vunpack.c.h.b16 %v3004
        %v4057 = vunpack.c.l.b16 %v3005
        %v4058 = vunpack.c.h.b16 %v3005
        %v4059 = vunpack.c.l.b16 %v3006
        %v4060 = vunpack.c.h.b16 %v3006
        %v4061 = vunpack.c.l.b16 %v3007
        %v4062 = vunpack.c.h.b16 %v3007
        %v4063 = vunpack.c.l.b16 %v3008
        %v4064 = vunpack.c.h.b16 %v3008
        %v4065 = vunpack.c.l.b16 %v3009
        %v4066 = vunpack.c.h.b16 %v3009
        %v4067 = vunpack.c.l.b16 %v3010
        %v4068 = vunpack.c.h.b16 %v3010
        %v4069 = vunpack.c.l.b16 %v3011
        %v4070 = vunpack.c.h.b16 %v3011
        %v4071 = vunpack.c.l.b16 %v3012
        %v4072 = vunpack.c.h.b16 %v3012
        %v4073 = vunpack.c.l.b16 %v3013
        %v4074 = vunpack.c.h.b16 %v3013
        %v4075 = vunpack.c.l.b16 %v3014
        %v4076 = vunpack.c.h.b16 %v3014
        %v4077 = vunpack.c.l.b16 %v3015
        %v4078 = vunpack.c.h.b16 %v3015
        %v4079 = vunpack.c.l.b16 %v3016
        %v4080 = vunpack.c.h.b16 %v3016
        %v4081 = vunpack.c.l.b16 %v3017
        %v4082 = vunpack.c.h.b16 %v3017
        %v4083 = vunpack.c.l.b16 %v3018
        %v4084 = vunpack.c.h.b16 %v3018
        %v4085 = vunpack.c.l.b16 %v3019
        %v4086 = vunpack.c.h.b16 %v3019
        %v4087 = vunpack.c.l.b16 %v3020
        %v4088 = vunpack.c.h.b16 %v3020
        %v4089 = vunpack.c.l.b16 %v3021
        %v4090 = vunpack.c.h.b16 %v3021
        %v4091 = vunpack.c.l.b16 %v3022
        %v4092 = vunpack.c.h.b16 %v3022
        %v4093 = vunpack.c.l.b16 %v3023
        %v4094 = vunpack.c.h.b16 %v3023
        %v4095 = vunpack.c.l.b16 %v3024
        %v4096 = vunpack.c.h.b16 %v3024
        %v4097 = vunpack.c.l.b16 %v3025
        %v4098 = vunpack.c.h.b16 %v3025
        %v4099 = vunpack.c.l.b16 %v3026
        %v4100 = vunpack.c.h.b16 %v3026
        %v4101 = vunpack.c.l.b16 %v3027
        %v4102 = vunpack.c.h.b16 %v3027
        %v4103 = vunpack.c.l.b16 %v3028
        %v4104 = vunpack.c.h.b16 %v3028
        %v4105 = vunpack.c.l.b16 %v3029
        %v4106 = vunpack.c.h.b16 %v3029
        %v4107 = vunpack.c.l.b16 %v3030
        %v4108 = vunpack.c.h.b16 %v3030
        %v4109 = vunpack.c.l.b16 %v3031
        %v4110 = vunpack.c.h.b16 %v3031
        %v4111 = vunpack.c.l.b16 %v3032
        %v4112 = vunpack.c.h.b16 %v3032
        %v4113 = vunpack.c.l.b16 %v3033
        %v4114 = vunpack.c.h.b16 %v3033
        %v4115 = vunpack.c.l.b16 %v3034
        %v4116 = vunpack.c.h.b16 %v3034
        %v4117 = vunpack.c.l.b16 %v3035
        %v4118 = vunpack.c.h.b16 %v3035
        %v4119 = vunpack.c.l.b16 %v3036
        %v4120 = vunpack.c.h.b16 %v3036
        %v4121 = vunpack.c.l.b16 %v3037
        %v4122 = vunpack.c.h.b16 %v3037
        %v4123 = vunpack.c.l.b16 %v3038
        %v4124 = vunpack.c.h.b16 %v3038
        %v4125 = vunpack.c.l.b16 %v3039
        %v4126 = vunpack.c.h.b16 %v3039
        %v4127 = vunpack.c.l.b16 %v3040
        %v4128 = vunpack.c.h.b16 %v3040
        %v4129 = vunpack.c.l.b16 %v3041
        %v4130 = vunpack.c.h.b16 %v3041
        %v4131 = vunpack.c.l.b16 %v3042
        %v4132 = vunpack.c.h.b16 %v3042
        %v4133 = vunpack.c.l.b16 %v3043
        %v4134 = vunpack.c.h.b16 %v3043
        %v4135 = vunpack.c.l.b16 %v3044
        %v4136 = vunpack.c.h.b16 %v3044
        %v4137 = vunpack.c.l.b16 %v3045
        %v4138 = vunpack.c.h.b16 %v3045
        %v4139 = vunpack.c.l.b16 %v3046
        %v4140 = vunpack.c.h.b16 %v3046
        %v4141 = vunpack.c.l.b16 %v3047
        %v4142 = vunpack.c.h.b16 %v3047
        %v4143 = vunpack.c.l.b16 %v3048
        %v4144 = vunpack.c.h.b16 %v3048
        %v4145 = vunpack.c.l.b16 %v3049
        %v4146 = vunpack.c.h.b16 %v3049
        %v4147 = vunpack.c.l.b16 %v3050
        %v4148 = vunpack.c.h.b16 %v3050
        %v4149 = vunpack.c.l.b16 %v3051
        %v4150 = vunpack.c.h.b16 %v3051
        %v4151 = vunpack.c.l.b16 %v3052
        %v4152 = vunpack.c.h.b16 %v3052
        %v4153 = vunpack.c.l.b16 %v3053
        %v4154 = vunpack.c.h.b16 %v3053
        %v4155 = vunpack.c.l.b16 %v3054
        %v4156 = vunpack.c.h.b16 %v3054
        %v4157 = vunpack.c.l.b16 %v3055
        %v4158 = vunpack.c.h.b16 %v3055
        %v4159 = vunpack.c.l.b16 %v3056
        %v4160 = vunpack.c.h.b16 %v3056
        %v4161 = vunpack.c.l.b16 %v3057
        %v4162 = vunpack.c.h.b16 %v3057
        %v4163 = vunpack.c.l.b16 %v3058
        %v4164 = vunpack.c.h.b16 %v3058
        %v4165 = vunpack.c.l.b16 %v3059
        %v4166 = vunpack.c.h.b16 %v3059
        %v4167 = vunpack.c.l.b16 %v3060
        %v4168 = vunpack.c.h.b16 %v3060
        %v4169 = vunpack.c.l.b16 %v3061
        %v4170 = vunpack.c.h.b16 %v3061
        %v4171 = vunpack.c.l.b16 %v3062
        %v4172 = vunpack.c.h.b16 %v3062
        %v4173 = vunpack.c.l.b16 %v3063
        %v4174 = vunpack.c.h.b16 %v3063
        %v4175 = vunpack.c.l.b16 %v3064
        %v4176 = vunpack.c.h.b16 %v3064
        %v4177 = vunpack.c.l.b16 %v3065
        %v4178 = vunpack.c.h.b16 %v3065
        %v4179 = vunpack.c.l.b16 %v3066
        %v4180 = vunpack.c.h.b16 %v3066
        %v4181 = vunpack.c.l.b16 %v3067
        %v4182 = vunpack.c.h.b16 %v3067
        %v4183 = vunpack.c.l.b16 %v3068
        %v4184 = vunpack.c.h.b16 %v3068
        %v4185 = vunpack.c.l.b16 %v3069
        %v4186 = vunpack.c.h.b16 %v3069
        %v4187 = vunpack.c.l.b16 %v3070
        %v4188 = vunpack.c.h.b16 %v3070
        %v4189 = vunpack.c.l.b16 %v3071
        %v4190 = vunpack.c.h.b16 %v3071
        %v4191 = vunpack.c.l.b16 %v3072
        %v4192 = vunpack.c.h.b16 %v3072
        %v4193 = vunpack.c.l.b16 %v3073
        %v4194 = vunpack.c.h.b16 %v3073
        %v4195 = vunpack.c.l.b16 %v3074
        %v4196 = vunpack.c.h.b16 %v3074
        %v4197 = vunpack.c.l.b16 %v3075
        %v4198 = vunpack.c.h.b16 %v3075
        %v4199 = vunpack.c.l.b16 %v3076
        %v4200 = vunpack.c.h.b16 %v3076
        %v4201 = vunpack.c.l.b16 %v3077
        %v4202 = vunpack.c.h.b16 %v3077
        %v4203 = vunpack.c.l.b16 %v3078
        %v4204 = vunpack.c.h.b16 %v3078
        %v4205 = vunpack.c.l.b16 %v3079
        %v4206 = vunpack.c.h.b16 %v3079
        %v4207 = vunpack.c.l.b16 %v3080
        %v4208 = vunpack.c.h.b16 %v3080
        %v4209 = vunpack.c.l.b16 %v3081
        %v4210 = vunpack.c.h.b16 %v3081
        %v4211 = vunpack.c.l.b16 %v3082
        %v4212 = vunpack.c.h.b16 %v3082
        %v4213 = vunpack.c.l.b16 %v3083
        %v4214 = vunpack.c.h.b16 %v3083
        %v4215 = vunpack.c.l.b16 %v3084
        %v4216 = vunpack.c.h.b16 %v3084
        %v4217 = vunpack.c.l.b16 %v3085
        %v4218 = vunpack.c.h.b16 %v3085
        %v4219 = vunpack.c.l.b16 %v3086
        %v4220 = vunpack.c.h.b16 %v3086
        %v4221 = vunpack.c.l.b16 %v3087
        %v4222 = vunpack.c.h.b16 %v3087
        %v4223 = vunpack.c.l.b16 %v3088
        %v4224 = vunpack.c.h.b16 %v3088
        %v4225 = vunpack.c.l.b16 %v3089
        %v4226 = vunpack.c.h.b16 %v3089
        %v4227 = vunpack.c.l.b16 %v3090
        %v4228 = vunpack.c.h.b16 %v3090
        %v4229 = vunpack.c.l.b16 %v3091
        %v4230 = vunpack.c.h.b16 %v3091
        %v4231 = vunpack.c.l.b16 %v3092
        %v4232 = vunpack.c.h.b16 %v3092
        %v4233 = vunpack.c.l.b16 %v3093
        %v4234 = vunpack.c.h.b16 %v3093
        %v4235 = vunpack.c.l.b16 %v3094
        %v4236 = vunpack.c.h.b16 %v3094
        %v4237 = vunpack.c.l.b16 %v3095
        %v4238 = vunpack.c.h.b16 %v3095
        %v4239 = vunpack.c.l.b16 %v3096
        %v4240 = vunpack.c.h.b16 %v3096
        %v4241 = vunpack.c.l.b16 %v3097
        %v4242 = vunpack.c.h.b16 %v3097
        %v4243 = vunpack.c.l.b16 %v3098
        %v4244 = vunpack.c.h.b16 %v3098
        %v4245 = vunpack.c.l.b16 %v3099
        %v4246 = vunpack.c.h.b16 %v3099
        %v4247 = vunpack.c.l.b16 %v3100
        %v4248 = vunpack.c.h.b16 %v3100
        %v4249 = vunpack.c.l.b16 %v3101
        %v4250 = vunpack.c.h.b16 %v3101
        %v4251 = vunpack.c.l.b16 %v3102
        %v4252 = vunpack.c.h.b16 %v3102
        %v4253 = vunpack.c.l.b16 %v3103
        %v4254 = vunpack.c.h.b16 %v3103
        %v4255 = vunpack.c.l.b16 %v3104
        %v4256 = vunpack.c.h.b16 %v3104
        %v4257 = vunpack.c.l.b16 %v3105
        %v4258 = vunpack.c.h.b16 %v3105
        %v4259 = vunpack.c.l.b16 %v3106
        %v4260 = vunpack.c.h.b16 %v3106
        %v4261 = vunpack.c.l.b16 %v3107
        %v4262 = vunpack.c.h.b16 %v3107
        %v4263 = vunpack.c.l.b16 %v3108
        %v4264 = vunpack.c.h.b16 %v3108
        %v4265 = vunpack.c.l.b16 %v3109
        %v4266 = vunpack.c.h.b16 %v3109
        %v4267 = vunpack.c.l.b16 %v3110
        %v4268 = vunpack.c.h.b16 %v3110
        %v4269 = vunpack.c.l.b16 %v3111
        %v4270 = vunpack.c.h.b16 %v3111
        %v4271 = vunpack.c.l.b16 %v3112
        %v4272 = vunpack.c.h.b16 %v3112
        %v4273 = vunpack.c.l.b16 %v3113
        %v4274 = vunpack.c.h.b16 %v3113
        %v4275 = vunpack.c.l.b16 %v3114
        %v4276 = vunpack.c.h.b16 %v3114
        %v4277 = vunpack.c.l.b16 %v3115
        %v4278 = vunpack.c.h.b16 %v3115
        %v4279 = vunpack.c.l.b16 %v3116
        %v4280 = vunpack.c.h.b16 %v3116
        %v4281 = vunpack.c.l.b16 %v3117
        %v4282 = vunpack.c.h.b16 %v3117
        %v4283 = vunpack.c.l.b16 %v3118
        %v4284 = vunpack.c.h.b16 %v3118
        %v4285 = vpack.c.b16 %v3523, %v3517
        %v4286 = vpack.c.b16 %v3524, %v3518
        %v4287 = vpack.c.b16 %v3525, %v3519
        %v4288 = vpack.c.b16 %v3526, %v3520
        %v4289 = vpack.c.b16 %v3527, %v3521
        %v4290 = vpack.c.b16 %v3528, %v3522
        %v4291 = vpack.c.b16 %v3535, %v3529
        %v4292 = vpack.c.b16 %v3536, %v3530
        %v4293 = vpack.c.b16 %v3537, %v3531
        %v4294 = vpack.c.b16 %v3538, %v3532
        %v4295 = vpack.c.b16 %v3539, %v3533
        %v4296 = vpack.c.b16 %v3540, %v3534
        %v4297 = vpack.c.b16 %v3547, %v3541
        %v4298 = vpack.c.b16 %v3548, %v3542
        %v4299 = vpack.c.b16 %v3549, %v3543
        %v4300 = vpack.c.b16 %v3550, %v3544
        %v4301 = vpack.c.b16 %v3551, %v3545
        %v4302 = vpack.c.b16 %v3552, %v3546
        %v4303 = vpack.c.b16 %v3559, %v3553
        %v4304 = vpack.c.b16 %v3560, %v3554
        %v4305 = vpack.c.b16 %v3561, %v3555
        %v4306 = vpack.c.b16 %v3562, %v3556
        %v4307 = vpack.c.b16 %v3563, %v3557
        %v4308 = vpack.c.b16 %v3564, %v3558
        %v4309 = vpack.c.b16 %v3571, %v3565
        %v4310 = vpack.c.b16 %v3572, %v3566
        %v4311 = vpack.c.b16 %v3573, %v3567
        %v4312 = vpack.c.b16 %v3574, %v3568
        %v4313 = vpack.c.b16 %v3575, %v3569
        %v4314 = vpack.c.b16 %v3576, %v3570
        %v4315 = vpack.c.b16 %v3583, %v3577
        %v4316 = vpack.c.b16 %v3584, %v3578
        %v4317 = vpack.c.b16 %v3585, %v3579
        %v4318 = vpack.c.b16 %v3586, %v3580
        %v4319 = vpack.c.b16 %v3587, %v3581
        %v4320 = vpack.c.b16 %v3588, %v3582
        %v4321 = vpack.c.b16 %v3595, %v3589
        %v4322 = vpack.c.b16 %v3596, %v3590
        %v4323 = vpack.c.b16 %v3597, %v3591
        %v4324 = vpack.c.b16 %v3598, %v3592
        %v4325 = vpack.c.b16 %v3599, %v3593
        %v4326 = vpack.c.b16 %v3600, %v3594
        %v4327 = vpack.c.b16 %v3607, %v3601
        %v4328 = vpack.c.b16 %v3608, %v3602
        %v4329 = vpack.c.b16 %v3609, %v3603
        %v4330 = vpack.c.b16 %v3610, %v3604
        %v4331 = vpack.c.b16 %v3611, %v3605
        %v4332 = vpack.c.b16 %v3612, %v3606
        %v4333 = vpack.c.b16 %v3619, %v3613
        %v4334 = vpack.c.b16 %v3620, %v3614
        %v4335 = vpack.c.b16 %v3621, %v3615
        %v4336 = vpack.c.b16 %v3622, %v3616
        %v4337 = vpack.c.b16 %v3623, %v3617
        %v4338 = vpack.c.b16 %v3624, %v3618
        %v4339 = vpack.c.b16 %v3631, %v3625
        %v4340 = vpack.c.b16 %v3632, %v3626
        %v4341 = vpack.c.b16 %v3633, %v3627
        %v4342 = vpack.c.b16 %v3634, %v3628
        %v4343 = vpack.c.b16 %v3635, %v3629
        %v4344 = vpack.c.b16 %v3636, %v3630
        %v4345 = vpack.c.b16 %v3643, %v3637
        %v4346 = vpack.c.b16 %v3644, %v3638
        %v4347 = vpack.c.b16 %v3645, %v3639
        %v4348 = vpack.c.b16 %v3646, %v3640
        %v4349 = vpack.c.b16 %v3647, %v3641
        %v4350 = vpack.c.b16 %v3648, %v3642
        %v4351 = vpack.c.b16 %v3655, %v3649
        %v4352 = vpack.c.b16 %v3656, %v3650
        %v4353 = vpack.c.b16 %v3657, %v3651
        %v4354 = vpack.c.b16 %v3658, %v3652
        %v4355 = vpack.c.b16 %v3659, %v3653
        %v4356 = vpack.c.b16 %v3660, %v3654
        %v4357 = vpack.c.b16 %v3667, %v3661
        %v4358 = vpack.c.b16 %v3668, %v3662
        %v4359 = vpack.c.b16 %v3669, %v3663
        %v4360 = vpack.c.b16 %v3670, %v3664
        %v4361 = vpack.c.b16 %v3671, %v3665
        %v4362 = vpack.c.b16 %v3672, %v3666
        %v4363 = vpack.c.b16 %v3679, %v3673
        %v4364 = vpack.c.b16 %v3680, %v3674
        %v4365 = vpack.c.b16 %v3681, %v3675
        %v4366 = vpack.c.b16 %v3682, %v3676
        %v4367 = vpack.c.b16 %v3683, %v3677
        %v4368 = vpack.c.b16 %v3684, %v3678
        %v4369 = vpack.c.b16 %v3691, %v3685
        %v4370 = vpack.c.b16 %v3692, %v3686
        %v4371 = vpack.c.b16 %v3693, %v3687
        %v4372 = vpack.c.b16 %v3694, %v3688
        %v4373 = vpack.c.b16 %v3695, %v3689
        %v4374 = vpack.c.b16 %v3696, %v3690
        %v4375 = vpack.c.b16 %v3703, %v3697
        %v4376 = vpack.c.b16 %v3704, %v3698
        %v4377 = vpack.c.b16 %v3705, %v3699
        %v4378 = vpack.c.b16 %v3706, %v3700
        %v4379 = vpack.c.b16 %v3707, %v3701
        %v4380 = vpack.c.b16 %v3708, %v3702
        %v4381 = vpack.c.b16 %v3715, %v3709
        %v4382 = vpack.c.b16 %v3716, %v3710
        %v4383 = vpack.c.b16 %v3717, %v3711
        %v4384 = vpack.c.b16 %v3718, %v3712
        %v4385 = vpack.c.b16 %v3719, %v3713
        %v4386 = vpack.c.b16 %v3720, %v3714
        %v4387 = vpack.c.b16 %v3727, %v3721
        %v4388 = vpack.c.b16 %v3728, %v3722
        %v4389 = vpack.c.b16 %v3729, %v3723
        %v4390 = vpack.c.b16 %v3730, %v3724
        %v4391 = vpack.c.b16 %v3731, %v3725
        %v4392 = vpack.c.b16 %v3732, %v3726
        %v4393 = vpack.c.b16 %v3739, %v3733
        %v4394 = vpack.c.b16 %v3740, %v3734
        %v4395 = vpack.c.b16 %v3741, %v3735
        %v4396 = vpack.c.b16 %v3742, %v3736
        %v4397 = vpack.c.b16 %v3743, %v3737
        %v4398 = vpack.c.b16 %v3744, %v3738
        %v4399 = vpack.c.b16 %v3751, %v3745
        %v4400 = vpack.c.b16 %v3752, %v3746
        %v4401 = vpack.c.b16 %v3753, %v3747
        %v4402 = vpack.c.b16 %v3754, %v3748
        %v4403 = vpack.c.b16 %v3755, %v3749
        %v4404 = vpack.c.b16 %v3756, %v3750
        %v4405 = vpack.c.b16 %v3763, %v3757
        %v4406 = vpack.c.b16 %v3764, %v3758
        %v4407 = vpack.c.b16 %v3765, %v3759
        %v4408 = vpack.c.b16 %v3766, %v3760
        %v4409 = vpack.c.b16 %v3767, %v3761
        %v4410 = vpack.c.b16 %v3768, %v3762
        %v4411 = vpack.c.b16 %v3775, %v3769
        %v4412 = vpack.c.b16 %v3776, %v3770
        %v4413 = vpack.c.b16 %v3777, %v3771
        %v4414 = vpack.c.b16 %v3778, %v3772
        %v4415 = vpack.c.b16 %v3779, %v3773
        %v4416 = vpack.c.b16 %v3780, %v3774
        %v4417 = vpack.c.b16 %v3787, %v3781
        %v4418 = vpack.c.b16 %v3788, %v3782
        %v4419 = vpack.c.b16 %v3789, %v3783
        %v4420 = vpack.c.b16 %v3790, %v3784
        %v4421 = vpack.c.b16 %v3791, %v3785
        %v4422 = vpack.c.b16 %v3792, %v3786
        %v4423 = vpack.c.b16 %v3799, %v3793
        %v4424 = vpack.c.b16 %v3800, %v3794
        %v4425 = vpack.c.b16 %v3801, %v3795
        %v4426 = vpack.c.b16 %v3802, %v3796
        %v4427 = vpack.c.b16 %v3803, %v3797
        %v4428 = vpack.c.b16 %v3804, %v3798
        %v4429 = vpack.c.b16 %v3811, %v3805
        %v4430 = vpack.c.b16 %v3812, %v3806
        %v4431 = vpack.c.b16 %v3813, %v3807
        %v4432 = vpack.c.b16 %v3814, %v3808
        %v4433 = vpack.c.b16 %v3815, %v3809
        %v4434 = vpack.c.b16 %v3816, %v3810
        %v4435 = vpack.c.b16 %v3823, %v3817
        %v4436 = vpack.c.b16 %v3824, %v3818
        %v4437 = vpack.c.b16 %v3825, %v3819
        %v4438 = vpack.c.b16 %v3826, %v3820
        %v4439 = vpack.c.b16 %v3827, %v3821
        %v4440 = vpack.c.b16 %v3828, %v3822
        %v4441 = vpack.c.b16 %v3835, %v3829
        %v4442 = vpack.c.b16 %v3836, %v3830
        %v4443 = vpack.c.b16 %v3837, %v3831
        %v4444 = vpack.c.b16 %v3838, %v3832
        %v4445 = vpack.c.b16 %v3839, %v3833
        %v4446 = vpack.c.b16 %v3840, %v3834
        %v4447 = vpack.c.b16 %v3847, %v3841
        %v4448 = vpack.c.b16 %v3848, %v3842
        %v4449 = vpack.c.b16 %v3849, %v3843
        %v4450 = vpack.c.b16 %v3850, %v3844
        %v4451 = vpack.c.b16 %v3851, %v3845
        %v4452 = vpack.c.b16 %v3852, %v3846
        %v4453 = vpack.c.b16 %v3859, %v3853
        %v4454 = vpack.c.b16 %v3860, %v3854
        %v4455 = vpack.c.b16 %v3861, %v3855
        %v4456 = vpack.c.b16 %v3862, %v3856
        %v4457 = vpack.c.b16 %v3863, %v3857
        %v4458 = vpack.c.b16 %v3864, %v3858
        %v4459 = vpack.c.b16 %v3871, %v3865
        %v4460 = vpack.c.b16 %v3872, %v3866
        %v4461 = vpack.c.b16 %v3873, %v3867
        %v4462 = vpack.c.b16 %v3874, %v3868
        %v4463 = vpack.c.b16 %v3875, %v3869
        %v4464 = vpack.c.b16 %v3876, %v3870
        %v4465 = vpack.c.b16 %v3883, %v3877
        %v4466 = vpack.c.b16 %v3884, %v3878
        %v4467 = vpack.c.b16 %v3885, %v3879
        %v4468 = vpack.c.b16 %v3886, %v3880
        %v4469 = vpack.c.b16 %v3887, %v3881
        %v4470 = vpack.c.b16 %v3888, %v3882
        %v4471 = vpack.c.b16 %v3895, %v3889
        %v4472 = vpack.c.b16 %v3896, %v3890
        %v4473 = vpack.c.b16 %v3897, %v3891
        %v4474 = vpack.c.b16 %v3898, %v3892
        %v4475 = vpack.c.b16 %v3899, %v3893
        %v4476 = vpack.c.b16 %v3900, %v3894
        %v4477 = vpack.c.b16 %v3907, %v3901
        %v4478 = vpack.c.b16 %v3908, %v3902
        %v4479 = vpack.c.b16 %v3909, %v3903
        %v4480 = vpack.c.b16 %v3910, %v3904
        %v4481 = vpack.c.b16 %v3911, %v3905
        %v4482 = vpack.c.b16 %v3912, %v3906
        %v4483 = vpack.c.b16 %v3919, %v3913
        %v4484 = vpack.c.b16 %v3920, %v3914
        %v4485 = vpack.c.b16 %v3921, %v3915
        %v4486 = vpack.c.b16 %v3922, %v3916
        %v4487 = vpack.c.b16 %v3923, %v3917
        %v4488 = vpack.c.b16 %v3924, %v3918
        %v4489 = vpack.c.b16 %v3931, %v3925
        %v4490 = vpack.c.b16 %v3932, %v3926
        %v4491 = vpack.c.b16 %v3933, %v3927
        %v4492 = vpack.c.b16 %v3934, %v3928
        %v4493 = vpack.c.b16 %v3935, %v3929
        %v4494 = vpack.c.b16 %v3936, %v3930
        %v4495 = vpack.c.b16 %v3943, %v3937
        %v4496 = vpack.c.b16 %v3944, %v3938
        %v4497 = vpack.c.b16 %v3945, %v3939
        %v4498 = vpack.c.b16 %v3946, %v3940
        %v4499 = vpack.c.b16 %v3947, %v3941
        %v4500 = vpack.c.b16 %v3948, %v3942
        %v4501 = vpack.c.b16 %v3955, %v3949
        %v4502 = vpack.c.b16 %v3956, %v3950
        %v4503 = vpack.c.b16 %v3957, %v3951
        %v4504 = vpack.c.b16 %v3958, %v3952
        %v4505 = vpack.c.b16 %v3959, %v3953
        %v4506 = vpack.c.b16 %v3960, %v3954
        %v4507 = vpack.c.b16 %v3967, %v3961
        %v4508 = vpack.c.b16 %v3968, %v3962
        %v4509 = vpack.c.b16 %v3969, %v3963
        %v4510 = vpack.c.b16 %v3970, %v3964
        %v4511 = vpack.c.b16 %v3971, %v3965
        %v4512 = vpack.c.b16 %v3972, %v3966
        %v4513 = vpack.c.b16 %v3979, %v3973
        %v4514 = vpack.c.b16 %v3980, %v3974
        %v4515 = vpack.c.b16 %v3981, %v3975
        %v4516 = vpack.c.b16 %v3982, %v3976
        %v4517 = vpack.c.b16 %v3983, %v3977
        %v4518 = vpack.c.b16 %v3984, %v3978
        %v4519 = vpack.c.b16 %v3991, %v3985
        %v4520 = vpack.c.b16 %v3992, %v3986
        %v4521 = vpack.c.b16 %v3993, %v3987
        %v4522 = vpack.c.b16 %v3994, %v3988
        %v4523 = vpack.c.b16 %v3995, %v3989
        %v4524 = vpack.c.b16 %v3996, %v3990
        %v4525 = vpack.c.b16 %v4003, %v3997
        %v4526 = vpack.c.b16 %v4004, %v3998
        %v4527 = vpack.c.b16 %v4005, %v3999
        %v4528 = vpack.c.b16 %v4006, %v4000
        %v4529 = vpack.c.b16 %v4007, %v4001
        %v4530 = vpack.c.b16 %v4008, %v4002
        %v4531 = vpack.c.b16 %v4015, %v4009
        %v4532 = vpack.c.b16 %v4016, %v4010
        %v4533 = vpack.c.b16 %v4017, %v4011
        %v4534 = vpack.c.b16 %v4018, %v4012
        %v4535 = vpack.c.b16 %v4019, %v4013
        %v4536 = vpack.c.b16 %v4020, %v4014
        %v4537 = vpack.c.b16 %v4027, %v4021
        %v4538 = vpack.c.b16 %v4028, %v4022
        %v4539 = vpack.c.b16 %v4029, %v4023
        %v4540 = vpack.c.b16 %v4030, %v4024
        %v4541 = vpack.c.b16 %v4031, %v4025
        %v4542 = vpack.c.b16 %v4032, %v4026
        %v4543 = vpack.c.b16 %v4039, %v4033
        %v4544 = vpack.c.b16 %v4040, %v4034
        %v4545 = vpack.c.b16 %v4041, %v4035
        %v4546 = vpack.c.b16 %v4042, %v4036
        %v4547 = vpack.c.b16 %v4043, %v4037
        %v4548 = vpack.c.b16 %v4044, %v4038
        %v4549 = vpack.c.b16 %v4051, %v4045
        %v4550 = vpack.c.b16 %v4052, %v4046
        %v4551 = vpack.c.b16 %v4053, %v4047
        %v4552 = vpack.c.b16 %v4054, %v4048
        %v4553 = vpack.c.b16 %v4055, %v4049
        %v4554 = vpack.c.b16 %v4056, %v4050
        %v4555 = vpack.c.b16 %v4063, %v4057
        %v4556 = vpack.c.b16 %v4064, %v4058
        %v4557 = vpack.c.b16 %v4065, %v4059
        %v4558 = vpack.c.b16 %v4066, %v4060
        %v4559 = vpack.c.b16 %v4067, %v4061
        %v4560 = vpack.c.b16 %v4068, %v4062
        %v4561 = vpack.c.b16 %v4075, %v4069
        %v4562 = vpack.c.b16 %v4076, %v4070
        %v4563 = vpack.c.b16 %v4077, %v4071
        %v4564 = vpack.c.b16 %v4078, %v4072
        %v4565 = vpack.c.b16 %v4079, %v4073
        %v4566 = vpack.c.b16 %v4080, %v4074
        %v4567 = vpack.c.b16 %v4087, %v4081
        %v4568 = vpack.c.b16 %v4088, %v4082
        %v4569 = vpack.c.b16 %v4089, %v4083
        %v4570 = vpack.c.b16 %v4090, %v4084
        %v4571 = vpack.c.b16 %v4091, %v4085
        %v4572 = vpack.c.b16 %v4092, %v4086
        %v4573 = vpack.c.b16 %v4099, %v4093
        %v4574 = vpack.c.b16 %v4100, %v4094
        %v4575 = vpack.c.b16 %v4101, %v4095
        %v4576 = vpack.c.b16 %v4102, %v4096
        %v4577 = vpack.c.b16 %v4103, %v4097
        %v4578 = vpack.c.b16 %v4104, %v4098
        %v4579 = vpack.c.b16 %v4111, %v4105
        %v4580 = vpack.c.b16 %v4112, %v4106
        %v4581 = vpack.c.b16 %v4113, %v4107
        %v4582 = vpack.c.b16 %v4114, %v4108
        %v4583 = vpack.c.b16 %v4115, %v4109
        %v4584 = vpack.c.b16 %v4116, %v4110
        %v4585 = vpack.c.b16 %v4123, %v4117
        %v4586 = vpack.c.b16 %v4124, %v4118
        %v4587 = vpack.c.b16 %v4125, %v4119
        %v4588 = vpack.c.b16 %v4126, %v4120
        %v4589 = vpack.c.b16 %v4127, %v4121
        %v4590 = vpack.c.b16 %v4128, %v4122
        %v4591 = vpack.c.b16 %v4135, %v4129
        %v4592 = vpack.c.b16 %v4136, %v4130
        %v4593 = vpack.c.b16 %v4137, %v4131
        %v4594 = vpack.c.b16 %v4138, %v4132
        %v4595 = vpack.c.b16 %v4139, %v4133
        %v4596 = vpack.c.b16 %v4140, %v4134
        %v4597 = vpack.c.b16 %v4147, %v4141
        %v4598 = vpack.c.b16 %v4148, %v4142
        %v4599 = vpack.c.b16 %v4149, %v4143
        %v4600 = vpack.c.b16 %v4150, %v4144
        %v4601 = vpack.c.b16 %v4151, %v4145
        %v4602 = vpack.c.b16 %v4152, %v4146
        %v4603 = vpack.c.b16 %v4159, %v4153
        %v4604 = vpack.c.b16 %v4160, %v4154
        %v4605 = vpack.c.b16 %v4161, %v4155
        %v4606 = vpack.c.b16 %v4162, %v4156
        %v4607 = vpack.c.b16 %v4163, %v4157
        %v4608 = vpack.c.b16 %v4164, %v4158
        %v4609 = vpack.c.b16 %v4171, %v4165
        %v4610 = vpack.c.b16 %v4172, %v4166
        %v4611 = vpack.c.b16 %v4173, %v4167
        %v4612 = vpack.c.b16 %v4174, %v4168
        %v4613 = vpack.c.b16 %v4175, %v4169
        %v4614 = vpack.c.b16 %v4176, %v4170
        %v4615 = vpack.c.b16 %v4183, %v4177
        %v4616 = vpack.c.b16 %v4184, %v4178
        %v4617 = vpack.c.b16 %v4185, %v4179
        %v4618 = vpack.c.b16 %v4186, %v4180
        %v4619 = vpack.c.b16 %v4187, %v4181
        %v4620 = vpack.c.b16 %v4188, %v4182
        %v4621 = vpack.c.b16 %v4195, %v4189
        %v4622 = vpack.c.b16 %v4196, %v4190
        %v4623 = vpack.c.b16 %v4197, %v4191
        %v4624 = vpack.c.b16 %v4198, %v4192
        %v4625 = vpack.c.b16 %v4199, %v4193
        %v4626 = vpack.c.b16 %v4200, %v4194
        %v4627 = vpack.c.b16 %v4207, %v4201
        %v4628 = vpack.c.b16 %v4208, %v4202
        %v4629 = vpack.c.b16 %v4209, %v4203
        %v4630 = vpack.c.b16 %v4210, %v4204
        %v4631 = vpack.c.b16 %v4211, %v4205
        %v4632 = vpack.c.b16 %v4212, %v4206
        %v4633 = vpack.c.b16 %v4219, %v4213
        %v4634 = vpack.c.b16 %v4220, %v4214
        %v4635 = vpack.c.b16 %v4221, %v4215
        %v4636 = vpack.c.b16 %v4222, %v4216
        %v4637 = vpack.c.b16 %v4223, %v4217
        %v4638 = vpack.c.b16 %v4224, %v4218
        %v4639 = vpack.c.b16 %v4231, %v4225
        %v4640 = vpack.c.b16 %v4232, %v4226
        %v4641 = vpack.c.b16 %v4233, %v4227
        %v4642 = vpack.c.b16 %v4234, %v4228
        %v4643 = vpack.c.b16 %v4235, %v4229
        %v4644 = vpack.c.b16 %v4236, %v4230
        %v4645 = vpack.c.b16 %v4243, %v4237
        %v4646 = vpack.c.b16 %v4244, %v4238
        %v4647 = vpack.c.b16 %v4245, %v4239
        %v4648 = vpack.c.b16 %v4246, %v4240
        %v4649 = vpack.c.b16 %v4247, %v4241
        %v4650 = vpack.c.b16 %v4248, %v4242
        %v4651 = vpack.c.b16 %v4255, %v4249
        %v4652 = vpack.c.b16 %v4256, %v4250
        %v4653 = vpack.c.b16 %v4257, %v4251
        %v4654 = vpack.c.b16 %v4258, %v4252
        %v4655 = vpack.c.b16 %v4259, %v4253
        %v4656 = vpack.c.b16 %v4260, %v4254
        %v4657 = vpack.c.b16 %v4267, %v4261
        %v4658 = vpack.c.b16 %v4268, %v4262
        %v4659 = vpack.c.b16 %v4269, %v4263
        %v4660 = vpack.c.b16 %v4270, %v4264
        %v4661 = vpack.c.b16 %v4271, %v4265
        %v4662 = vpack.c.b16 %v4272, %v4266
        %v4663 = vpack.c.b16 %v4279, %v4273
        %v4664 = vpack.c.b16 %v4280, %v4274
        %v4665 = vpack.c.b16 %v4281, %v4275
        %v4666 = vpack.c.b16 %v4282, %v4276
        %v4667 = vpack.c.b16 %v4283, %v4277
        %v4668 = vpack.c.b16 %v4284, %v4278
        %5053 = vmatpush.bf16.msra.mxu0 %v4327
        %5054 = vmatpush.bf16.msra.mxu0 %v4321
        %5055 = vmatpush.bf16.msra.mxu0 %v4315
        %5056 = vmatpush.bf16.msra.mxu0 %v4309
        %5057 = vmatpush.bf16.msra.mxu0 %v4303
        %5058 = vmatpush.bf16.msra.mxu0 %v4297
        %5059 = vmatpush.bf16.msra.mxu0 %v4291
        %5060 = vmatpush.bf16.msra.mxu0 %v4285
        %5061 = vmatmul.bf16.gmra.mxu0 %v2727
        %v5062 = vpop.f32.mrf.mxu0
        %v5063 = vadd.f32 %v3121, %v5062
        %v5064 = vpop.f32.mrf.mxu0
        %5065 = vdwg.mxu0
        %5066 = vmatpush.bf16.msra.mxu0 %v4375
        %5067 = vmatpush.bf16.msra.mxu0 %v4369
        %5068 = vmatpush.bf16.msra.mxu0 %v4363
        %5069 = vmatpush.bf16.msra.mxu0 %v4357
        %5070 = vmatpush.bf16.msra.mxu0 %v4351
        %5071 = vmatpush.bf16.msra.mxu0 %v4345
        %5072 = vmatpush.bf16.msra.mxu0 %v4339
        %5073 = vmatpush.bf16.msra.mxu0 %v4333
        %5074 = vmatmul.bf16.gmra.mxu0 %v2728
        %v5075 = vpop.f32.mrf.mxu0
        %v5076 = vadd.f32 %v5063, %v5075
        %v5077 = vpop.f32.mrf.mxu0
        %5078 = vdwg.mxu0
        %5079 = vmatpush.bf16.msra.mxu0 %v4423
        %5080 = vmatpush.bf16.msra.mxu0 %v4417
        %5081 = vmatpush.bf16.msra.mxu0 %v4411
        %5082 = vmatpush.bf16.msra.mxu0 %v4405
        %5083 = vmatpush.bf16.msra.mxu0 %v4399
        %5084 = vmatpush.bf16.msra.mxu0 %v4393
        %5085 = vmatpush.bf16.msra.mxu0 %v4387
        %5086 = vmatpush.bf16.msra.mxu0 %v4381
        %5087 = vmatmul.bf16.gmra.mxu0 %v2729
        %v5088 = vpop.f32.mrf.mxu0
        %v5089 = vadd.f32 %v5076, %v5088
        %v5090 = vpop.f32.mrf.mxu0
        %5091 = vdwg.mxu0
        %5092 = vmatpush.bf16.msra.mxu0 %v4471
        %5093 = vmatpush.bf16.msra.mxu0 %v4465
        %5094 = vmatpush.bf16.msra.mxu0 %v4459
        %5095 = vmatpush.bf16.msra.mxu0 %v4453
        %5096 = vmatpush.bf16.msra.mxu0 %v4447
        %5097 = vmatpush.bf16.msra.mxu0 %v4441
        %5098 = vmatpush.bf16.msra.mxu0 %v4435
        %5099 = vmatpush.bf16.msra.mxu0 %v4429
        %5100 = vmatmul.bf16.gmra.mxu0 %v2730
        %v5101 = vpop.f32.mrf.mxu0
        %v5102 = vadd.f32 %v5089, %v5101
        %v5103 = vpop.f32.mrf.mxu0
        %5104 = vdwg.mxu0
        %5105 = vmatpush.bf16.msra.mxu0 %v4519
        %5106 = vmatpush.bf16.msra.mxu0 %v4513
        %5107 = vmatpush.bf16.msra.mxu0 %v4507
        %5108 = vmatpush.bf16.msra.mxu0 %v4501
        %5109 = vmatpush.bf16.msra.mxu0 %v4495
        %5110 = vmatpush.bf16.msra.mxu0 %v4489
        %5111 = vmatpush.bf16.msra.mxu0 %v4483
        %5112 = vmatpush.bf16.msra.mxu0 %v4477
        %5113 = vmatmul.bf16.gmra.mxu0 %v2731
        %v5114 = vpop.f32.mrf.mxu0
        %v5115 = vadd.f32 %v5102, %v5114
        %v5116 = vpop.f32.mrf.mxu0
        %5117 = vdwg.mxu0
        %5118 = vmatpush.bf16.msra.mxu0 %v4567
        %5119 = vmatpush.bf16.msra.mxu0 %v4561
        %5120 = vmatpush.bf16.msra.mxu0 %v4555
        %5121 = vmatpush.bf16.msra.mxu0 %v4549
        %5122 = vmatpush.bf16.msra.mxu0 %v4543
        %5123 = vmatpush.bf16.msra.mxu0 %v4537
        %5124 = vmatpush.bf16.msra.mxu0 %v4531
        %5125 = vmatpush.bf16.msra.mxu0 %v4525
        %5126 = vmatmul.bf16.gmra.mxu0 %v2732
        %v5127 = vpop.f32.mrf.mxu0
        %v5128 = vadd.f32 %v5115, %v5127
        %v5129 = vpop.f32.mrf.mxu0
        %5130 = vdwg.mxu0
        %5131 = vmatpush.bf16.msra.mxu0 %v4615
        %5132 = vmatpush.bf16.msra.mxu0 %v4609
        %5133 = vmatpush.bf16.msra.mxu0 %v4603
        %5134 = vmatpush.bf16.msra.mxu0 %v4597
        %5135 = vmatpush.bf16.msra.mxu0 %v4591
        %5136 = vmatpush.bf16.msra.mxu0 %v4585
        %5137 = vmatpush.bf16.msra.mxu0 %v4579
        %5138 = vmatpush.bf16.msra.mxu0 %v4573
        %5139 = vmatmul.bf16.gmra.mxu0 %v2733
        %v5140 = vpop.f32.mrf.mxu0
        %v5141 = vadd.f32 %v5128, %v5140
        %v5142 = vpop.f32.mrf.mxu0
        %5143 = vdwg.mxu0
        %5144 = vmatpush.bf16.msra.mxu0 %v4663
        %5145 = vmatpush.bf16.msra.mxu0 %v4657
        %5146 = vmatpush.bf16.msra.mxu0 %v4651
        %5147 = vmatpush.bf16.msra.mxu0 %v4645
        %5148 = vmatpush.bf16.msra.mxu0 %v4639
        %5149 = vmatpush.bf16.msra.mxu0 %v4633
        %5150 = vmatpush.bf16.msra.mxu0 %v4627
        %5151 = vmatpush.bf16.msra.mxu0 %v4621
        %5152 = vmatmul.bf16.gmra.mxu0 %v2734
        %v5153 = vpop.f32.mrf.mxu0
        %v5154 = vadd.f32 %v5141, %v5153
        %v5155 = vpop.f32.mrf.mxu0
        %5156 = vdwg.mxu0
        %5157 = vmatpush.bf16.msra.mxu0 %v4328
        %5158 = vmatpush.bf16.msra.mxu0 %v4322
        %5159 = vmatpush.bf16.msra.mxu0 %v4316
        %5160 = vmatpush.bf16.msra.mxu0 %v4310
        %5161 = vmatpush.bf16.msra.mxu0 %v4304
        %5162 = vmatpush.bf16.msra.mxu0 %v4298
        %5163 = vmatpush.bf16.msra.mxu0 %v4292
        %5164 = vmatpush.bf16.msra.mxu0 %v4286
        %5165 = vmatmul.bf16.gmra.mxu0 %v2727
        %v5166 = vpop.f32.mrf.mxu0
        %v5167 = vadd.f32 %v3122, %v5166
        %v5168 = vpop.f32.mrf.mxu0
        %5169 = vdwg.mxu0
        %5170 = vmatpush.bf16.msra.mxu0 %v4376
        %5171 = vmatpush.bf16.msra.mxu0 %v4370
        %5172 = vmatpush.bf16.msra.mxu0 %v4364
        %5173 = vmatpush.bf16.msra.mxu0 %v4358
        %5174 = vmatpush.bf16.msra.mxu0 %v4352
        %5175 = vmatpush.bf16.msra.mxu0 %v4346
        %5176 = vmatpush.bf16.msra.mxu0 %v4340
        %5177 = vmatpush.bf16.msra.mxu0 %v4334
        %5178 = vmatmul.bf16.gmra.mxu0 %v2728
        %v5179 = vpop.f32.mrf.mxu0
        %v5180 = vadd.f32 %v5167, %v5179
        %v5181 = vpop.f32.mrf.mxu0
        %5182 = vdwg.mxu0
        %5183 = vmatpush.bf16.msra.mxu0 %v4424
        %5184 = vmatpush.bf16.msra.mxu0 %v4418
        %5185 = vmatpush.bf16.msra.mxu0 %v4412
        %5186 = vmatpush.bf16.msra.mxu0 %v4406
        %5187 = vmatpush.bf16.msra.mxu0 %v4400
        %5188 = vmatpush.bf16.msra.mxu0 %v4394
        %5189 = vmatpush.bf16.msra.mxu0 %v4388
        %5190 = vmatpush.bf16.msra.mxu0 %v4382
        %5191 = vmatmul.bf16.gmra.mxu0 %v2729
        %v5192 = vpop.f32.mrf.mxu0
        %v5193 = vadd.f32 %v5180, %v5192
        %v5194 = vpop.f32.mrf.mxu0
        %5195 = vdwg.mxu0
        %5196 = vmatpush.bf16.msra.mxu0 %v4472
        %5197 = vmatpush.bf16.msra.mxu0 %v4466
        %5198 = vmatpush.bf16.msra.mxu0 %v4460
        %5199 = vmatpush.bf16.msra.mxu0 %v4454
        %5200 = vmatpush.bf16.msra.mxu0 %v4448
        %5201 = vmatpush.bf16.msra.mxu0 %v4442
        %5202 = vmatpush.bf16.msra.mxu0 %v4436
        %5203 = vmatpush.bf16.msra.mxu0 %v4430
        %5204 = vmatmul.bf16.gmra.mxu0 %v2730
        %v5205 = vpop.f32.mrf.mxu0
        %v5206 = vadd.f32 %v5193, %v5205
        %v5207 = vpop.f32.mrf.mxu0
        %5208 = vdwg.mxu0
        %5209 = vmatpush.bf16.msra.mxu0 %v4520
        %5210 = vmatpush.bf16.msra.mxu0 %v4514
        %5211 = vmatpush.bf16.msra.mxu0 %v4508
        %5212 = vmatpush.bf16.msra.mxu0 %v4502
        %5213 = vmatpush.bf16.msra.mxu0 %v4496
        %5214 = vmatpush.bf16.msra.mxu0 %v4490
        %5215 = vmatpush.bf16.msra.mxu0 %v4484
        %5216 = vmatpush.bf16.msra.mxu0 %v4478
        %5217 = vmatmul.bf16.gmra.mxu0 %v2731
        %v5218 = vpop.f32.mrf.mxu0
        %v5219 = vadd.f32 %v5206, %v5218
        %v5220 = vpop.f32.mrf.mxu0
        %5221 = vdwg.mxu0
        %5222 = vmatpush.bf16.msra.mxu0 %v4568
        %5223 = vmatpush.bf16.msra.mxu0 %v4562
        %5224 = vmatpush.bf16.msra.mxu0 %v4556
        %5225 = vmatpush.bf16.msra.mxu0 %v4550
        %5226 = vmatpush.bf16.msra.mxu0 %v4544
        %5227 = vmatpush.bf16.msra.mxu0 %v4538
        %5228 = vmatpush.bf16.msra.mxu0 %v4532
        %5229 = vmatpush.bf16.msra.mxu0 %v4526
        %5230 = vmatmul.bf16.gmra.mxu0 %v2732
        %v5231 = vpop.f32.mrf.mxu0
        %v5232 = vadd.f32 %v5219, %v5231
        %v5233 = vpop.f32.mrf.mxu0
        %5234 = vdwg.mxu0
        %5235 = vmatpush.bf16.msra.mxu0 %v4616
        %5236 = vmatpush.bf16.msra.mxu0 %v4610
        %5237 = vmatpush.bf16.msra.mxu0 %v4604
        %5238 = vmatpush.bf16.msra.mxu0 %v4598
        %5239 = vmatpush.bf16.msra.mxu0 %v4592
        %5240 = vmatpush.bf16.msra.mxu0 %v4586
        %5241 = vmatpush.bf16.msra.mxu0 %v4580
        %5242 = vmatpush.bf16.msra.mxu0 %v4574
        %5243 = vmatmul.bf16.gmra.mxu0 %v2733
        %v5244 = vpop.f32.mrf.mxu0
        %v5245 = vadd.f32 %v5232, %v5244
        %v5246 = vpop.f32.mrf.mxu0
        %5247 = vdwg.mxu0
        %5248 = vmatpush.bf16.msra.mxu0 %v4664
        %5249 = vmatpush.bf16.msra.mxu0 %v4658
        %5250 = vmatpush.bf16.msra.mxu0 %v4652
        %5251 = vmatpush.bf16.msra.mxu0 %v4646
        %5252 = vmatpush.bf16.msra.mxu0 %v4640
        %5253 = vmatpush.bf16.msra.mxu0 %v4634
        %5254 = vmatpush.bf16.msra.mxu0 %v4628
        %5255 = vmatpush.bf16.msra.mxu0 %v4622
        %5256 = vmatmul.bf16.gmra.mxu0 %v2734
        %v5257 = vpop.f32.mrf.mxu0
        %v5258 = vadd.f32 %v5245, %v5257
        %v5259 = vpop.f32.mrf.mxu0
        %5260 = vdwg.mxu0
        %5261 = vmatpush.bf16.msra.mxu0 %v4329
        %5262 = vmatpush.bf16.msra.mxu0 %v4323
        %5263 = vmatpush.bf16.msra.mxu0 %v4317
        %5264 = vmatpush.bf16.msra.mxu0 %v4311
        %5265 = vmatpush.bf16.msra.mxu0 %v4305
        %5266 = vmatpush.bf16.msra.mxu0 %v4299
        %5267 = vmatpush.bf16.msra.mxu0 %v4293
        %5268 = vmatpush.bf16.msra.mxu0 %v4287
        %5269 = vmatmul.bf16.gmra.mxu0 %v2727
        %v5270 = vpop.f32.mrf.mxu0
        %v5271 = vadd.f32 %v3123, %v5270
        %v5272 = vpop.f32.mrf.mxu0
        %5273 = vdwg.mxu0
        %5274 = vmatpush.bf16.msra.mxu0 %v4377
        %5275 = vmatpush.bf16.msra.mxu0 %v4371
        %5276 = vmatpush.bf16.msra.mxu0 %v4365
        %5277 = vmatpush.bf16.msra.mxu0 %v4359
        %5278 = vmatpush.bf16.msra.mxu0 %v4353
        %5279 = vmatpush.bf16.msra.mxu0 %v4347
        %5280 = vmatpush.bf16.msra.mxu0 %v4341
        %5281 = vmatpush.bf16.msra.mxu0 %v4335
        %5282 = vmatmul.bf16.gmra.mxu0 %v2728
        %v5283 = vpop.f32.mrf.mxu0
        %v5284 = vadd.f32 %v5271, %v5283
        %v5285 = vpop.f32.mrf.mxu0
        %5286 = vdwg.mxu0
        %5287 = vmatpush.bf16.msra.mxu0 %v4425
        %5288 = vmatpush.bf16.msra.mxu0 %v4419
        %5289 = vmatpush.bf16.msra.mxu0 %v4413
        %5290 = vmatpush.bf16.msra.mxu0 %v4407
        %5291 = vmatpush.bf16.msra.mxu0 %v4401
        %5292 = vmatpush.bf16.msra.mxu0 %v4395
        %5293 = vmatpush.bf16.msra.mxu0 %v4389
        %5294 = vmatpush.bf16.msra.mxu0 %v4383
        %5295 = vmatmul.bf16.gmra.mxu0 %v2729
        %v5296 = vpop.f32.mrf.mxu0
        %v5297 = vadd.f32 %v5284, %v5296
        %v5298 = vpop.f32.mrf.mxu0
        %5299 = vdwg.mxu0
        %5300 = vmatpush.bf16.msra.mxu0 %v4473
        %5301 = vmatpush.bf16.msra.mxu0 %v4467
        %5302 = vmatpush.bf16.msra.mxu0 %v4461
        %5303 = vmatpush.bf16.msra.mxu0 %v4455
        %5304 = vmatpush.bf16.msra.mxu0 %v4449
        %5305 = vmatpush.bf16.msra.mxu0 %v4443
        %5306 = vmatpush.bf16.msra.mxu0 %v4437
        %5307 = vmatpush.bf16.msra.mxu0 %v4431
        %5308 = vmatmul.bf16.gmra.mxu0 %v2730
        %v5309 = vpop.f32.mrf.mxu0
        %v5310 = vadd.f32 %v5297, %v5309
        %v5311 = vpop.f32.mrf.mxu0
        %5312 = vdwg.mxu0
        %5313 = vmatpush.bf16.msra.mxu0 %v4521
        %5314 = vmatpush.bf16.msra.mxu0 %v4515
        %5315 = vmatpush.bf16.msra.mxu0 %v4509
        %5316 = vmatpush.bf16.msra.mxu0 %v4503
        %5317 = vmatpush.bf16.msra.mxu0 %v4497
        %5318 = vmatpush.bf16.msra.mxu0 %v4491
        %5319 = vmatpush.bf16.msra.mxu0 %v4485
        %5320 = vmatpush.bf16.msra.mxu0 %v4479
        %5321 = vmatmul.bf16.gmra.mxu0 %v2731
        %v5322 = vpop.f32.mrf.mxu0
        %v5323 = vadd.f32 %v5310, %v5322
        %v5324 = vpop.f32.mrf.mxu0
        %5325 = vdwg.mxu0
        %5326 = vmatpush.bf16.msra.mxu0 %v4569
        %5327 = vmatpush.bf16.msra.mxu0 %v4563
        %5328 = vmatpush.bf16.msra.mxu0 %v4557
        %5329 = vmatpush.bf16.msra.mxu0 %v4551
        %5330 = vmatpush.bf16.msra.mxu0 %v4545
        %5331 = vmatpush.bf16.msra.mxu0 %v4539
        %5332 = vmatpush.bf16.msra.mxu0 %v4533
        %5333 = vmatpush.bf16.msra.mxu0 %v4527
        %5334 = vmatmul.bf16.gmra.mxu0 %v2732
        %v5335 = vpop.f32.mrf.mxu0
        %v5336 = vadd.f32 %v5323, %v5335
        %v5337 = vpop.f32.mrf.mxu0
        %5338 = vdwg.mxu0
        %5339 = vmatpush.bf16.msra.mxu0 %v4617
        %5340 = vmatpush.bf16.msra.mxu0 %v4611
        %5341 = vmatpush.bf16.msra.mxu0 %v4605
        %5342 = vmatpush.bf16.msra.mxu0 %v4599
        %5343 = vmatpush.bf16.msra.mxu0 %v4593
        %5344 = vmatpush.bf16.msra.mxu0 %v4587
        %5345 = vmatpush.bf16.msra.mxu0 %v4581
        %5346 = vmatpush.bf16.msra.mxu0 %v4575
        %5347 = vmatmul.bf16.gmra.mxu0 %v2733
        %v5348 = vpop.f32.mrf.mxu0
        %v5349 = vadd.f32 %v5336, %v5348
        %v5350 = vpop.f32.mrf.mxu0
        %5351 = vdwg.mxu0
        %5352 = vmatpush.bf16.msra.mxu0 %v4665
        %5353 = vmatpush.bf16.msra.mxu0 %v4659
        %5354 = vmatpush.bf16.msra.mxu0 %v4653
        %5355 = vmatpush.bf16.msra.mxu0 %v4647
        %5356 = vmatpush.bf16.msra.mxu0 %v4641
        %5357 = vmatpush.bf16.msra.mxu0 %v4635
        %5358 = vmatpush.bf16.msra.mxu0 %v4629
        %5359 = vmatpush.bf16.msra.mxu0 %v4623
        %5360 = vmatmul.bf16.gmra.mxu0 %v2734
        %v5361 = vpop.f32.mrf.mxu0
        %v5362 = vadd.f32 %v5349, %v5361
        %v5363 = vpop.f32.mrf.mxu0
        %5364 = vdwg.mxu0
        %5365 = vmatpush.bf16.msra.mxu0 %v4330
        %5366 = vmatpush.bf16.msra.mxu0 %v4324
        %5367 = vmatpush.bf16.msra.mxu0 %v4318
        %5368 = vmatpush.bf16.msra.mxu0 %v4312
        %5369 = vmatpush.bf16.msra.mxu0 %v4306
        %5370 = vmatpush.bf16.msra.mxu0 %v4300
        %5371 = vmatpush.bf16.msra.mxu0 %v4294
        %5372 = vmatpush.bf16.msra.mxu0 %v4288
        %5373 = vmatmul.bf16.gmra.mxu0 %v2727
        %v5374 = vpop.f32.mrf.mxu0
        %v5375 = vadd.f32 %v3124, %v5374
        %v5376 = vpop.f32.mrf.mxu0
        %5377 = vdwg.mxu0
        %5378 = vmatpush.bf16.msra.mxu0 %v4378
        %5379 = vmatpush.bf16.msra.mxu0 %v4372
        %5380 = vmatpush.bf16.msra.mxu0 %v4366
        %5381 = vmatpush.bf16.msra.mxu0 %v4360
        %5382 = vmatpush.bf16.msra.mxu0 %v4354
        %5383 = vmatpush.bf16.msra.mxu0 %v4348
        %5384 = vmatpush.bf16.msra.mxu0 %v4342
        %5385 = vmatpush.bf16.msra.mxu0 %v4336
        %5386 = vmatmul.bf16.gmra.mxu0 %v2728
        %v5387 = vpop.f32.mrf.mxu0
        %v5388 = vadd.f32 %v5375, %v5387
        %v5389 = vpop.f32.mrf.mxu0
        %5390 = vdwg.mxu0
        %5391 = vmatpush.bf16.msra.mxu0 %v4426
        %5392 = vmatpush.bf16.msra.mxu0 %v4420
        %5393 = vmatpush.bf16.msra.mxu0 %v4414
        %5394 = vmatpush.bf16.msra.mxu0 %v4408
        %5395 = vmatpush.bf16.msra.mxu0 %v4402
        %5396 = vmatpush.bf16.msra.mxu0 %v4396
        %5397 = vmatpush.bf16.msra.mxu0 %v4390
        %5398 = vmatpush.bf16.msra.mxu0 %v4384
        %5399 = vmatmul.bf16.gmra.mxu0 %v2729
        %v5400 = vpop.f32.mrf.mxu0
        %v5401 = vadd.f32 %v5388, %v5400
        %v5402 = vpop.f32.mrf.mxu0
        %5403 = vdwg.mxu0
        %5404 = vmatpush.bf16.msra.mxu0 %v4474
        %5405 = vmatpush.bf16.msra.mxu0 %v4468
        %5406 = vmatpush.bf16.msra.mxu0 %v4462
        %5407 = vmatpush.bf16.msra.mxu0 %v4456
        %5408 = vmatpush.bf16.msra.mxu0 %v4450
        %5409 = vmatpush.bf16.msra.mxu0 %v4444
        %5410 = vmatpush.bf16.msra.mxu0 %v4438
        %5411 = vmatpush.bf16.msra.mxu0 %v4432
        %5412 = vmatmul.bf16.gmra.mxu0 %v2730
        %v5413 = vpop.f32.mrf.mxu0
        %v5414 = vadd.f32 %v5401, %v5413
        %v5415 = vpop.f32.mrf.mxu0
        %5416 = vdwg.mxu0
        %5417 = vmatpush.bf16.msra.mxu0 %v4522
        %5418 = vmatpush.bf16.msra.mxu0 %v4516
        %5419 = vmatpush.bf16.msra.mxu0 %v4510
        %5420 = vmatpush.bf16.msra.mxu0 %v4504
        %5421 = vmatpush.bf16.msra.mxu0 %v4498
        %5422 = vmatpush.bf16.msra.mxu0 %v4492
        %5423 = vmatpush.bf16.msra.mxu0 %v4486
        %5424 = vmatpush.bf16.msra.mxu0 %v4480
        %5425 = vmatmul.bf16.gmra.mxu0 %v2731
        %v5426 = vpop.f32.mrf.mxu0
        %v5427 = vadd.f32 %v5414, %v5426
        %v5428 = vpop.f32.mrf.mxu0
        %5429 = vdwg.mxu0
        %5430 = vmatpush.bf16.msra.mxu0 %v4570
        %5431 = vmatpush.bf16.msra.mxu0 %v4564
        %5432 = vmatpush.bf16.msra.mxu0 %v4558
        %5433 = vmatpush.bf16.msra.mxu0 %v4552
        %5434 = vmatpush.bf16.msra.mxu0 %v4546
        %5435 = vmatpush.bf16.msra.mxu0 %v4540
        %5436 = vmatpush.bf16.msra.mxu0 %v4534
        %5437 = vmatpush.bf16.msra.mxu0 %v4528
        %5438 = vmatmul.bf16.gmra.mxu0 %v2732
        %v5439 = vpop.f32.mrf.mxu0
        %v5440 = vadd.f32 %v5427, %v5439
        %v5441 = vpop.f32.mrf.mxu0
        %5442 = vdwg.mxu0
        %5443 = vmatpush.bf16.msra.mxu0 %v4618
        %5444 = vmatpush.bf16.msra.mxu0 %v4612
        %5445 = vmatpush.bf16.msra.mxu0 %v4606
        %5446 = vmatpush.bf16.msra.mxu0 %v4600
        %5447 = vmatpush.bf16.msra.mxu0 %v4594
        %5448 = vmatpush.bf16.msra.mxu0 %v4588
        %5449 = vmatpush.bf16.msra.mxu0 %v4582
        %5450 = vmatpush.bf16.msra.mxu0 %v4576
        %5451 = vmatmul.bf16.gmra.mxu0 %v2733
        %v5452 = vpop.f32.mrf.mxu0
        %v5453 = vadd.f32 %v5440, %v5452
        %v5454 = vpop.f32.mrf.mxu0
        %5455 = vdwg.mxu0
        %5456 = vmatpush.bf16.msra.mxu0 %v4666
        %5457 = vmatpush.bf16.msra.mxu0 %v4660
        %5458 = vmatpush.bf16.msra.mxu0 %v4654
        %5459 = vmatpush.bf16.msra.mxu0 %v4648
        %5460 = vmatpush.bf16.msra.mxu0 %v4642
        %5461 = vmatpush.bf16.msra.mxu0 %v4636
        %5462 = vmatpush.bf16.msra.mxu0 %v4630
        %5463 = vmatpush.bf16.msra.mxu0 %v4624
        %5464 = vmatmul.bf16.gmra.mxu0 %v2734
        %v5465 = vpop.f32.mrf.mxu0
        %v5466 = vadd.f32 %v5453, %v5465
        %v5467 = vpop.f32.mrf.mxu0
        %5468 = vdwg.mxu0
        %5469 = vmatpush.bf16.msra.mxu0 %v4331
        %5470 = vmatpush.bf16.msra.mxu0 %v4325
        %5471 = vmatpush.bf16.msra.mxu0 %v4319
        %5472 = vmatpush.bf16.msra.mxu0 %v4313
        %5473 = vmatpush.bf16.msra.mxu0 %v4307
        %5474 = vmatpush.bf16.msra.mxu0 %v4301
        %5475 = vmatpush.bf16.msra.mxu0 %v4295
        %5476 = vmatpush.bf16.msra.mxu0 %v4289
        %5477 = vmatmul.bf16.gmra.mxu0 %v2727
        %v5478 = vpop.f32.mrf.mxu0
        %v5479 = vadd.f32 %v3125, %v5478
        %v5480 = vpop.f32.mrf.mxu0
        %5481 = vdwg.mxu0
        %5482 = vmatpush.bf16.msra.mxu0 %v4379
        %5483 = vmatpush.bf16.msra.mxu0 %v4373
        %5484 = vmatpush.bf16.msra.mxu0 %v4367
        %5485 = vmatpush.bf16.msra.mxu0 %v4361
        %5486 = vmatpush.bf16.msra.mxu0 %v4355
        %5487 = vmatpush.bf16.msra.mxu0 %v4349
        %5488 = vmatpush.bf16.msra.mxu0 %v4343
        %5489 = vmatpush.bf16.msra.mxu0 %v4337
        %5490 = vmatmul.bf16.gmra.mxu0 %v2728
        %v5491 = vpop.f32.mrf.mxu0
        %v5492 = vadd.f32 %v5479, %v5491
        %v5493 = vpop.f32.mrf.mxu0
        %5494 = vdwg.mxu0
        %5495 = vmatpush.bf16.msra.mxu0 %v4427
        %5496 = vmatpush.bf16.msra.mxu0 %v4421
        %5497 = vmatpush.bf16.msra.mxu0 %v4415
        %5498 = vmatpush.bf16.msra.mxu0 %v4409
        %5499 = vmatpush.bf16.msra.mxu0 %v4403
        %5500 = vmatpush.bf16.msra.mxu0 %v4397
        %5501 = vmatpush.bf16.msra.mxu0 %v4391
        %5502 = vmatpush.bf16.msra.mxu0 %v4385
        %5503 = vmatmul.bf16.gmra.mxu0 %v2729
        %v5504 = vpop.f32.mrf.mxu0
        %v5505 = vadd.f32 %v5492, %v5504
        %v5506 = vpop.f32.mrf.mxu0
        %5507 = vdwg.mxu0
        %5508 = vmatpush.bf16.msra.mxu0 %v4475
        %5509 = vmatpush.bf16.msra.mxu0 %v4469
        %5510 = vmatpush.bf16.msra.mxu0 %v4463
        %5511 = vmatpush.bf16.msra.mxu0 %v4457
        %5512 = vmatpush.bf16.msra.mxu0 %v4451
        %5513 = vmatpush.bf16.msra.mxu0 %v4445
        %5514 = vmatpush.bf16.msra.mxu0 %v4439
        %5515 = vmatpush.bf16.msra.mxu0 %v4433
        %5516 = vmatmul.bf16.gmra.mxu0 %v2730
        %v5517 = vpop.f32.mrf.mxu0
        %v5518 = vadd.f32 %v5505, %v5517
        %v5519 = vpop.f32.mrf.mxu0
        %5520 = vdwg.mxu0
        %5521 = vmatpush.bf16.msra.mxu0 %v4523
        %5522 = vmatpush.bf16.msra.mxu0 %v4517
        %5523 = vmatpush.bf16.msra.mxu0 %v4511
        %5524 = vmatpush.bf16.msra.mxu0 %v4505
        %5525 = vmatpush.bf16.msra.mxu0 %v4499
        %5526 = vmatpush.bf16.msra.mxu0 %v4493
        %5527 = vmatpush.bf16.msra.mxu0 %v4487
        %5528 = vmatpush.bf16.msra.mxu0 %v4481
        %5529 = vmatmul.bf16.gmra.mxu0 %v2731
        %v5530 = vpop.f32.mrf.mxu0
        %v5531 = vadd.f32 %v5518, %v5530
        %v5532 = vpop.f32.mrf.mxu0
        %5533 = vdwg.mxu0
        %5534 = vmatpush.bf16.msra.mxu0 %v4571
        %5535 = vmatpush.bf16.msra.mxu0 %v4565
        %5536 = vmatpush.bf16.msra.mxu0 %v4559
        %5537 = vmatpush.bf16.msra.mxu0 %v4553
        %5538 = vmatpush.bf16.msra.mxu0 %v4547
        %5539 = vmatpush.bf16.msra.mxu0 %v4541
        %5540 = vmatpush.bf16.msra.mxu0 %v4535
        %5541 = vmatpush.bf16.msra.mxu0 %v4529
        %5542 = vmatmul.bf16.gmra.mxu0 %v2732
        %v5543 = vpop.f32.mrf.mxu0
        %v5544 = vadd.f32 %v5531, %v5543
        %v5545 = vpop.f32.mrf.mxu0
        %5546 = vdwg.mxu0
        %5547 = vmatpush.bf16.msra.mxu0 %v4619
        %5548 = vmatpush.bf16.msra.mxu0 %v4613
        %5549 = vmatpush.bf16.msra.mxu0 %v4607
        %5550 = vmatpush.bf16.msra.mxu0 %v4601
        %5551 = vmatpush.bf16.msra.mxu0 %v4595
        %5552 = vmatpush.bf16.msra.mxu0 %v4589
        %5553 = vmatpush.bf16.msra.mxu0 %v4583
        %5554 = vmatpush.bf16.msra.mxu0 %v4577
        %5555 = vmatmul.bf16.gmra.mxu0 %v2733
        %v5556 = vpop.f32.mrf.mxu0
        %v5557 = vadd.f32 %v5544, %v5556
        %v5558 = vpop.f32.mrf.mxu0
        %5559 = vdwg.mxu0
        %5560 = vmatpush.bf16.msra.mxu0 %v4667
        %5561 = vmatpush.bf16.msra.mxu0 %v4661
        %5562 = vmatpush.bf16.msra.mxu0 %v4655
        %5563 = vmatpush.bf16.msra.mxu0 %v4649
        %5564 = vmatpush.bf16.msra.mxu0 %v4643
        %5565 = vmatpush.bf16.msra.mxu0 %v4637
        %5566 = vmatpush.bf16.msra.mxu0 %v4631
        %5567 = vmatpush.bf16.msra.mxu0 %v4625
        %5568 = vmatmul.bf16.gmra.mxu0 %v2734
        %v5569 = vpop.f32.mrf.mxu0
        %v5570 = vadd.f32 %v5557, %v5569
        %v5571 = vpop.f32.mrf.mxu0
        %5572 = vdwg.mxu0
        %5573 = vmatpush.bf16.msra.mxu0 %v4332
        %5574 = vmatpush.bf16.msra.mxu0 %v4326
        %5575 = vmatpush.bf16.msra.mxu0 %v4320
        %5576 = vmatpush.bf16.msra.mxu0 %v4314
        %5577 = vmatpush.bf16.msra.mxu0 %v4308
        %5578 = vmatpush.bf16.msra.mxu0 %v4302
        %5579 = vmatpush.bf16.msra.mxu0 %v4296
        %5580 = vmatpush.bf16.msra.mxu0 %v4290
        %5581 = vmatmul.bf16.gmra.mxu0 %v2727
        %v5582 = vpop.f32.mrf.mxu0
        %v5583 = vadd.f32 %v3126, %v5582
        %v5584 = vpop.f32.mrf.mxu0
        %5585 = vdwg.mxu0
        %5586 = vmatpush.bf16.msra.mxu0 %v4380
        %5587 = vmatpush.bf16.msra.mxu0 %v4374
        %5588 = vmatpush.bf16.msra.mxu0 %v4368
        %5589 = vmatpush.bf16.msra.mxu0 %v4362
        %5590 = vmatpush.bf16.msra.mxu0 %v4356
        %5591 = vmatpush.bf16.msra.mxu0 %v4350
        %5592 = vmatpush.bf16.msra.mxu0 %v4344
        %5593 = vmatpush.bf16.msra.mxu0 %v4338
        %5594 = vmatmul.bf16.gmra.mxu0 %v2728
        %v5595 = vpop.f32.mrf.mxu0
        %v5596 = vadd.f32 %v5583, %v5595
        %v5597 = vpop.f32.mrf.mxu0
        %5598 = vdwg.mxu0
        %5599 = vmatpush.bf16.msra.mxu0 %v4428
        %5600 = vmatpush.bf16.msra.mxu0 %v4422
        %5601 = vmatpush.bf16.msra.mxu0 %v4416
        %5602 = vmatpush.bf16.msra.mxu0 %v4410
        %5603 = vmatpush.bf16.msra.mxu0 %v4404
        %5604 = vmatpush.bf16.msra.mxu0 %v4398
        %5605 = vmatpush.bf16.msra.mxu0 %v4392
        %5606 = vmatpush.bf16.msra.mxu0 %v4386
        %5607 = vmatmul.bf16.gmra.mxu0 %v2729
        %v5608 = vpop.f32.mrf.mxu0
        %v5609 = vadd.f32 %v5596, %v5608
        %v5610 = vpop.f32.mrf.mxu0
        %5611 = vdwg.mxu0
        %5612 = vmatpush.bf16.msra.mxu0 %v4476
        %5613 = vmatpush.bf16.msra.mxu0 %v4470
        %5614 = vmatpush.bf16.msra.mxu0 %v4464
        %5615 = vmatpush.bf16.msra.mxu0 %v4458
        %5616 = vmatpush.bf16.msra.mxu0 %v4452
        %5617 = vmatpush.bf16.msra.mxu0 %v4446
        %5618 = vmatpush.bf16.msra.mxu0 %v4440
        %5619 = vmatpush.bf16.msra.mxu0 %v4434
        %5620 = vmatmul.bf16.gmra.mxu0 %v2730
        %v5621 = vpop.f32.mrf.mxu0
        %v5622 = vadd.f32 %v5609, %v5621
        %v5623 = vpop.f32.mrf.mxu0
        %5624 = vdwg.mxu0
        %5625 = vmatpush.bf16.msra.mxu0 %v4524
        %5626 = vmatpush.bf16.msra.mxu0 %v4518
        %5627 = vmatpush.bf16.msra.mxu0 %v4512
        %5628 = vmatpush.bf16.msra.mxu0 %v4506
        %5629 = vmatpush.bf16.msra.mxu0 %v4500
        %5630 = vmatpush.bf16.msra.mxu0 %v4494
        %5631 = vmatpush.bf16.msra.mxu0 %v4488
        %5632 = vmatpush.bf16.msra.mxu0 %v4482
        %5633 = vmatmul.bf16.gmra.mxu0 %v2731
        %v5634 = vpop.f32.mrf.mxu0
        %v5635 = vadd.f32 %v5622, %v5634
        %v5636 = vpop.f32.mrf.mxu0
        %5637 = vdwg.mxu0
        %5638 = vmatpush.bf16.msra.mxu0 %v4572
        %5639 = vmatpush.bf16.msra.mxu0 %v4566
        %5640 = vmatpush.bf16.msra.mxu0 %v4560
        %5641 = vmatpush.bf16.msra.mxu0 %v4554
        %5642 = vmatpush.bf16.msra.mxu0 %v4548
        %5643 = vmatpush.bf16.msra.mxu0 %v4542
        %5644 = vmatpush.bf16.msra.mxu0 %v4536
        %5645 = vmatpush.bf16.msra.mxu0 %v4530
        %5646 = vmatmul.bf16.gmra.mxu0 %v2732
        %v5647 = vpop.f32.mrf.mxu0
        %v5648 = vadd.f32 %v5635, %v5647
        %v5649 = vpop.f32.mrf.mxu0
        %5650 = vdwg.mxu0
        %5651 = vmatpush.bf16.msra.mxu0 %v4620
        %5652 = vmatpush.bf16.msra.mxu0 %v4614
        %5653 = vmatpush.bf16.msra.mxu0 %v4608
        %5654 = vmatpush.bf16.msra.mxu0 %v4602
        %5655 = vmatpush.bf16.msra.mxu0 %v4596
        %5656 = vmatpush.bf16.msra.mxu0 %v4590
        %5657 = vmatpush.bf16.msra.mxu0 %v4584
        %5658 = vmatpush.bf16.msra.mxu0 %v4578
        %5659 = vmatmul.bf16.gmra.mxu0 %v2733
        %v5660 = vpop.f32.mrf.mxu0
        %v5661 = vadd.f32 %v5648, %v5660
        %v5662 = vpop.f32.mrf.mxu0
        %5663 = vdwg.mxu0
        %5664 = vmatpush.bf16.msra.mxu0 %v4668
        %5665 = vmatpush.bf16.msra.mxu0 %v4662
        %5666 = vmatpush.bf16.msra.mxu0 %v4656
        %5667 = vmatpush.bf16.msra.mxu0 %v4650
        %5668 = vmatpush.bf16.msra.mxu0 %v4644
        %5669 = vmatpush.bf16.msra.mxu0 %v4638
        %5670 = vmatpush.bf16.msra.mxu0 %v4632
        %5671 = vmatpush.bf16.msra.mxu0 %v4626
        %5672 = vmatmul.bf16.gmra.mxu0 %v2734
        %v5673 = vpop.f32.mrf.mxu0
        %v5674 = vadd.f32 %v5661, %v5673
        %v5675 = vpop.f32.mrf.mxu0
        %5676 = vdwg.mxu0
        %5677 = vst [vmem:[%s411] sm:$0xff] %v5154
        %5678 = vst [vmem:[%s411 + $0x8] sm:$0xff] %v5258
        %5679 = vst [vmem:[%s411 + $0x10] sm:$0xff] %v5362
        %5680 = vst [vmem:[%s411 + $0x18] sm:$0xff] %v5466
        %5681 = vst [vmem:[%s411 + $0x20] sm:$0xff] %v5570
        %5682 = vst [vmem:[%s411 + $0x28] sm:$0xff] %v5674
        %s5683 = sand.u32 %s192, 1
        %s5684 = scalar_lea.sflag [#allocation4], %s5683
        %s5685 = sand.u32 %s192, 1
        %s5686 = smul.addr %s5685, 48
        %s5687 = scalar_lea.vmem [#allocation14], %s5686
        // Predicated region
        $region77: #{tpu_custom_call.1} parent=47 // pred_check
          %p5688 = pneg %p202
        $region78: #{tpu_custom_call.1} parent=47 // pred_check_branch
          %5690 = sbr.rel (%p5688) target = $region80
        $region79: #{tpu_custom_call.1} parent=47 // pred_region
          %s5691 = smul.u32 6, %s27
          %5693 = vsyncadd %s5684, 0
          %s5694 = smul.addr %s5691, 8
          %s5695 = scalar_lea.hbm %s7, %s5694
          %s5697 = sshll.u32 %s5687, 4
          %s5698 = int_to_ptr.vmem [resolvable:$true] %s5697
          %s5699 = sshll.u32 %s5695, 4
          %s5700 = int_to_ptr.hbm [resolvable:$true] %s5699
          %5702 = dma.vmem_to_hbm [thread:$0]  %s5698, 768, %s5700, %s5684
        $region80: #{tpu_custom_call.1} parent=47 // pred_fallthru
          _
      $region48: #{tpu_custom_call.1} parent=5 // pred_fallthru
        _
      %p5703 = scmp.le.s32.totalorder 2, %s22
      // Predicated region
      $region81: #{tpu_custom_call.1} parent=5 // pred_check
        %p5704 = pneg %p5703
      $region82: #{tpu_custom_call.1} parent=5 // pred_check_branch
        %5706 = sbr.rel (%p5704) target = $region84
      $region83: #{tpu_custom_call.1} parent=5 // pred_region
        %s5707 = ssub.s32 %s22, 2
        // Predicated region
        $region85: #{tpu_custom_call.1} parent=83 // pred_check
          %p5708 = pneg %p208
        $region86: #{tpu_custom_call.1} parent=83 // pred_check_branch
          %5710 = sbr.rel (%p5708) target = $region88
        $region87: #{tpu_custom_call.1} parent=83 // pred_region
          %s5711 = sand.u32 %s193, 1
          %s5712 = scalar_lea.sflag [#allocation4], %s5711
          %s5713 = sand.u32 %s193, 1
          %s5714 = smul.addr %s5713, 48
          %s5715 = scalar_lea.vmem [#allocation14], %s5714
          %5717 = dma.done %s5712, 768
        $region88: #{tpu_custom_call.1} parent=83 // pred_fallthru
          _
      $region84: #{tpu_custom_call.1} parent=5 // pred_fallthru
        _
    $region6: #{tpu_custom_call.1} parent=1 // loop_footer
      %s26 = sadd.s32 1, %s22
    $region7: #{tpu_custom_call.1} parent=1 // loop_footer_branch
      %21 = sbr.rel target = $region3
    $region8: #{tpu_custom_call.1} parent=1 // loop_exit
      _
    %5718 = vsyncpa [#allocation3], 1
    %s5719 = scalar_lea.sflag [#allocation3], 1
    %5720 = vsyncpa %s5719, 1
    %5721 = vsyncpa [#allocation6], 1
    %5722 = vsyncpa [#allocation9], 1
    %5723 = vsyncpa [#allocation12], 1
    %s5724 = scalar_lea.sflag [#allocation12], 1
    %5725 = vsyncpa %s5724, 1
    %5726 = vsyncpa [#allocation4], 1
    %s5727 = scalar_lea.sflag [#allocation4], 1
    %5728 = vsyncpa %s5727, 1

// kernel: tpu_custom_call.1
$region0: #{tpu_custom_call.1}
  #allocation0 [shape = 'u32[]', space=smem, size = 0x4, offset = 0x4, fixed_abs, tag = 'smem constant byte address 0x4 - core index']
  #allocation1 [shape = 'u32[72,128]{1,0:T(1,128)}', space=vmem, size = 0x9000, scoped, tag = 'internal scratch']
  %s0 = inlined_call_operand.hbm [shape: bf16[8,64], index: 0, kind: input, shape index: {}]
  %s1 = inlined_call_operand.hbm [shape: bf16[64,1024], index: 1, kind: input, shape index: {}]
  %s2 = inlined_call_operand.hbm [shape: bf16[8,512], index: 2, kind: input, shape index: {}]
  %s3 = inlined_call_operand.hbm [shape: bf16[512,1024], index: 3, kind: input, shape index: {}]
  %s4 = inlined_call_operand.hbm [shape: f32[1,1024], index: 4, kind: input, shape index: {}]
  %s5 = inlined_call_operand.hbm [shape: bf16[1024,3072], index: 5, kind: input, shape index: {}]
  %s6 = inlined_call_operand.hbm [shape: f32[1,3072], index: 6, kind: input, shape index: {}]
  %s7 = inlined_call_operand.hbm [shape: f32[8,3072], index: 7, kind: output, shape index: {}]
  %s8 = sld [smem:[#allocation0]]
  $region89: #{tpu_custom_call.1} parent=0
    _
  %s10 = ssub.s32 1, %s8
  %s11 = scalar_select 0, %s10, %s8
  $region1: #{tpu_custom_call.1} parent=0
    #allocation2 [shape = 'u8[2048]{0}', space=vmem, size = 0x800, scoped, tag = 'input window, operand 0, single buffered']
    #allocation3 [shape = 's32[2]{0}', space=sflag, size = 0x8, scoped, tag = 'scoped memory for tpu_custom_call.1']
    #allocation4 [shape = 's32[2]{0}', space=sflag, size = 0x8, scoped, tag = 'scoped memory for tpu_custom_call.1']
    #allocation5 [shape = 'u8[131072]{0}', space=vmem, size = 0x20000, scoped, tag = 'input window, operand 1, single buffered']
    #allocation6 [shape = 's32[1]{0}', space=sflag, size = 0x4, scoped, tag = 'scoped memory for tpu_custom_call.1']
    #allocation7 [shape = 'u8[8192]{0}', space=vmem, size = 0x2000, scoped, tag = 'input window, operand 2, single buffered']
    #allocation8 [shape = 'u8[1048576]{0}', space=vmem, size = 0x100000, scoped, tag = 'input window, operand 3, single buffered']
    #allocation9 [shape = 's32[1]{0}', space=sflag, size = 0x4, scoped, tag = 'scoped memory for tpu_custom_call.1']
    #allocation10 [shape = 'u8[4096]{0}', space=vmem, size = 0x1000, scoped, tag = 'input window, operand 4, single buffered']
    #allocation11 [shape = 'u8[3145728]{0}', space=vmem, size = 0x300000, scoped, tag = 'input window, operand 5']
    #allocation12 [shape = 's32[2]{0}', space=sflag, size = 0x8, scoped, tag = 'scoped memory for tpu_custom_call.1']
    #allocation13 [shape = 'u8[6144]{0}', space=vmem, size = 0x1800, scoped, tag = 'input window, operand 6']
    #allocation14 [shape = 'u8[49152]{0}', space=vmem, size = 0xc000, scoped, tag = 'output window, operand 0']
    %12 = vsyncpa [#allocation3], 0
    %13 = vsyncpa [#allocation6], 0
    %14 = vsyncpa [#allocation9], 0
    %15 = vsyncpa [#allocation12], 0
    %s16 = scalar_lea.sflag [#allocation12], 1
    %17 = vsyncpa %s16, 0
    %18 = vsyncpa [#allocation4], 0
    %s19 = scalar_lea.sflag [#allocation4], 1
    %20 = vsyncpa %s19, 0
    loop: start=0, step=1, limit=6
    $region2: #{tpu_custom_call.1} parent=1 // loop_pre_header
      _
    $region3: #{tpu_custom_call.1} parent=1 // loop_header
      %s22 = sphi 0, %s26
      %p23 = scmp.ge.s32.totalorder %s22, 6
      %s30 = sphi 0, %s30
      %s32 = sphi 0, %s30
      %s33 = sphi 0, %s32
      %s47 = sphi 0, %s33
      %s51 = sphi 0, %s51
      %s53 = sphi 0, %s51
      %s54 = sphi 0, %s53
      %s68 = sphi 0, %s54
      %s72 = sphi 0, %s72
      %s74 = sphi 0, %s72
      %s75 = sphi 0, %s74
      %s89 = sphi 0, %s75
      %s93 = sphi 0, %s93
      %s95 = sphi 0, %s93
      %s96 = sphi 0, %s95
      %s110 = sphi 0, %s96
      %s114 = sphi 0, %s114
      %s116 = sphi 0, %s114
      %s117 = sphi 0, %s116
      %s131 = sphi 0, %s117
      %s137 = sphi 0, %s139
      %s140 = sphi 0, %s137
      %s141 = sphi 0, %s140
      %s157 = sphi 0, %s141
      %s163 = sphi 0, %s165
      %s166 = sphi 0, %s163
      %s167 = sphi 0, %s166
      %s183 = sphi 0, %s167
      %s189 = sphi 0, %s191
      %s192 = sphi 0, %s189
      %s193 = sphi 0, %s192
      %s209 = sphi 0, %s193
    $region4: #{tpu_custom_call.1} parent=1 // loop_header_branch
      %25 = sbr.rel (%p23) target = $region8
    $region5: #{tpu_custom_call.1} parent=1 // loop_body
      %s27 = ssub.s32 %s22, 1
      %s28 = ssub.s32 %s22, 2
      %s29 = sadd.s32 %s22, 1
      %s31 = sadd.s32 %s30, 1
      %p34 = scmp.eq.s32.totalorder %s22, 3
      %p35 = scmp.ne.s32.totalorder %s30, %s32
      %p36 = scmp.eq.s32.totalorder %s22, 0
      %p37 = por %p35, %p36
      %p38 = scmp.ne.s32.totalorder %s30, %s32
      %p39 = scmp.eq.s32.totalorder %s27, 3
      %p40 = por %p38, %p39
      %p41 = scmp.ne.s32.totalorder %s32, %s33
      %p42 = scmp.eq.s32.totalorder %s27, 0
      %p43 = por %p41, %p42
      %p44 = scmp.ne.s32.totalorder %s32, %s33
      %p45 = scmp.eq.s32.totalorder %s28, 3
      %p46 = por %p44, %p45
      %p48 = scmp.ne.s32.totalorder %s33, %s47
      %p49 = scmp.eq.s32.totalorder %s28, 0
      %p50 = por %p48, %p49
      %s52 = sadd.s32 %s51, 1
      %p55 = scmp.eq.s32.totalorder %s22, 3
      %p56 = scmp.ne.s32.totalorder %s51, %s53
      %p57 = scmp.eq.s32.totalorder %s22, 0
      %p58 = por %p56, %p57
      %p59 = scmp.ne.s32.totalorder %s51, %s53
      %p60 = scmp.eq.s32.totalorder %s27, 3
      %p61 = por %p59, %p60
      %p62 = scmp.ne.s32.totalorder %s53, %s54
      %p63 = scmp.eq.s32.totalorder %s27, 0
      %p64 = por %p62, %p63
      %p65 = scmp.ne.s32.totalorder %s53, %s54
      %p66 = scmp.eq.s32.totalorder %s28, 3
      %p67 = por %p65, %p66
      %p69 = scmp.ne.s32.totalorder %s54, %s68
      %p70 = scmp.eq.s32.totalorder %s28, 0
      %p71 = por %p69, %p70
      %s73 = sadd.s32 %s72, 1
      %p76 = scmp.eq.s32.totalorder %s22, 3
      %p77 = scmp.ne.s32.totalorder %s72, %s74
      %p78 = scmp.eq.s32.totalorder %s22, 0
      %p79 = por %p77, %p78
      %p80 = scmp.ne.s32.totalorder %s72, %s74
      %p81 = scmp.eq.s32.totalorder %s27, 3
      %p82 = por %p80, %p81
      %p83 = scmp.ne.s32.totalorder %s74, %s75
      %p84 = scmp.eq.s32.totalorder %s27, 0
      %p85 = por %p83, %p84
      %p86 = scmp.ne.s32.totalorder %s74, %s75
      %p87 = scmp.eq.s32.totalorder %s28, 3
      %p88 = por %p86, %p87
      %p90 = scmp.ne.s32.totalorder %s75, %s89
      %p91 = scmp.eq.s32.totalorder %s28, 0
      %p92 = por %p90, %p91
      %s94 = sadd.s32 %s93, 1
      %p97 = scmp.eq.s32.totalorder %s22, 3
      %p98 = scmp.ne.s32.totalorder %s93, %s95
      %p99 = scmp.eq.s32.totalorder %s22, 0
      %p100 = por %p98, %p99
      %p101 = scmp.ne.s32.totalorder %s93, %s95
      %p102 = scmp.eq.s32.totalorder %s27, 3
      %p103 = por %p101, %p102
      %p104 = scmp.ne.s32.totalorder %s95, %s96
      %p105 = scmp.eq.s32.totalorder %s27, 0
      %p106 = por %p104, %p105
      %p107 = scmp.ne.s32.totalorder %s95, %s96
      %p108 = scmp.eq.s32.totalorder %s28, 3
      %p109 = por %p107, %p108
      %p111 = scmp.ne.s32.totalorder %s96, %s110
      %p112 = scmp.eq.s32.totalorder %s28, 0
      %p113 = por %p111, %p112
      %s115 = sadd.s32 %s114, 1
      %p118 = scmp.eq.s32.totalorder %s22, 3
      %p119 = scmp.ne.s32.totalorder %s114, %s116
      %p120 = scmp.eq.s32.totalorder %s22, 0
      %p121 = por %p119, %p120
      %p122 = scmp.ne.s32.totalorder %s114, %s116
      %p123 = scmp.eq.s32.totalorder %s27, 3
      %p124 = por %p122, %p123
      %p125 = scmp.ne.s32.totalorder %s116, %s117
      %p126 = scmp.eq.s32.totalorder %s27, 0
      %p127 = por %p125, %p126
      %p128 = scmp.ne.s32.totalorder %s116, %s117
      %p129 = scmp.eq.s32.totalorder %s28, 3
      %p130 = por %p128, %p129
      %p132 = scmp.ne.s32.totalorder %s117, %s131
      %p133 = scmp.eq.s32.totalorder %s28, 0
      %p134 = por %p132, %p133
      %s135 = ssub.s32 %s22, %s29
      %p136 = scmp.eq.s32.totalorder %s135, 0
      %s138 = sadd.s32 %s137, 1
      %s139 = scalar_select %p136, %s137, %s138
      %p142 = pneg %p136
      %p143 = scmp.eq.s32.totalorder %s22, 3
      %p144 = por %p142, %p143
      %p145 = scmp.ne.s32.totalorder %s137, %s140
      %p146 = scmp.eq.s32.totalorder %s22, 0
      %p147 = por %p145, %p146
      %p148 = scmp.ne.s32.totalorder %s137, %s140
      %p149 = scmp.eq.s32.totalorder %s27, 3
      %p150 = por %p148, %p149
      %p151 = scmp.ne.s32.totalorder %s140, %s141
      %p152 = scmp.eq.s32.totalorder %s27, 0
      %p153 = por %p151, %p152
      %p154 = scmp.ne.s32.totalorder %s140, %s141
      %p155 = scmp.eq.s32.totalorder %s28, 3
      %p156 = por %p154, %p155
      %p158 = scmp.ne.s32.totalorder %s141, %s157
      %p159 = scmp.eq.s32.totalorder %s28, 0
      %p160 = por %p158, %p159
      %s161 = ssub.s32 %s22, %s29
      %p162 = scmp.eq.s32.totalorder %s161, 0
      %s164 = sadd.s32 %s163, 1
      %s165 = scalar_select %p162, %s163, %s164
      %p168 = pneg %p162
      %p169 = scmp.eq.s32.totalorder %s22, 3
      %p170 = por %p168, %p169
      %p171 = scmp.ne.s32.totalorder %s163, %s166
      %p172 = scmp.eq.s32.totalorder %s22, 0
      %p173 = por %p171, %p172
      %p174 = scmp.ne.s32.totalorder %s163, %s166
      %p175 = scmp.eq.s32.totalorder %s27, 3
      %p176 = por %p174, %p175
      %p177 = scmp.ne.s32.totalorder %s166, %s167
      %p178 = scmp.eq.s32.totalorder %s27, 0
      %p179 = por %p177, %p178
      %p180 = scmp.ne.s32.totalorder %s166, %s167
      %p181 = scmp.eq.s32.totalorder %s28, 3
      %p182 = por %p180, %p181
      %p184 = scmp.ne.s32.totalorder %s167, %s183
      %p185 = scmp.eq.s32.totalorder %s28, 0
      %p186 = por %p184, %p185
      %s187 = ssub.s32 %s22, %s29
      %p188 = scmp.eq.s32.totalorder %s187, 0
      %s190 = sadd.s32 %s189, 1
      %s191 = scalar_select %p188, %s189, %s190
      %p194 = pneg %p188
      %p195 = scmp.eq.s32.totalorder %s22, 3
      %p196 = por %p194, %p195
      %p197 = scmp.ne.s32.totalorder %s189, %s192
      %p198 = scmp.eq.s32.totalorder %s22, 0
      %p199 = por %p197, %p198
      %p200 = scmp.ne.s32.totalorder %s189, %s192
      %p201 = scmp.eq.s32.totalorder %s27, 3
      %p202 = por %p200, %p201
      %p203 = scmp.ne.s32.totalorder %s192, %s193
      %p204 = scmp.eq.s32.totalorder %s27, 0
      %p205 = por %p203, %p204
      %p206 = scmp.ne.s32.totalorder %s192, %s193
      %p207 = scmp.eq.s32.totalorder %s28, 3
      %p208 = por %p206, %p207
      %p210 = scmp.ne.s32.totalorder %s193, %s209
      %p211 = scmp.eq.s32.totalorder %s28, 0
      %p212 = por %p210, %p211
      %p213 = scmp.le.s32.totalorder 1, %s22
      %p214 = scmp.lt.s32.totalorder %s22, 5
      %p215 = pnand %p213, %p214
      %p216 = pneg %p215
      // Predicated region
      $region9: #{tpu_custom_call.1} parent=5 // pred_check
        _
      $region10: #{tpu_custom_call.1} parent=5 // pred_check_branch
        %218 = sbr.rel (%p215) target = $region12
      $region11: #{tpu_custom_call.1} parent=5 // pred_region
        %s219 = ssub.s32 %s22, 1
        // Predicated region
        $region13: #{tpu_custom_call.1} parent=11 // pred_check
          %p220 = pneg %p43
        $region14: #{tpu_custom_call.1} parent=11 // pred_check_branch
          %222 = sbr.rel (%p220) target = $region16
        $region15: #{tpu_custom_call.1} parent=11 // pred_region
          %224 = vsyncadd [#allocation3], 0
          %s226 = sshll.u32 %s0, 4
          %s227 = int_to_ptr.hbm [resolvable:$true] %s226
          %s228 = sshll.u32 [#allocation2], 4
          %s229 = int_to_ptr.vmem [resolvable:$true] %s228
          %231 = dma.hbm_to_vmem [thread:$0]  %s227, 64, %s229, [#allocation3]
        $region16: #{tpu_custom_call.1} parent=11 // pred_fallthru
          _
        // Predicated region
        $region17: #{tpu_custom_call.1} parent=11 // pred_check
          %p232 = pneg %p64
        $region18: #{tpu_custom_call.1} parent=11 // pred_check_branch
          %234 = sbr.rel (%p232) target = $region20
        $region19: #{tpu_custom_call.1} parent=11 // pred_region
          %236 = vsyncadd [#allocation6], 0
          %s237 = sshll.u32 %s1, 4
          %s238 = int_to_ptr.hbm [resolvable:$true] %s237
          %s239 = sshll.u32 [#allocation5], 4
          %s240 = int_to_ptr.vmem [resolvable:$true] %s239
          %245 = dma.hbm_to_vmem [thread:$0]  %s238, 4096, %s240, [#allocation6], 512, 512, 32
        $region20: #{tpu_custom_call.1} parent=11 // pred_fallthru
          _
        // Predicated region
        $region21: #{tpu_custom_call.1} parent=11 // pred_check
          %p246 = pneg %p85
        $region22: #{tpu_custom_call.1} parent=11 // pred_check_branch
          %248 = sbr.rel (%p246) target = $region24
        $region23: #{tpu_custom_call.1} parent=11 // pred_region
          %250 = vsyncadd [#allocation6], 0
          %s252 = sshll.u32 %s2, 4
          %s253 = int_to_ptr.hbm [resolvable:$true] %s252
          %s254 = sshll.u32 [#allocation7], 4
          %s255 = int_to_ptr.vmem [resolvable:$true] %s254
          %257 = dma.hbm_to_vmem [thread:$0]  %s253, 256, %s255, [#allocation6]
        $region24: #{tpu_custom_call.1} parent=11 // pred_fallthru
          _
        // Predicated region
        $region25: #{tpu_custom_call.1} parent=11 // pred_check
          %p258 = pneg %p106
        $region26: #{tpu_custom_call.1} parent=11 // pred_check_branch
          %260 = sbr.rel (%p258) target = $region28
        $region27: #{tpu_custom_call.1} parent=11 // pred_region
          %262 = vsyncadd [#allocation9], 0
          %s263 = sshll.u32 %s3, 4
          %s264 = int_to_ptr.hbm [resolvable:$true] %s263
          %s265 = sshll.u32 [#allocation8], 4
          %s266 = int_to_ptr.vmem [resolvable:$true] %s265
          %271 = dma.hbm_to_vmem [thread:$0]  %s264, 32768, %s266, [#allocation9], 512, 512, 32
        $region28: #{tpu_custom_call.1} parent=11 // pred_fallthru
          _
        // Predicated region
        $region29: #{tpu_custom_call.1} parent=11 // pred_check
          %p272 = pneg %p127
        $region30: #{tpu_custom_call.1} parent=11 // pred_check_branch
          %274 = sbr.rel (%p272) target = $region32
        $region31: #{tpu_custom_call.1} parent=11 // pred_region
          %276 = vsyncadd [#allocation9], 0
          %s278 = sshll.u32 %s4, 4
          %s279 = int_to_ptr.hbm [resolvable:$true] %s278
          %s280 = sshll.u32 [#allocation10], 4
          %s281 = int_to_ptr.vmem [resolvable:$true] %s280
          %283 = dma.hbm_to_vmem [thread:$0]  %s279, 128, %s281, [#allocation9]
        $region32: #{tpu_custom_call.1} parent=11 // pred_fallthru
          _
      $region12: #{tpu_custom_call.1} parent=5 // pred_fallthru
        _
      %p284 = scmp.lt.s32.totalorder %s22, 4
      // Predicated region
      $region33: #{tpu_custom_call.1} parent=5 // pred_check
        %p285 = pneg %p284
      $region34: #{tpu_custom_call.1} parent=5 // pred_check_branch
        %287 = sbr.rel (%p285) target = $region36
      $region35: #{tpu_custom_call.1} parent=5 // pred_region
        // Predicated region
        $region37: #{tpu_custom_call.1} parent=35 // pred_check
          %p288 = pneg %p147
        $region38: #{tpu_custom_call.1} parent=35 // pred_check_branch
          %290 = sbr.rel (%p288) target = $region40
        $region39: #{tpu_custom_call.1} parent=35 // pred_region
          %s291 = sand.u32 %s22, 1
          %s292 = scalar_lea.sflag [#allocation12], %s291
          %s293 = sand.u32 %s137, 1
          %s294 = smul.addr %s293, 3072
          %s295 = scalar_lea.vmem [#allocation11], %s294
          %s296 = smul.u32 6, %s22
          %298 = vsyncadd %s292, 0
          %s299 = smul.addr %s296, 4
          %s300 = scalar_lea.hbm %s5, %s299
          %s301 = sshll.u32 %s300, 4
          %s302 = int_to_ptr.hbm [resolvable:$true] %s301
          %s303 = sshll.u32 %s295, 4
          %s304 = int_to_ptr.vmem [resolvable:$true] %s303
          %309 = dma.hbm_to_vmem [thread:$0]  %s302, 49152, %s304, %s292, 1536, 384, 24
        $region40: #{tpu_custom_call.1} parent=35 // pred_fallthru
          _
        // Predicated region
        $region41: #{tpu_custom_call.1} parent=35 // pred_check
          %p310 = pneg %p173
        $region42: #{tpu_custom_call.1} parent=35 // pred_check_branch
          %312 = sbr.rel (%p310) target = $region44
        $region43: #{tpu_custom_call.1} parent=35 // pred_region
          %s313 = sand.u32 %s22, 1
          %s314 = scalar_lea.sflag [#allocation12], %s313
          %s315 = sand.u32 %s163, 1
          %s316 = smul.addr %s315, 6
          %s317 = scalar_lea.vmem [#allocation13], %s316
          %s318 = smul.u32 6, %s22
          %320 = vsyncadd %s314, 0
          %s321 = scalar_lea.hbm %s6, %s318
          %s323 = sshll.u32 %s321, 4
          %s324 = int_to_ptr.hbm [resolvable:$true] %s323
          %s325 = sshll.u32 %s317, 4
          %s326 = int_to_ptr.vmem [resolvable:$true] %s325
          %328 = dma.hbm_to_vmem [thread:$0]  %s324, 96, %s326, %s314
        $region44: #{tpu_custom_call.1} parent=35 // pred_fallthru
          _
      $region36: #{tpu_custom_call.1} parent=5 // pred_fallthru
        _
      %p329 = scmp.le.s32.totalorder 1, %s22
      %p330 = scmp.lt.s32.totalorder %s22, 5
      %p331 = pnand %p329, %p330
      %p332 = pneg %p331
      // Predicated region
      $region45: #{tpu_custom_call.1} parent=5 // pred_check
        _
      $region46: #{tpu_custom_call.1} parent=5 // pred_check_branch
        %334 = sbr.rel (%p331) target = $region48
      $region47: #{tpu_custom_call.1} parent=5 // pred_region
        %s335 = ssub.s32 %s22, 1
        // Predicated region
        $region49: #{tpu_custom_call.1} parent=47 // pred_check
          %p336 = pneg %p43
        $region50: #{tpu_custom_call.1} parent=47 // pred_check_branch
          %338 = sbr.rel (%p336) target = $region52
        $region51: #{tpu_custom_call.1} parent=47 // pred_region
          %340 = dma.done [#allocation3], 64
        $region52: #{tpu_custom_call.1} parent=47 // pred_fallthru
          _
        // Predicated region
        $region53: #{tpu_custom_call.1} parent=47 // pred_check
          %p341 = pneg %p64
        $region54: #{tpu_custom_call.1} parent=47 // pred_check_branch
          %343 = sbr.rel (%p341) target = $region56
        $region55: #{tpu_custom_call.1} parent=47 // pred_region
          %345 = dma.done [#allocation6], 4096
        $region56: #{tpu_custom_call.1} parent=47 // pred_fallthru
          _
        // Predicated region
        $region57: #{tpu_custom_call.1} parent=47 // pred_check
          %p346 = pneg %p85
        $region58: #{tpu_custom_call.1} parent=47 // pred_check_branch
          %348 = sbr.rel (%p346) target = $region60
        $region59: #{tpu_custom_call.1} parent=47 // pred_region
          %350 = dma.done [#allocation6], 256
        $region60: #{tpu_custom_call.1} parent=47 // pred_fallthru
          _
        // Predicated region
        $region61: #{tpu_custom_call.1} parent=47 // pred_check
          %p351 = pneg %p106
        $region62: #{tpu_custom_call.1} parent=47 // pred_check_branch
          %353 = sbr.rel (%p351) target = $region64
        $region63: #{tpu_custom_call.1} parent=47 // pred_region
          %355 = dma.done [#allocation9], 32768
        $region64: #{tpu_custom_call.1} parent=47 // pred_fallthru
          _
        // Predicated region
        $region65: #{tpu_custom_call.1} parent=47 // pred_check
          %p356 = pneg %p127
        $region66: #{tpu_custom_call.1} parent=47 // pred_check_branch
          %358 = sbr.rel (%p356) target = $region68
        $region67: #{tpu_custom_call.1} parent=47 // pred_region
          %360 = dma.done [#allocation9], 128
        $region68: #{tpu_custom_call.1} parent=47 // pred_fallthru
          _
        %s361 = sand.u32 %s27, 1
        %s362 = scalar_lea.sflag [#allocation12], %s361
        %s363 = sand.u32 %s140, 1
        %s364 = smul.addr %s363, 3072
        %s365 = scalar_lea.vmem [#allocation11], %s364
        // Predicated region
        $region69: #{tpu_custom_call.1} parent=47 // pred_check
          %p366 = pneg %p153
        $region70: #{tpu_custom_call.1} parent=47 // pred_check_branch
          %368 = sbr.rel (%p366) target = $region72
        $region71: #{tpu_custom_call.1} parent=47 // pred_region
          %370 = dma.done %s362, 49152
        $region72: #{tpu_custom_call.1} parent=47 // pred_fallthru
          _
        %s371 = sand.u32 %s27, 1
        %s372 = scalar_lea.sflag [#allocation12], %s371
        %s373 = sand.u32 %s166, 1
        %s374 = smul.addr %s373, 6
        %s375 = scalar_lea.vmem [#allocation13], %s374
        // Predicated region
        $region73: #{tpu_custom_call.1} parent=47 // pred_check
          %p376 = pneg %p179
        $region74: #{tpu_custom_call.1} parent=47 // pred_check_branch
          %378 = sbr.rel (%p376) target = $region76
        $region75: #{tpu_custom_call.1} parent=47 // pred_region
          %380 = dma.done %s372, 96
        $region76: #{tpu_custom_call.1} parent=47 // pred_fallthru
          _
        %p381 = pneg %p43
        %p382 = pneg %p40
        %p383 = pneg %p64
        %p384 = pneg %p61
        %p385 = pneg %p85
        %p386 = pneg %p82
        %p387 = pneg %p106
        %p388 = pneg %p103
        %p389 = pneg %p127
        %p390 = pneg %p124
        %s391 = sand.u32 %s27, 1
        %s392 = scalar_lea.sflag [#allocation12], %s391
        %s393 = sand.u32 %s140, 1
        %s394 = smul.addr %s393, 3072
        %s395 = scalar_lea.vmem [#allocation11], %s394
        %p396 = pneg %p153
        %p397 = pneg %p150
        %s398 = sand.u32 %s27, 1
        %s399 = scalar_lea.sflag [#allocation12], %s398
        %s400 = sand.u32 %s166, 1
        %s401 = smul.addr %s400, 6
        %s402 = scalar_lea.vmem [#allocation13], %s401
        %p403 = pneg %p179
        %p404 = pneg %p176
        %p405 = pneg %p205
        %p406 = pneg %p202
        %s407 = sand.u32 %s192, 1
        %s408 = scalar_lea.sflag [#allocation4], %s407
        %s409 = sand.u32 %s192, 1
        %s410 = smul.addr %s409, 48
        %s411 = scalar_lea.vmem [#allocation14], %s410
        %s412 = smul.u32 6, %s27
        %s413 = smul.u32 6, %s27
        %s414 = smul.u32 6, %s27
        %v416 = vld [vmem:[#allocation2] sm:$0xf]
        %v417 = vld [vmem:[#allocation5] sm:$0xff]
        %v418 = vld [vmem:[#allocation5 + $0x8] sm:$0xff]
        %v419 = vld [vmem:[#allocation5 + $0x10] sm:$0xff]
        %v420 = vld [vmem:[#allocation5 + $0x18] sm:$0xff]
        %v421 = vld [vmem:[#allocation5 + $0x20] sm:$0xff]
        %v422 = vld [vmem:[#allocation5 + $0x28] sm:$0xff]
        %v423 = vld [vmem:[#allocation5 + $0x30] sm:$0xff]
        %v424 = vld [vmem:[#allocation5 + $0x38] sm:$0xff]
        %v425 = vld [vmem:[#allocation5 + $0x40] sm:$0xff]
        %v426 = vld [vmem:[#allocation5 + $0x48] sm:$0xff]
        %v427 = vld [vmem:[#allocation5 + $0x50] sm:$0xff]
        %v428 = vld [vmem:[#allocation5 + $0x58] sm:$0xff]
        %v429 = vld [vmem:[#allocation5 + $0x60] sm:$0xff]
        %v430 = vld [vmem:[#allocation5 + $0x68] sm:$0xff]
        %v431 = vld [vmem:[#allocation5 + $0x70] sm:$0xff]
        %v432 = vld [vmem:[#allocation5 + $0x78] sm:$0xff]
        %v433 = vld [vmem:[#allocation5 + $0x80] sm:$0xff]
        %v434 = vld [vmem:[#allocation5 + $0x88] sm:$0xff]
        %v435 = vld [vmem:[#allocation5 + $0x90] sm:$0xff]
        %v436 = vld [vmem:[#allocation5 + $0x98] sm:$0xff]
        %v437 = vld [vmem:[#allocation5 + $0xa0] sm:$0xff]
        %v438 = vld [vmem:[#allocation5 + $0xa8] sm:$0xff]
        %v439 = vld [vmem:[#allocation5 + $0xb0] sm:$0xff]
        %v440 = vld [vmem:[#allocation5 + $0xb8] sm:$0xff]
        %v441 = vld [vmem:[#allocation5 + $0xc0] sm:$0xff]
        %v442 = vld [vmem:[#allocation5 + $0xc8] sm:$0xff]
        %v443 = vld [vmem:[#allocation5 + $0xd0] sm:$0xff]
        %v444 = vld [vmem:[#allocation5 + $0xd8] sm:$0xff]
        %v445 = vld [vmem:[#allocation5 + $0xe0] sm:$0xff]
        %v446 = vld [vmem:[#allocation5 + $0xe8] sm:$0xff]
        %v447 = vld [vmem:[#allocation5 + $0xf0] sm:$0xff]
        %v448 = vld [vmem:[#allocation5 + $0xf8] sm:$0xff]
        %v481 = vunpack.c.l.b16 %v417
        %v482 = vunpack.c.h.b16 %v417
        %v483 = vunpack.c.l.b16 %v418
        %v484 = vunpack.c.h.b16 %v418
        %v485 = vunpack.c.l.b16 %v419
        %v486 = vunpack.c.h.b16 %v419
        %v487 = vunpack.c.l.b16 %v420
        %v488 = vunpack.c.h.b16 %v420
        %v489 = vunpack.c.l.b16 %v421
        %v490 = vunpack.c.h.b16 %v421
        %v491 = vunpack.c.l.b16 %v422
        %v492 = vunpack.c.h.b16 %v422
        %v493 = vunpack.c.l.b16 %v423
        %v494 = vunpack.c.h.b16 %v423
        %v495 = vunpack.c.l.b16 %v424
        %v496 = vunpack.c.h.b16 %v424
        %v497 = vunpack.c.l.b16 %v425
        %v498 = vunpack.c.h.b16 %v425
        %v499 = vunpack.c.l.b16 %v426
        %v500 = vunpack.c.h.b16 %v426
        %v501 = vunpack.c.l.b16 %v427
        %v502 = vunpack.c.h.b16 %v427
        %v503 = vunpack.c.l.b16 %v428
        %v504 = vunpack.c.h.b16 %v428
        %v505 = vunpack.c.l.b16 %v429
        %v506 = vunpack.c.h.b16 %v429
        %v507 = vunpack.c.l.b16 %v430
        %v508 = vunpack.c.h.b16 %v430
        %v509 = vunpack.c.l.b16 %v431
        %v510 = vunpack.c.h.b16 %v431
        %v511 = vunpack.c.l.b16 %v432
        %v512 = vunpack.c.h.b16 %v432
        %v513 = vunpack.c.l.b16 %v433
        %v514 = vunpack.c.h.b16 %v433
        %v515 = vunpack.c.l.b16 %v434
        %v516 = vunpack.c.h.b16 %v434
        %v517 = vunpack.c.l.b16 %v435
        %v518 = vunpack.c.h.b16 %v435
        %v519 = vunpack.c.l.b16 %v436
        %v520 = vunpack.c.h.b16 %v436
        %v521 = vunpack.c.l.b16 %v437
        %v522 = vunpack.c.h.b16 %v437
        %v523 = vunpack.c.l.b16 %v438
        %v524 = vunpack.c.h.b16 %v438
        %v525 = vunpack.c.l.b16 %v439
        %v526 = vunpack.c.h.b16 %v439
        %v527 = vunpack.c.l.b16 %v440
        %v528 = vunpack.c.h.b16 %v440
        %v529 = vunpack.c.l.b16 %v441
        %v530 = vunpack.c.h.b16 %v441
        %v531 = vunpack.c.l.b16 %v442
        %v532 = vunpack.c.h.b16 %v442
        %v533 = vunpack.c.l.b16 %v443
        %v534 = vunpack.c.h.b16 %v443
        %v535 = vunpack.c.l.b16 %v444
        %v536 = vunpack.c.h.b16 %v444
        %v537 = vunpack.c.l.b16 %v445
        %v538 = vunpack.c.h.b16 %v445
        %v539 = vunpack.c.l.b16 %v446
        %v540 = vunpack.c.h.b16 %v446
        %v541 = vunpack.c.l.b16 %v447
        %v542 = vunpack.c.h.b16 %v447
        %v543 = vunpack.c.l.b16 %v448
        %v544 = vunpack.c.h.b16 %v448
        %v545 = vpack.c.b16 %v489, %v481
        %v546 = vpack.c.b16 %v490, %v482
        %v547 = vpack.c.b16 %v491, %v483
        %v548 = vpack.c.b16 %v492, %v484
        %v549 = vpack.c.b16 %v493, %v485
        %v550 = vpack.c.b16 %v494, %v486
        %v551 = vpack.c.b16 %v495, %v487
        %v552 = vpack.c.b16 %v496, %v488
        %v553 = vpack.c.b16 %v505, %v497
        %v554 = vpack.c.b16 %v506, %v498
        %v555 = vpack.c.b16 %v507, %v499
        %v556 = vpack.c.b16 %v508, %v500
        %v557 = vpack.c.b16 %v509, %v501
        %v558 = vpack.c.b16 %v510, %v502
        %v559 = vpack.c.b16 %v511, %v503
        %v560 = vpack.c.b16 %v512, %v504
        %v561 = vpack.c.b16 %v521, %v513
        %v562 = vpack.c.b16 %v522, %v514
        %v563 = vpack.c.b16 %v523, %v515
        %v564 = vpack.c.b16 %v524, %v516
        %v565 = vpack.c.b16 %v525, %v517
        %v566 = vpack.c.b16 %v526, %v518
        %v567 = vpack.c.b16 %v527, %v519
        %v568 = vpack.c.b16 %v528, %v520
        %v569 = vpack.c.b16 %v537, %v529
        %v570 = vpack.c.b16 %v538, %v530
        %v571 = vpack.c.b16 %v539, %v531
        %v572 = vpack.c.b16 %v540, %v532
        %v573 = vpack.c.b16 %v541, %v533
        %v574 = vpack.c.b16 %v542, %v534
        %v575 = vpack.c.b16 %v543, %v535
        %v576 = vpack.c.b16 %v544, %v536
        %vm609 = vcmask 523264
        %v611 = vsel %vm609, %v416, 0
        %613 = vmatpush.bf16.msra.mxu0 0
        %614 = vmatpush.bf16.msra.mxu0 0
        %615 = vmatpush.bf16.msra.mxu0 0
        %616 = vmatpush.bf16.msra.mxu0 0
        %617 = vmatpush.bf16.msra.mxu0 %v569
        %618 = vmatpush.bf16.msra.mxu0 %v561
        %619 = vmatpush.bf16.msra.mxu0 %v553
        %620 = vmatpush.bf16.msra.mxu0 %v545
        %621 = vmatmul.bf16.gmra.mxu0 %v611
        %v622 = vpop.f32.mrf.mxu0
        %v623 = vadd.f32 0.0, %v622
        %v624 = vpop.f32.mrf.mxu0
        %625 = vdwg.mxu0
        %626 = vmatpush.bf16.msra.mxu0 0
        %627 = vmatpush.bf16.msra.mxu0 0
        %628 = vmatpush.bf16.msra.mxu0 0
        %629 = vmatpush.bf16.msra.mxu0 0
        %630 = vmatpush.bf16.msra.mxu0 %v570
        %631 = vmatpush.bf16.msra.mxu0 %v562
        %632 = vmatpush.bf16.msra.mxu0 %v554
        %633 = vmatpush.bf16.msra.mxu0 %v546
        %634 = vmatmul.bf16.gmra.mxu0 %v611
        %v635 = vpop.f32.mrf.mxu0
        %v636 = vadd.f32 0.0, %v635
        %v637 = vpop.f32.mrf.mxu0
        %638 = vdwg.mxu0
        %639 = vmatpush.bf16.msra.mxu0 0
        %640 = vmatpush.bf16.msra.mxu0 0
        %641 = vmatpush.bf16.msra.mxu0 0
        %642 = vmatpush.bf16.msra.mxu0 0
        %643 = vmatpush.bf16.msra.mxu0 %v571
        %644 = vmatpush.bf16.msra.mxu0 %v563
        %645 = vmatpush.bf16.msra.mxu0 %v555
        %646 = vmatpush.bf16.msra.mxu0 %v547
        %647 = vmatmul.bf16.gmra.mxu0 %v611
        %v648 = vpop.f32.mrf.mxu0
        %v649 = vadd.f32 0.0, %v648
        %v650 = vpop.f32.mrf.mxu0
        %651 = vdwg.mxu0
        %652 = vmatpush.bf16.msra.mxu0 0
        %653 = vmatpush.bf16.msra.mxu0 0
        %654 = vmatpush.bf16.msra.mxu0 0
        %655 = vmatpush.bf16.msra.mxu0 0
        %656 = vmatpush.bf16.msra.mxu0 %v572
        %657 = vmatpush.bf16.msra.mxu0 %v564
        %658 = vmatpush.bf16.msra.mxu0 %v556
        %659 = vmatpush.bf16.msra.mxu0 %v548
        %660 = vmatmul.bf16.gmra.mxu0 %v611
        %v661 = vpop.f32.mrf.mxu0
        %v662 = vadd.f32 0.0, %v661
        %v663 = vpop.f32.mrf.mxu0
        %664 = vdwg.mxu0
        %665 = vmatpush.bf16.msra.mxu0 0
        %666 = vmatpush.bf16.msra.mxu0 0
        %667 = vmatpush.bf16.msra.mxu0 0
        %668 = vmatpush.bf16.msra.mxu0 0
        %669 = vmatpush.bf16.msra.mxu0 %v573
        %670 = vmatpush.bf16.msra.mxu0 %v565
        %671 = vmatpush.bf16.msra.mxu0 %v557
        %672 = vmatpush.bf16.msra.mxu0 %v549
        %673 = vmatmul.bf16.gmra.mxu0 %v611
        %v674 = vpop.f32.mrf.mxu0
        %v675 = vadd.f32 0.0, %v674
        %v676 = vpop.f32.mrf.mxu0
        %677 = vdwg.mxu0
        %678 = vmatpush.bf16.msra.mxu0 0
        %679 = vmatpush.bf16.msra.mxu0 0
        %680 = vmatpush.bf16.msra.mxu0 0
        %681 = vmatpush.bf16.msra.mxu0 0
        %682 = vmatpush.bf16.msra.mxu0 %v574
        %683 = vmatpush.bf16.msra.mxu0 %v566
        %684 = vmatpush.bf16.msra.mxu0 %v558
        %685 = vmatpush.bf16.msra.mxu0 %v550
        %686 = vmatmul.bf16.gmra.mxu0 %v611
        %v687 = vpop.f32.mrf.mxu0
        %v688 = vadd.f32 0.0, %v687
        %v689 = vpop.f32.mrf.mxu0
        %690 = vdwg.mxu0
        %691 = vmatpush.bf16.msra.mxu0 0
        %692 = vmatpush.bf16.msra.mxu0 0
        %693 = vmatpush.bf16.msra.mxu0 0
        %694 = vmatpush.bf16.msra.mxu0 0
        %695 = vmatpush.bf16.msra.mxu0 %v575
        %696 = vmatpush.bf16.msra.mxu0 %v567
        %697 = vmatpush.bf16.msra.mxu0 %v559
        %698 = vmatpush.bf16.msra.mxu0 %v551
        %699 = vmatmul.bf16.gmra.mxu0 %v611
        %v700 = vpop.f32.mrf.mxu0
        %v701 = vadd.f32 0.0, %v700
        %v702 = vpop.f32.mrf.mxu0
        %703 = vdwg.mxu0
        %704 = vmatpush.bf16.msra.mxu0 0
        %705 = vmatpush.bf16.msra.mxu0 0
        %706 = vmatpush.bf16.msra.mxu0 0
        %707 = vmatpush.bf16.msra.mxu0 0
        %708 = vmatpush.bf16.msra.mxu0 %v576
        %709 = vmatpush.bf16.msra.mxu0 %v568
        %710 = vmatpush.bf16.msra.mxu0 %v560
        %711 = vmatpush.bf16.msra.mxu0 %v552
        %712 = vmatmul.bf16.gmra.mxu0 %v611
        %v713 = vpop.f32.mrf.mxu0
        %v714 = vadd.f32 0.0, %v713
        %v715 = vpop.f32.mrf.mxu0
        %716 = vdwg.mxu0
        %v717 = vtanh.pop %v623
        %v718 = vtanh.pop %v636
        %v719 = vtanh.pop %v649
        %v720 = vtanh.pop %v662
        %v721 = vtanh.pop %v675
        %v722 = vtanh.pop %v688
        %v723 = vtanh.pop %v701
        %v724 = vtanh.pop %v714
        %v725 = vld [vmem:[#allocation7] sm:$0xff]
        %v726 = vld [vmem:[#allocation7 + $0x8] sm:$0xff]
        %v727 = vld [vmem:[#allocation8] sm:$0xff]
        %v728 = vld [vmem:[#allocation8 + $0x8] sm:$0xff]
        %v729 = vld [vmem:[#allocation8 + $0x10] sm:$0xff]
        %v730 = vld [vmem:[#allocation8 + $0x18] sm:$0xff]
        %v731 = vld [vmem:[#allocation8 + $0x20] sm:$0xff]
        %v732 = vld [vmem:[#allocation8 + $0x28] sm:$0xff]
        %v733 = vld [vmem:[#allocation8 + $0x30] sm:$0xff]
        %v734 = vld [vmem:[#allocation8 + $0x38] sm:$0xff]
        %v735 = vld [vmem:[#allocation8 + $0x40] sm:$0xff]
        %v736 = vld [vmem:[#allocation8 + $0x48] sm:$0xff]
        %v737 = vld [vmem:[#allocation8 + $0x50] sm:$0xff]
        %v738 = vld [vmem:[#allocation8 + $0x58] sm:$0xff]
        %v739 = vld [vmem:[#allocation8 + $0x60] sm:$0xff]
        %v740 = vld [vmem:[#allocation8 + $0x68] sm:$0xff]
        %v741 = vld [vmem:[#allocation8 + $0x70] sm:$0xff]
        %v742 = vld [vmem:[#allocation8 + $0x78] sm:$0xff]
        %v743 = vld [vmem:[#allocation8 + $0x80] sm:$0xff]
        %v744 = vld [vmem:[#allocation8 + $0x88] sm:$0xff]
        %v745 = vld [vmem:[#allocation8 + $0x90] sm:$0xff]
        %v746 = vld [vmem:[#allocation8 + $0x98] sm:$0xff]
        %v747 = vld [vmem:[#allocation8 + $0xa0] sm:$0xff]
        %v748 = vld [vmem:[#allocation8 + $0xa8] sm:$0xff]
        %v749 = vld [vmem:[#allocation8 + $0xb0] sm:$0xff]
        %v750 = vld [vmem:[#allocation8 + $0xb8] sm:$0xff]
        %v751 = vld [vmem:[#allocation8 + $0xc0] sm:$0xff]
        %v752 = vld [vmem:[#allocation8 + $0xc8] sm:$0xff]
        %v753 = vld [vmem:[#allocation8 + $0xd0] sm:$0xff]
        %v754 = vld [vmem:[#allocation8 + $0xd8] sm:$0xff]
        %v755 = vld [vmem:[#allocation8 + $0xe0] sm:$0xff]
        %v756 = vld [vmem:[#allocation8 + $0xe8] sm:$0xff]
        %v757 = vld [vmem:[#allocation8 + $0xf0] sm:$0xff]
        %v758 = vld [vmem:[#allocation8 + $0xf8] sm:$0xff]
        %v759 = vld [vmem:[#allocation8 + $0x100] sm:$0xff]
        %v760 = vld [vmem:[#allocation8 + $0x108] sm:$0xff]
        %v761 = vld [vmem:[#allocation8 + $0x110] sm:$0xff]
        %v762 = vld [vmem:[#allocation8 + $0x118] sm:$0xff]
        %v763 = vld [vmem:[#allocation8 + $0x120] sm:$0xff]
        %v764 = vld [vmem:[#allocation8 + $0x128] sm:$0xff]
        %v765 = vld [vmem:[#allocation8 + $0x130] sm:$0xff]
        %v766 = vld [vmem:[#allocation8 + $0x138] sm:$0xff]
        %v767 = vld [vmem:[#allocation8 + $0x140] sm:$0xff]
        %v768 = vld [vmem:[#allocation8 + $0x148] sm:$0xff]
        %v769 = vld [vmem:[#allocation8 + $0x150] sm:$0xff]
        %v770 = vld [vmem:[#allocation8 + $0x158] sm:$0xff]
        %v771 = vld [vmem:[#allocation8 + $0x160] sm:$0xff]
        %v772 = vld [vmem:[#allocation8 + $0x168] sm:$0xff]
        %v773 = vld [vmem:[#allocation8 + $0x170] sm:$0xff]
        %v774 = vld [vmem:[#allocation8 + $0x178] sm:$0xff]
        %v775 = vld [vmem:[#allocation8 + $0x180] sm:$0xff]
        %v776 = vld [vmem:[#allocation8 + $0x188] sm:$0xff]
        %v777 = vld [vmem:[#allocation8 + $0x190] sm:$0xff]
        %v778 = vld [vmem:[#allocation8 + $0x198] sm:$0xff]
        %v779 = vld [vmem:[#allocation8 + $0x1a0] sm:$0xff]
        %v780 = vld [vmem:[#allocation8 + $0x1a8] sm:$0xff]
        %v781 = vld [vmem:[#allocation8 + $0x1b0] sm:$0xff]
        %v782 = vld [vmem:[#allocation8 + $0x1b8] sm:$0xff]
        %v783 = vld [vmem:[#allocation8 + $0x1c0] sm:$0xff]
        %v784 = vld [vmem:[#allocation8 + $0x1c8] sm:$0xff]
        %v785 = vld [vmem:[#allocation8 + $0x1d0] sm:$0xff]
        %v786 = vld [vmem:[#allocation8 + $0x1d8] sm:$0xff]
        %v787 = vld [vmem:[#allocation8 + $0x1e0] sm:$0xff]
        %v788 = vld [vmem:[#allocation8 + $0x1e8] sm:$0xff]
        %v789 = vld [vmem:[#allocation8 + $0x1f0] sm:$0xff]
        %v790 = vld [vmem:[#allocation8 + $0x1f8] sm:$0xff]
        %v791 = vld [vmem:[#allocation8 + $0x200] sm:$0xff]
        %v792 = vld [vmem:[#allocation8 + $0x208] sm:$0xff]
        %v793 = vld [vmem:[#allocation8 + $0x210] sm:$0xff]
        %v794 = vld [vmem:[#allocation8 + $0x218] sm:$0xff]
        %v795 = vld [vmem:[#allocation8 + $0x220] sm:$0xff]
        %v796 = vld [vmem:[#allocation8 + $0x228] sm:$0xff]
        %v797 = vld [vmem:[#allocation8 + $0x230] sm:$0xff]
        %v798 = vld [vmem:[#allocation8 + $0x238] sm:$0xff]
        %v799 = vld [vmem:[#allocation8 + $0x240] sm:$0xff]
        %v800 = vld [vmem:[#allocation8 + $0x248] sm:$0xff]
        %v801 = vld [vmem:[#allocation8 + $0x250] sm:$0xff]
        %v802 = vld [vmem:[#allocation8 + $0x258] sm:$0xff]
        %v803 = vld [vmem:[#allocation8 + $0x260] sm:$0xff]
        %v804 = vld [vmem:[#allocation8 + $0x268] sm:$0xff]
        %v805 = vld [vmem:[#allocation8 + $0x270] sm:$0xff]
        %v806 = vld [vmem:[#allocation8 + $0x278] sm:$0xff]
        %v807 = vld [vmem:[#allocation8 + $0x280] sm:$0xff]
        %v808 = vld [vmem:[#allocation8 + $0x288] sm:$0xff]
        %v809 = vld [vmem:[#allocation8 + $0x290] sm:$0xff]
        %v810 = vld [vmem:[#allocation8 + $0x298] sm:$0xff]
        %v811 = vld [vmem:[#allocation8 + $0x2a0] sm:$0xff]
        %v812 = vld [vmem:[#allocation8 + $0x2a8] sm:$0xff]
        %v813 = vld [vmem:[#allocation8 + $0x2b0] sm:$0xff]
        %v814 = vld [vmem:[#allocation8 + $0x2b8] sm:$0xff]
        %v815 = vld [vmem:[#allocation8 + $0x2c0] sm:$0xff]
        %v816 = vld [vmem:[#allocation8 + $0x2c8] sm:$0xff]
        %v817 = vld [vmem:[#allocation8 + $0x2d0] sm:$0xff]
        %v818 = vld [vmem:[#allocation8 + $0x2d8] sm:$0xff]
        %v819 = vld [vmem:[#allocation8 + $0x2e0] sm:$0xff]
        %v820 = vld [vmem:[#allocation8 + $0x2e8] sm:$0xff]
        %v821 = vld [vmem:[#allocation8 + $0x2f0] sm:$0xff]
        %v822 = vld [vmem:[#allocation8 + $0x2f8] sm:$0xff]
        %v823 = vld [vmem:[#allocation8 + $0x300] sm:$0xff]
        %v824 = vld [vmem:[#allocation8 + $0x308] sm:$0xff]
        %v825 = vld [vmem:[#allocation8 + $0x310] sm:$0xff]
        %v826 = vld [vmem:[#allocation8 + $0x318] sm:$0xff]
        %v827 = vld [vmem:[#allocation8 + $0x320] sm:$0xff]
        %v828 = vld [vmem:[#allocation8 + $0x328] sm:$0xff]
        %v829 = vld [vmem:[#allocation8 + $0x330] sm:$0xff]
        %v830 = vld [vmem:[#allocation8 + $0x338] sm:$0xff]
        %v831 = vld [vmem:[#allocation8 + $0x340] sm:$0xff]
        %v832 = vld [vmem:[#allocation8 + $0x348] sm:$0xff]
        %v833 = vld [vmem:[#allocation8 + $0x350] sm:$0xff]
        %v834 = vld [vmem:[#allocation8 + $0x358] sm:$0xff]
        %v835 = vld [vmem:[#allocation8 + $0x360] sm:$0xff]
        %v836 = vld [vmem:[#allocation8 + $0x368] sm:$0xff]
        %v837 = vld [vmem:[#allocation8 + $0x370] sm:$0xff]
        %v838 = vld [vmem:[#allocation8 + $0x378] sm:$0xff]
        %v839 = vld [vmem:[#allocation8 + $0x380] sm:$0xff]
        %v840 = vld [vmem:[#allocation8 + $0x388] sm:$0xff]
        %v841 = vld [vmem:[#allocation8 + $0x390] sm:$0xff]
        %v842 = vld [vmem:[#allocation8 + $0x398] sm:$0xff]
        %v843 = vld [vmem:[#allocation8 + $0x3a0] sm:$0xff]
        %v844 = vld [vmem:[#allocation8 + $0x3a8] sm:$0xff]
        %v845 = vld [vmem:[#allocation8 + $0x3b0] sm:$0xff]
        %v846 = vld [vmem:[#allocation8 + $0x3b8] sm:$0xff]
        %v847 = vld [vmem:[#allocation8 + $0x3c0] sm:$0xff]
        %v848 = vld [vmem:[#allocation8 + $0x3c8] sm:$0xff]
        %v849 = vld [vmem:[#allocation8 + $0x3d0] sm:$0xff]
        %v850 = vld [vmem:[#allocation8 + $0x3d8] sm:$0xff]
        %v851 = vld [vmem:[#allocation8 + $0x3e0] sm:$0xff]
        %v852 = vld [vmem:[#allocation8 + $0x3e8] sm:$0xff]
        %v853 = vld [vmem:[#allocation8 + $0x3f0] sm:$0xff]
        %v854 = vld [vmem:[#allocation8 + $0x3f8] sm:$0xff]
        %v855 = vld [vmem:[#allocation8 + $0x400] sm:$0xff]
        %v856 = vld [vmem:[#allocation8 + $0x408] sm:$0xff]
        %v857 = vld [vmem:[#allocation8 + $0x410] sm:$0xff]
        %v858 = vld [vmem:[#allocation8 + $0x418] sm:$0xff]
        %v859 = vld [vmem:[#allocation8 + $0x420] sm:$0xff]
        %v860 = vld [vmem:[#allocation8 + $0x428] sm:$0xff]
        %v861 = vld [vmem:[#allocation8 + $0x430] sm:$0xff]
        %v862 = vld [vmem:[#allocation8 + $0x438] sm:$0xff]
        %v863 = vld [vmem:[#allocation8 + $0x440] sm:$0xff]
        %v864 = vld [vmem:[#allocation8 + $0x448] sm:$0xff]
        %v865 = vld [vmem:[#allocation8 + $0x450] sm:$0xff]
        %v866 = vld [vmem:[#allocation8 + $0x458] sm:$0xff]
        %v867 = vld [vmem:[#allocation8 + $0x460] sm:$0xff]
        %v868 = vld [vmem:[#allocation8 + $0x468] sm:$0xff]
        %v869 = vld [vmem:[#allocation8 + $0x470] sm:$0xff]
        %v870 = vld [vmem:[#allocation8 + $0x478] sm:$0xff]
        %v871 = vld [vmem:[#allocation8 + $0x480] sm:$0xff]
        %v872 = vld [vmem:[#allocation8 + $0x488] sm:$0xff]
        %v873 = vld [vmem:[#allocation8 + $0x490] sm:$0xff]
        %v874 = vld [vmem:[#allocation8 + $0x498] sm:$0xff]
        %v875 = vld [vmem:[#allocation8 + $0x4a0] sm:$0xff]
        %v876 = vld [vmem:[#allocation8 + $0x4a8] sm:$0xff]
        %v877 = vld [vmem:[#allocation8 + $0x4b0] sm:$0xff]
        %v878 = vld [vmem:[#allocation8 + $0x4b8] sm:$0xff]
        %v879 = vld [vmem:[#allocation8 + $0x4c0] sm:$0xff]
        %v880 = vld [vmem:[#allocation8 + $0x4c8] sm:$0xff]
        %v881 = vld [vmem:[#allocation8 + $0x4d0] sm:$0xff]
        %v882 = vld [vmem:[#allocation8 + $0x4d8] sm:$0xff]
        %v883 = vld [vmem:[#allocation8 + $0x4e0] sm:$0xff]
        %v884 = vld [vmem:[#allocation8 + $0x4e8] sm:$0xff]
        %v885 = vld [vmem:[#allocation8 + $0x4f0] sm:$0xff]
        %v886 = vld [vmem:[#allocation8 + $0x4f8] sm:$0xff]
        %v887 = vld [vmem:[#allocation8 + $0x500] sm:$0xff]
        %v888 = vld [vmem:[#allocation8 + $0x508] sm:$0xff]
        %v889 = vld [vmem:[#allocation8 + $0x510] sm:$0xff]
        %v890 = vld [vmem:[#allocation8 + $0x518] sm:$0xff]
        %v891 = vld [vmem:[#allocation8 + $0x520] sm:$0xff]
        %v892 = vld [vmem:[#allocation8 + $0x528] sm:$0xff]
        %v893 = vld [vmem:[#allocation8 + $0x530] sm:$0xff]
        %v894 = vld [vmem:[#allocation8 + $0x538] sm:$0xff]
        %v895 = vld [vmem:[#allocation8 + $0x540] sm:$0xff]
        %v896 = vld [vmem:[#allocation8 + $0x548] sm:$0xff]
        %v897 = vld [vmem:[#allocation8 + $0x550] sm:$0xff]
        %v898 = vld [vmem:[#allocation8 + $0x558] sm:$0xff]
        %v899 = vld [vmem:[#allocation8 + $0x560] sm:$0xff]
        %v900 = vld [vmem:[#allocation8 + $0x568] sm:$0xff]
        %v901 = vld [vmem:[#allocation8 + $0x570] sm:$0xff]
        %v902 = vld [vmem:[#allocation8 + $0x578] sm:$0xff]
        %v903 = vld [vmem:[#allocation8 + $0x580] sm:$0xff]
        %v904 = vld [vmem:[#allocation8 + $0x588] sm:$0xff]
        %v905 = vld [vmem:[#allocation8 + $0x590] sm:$0xff]
        %v906 = vld [vmem:[#allocation8 + $0x598] sm:$0xff]
        %v907 = vld [vmem:[#allocation8 + $0x5a0] sm:$0xff]
        %v908 = vld [vmem:[#allocation8 + $0x5a8] sm:$0xff]
        %v909 = vld [vmem:[#allocation8 + $0x5b0] sm:$0xff]
        %v910 = vld [vmem:[#allocation8 + $0x5b8] sm:$0xff]
        %v911 = vld [vmem:[#allocation8 + $0x5c0] sm:$0xff]
        %v912 = vld [vmem:[#allocation8 + $0x5c8] sm:$0xff]
        %v913 = vld [vmem:[#allocation8 + $0x5d0] sm:$0xff]
        %v914 = vld [vmem:[#allocation8 + $0x5d8] sm:$0xff]
        %v915 = vld [vmem:[#allocation8 + $0x5e0] sm:$0xff]
        %v916 = vld [vmem:[#allocation8 + $0x5e8] sm:$0xff]
        %v917 = vld [vmem:[#allocation8 + $0x5f0] sm:$0xff]
        %v918 = vld [vmem:[#allocation8 + $0x5f8] sm:$0xff]
        %v919 = vld [vmem:[#allocation8 + $0x600] sm:$0xff]
        %v920 = vld [vmem:[#allocation8 + $0x608] sm:$0xff]
        %v921 = vld [vmem:[#allocation8 + $0x610] sm:$0xff]
        %v922 = vld [vmem:[#allocation8 + $0x618] sm:$0xff]
        %v923 = vld [vmem:[#allocation8 + $0x620] sm:$0xff]
        %v924 = vld [vmem:[#allocation8 + $0x628] sm:$0xff]
        %v925 = vld [vmem:[#allocation8 + $0x630] sm:$0xff]
        %v926 = vld [vmem:[#allocation8 + $0x638] sm:$0xff]
        %v927 = vld [vmem:[#allocation8 + $0x640] sm:$0xff]
        %v928 = vld [vmem:[#allocation8 + $0x648] sm:$0xff]
        %v929 = vld [vmem:[#allocation8 + $0x650] sm:$0xff]
        %v930 = vld [vmem:[#allocation8 + $0x658] sm:$0xff]
        %v931 = vld [vmem:[#allocation8 + $0x660] sm:$0xff]
        %v932 = vld [vmem:[#allocation8 + $0x668] sm:$0xff]
        %v933 = vld [vmem:[#allocation8 + $0x670] sm:$0xff]
        %v934 = vld [vmem:[#allocation8 + $0x678] sm:$0xff]
        %v935 = vld [vmem:[#allocation8 + $0x680] sm:$0xff]
        %v936 = vld [vmem:[#allocation8 + $0x688] sm:$0xff]
        %v937 = vld [vmem:[#allocation8 + $0x690] sm:$0xff]
        %v938 = vld [vmem:[#allocation8 + $0x698] sm:$0xff]
        %v939 = vld [vmem:[#allocation8 + $0x6a0] sm:$0xff]
        %v940 = vld [vmem:[#allocation8 + $0x6a8] sm:$0xff]
        %v941 = vld [vmem:[#allocation8 + $0x6b0] sm:$0xff]
        %v942 = vld [vmem:[#allocation8 + $0x6b8] sm:$0xff]
        %v943 = vld [vmem:[#allocation8 + $0x6c0] sm:$0xff]
        %v944 = vld [vmem:[#allocation8 + $0x6c8] sm:$0xff]
        %v945 = vld [vmem:[#allocation8 + $0x6d0] sm:$0xff]
        %v946 = vld [vmem:[#allocation8 + $0x6d8] sm:$0xff]
        %v947 = vld [vmem:[#allocation8 + $0x6e0] sm:$0xff]
        %v948 = vld [vmem:[#allocation8 + $0x6e8] sm:$0xff]
        %v949 = vld [vmem:[#allocation8 + $0x6f0] sm:$0xff]
        %v950 = vld [vmem:[#allocation8 + $0x6f8] sm:$0xff]
        %v951 = vld [vmem:[#allocation8 + $0x700] sm:$0xff]
        %v952 = vld [vmem:[#allocation8 + $0x708] sm:$0xff]
        %v953 = vld [vmem:[#allocation8 + $0x710] sm:$0xff]
        %v954 = vld [vmem:[#allocation8 + $0x718] sm:$0xff]
        %v955 = vld [vmem:[#allocation8 + $0x720] sm:$0xff]
        %v956 = vld [vmem:[#allocation8 + $0x728] sm:$0xff]
        %v957 = vld [vmem:[#allocation8 + $0x730] sm:$0xff]
        %v958 = vld [vmem:[#allocation8 + $0x738] sm:$0xff]
        %v959 = vld [vmem:[#allocation8 + $0x740] sm:$0xff]
        %v960 = vld [vmem:[#allocation8 + $0x748] sm:$0xff]
        %v961 = vld [vmem:[#allocation8 + $0x750] sm:$0xff]
        %v962 = vld [vmem:[#allocation8 + $0x758] sm:$0xff]
        %v963 = vld [vmem:[#allocation8 + $0x760] sm:$0xff]
        %v964 = vld [vmem:[#allocation8 + $0x768] sm:$0xff]
        %v965 = vld [vmem:[#allocation8 + $0x770] sm:$0xff]
        %v966 = vld [vmem:[#allocation8 + $0x778] sm:$0xff]
        %v967 = vld [vmem:[#allocation8 + $0x780] sm:$0xff]
        %v968 = vld [vmem:[#allocation8 + $0x788] sm:$0xff]
        %v969 = vld [vmem:[#allocation8 + $0x790] sm:$0xff]
        %v970 = vld [vmem:[#allocation8 + $0x798] sm:$0xff]
        %v971 = vld [vmem:[#allocation8 + $0x7a0] sm:$0xff]
        %v972 = vld [vmem:[#allocation8 + $0x7a8] sm:$0xff]
        %v973 = vld [vmem:[#allocation8 + $0x7b0] sm:$0xff]
        %v974 = vld [vmem:[#allocation8 + $0x7b8] sm:$0xff]
        %v975 = vld [vmem:[#allocation8 + $0x7c0] sm:$0xff]
        %v976 = vld [vmem:[#allocation8 + $0x7c8] sm:$0xff]
        %v977 = vld [vmem:[#allocation8 + $0x7d0] sm:$0xff]
        %v978 = vld [vmem:[#allocation8 + $0x7d8] sm:$0xff]
        %v979 = vld [vmem:[#allocation8 + $0x7e0] sm:$0xff]
        %v980 = vld [vmem:[#allocation8 + $0x7e8] sm:$0xff]
        %v981 = vld [vmem:[#allocation8 + $0x7f0] sm:$0xff]
        %v982 = vld [vmem:[#allocation8 + $0x7f8] sm:$0xff]
        %v983 = vld [vmem:[#allocation10] sm:$0xff]
        %v985 = vperm.slane %v983, 0
        %v986 = vperm.slane %v983, 1
        %v987 = vperm.slane %v983, 2
        %v988 = vperm.slane %v983, 3
        %v989 = vperm.slane %v983, 4
        %v990 = vperm.slane %v983, 5
        %v991 = vperm.slane %v983, 6
        %v992 = vperm.slane %v983, 7
        %v1003 = vunpack.c.l.b16 %v725
        %v1004 = vunpack.c.h.b16 %v725
        %v1005 = vunpack.c.l.b16 %v726
        %v1006 = vunpack.c.h.b16 %v726
        %v1007 = vpack.c.b16 %v1003, %v1003
        %v1008 = vpack.c.b16 %v1004, %v1004
        %v1009 = vpack.c.b16 %v1005, %v1005
        %v1010 = vpack.c.b16 %v1006, %v1006
        %v1271 = vunpack.c.l.b16 %v727
        %v1272 = vunpack.c.h.b16 %v727
        %v1273 = vunpack.c.l.b16 %v728
        %v1274 = vunpack.c.h.b16 %v728
        %v1275 = vunpack.c.l.b16 %v729
        %v1276 = vunpack.c.h.b16 %v729
        %v1277 = vunpack.c.l.b16 %v730
        %v1278 = vunpack.c.h.b16 %v730
        %v1279 = vunpack.c.l.b16 %v731
        %v1280 = vunpack.c.h.b16 %v731
        %v1281 = vunpack.c.l.b16 %v732
        %v1282 = vunpack.c.h.b16 %v732
        %v1283 = vunpack.c.l.b16 %v733
        %v1284 = vunpack.c.h.b16 %v733
        %v1285 = vunpack.c.l.b16 %v734
        %v1286 = vunpack.c.h.b16 %v734
        %v1287 = vunpack.c.l.b16 %v735
        %v1288 = vunpack.c.h.b16 %v735
        %v1289 = vunpack.c.l.b16 %v736
        %v1290 = vunpack.c.h.b16 %v736
        %v1291 = vunpack.c.l.b16 %v737
        %v1292 = vunpack.c.h.b16 %v737
        %v1293 = vunpack.c.l.b16 %v738
        %v1294 = vunpack.c.h.b16 %v738
        %v1295 = vunpack.c.l.b16 %v739
        %v1296 = vunpack.c.h.b16 %v739
        %v1297 = vunpack.c.l.b16 %v740
        %v1298 = vunpack.c.h.b16 %v740
        %v1299 = vunpack.c.l.b16 %v741
        %v1300 = vunpack.c.h.b16 %v741
        %v1301 = vunpack.c.l.b16 %v742
        %v1302 = vunpack.c.h.b16 %v742
        %v1303 = vunpack.c.l.b16 %v743
        %v1304 = vunpack.c.h.b16 %v743
        %v1305 = vunpack.c.l.b16 %v744
        %v1306 = vunpack.c.h.b16 %v744
        %v1307 = vunpack.c.l.b16 %v745
        %v1308 = vunpack.c.h.b16 %v745
        %v1309 = vunpack.c.l.b16 %v746
        %v1310 = vunpack.c.h.b16 %v746
        %v1311 = vunpack.c.l.b16 %v747
        %v1312 = vunpack.c.h.b16 %v747
        %v1313 = vunpack.c.l.b16 %v748
        %v1314 = vunpack.c.h.b16 %v748
        %v1315 = vunpack.c.l.b16 %v749
        %v1316 = vunpack.c.h.b16 %v749
        %v1317 = vunpack.c.l.b16 %v750
        %v1318 = vunpack.c.h.b16 %v750
        %v1319 = vunpack.c.l.b16 %v751
        %v1320 = vunpack.c.h.b16 %v751
        %v1321 = vunpack.c.l.b16 %v752
        %v1322 = vunpack.c.h.b16 %v752
        %v1323 = vunpack.c.l.b16 %v753
        %v1324 = vunpack.c.h.b16 %v753
        %v1325 = vunpack.c.l.b16 %v754
        %v1326 = vunpack.c.h.b16 %v754
        %v1327 = vunpack.c.l.b16 %v755
        %v1328 = vunpack.c.h.b16 %v755
        %v1329 = vunpack.c.l.b16 %v756
        %v1330 = vunpack.c.h.b16 %v756
        %v1331 = vunpack.c.l.b16 %v757
        %v1332 = vunpack.c.h.b16 %v757
        %v1333 = vunpack.c.l.b16 %v758
        %v1334 = vunpack.c.h.b16 %v758
        %v1335 = vunpack.c.l.b16 %v759
        %v1336 = vunpack.c.h.b16 %v759
        %v1337 = vunpack.c.l.b16 %v760
        %v1338 = vunpack.c.h.b16 %v760
        %v1339 = vunpack.c.l.b16 %v761
        %v1340 = vunpack.c.h.b16 %v761
        %v1341 = vunpack.c.l.b16 %v762
        %v1342 = vunpack.c.h.b16 %v762
        %v1343 = vunpack.c.l.b16 %v763
        %v1344 = vunpack.c.h.b16 %v763
        %v1345 = vunpack.c.l.b16 %v764
        %v1346 = vunpack.c.h.b16 %v764
        %v1347 = vunpack.c.l.b16 %v765
        %v1348 = vunpack.c.h.b16 %v765
        %v1349 = vunpack.c.l.b16 %v766
        %v1350 = vunpack.c.h.b16 %v766
        %v1351 = vunpack.c.l.b16 %v767
        %v1352 = vunpack.c.h.b16 %v767
        %v1353 = vunpack.c.l.b16 %v768
        %v1354 = vunpack.c.h.b16 %v768
        %v1355 = vunpack.c.l.b16 %v769
        %v1356 = vunpack.c.h.b16 %v769
        %v1357 = vunpack.c.l.b16 %v770
        %v1358 = vunpack.c.h.b16 %v770
        %v1359 = vunpack.c.l.b16 %v771
        %v1360 = vunpack.c.h.b16 %v771
        %v1361 = vunpack.c.l.b16 %v772
        %v1362 = vunpack.c.h.b16 %v772
        %v1363 = vunpack.c.l.b16 %v773
        %v1364 = vunpack.c.h.b16 %v773
        %v1365 = vunpack.c.l.b16 %v774
        %v1366 = vunpack.c.h.b16 %v774
        %v1367 = vunpack.c.l.b16 %v775
        %v1368 = vunpack.c.h.b16 %v775
        %v1369 = vunpack.c.l.b16 %v776
        %v1370 = vunpack.c.h.b16 %v776
        %v1371 = vunpack.c.l.b16 %v777
        %v1372 = vunpack.c.h.b16 %v777
        %v1373 = vunpack.c.l.b16 %v778
        %v1374 = vunpack.c.h.b16 %v778
        %v1375 = vunpack.c.l.b16 %v779
        %v1376 = vunpack.c.h.b16 %v779
        %v1377 = vunpack.c.l.b16 %v780
        %v1378 = vunpack.c.h.b16 %v780
        %v1379 = vunpack.c.l.b16 %v781
        %v1380 = vunpack.c.h.b16 %v781
        %v1381 = vunpack.c.l.b16 %v782
        %v1382 = vunpack.c.h.b16 %v782
        %v1383 = vunpack.c.l.b16 %v783
        %v1384 = vunpack.c.h.b16 %v783
        %v1385 = vunpack.c.l.b16 %v784
        %v1386 = vunpack.c.h.b16 %v784
        %v1387 = vunpack.c.l.b16 %v785
        %v1388 = vunpack.c.h.b16 %v785
        %v1389 = vunpack.c.l.b16 %v786
        %v1390 = vunpack.c.h.b16 %v786
        %v1391 = vunpack.c.l.b16 %v787
        %v1392 = vunpack.c.h.b16 %v787
        %v1393 = vunpack.c.l.b16 %v788
        %v1394 = vunpack.c.h.b16 %v788
        %v1395 = vunpack.c.l.b16 %v789
        %v1396 = vunpack.c.h.b16 %v789
        %v1397 = vunpack.c.l.b16 %v790
        %v1398 = vunpack.c.h.b16 %v790
        %v1399 = vunpack.c.l.b16 %v791
        %v1400 = vunpack.c.h.b16 %v791
        %v1401 = vunpack.c.l.b16 %v792
        %v1402 = vunpack.c.h.b16 %v792
        %v1403 = vunpack.c.l.b16 %v793
        %v1404 = vunpack.c.h.b16 %v793
        %v1405 = vunpack.c.l.b16 %v794
        %v1406 = vunpack.c.h.b16 %v794
        %v1407 = vunpack.c.l.b16 %v795
        %v1408 = vunpack.c.h.b16 %v795
        %v1409 = vunpack.c.l.b16 %v796
        %v1410 = vunpack.c.h.b16 %v796
        %v1411 = vunpack.c.l.b16 %v797
        %v1412 = vunpack.c.h.b16 %v797
        %v1413 = vunpack.c.l.b16 %v798
        %v1414 = vunpack.c.h.b16 %v798
        %v1415 = vunpack.c.l.b16 %v799
        %v1416 = vunpack.c.h.b16 %v799
        %v1417 = vunpack.c.l.b16 %v800
        %v1418 = vunpack.c.h.b16 %v800
        %v1419 = vunpack.c.l.b16 %v801
        %v1420 = vunpack.c.h.b16 %v801
        %v1421 = vunpack.c.l.b16 %v802
        %v1422 = vunpack.c.h.b16 %v802
        %v1423 = vunpack.c.l.b16 %v803
        %v1424 = vunpack.c.h.b16 %v803
        %v1425 = vunpack.c.l.b16 %v804
        %v1426 = vunpack.c.h.b16 %v804
        %v1427 = vunpack.c.l.b16 %v805
        %v1428 = vunpack.c.h.b16 %v805
        %v1429 = vunpack.c.l.b16 %v806
        %v1430 = vunpack.c.h.b16 %v806
        %v1431 = vunpack.c.l.b16 %v807
        %v1432 = vunpack.c.h.b16 %v807
        %v1433 = vunpack.c.l.b16 %v808
        %v1434 = vunpack.c.h.b16 %v808
        %v1435 = vunpack.c.l.b16 %v809
        %v1436 = vunpack.c.h.b16 %v809
        %v1437 = vunpack.c.l.b16 %v810
        %v1438 = vunpack.c.h.b16 %v810
        %v1439 = vunpack.c.l.b16 %v811
        %v1440 = vunpack.c.h.b16 %v811
        %v1441 = vunpack.c.l.b16 %v812
        %v1442 = vunpack.c.h.b16 %v812
        %v1443 = vunpack.c.l.b16 %v813
        %v1444 = vunpack.c.h.b16 %v813
        %v1445 = vunpack.c.l.b16 %v814
        %v1446 = vunpack.c.h.b16 %v814
        %v1447 = vunpack.c.l.b16 %v815
        %v1448 = vunpack.c.h.b16 %v815
        %v1449 = vunpack.c.l.b16 %v816
        %v1450 = vunpack.c.h.b16 %v816
        %v1451 = vunpack.c.l.b16 %v817
        %v1452 = vunpack.c.h.b16 %v817
        %v1453 = vunpack.c.l.b16 %v818
        %v1454 = vunpack.c.h.b16 %v818
        %v1455 = vunpack.c.l.b16 %v819
        %v1456 = vunpack.c.h.b16 %v819
        %v1457 = vunpack.c.l.b16 %v820
        %v1458 = vunpack.c.h.b16 %v820
        %v1459 = vunpack.c.l.b16 %v821
        %v1460 = vunpack.c.h.b16 %v821
        %v1461 = vunpack.c.l.b16 %v822
        %v1462 = vunpack.c.h.b16 %v822
        %v1463 = vunpack.c.l.b16 %v823
        %v1464 = vunpack.c.h.b16 %v823
        %v1465 = vunpack.c.l.b16 %v824
        %v1466 = vunpack.c.h.b16 %v824
        %v1467 = vunpack.c.l.b16 %v825
        %v1468 = vunpack.c.h.b16 %v825
        %v1469 = vunpack.c.l.b16 %v826
        %v1470 = vunpack.c.h.b16 %v826
        %v1471 = vunpack.c.l.b16 %v827
        %v1472 = vunpack.c.h.b16 %v827
        %v1473 = vunpack.c.l.b16 %v828
        %v1474 = vunpack.c.h.b16 %v828
        %v1475 = vunpack.c.l.b16 %v829
        %v1476 = vunpack.c.h.b16 %v829
        %v1477 = vunpack.c.l.b16 %v830
        %v1478 = vunpack.c.h.b16 %v830
        %v1479 = vunpack.c.l.b16 %v831
        %v1480 = vunpack.c.h.b16 %v831
        %v1481 = vunpack.c.l.b16 %v832
        %v1482 = vunpack.c.h.b16 %v832
        %v1483 = vunpack.c.l.b16 %v833
        %v1484 = vunpack.c.h.b16 %v833
        %v1485 = vunpack.c.l.b16 %v834
        %v1486 = vunpack.c.h.b16 %v834
        %v1487 = vunpack.c.l.b16 %v835
        %v1488 = vunpack.c.h.b16 %v835
        %v1489 = vunpack.c.l.b16 %v836
        %v1490 = vunpack.c.h.b16 %v836
        %v1491 = vunpack.c.l.b16 %v837
        %v1492 = vunpack.c.h.b16 %v837
        %v1493 = vunpack.c.l.b16 %v838
        %v1494 = vunpack.c.h.b16 %v838
        %v1495 = vunpack.c.l.b16 %v839
        %v1496 = vunpack.c.h.b16 %v839
        %v1497 = vunpack.c.l.b16 %v840
        %v1498 = vunpack.c.h.b16 %v840
        %v1499 = vunpack.c.l.b16 %v841
        %v1500 = vunpack.c.h.b16 %v841
        %v1501 = vunpack.c.l.b16 %v842
        %v1502 = vunpack.c.h.b16 %v842
        %v1503 = vunpack.c.l.b16 %v843
        %v1504 = vunpack.c.h.b16 %v843
        %v1505 = vunpack.c.l.b16 %v844
        %v1506 = vunpack.c.h.b16 %v844
        %v1507 = vunpack.c.l.b16 %v845
        %v1508 = vunpack.c.h.b16 %v845
        %v1509 = vunpack.c.l.b16 %v846
        %v1510 = vunpack.c.h.b16 %v846
        %v1511 = vunpack.c.l.b16 %v847
        %v1512 = vunpack.c.h.b16 %v847
        %v1513 = vunpack.c.l.b16 %v848
        %v1514 = vunpack.c.h.b16 %v848
        %v1515 = vunpack.c.l.b16 %v849
        %v1516 = vunpack.c.h.b16 %v849
        %v1517 = vunpack.c.l.b16 %v850
        %v1518 = vunpack.c.h.b16 %v850
        %v1519 = vunpack.c.l.b16 %v851
        %v1520 = vunpack.c.h.b16 %v851
        %v1521 = vunpack.c.l.b16 %v852
        %v1522 = vunpack.c.h.b16 %v852
        %v1523 = vunpack.c.l.b16 %v853
        %v1524 = vunpack.c.h.b16 %v853
        %v1525 = vunpack.c.l.b16 %v854
        %v1526 = vunpack.c.h.b16 %v854
        %v1527 = vunpack.c.l.b16 %v855
        %v1528 = vunpack.c.h.b16 %v855
        %v1529 = vunpack.c.l.b16 %v856
        %v1530 = vunpack.c.h.b16 %v856
        %v1531 = vunpack.c.l.b16 %v857
        %v1532 = vunpack.c.h.b16 %v857
        %v1533 = vunpack.c.l.b16 %v858
        %v1534 = vunpack.c.h.b16 %v858
        %v1535 = vunpack.c.l.b16 %v859
        %v1536 = vunpack.c.h.b16 %v859
        %v1537 = vunpack.c.l.b16 %v860
        %v1538 = vunpack.c.h.b16 %v860
        %v1539 = vunpack.c.l.b16 %v861
        %v1540 = vunpack.c.h.b16 %v861
        %v1541 = vunpack.c.l.b16 %v862
        %v1542 = vunpack.c.h.b16 %v862
        %v1543 = vunpack.c.l.b16 %v863
        %v1544 = vunpack.c.h.b16 %v863
        %v1545 = vunpack.c.l.b16 %v864
        %v1546 = vunpack.c.h.b16 %v864
        %v1547 = vunpack.c.l.b16 %v865
        %v1548 = vunpack.c.h.b16 %v865
        %v1549 = vunpack.c.l.b16 %v866
        %v1550 = vunpack.c.h.b16 %v866
        %v1551 = vunpack.c.l.b16 %v867
        %v1552 = vunpack.c.h.b16 %v867
        %v1553 = vunpack.c.l.b16 %v868
        %v1554 = vunpack.c.h.b16 %v868
        %v1555 = vunpack.c.l.b16 %v869
        %v1556 = vunpack.c.h.b16 %v869
        %v1557 = vunpack.c.l.b16 %v870
        %v1558 = vunpack.c.h.b16 %v870
        %v1559 = vunpack.c.l.b16 %v871
        %v1560 = vunpack.c.h.b16 %v871
        %v1561 = vunpack.c.l.b16 %v872
        %v1562 = vunpack.c.h.b16 %v872
        %v1563 = vunpack.c.l.b16 %v873
        %v1564 = vunpack.c.h.b16 %v873
        %v1565 = vunpack.c.l.b16 %v874
        %v1566 = vunpack.c.h.b16 %v874
        %v1567 = vunpack.c.l.b16 %v875
        %v1568 = vunpack.c.h.b16 %v875
        %v1569 = vunpack.c.l.b16 %v876
        %v1570 = vunpack.c.h.b16 %v876
        %v1571 = vunpack.c.l.b16 %v877
        %v1572 = vunpack.c.h.b16 %v877
        %v1573 = vunpack.c.l.b16 %v878
        %v1574 = vunpack.c.h.b16 %v878
        %v1575 = vunpack.c.l.b16 %v879
        %v1576 = vunpack.c.h.b16 %v879
        %v1577 = vunpack.c.l.b16 %v880
        %v1578 = vunpack.c.h.b16 %v880
        %v1579 = vunpack.c.l.b16 %v881
        %v1580 = vunpack.c.h.b16 %v881
        %v1581 = vunpack.c.l.b16 %v882
        %v1582 = vunpack.c.h.b16 %v882
        %v1583 = vunpack.c.l.b16 %v883
        %v1584 = vunpack.c.h.b16 %v883
        %v1585 = vunpack.c.l.b16 %v884
        %v1586 = vunpack.c.h.b16 %v884
        %v1587 = vunpack.c.l.b16 %v885
        %v1588 = vunpack.c.h.b16 %v885
        %v1589 = vunpack.c.l.b16 %v886
        %v1590 = vunpack.c.h.b16 %v886
        %v1591 = vunpack.c.l.b16 %v887
        %v1592 = vunpack.c.h.b16 %v887
        %v1593 = vunpack.c.l.b16 %v888
        %v1594 = vunpack.c.h.b16 %v888
        %v1595 = vunpack.c.l.b16 %v889
        %v1596 = vunpack.c.h.b16 %v889
        %v1597 = vunpack.c.l.b16 %v890
        %v1598 = vunpack.c.h.b16 %v890
        %v1599 = vunpack.c.l.b16 %v891
        %v1600 = vunpack.c.h.b16 %v891
        %v1601 = vunpack.c.l.b16 %v892
        %v1602 = vunpack.c.h.b16 %v892
        %v1603 = vunpack.c.l.b16 %v893
        %v1604 = vunpack.c.h.b16 %v893
        %v1605 = vunpack.c.l.b16 %v894
        %v1606 = vunpack.c.h.b16 %v894
        %v1607 = vunpack.c.l.b16 %v895
        %v1608 = vunpack.c.h.b16 %v895
        %v1609 = vunpack.c.l.b16 %v896
        %v1610 = vunpack.c.h.b16 %v896
        %v1611 = vunpack.c.l.b16 %v897
        %v1612 = vunpack.c.h.b16 %v897
        %v1613 = vunpack.c.l.b16 %v898
        %v1614 = vunpack.c.h.b16 %v898
        %v1615 = vunpack.c.l.b16 %v899
        %v1616 = vunpack.c.h.b16 %v899
        %v1617 = vunpack.c.l.b16 %v900
        %v1618 = vunpack.c.h.b16 %v900
        %v1619 = vunpack.c.l.b16 %v901
        %v1620 = vunpack.c.h.b16 %v901
        %v1621 = vunpack.c.l.b16 %v902
        %v1622 = vunpack.c.h.b16 %v902
        %v1623 = vunpack.c.l.b16 %v903
        %v1624 = vunpack.c.h.b16 %v903
        %v1625 = vunpack.c.l.b16 %v904
        %v1626 = vunpack.c.h.b16 %v904
        %v1627 = vunpack.c.l.b16 %v905
        %v1628 = vunpack.c.h.b16 %v905
        %v1629 = vunpack.c.l.b16 %v906
        %v1630 = vunpack.c.h.b16 %v906
        %v1631 = vunpack.c.l.b16 %v907
        %v1632 = vunpack.c.h.b16 %v907
        %v1633 = vunpack.c.l.b16 %v908
        %v1634 = vunpack.c.h.b16 %v908
        %v1635 = vunpack.c.l.b16 %v909
        %v1636 = vunpack.c.h.b16 %v909
        %v1637 = vunpack.c.l.b16 %v910
        %v1638 = vunpack.c.h.b16 %v910
        %v1639 = vunpack.c.l.b16 %v911
        %v1640 = vunpack.c.h.b16 %v911
        %v1641 = vunpack.c.l.b16 %v912
        %v1642 = vunpack.c.h.b16 %v912
        %v1643 = vunpack.c.l.b16 %v913
        %v1644 = vunpack.c.h.b16 %v913
        %v1645 = vunpack.c.l.b16 %v914
        %v1646 = vunpack.c.h.b16 %v914
        %v1647 = vunpack.c.l.b16 %v915
        %v1648 = vunpack.c.h.b16 %v915
        %v1649 = vunpack.c.l.b16 %v916
        %v1650 = vunpack.c.h.b16 %v916
        %v1651 = vunpack.c.l.b16 %v917
        %v1652 = vunpack.c.h.b16 %v917
        %v1653 = vunpack.c.l.b16 %v918
        %v1654 = vunpack.c.h.b16 %v918
        %v1655 = vunpack.c.l.b16 %v919
        %v1656 = vunpack.c.h.b16 %v919
        %v1657 = vunpack.c.l.b16 %v920
        %v1658 = vunpack.c.h.b16 %v920
        %v1659 = vunpack.c.l.b16 %v921
        %v1660 = vunpack.c.h.b16 %v921
        %v1661 = vunpack.c.l.b16 %v922
        %v1662 = vunpack.c.h.b16 %v922
        %v1663 = vunpack.c.l.b16 %v923
        %v1664 = vunpack.c.h.b16 %v923
        %v1665 = vunpack.c.l.b16 %v924
        %v1666 = vunpack.c.h.b16 %v924
        %v1667 = vunpack.c.l.b16 %v925
        %v1668 = vunpack.c.h.b16 %v925
        %v1669 = vunpack.c.l.b16 %v926
        %v1670 = vunpack.c.h.b16 %v926
        %v1671 = vunpack.c.l.b16 %v927
        %v1672 = vunpack.c.h.b16 %v927
        %v1673 = vunpack.c.l.b16 %v928
        %v1674 = vunpack.c.h.b16 %v928
        %v1675 = vunpack.c.l.b16 %v929
        %v1676 = vunpack.c.h.b16 %v929
        %v1677 = vunpack.c.l.b16 %v930
        %v1678 = vunpack.c.h.b16 %v930
        %v1679 = vunpack.c.l.b16 %v931
        %v1680 = vunpack.c.h.b16 %v931
        %v1681 = vunpack.c.l.b16 %v932
        %v1682 = vunpack.c.h.b16 %v932
        %v1683 = vunpack.c.l.b16 %v933
        %v1684 = vunpack.c.h.b16 %v933
        %v1685 = vunpack.c.l.b16 %v934
        %v1686 = vunpack.c.h.b16 %v934
        %v1687 = vunpack.c.l.b16 %v935
        %v1688 = vunpack.c.h.b16 %v935
        %v1689 = vunpack.c.l.b16 %v936
        %v1690 = vunpack.c.h.b16 %v936
        %v1691 = vunpack.c.l.b16 %v937
        %v1692 = vunpack.c.h.b16 %v937
        %v1693 = vunpack.c.l.b16 %v938
        %v1694 = vunpack.c.h.b16 %v938
        %v1695 = vunpack.c.l.b16 %v939
        %v1696 = vunpack.c.h.b16 %v939
        %v1697 = vunpack.c.l.b16 %v940
        %v1698 = vunpack.c.h.b16 %v940
        %v1699 = vunpack.c.l.b16 %v941
        %v1700 = vunpack.c.h.b16 %v941
        %v1701 = vunpack.c.l.b16 %v942
        %v1702 = vunpack.c.h.b16 %v942
        %v1703 = vunpack.c.l.b16 %v943
        %v1704 = vunpack.c.h.b16 %v943
        %v1705 = vunpack.c.l.b16 %v944
        %v1706 = vunpack.c.h.b16 %v944
        %v1707 = vunpack.c.l.b16 %v945
        %v1708 = vunpack.c.h.b16 %v945
        %v1709 = vunpack.c.l.b16 %v946
        %v1710 = vunpack.c.h.b16 %v946
        %v1711 = vunpack.c.l.b16 %v947
        %v1712 = vunpack.c.h.b16 %v947
        %v1713 = vunpack.c.l.b16 %v948
        %v1714 = vunpack.c.h.b16 %v948
        %v1715 = vunpack.c.l.b16 %v949
        %v1716 = vunpack.c.h.b16 %v949
        %v1717 = vunpack.c.l.b16 %v950
        %v1718 = vunpack.c.h.b16 %v950
        %v1719 = vunpack.c.l.b16 %v951
        %v1720 = vunpack.c.h.b16 %v951
        %v1721 = vunpack.c.l.b16 %v952
        %v1722 = vunpack.c.h.b16 %v952
        %v1723 = vunpack.c.l.b16 %v953
        %v1724 = vunpack.c.h.b16 %v953
        %v1725 = vunpack.c.l.b16 %v954
        %v1726 = vunpack.c.h.b16 %v954
        %v1727 = vunpack.c.l.b16 %v955
        %v1728 = vunpack.c.h.b16 %v955
        %v1729 = vunpack.c.l.b16 %v956
        %v1730 = vunpack.c.h.b16 %v956
        %v1731 = vunpack.c.l.b16 %v957
        %v1732 = vunpack.c.h.b16 %v957
        %v1733 = vunpack.c.l.b16 %v958
        %v1734 = vunpack.c.h.b16 %v958
        %v1735 = vunpack.c.l.b16 %v959
        %v1736 = vunpack.c.h.b16 %v959
        %v1737 = vunpack.c.l.b16 %v960
        %v1738 = vunpack.c.h.b16 %v960
        %v1739 = vunpack.c.l.b16 %v961
        %v1740 = vunpack.c.h.b16 %v961
        %v1741 = vunpack.c.l.b16 %v962
        %v1742 = vunpack.c.h.b16 %v962
        %v1743 = vunpack.c.l.b16 %v963
        %v1744 = vunpack.c.h.b16 %v963
        %v1745 = vunpack.c.l.b16 %v964
        %v1746 = vunpack.c.h.b16 %v964
        %v1747 = vunpack.c.l.b16 %v965
        %v1748 = vunpack.c.h.b16 %v965
        %v1749 = vunpack.c.l.b16 %v966
        %v1750 = vunpack.c.h.b16 %v966
        %v1751 = vunpack.c.l.b16 %v967
        %v1752 = vunpack.c.h.b16 %v967
        %v1753 = vunpack.c.l.b16 %v968
        %v1754 = vunpack.c.h.b16 %v968
        %v1755 = vunpack.c.l.b16 %v969
        %v1756 = vunpack.c.h.b16 %v969
        %v1757 = vunpack.c.l.b16 %v970
        %v1758 = vunpack.c.h.b16 %v970
        %v1759 = vunpack.c.l.b16 %v971
        %v1760 = vunpack.c.h.b16 %v971
        %v1761 = vunpack.c.l.b16 %v972
        %v1762 = vunpack.c.h.b16 %v972
        %v1763 = vunpack.c.l.b16 %v973
        %v1764 = vunpack.c.h.b16 %v973
        %v1765 = vunpack.c.l.b16 %v974
        %v1766 = vunpack.c.h.b16 %v974
        %v1767 = vunpack.c.l.b16 %v975
        %v1768 = vunpack.c.h.b16 %v975
        %v1769 = vunpack.c.l.b16 %v976
        %v1770 = vunpack.c.h.b16 %v976
        %v1771 = vunpack.c.l.b16 %v977
        %v1772 = vunpack.c.h.b16 %v977
        %v1773 = vunpack.c.l.b16 %v978
        %v1774 = vunpack.c.h.b16 %v978
        %v1775 = vunpack.c.l.b16 %v979
        %v1776 = vunpack.c.h.b16 %v979
        %v1777 = vunpack.c.l.b16 %v980
        %v1778 = vunpack.c.h.b16 %v980
        %v1779 = vunpack.c.l.b16 %v981
        %v1780 = vunpack.c.h.b16 %v981
        %v1781 = vunpack.c.l.b16 %v982
        %v1782 = vunpack.c.h.b16 %v982
        %v1783 = vpack.c.b16 %v1279, %v1271
        %v1784 = vpack.c.b16 %v1280, %v1272
        %v1785 = vpack.c.b16 %v1281, %v1273
        %v1786 = vpack.c.b16 %v1282, %v1274
        %v1787 = vpack.c.b16 %v1283, %v1275
        %v1788 = vpack.c.b16 %v1284, %v1276
        %v1789 = vpack.c.b16 %v1285, %v1277
        %v1790 = vpack.c.b16 %v1286, %v1278
        %v1791 = vpack.c.b16 %v1295, %v1287
        %v1792 = vpack.c.b16 %v1296, %v1288
        %v1793 = vpack.c.b16 %v1297, %v1289
        %v1794 = vpack.c.b16 %v1298, %v1290
        %v1795 = vpack.c.b16 %v1299, %v1291
        %v1796 = vpack.c.b16 %v1300, %v1292
        %v1797 = vpack.c.b16 %v1301, %v1293
        %v1798 = vpack.c.b16 %v1302, %v1294
        %v1799 = vpack.c.b16 %v1311, %v1303
        %v1800 = vpack.c.b16 %v1312, %v1304
        %v1801 = vpack.c.b16 %v1313, %v1305
        %v1802 = vpack.c.b16 %v1314, %v1306
        %v1803 = vpack.c.b16 %v1315, %v1307
        %v1804 = vpack.c.b16 %v1316, %v1308
        %v1805 = vpack.c.b16 %v1317, %v1309
        %v1806 = vpack.c.b16 %v1318, %v1310
        %v1807 = vpack.c.b16 %v1327, %v1319
        %v1808 = vpack.c.b16 %v1328, %v1320
        %v1809 = vpack.c.b16 %v1329, %v1321
        %v1810 = vpack.c.b16 %v1330, %v1322
        %v1811 = vpack.c.b16 %v1331, %v1323
        %v1812 = vpack.c.b16 %v1332, %v1324
        %v1813 = vpack.c.b16 %v1333, %v1325
        %v1814 = vpack.c.b16 %v1334, %v1326
        %v1815 = vpack.c.b16 %v1343, %v1335
        %v1816 = vpack.c.b16 %v1344, %v1336
        %v1817 = vpack.c.b16 %v1345, %v1337
        %v1818 = vpack.c.b16 %v1346, %v1338
        %v1819 = vpack.c.b16 %v1347, %v1339
        %v1820 = vpack.c.b16 %v1348, %v1340
        %v1821 = vpack.c.b16 %v1349, %v1341
        %v1822 = vpack.c.b16 %v1350, %v1342
        %v1823 = vpack.c.b16 %v1359, %v1351
        %v1824 = vpack.c.b16 %v1360, %v1352
        %v1825 = vpack.c.b16 %v1361, %v1353
        %v1826 = vpack.c.b16 %v1362, %v1354
        %v1827 = vpack.c.b16 %v1363, %v1355
        %v1828 = vpack.c.b16 %v1364, %v1356
        %v1829 = vpack.c.b16 %v1365, %v1357
        %v1830 = vpack.c.b16 %v1366, %v1358
        %v1831 = vpack.c.b16 %v1375, %v1367
        %v1832 = vpack.c.b16 %v1376, %v1368
        %v1833 = vpack.c.b16 %v1377, %v1369
        %v1834 = vpack.c.b16 %v1378, %v1370
        %v1835 = vpack.c.b16 %v1379, %v1371
        %v1836 = vpack.c.b16 %v1380, %v1372
        %v1837 = vpack.c.b16 %v1381, %v1373
        %v1838 = vpack.c.b16 %v1382, %v1374
        %v1839 = vpack.c.b16 %v1391, %v1383
        %v1840 = vpack.c.b16 %v1392, %v1384
        %v1841 = vpack.c.b16 %v1393, %v1385
        %v1842 = vpack.c.b16 %v1394, %v1386
        %v1843 = vpack.c.b16 %v1395, %v1387
        %v1844 = vpack.c.b16 %v1396, %v1388
        %v1845 = vpack.c.b16 %v1397, %v1389
        %v1846 = vpack.c.b16 %v1398, %v1390
        %v1847 = vpack.c.b16 %v1407, %v1399
        %v1848 = vpack.c.b16 %v1408, %v1400
        %v1849 = vpack.c.b16 %v1409, %v1401
        %v1850 = vpack.c.b16 %v1410, %v1402
        %v1851 = vpack.c.b16 %v1411, %v1403
        %v1852 = vpack.c.b16 %v1412, %v1404
        %v1853 = vpack.c.b16 %v1413, %v1405
        %v1854 = vpack.c.b16 %v1414, %v1406
        %v1855 = vpack.c.b16 %v1423, %v1415
        %v1856 = vpack.c.b16 %v1424, %v1416
        %v1857 = vpack.c.b16 %v1425, %v1417
        %v1858 = vpack.c.b16 %v1426, %v1418
        %v1859 = vpack.c.b16 %v1427, %v1419
        %v1860 = vpack.c.b16 %v1428, %v1420
        %v1861 = vpack.c.b16 %v1429, %v1421
        %v1862 = vpack.c.b16 %v1430, %v1422
        %v1863 = vpack.c.b16 %v1439, %v1431
        %v1864 = vpack.c.b16 %v1440, %v1432
        %v1865 = vpack.c.b16 %v1441, %v1433
        %v1866 = vpack.c.b16 %v1442, %v1434
        %v1867 = vpack.c.b16 %v1443, %v1435
        %v1868 = vpack.c.b16 %v1444, %v1436
        %v1869 = vpack.c.b16 %v1445, %v1437
        %v1870 = vpack.c.b16 %v1446, %v1438
        %v1871 = vpack.c.b16 %v1455, %v1447
        %v1872 = vpack.c.b16 %v1456, %v1448
        %v1873 = vpack.c.b16 %v1457, %v1449
        %v1874 = vpack.c.b16 %v1458, %v1450
        %v1875 = vpack.c.b16 %v1459, %v1451
        %v1876 = vpack.c.b16 %v1460, %v1452
        %v1877 = vpack.c.b16 %v1461, %v1453
        %v1878 = vpack.c.b16 %v1462, %v1454
        %v1879 = vpack.c.b16 %v1471, %v1463
        %v1880 = vpack.c.b16 %v1472, %v1464
        %v1881 = vpack.c.b16 %v1473, %v1465
        %v1882 = vpack.c.b16 %v1474, %v1466
        %v1883 = vpack.c.b16 %v1475, %v1467
        %v1884 = vpack.c.b16 %v1476, %v1468
        %v1885 = vpack.c.b16 %v1477, %v1469
        %v1886 = vpack.c.b16 %v1478, %v1470
        %v1887 = vpack.c.b16 %v1487, %v1479
        %v1888 = vpack.c.b16 %v1488, %v1480
        %v1889 = vpack.c.b16 %v1489, %v1481
        %v1890 = vpack.c.b16 %v1490, %v1482
        %v1891 = vpack.c.b16 %v1491, %v1483
        %v1892 = vpack.c.b16 %v1492, %v1484
        %v1893 = vpack.c.b16 %v1493, %v1485
        %v1894 = vpack.c.b16 %v1494, %v1486
        %v1895 = vpack.c.b16 %v1503, %v1495
        %v1896 = vpack.c.b16 %v1504, %v1496
        %v1897 = vpack.c.b16 %v1505, %v1497
        %v1898 = vpack.c.b16 %v1506, %v1498
        %v1899 = vpack.c.b16 %v1507, %v1499
        %v1900 = vpack.c.b16 %v1508, %v1500
        %v1901 = vpack.c.b16 %v1509, %v1501
        %v1902 = vpack.c.b16 %v1510, %v1502
        %v1903 = vpack.c.b16 %v1519, %v1511
        %v1904 = vpack.c.b16 %v1520, %v1512
        %v1905 = vpack.c.b16 %v1521, %v1513
        %v1906 = vpack.c.b16 %v1522, %v1514
        %v1907 = vpack.c.b16 %v1523, %v1515
        %v1908 = vpack.c.b16 %v1524, %v1516
        %v1909 = vpack.c.b16 %v1525, %v1517
        %v1910 = vpack.c.b16 %v1526, %v1518
        %v1911 = vpack.c.b16 %v1535, %v1527
        %v1912 = vpack.c.b16 %v1536, %v1528
        %v1913 = vpack.c.b16 %v1537, %v1529
        %v1914 = vpack.c.b16 %v1538, %v1530
        %v1915 = vpack.c.b16 %v1539, %v1531
        %v1916 = vpack.c.b16 %v1540, %v1532
        %v1917 = vpack.c.b16 %v1541, %v1533
        %v1918 = vpack.c.b16 %v1542, %v1534
        %v1919 = vpack.c.b16 %v1551, %v1543
        %v1920 = vpack.c.b16 %v1552, %v1544
        %v1921 = vpack.c.b16 %v1553, %v1545
        %v1922 = vpack.c.b16 %v1554, %v1546
        %v1923 = vpack.c.b16 %v1555, %v1547
        %v1924 = vpack.c.b16 %v1556, %v1548
        %v1925 = vpack.c.b16 %v1557, %v1549
        %v1926 = vpack.c.b16 %v1558, %v1550
        %v1927 = vpack.c.b16 %v1567, %v1559
        %v1928 = vpack.c.b16 %v1568, %v1560
        %v1929 = vpack.c.b16 %v1569, %v1561
        %v1930 = vpack.c.b16 %v1570, %v1562
        %v1931 = vpack.c.b16 %v1571, %v1563
        %v1932 = vpack.c.b16 %v1572, %v1564
        %v1933 = vpack.c.b16 %v1573, %v1565
        %v1934 = vpack.c.b16 %v1574, %v1566
        %v1935 = vpack.c.b16 %v1583, %v1575
        %v1936 = vpack.c.b16 %v1584, %v1576
        %v1937 = vpack.c.b16 %v1585, %v1577
        %v1938 = vpack.c.b16 %v1586, %v1578
        %v1939 = vpack.c.b16 %v1587, %v1579
        %v1940 = vpack.c.b16 %v1588, %v1580
        %v1941 = vpack.c.b16 %v1589, %v1581
        %v1942 = vpack.c.b16 %v1590, %v1582
        %v1943 = vpack.c.b16 %v1599, %v1591
        %v1944 = vpack.c.b16 %v1600, %v1592
        %v1945 = vpack.c.b16 %v1601, %v1593
        %v1946 = vpack.c.b16 %v1602, %v1594
        %v1947 = vpack.c.b16 %v1603, %v1595
        %v1948 = vpack.c.b16 %v1604, %v1596
        %v1949 = vpack.c.b16 %v1605, %v1597
        %v1950 = vpack.c.b16 %v1606, %v1598
        %v1951 = vpack.c.b16 %v1615, %v1607
        %v1952 = vpack.c.b16 %v1616, %v1608
        %v1953 = vpack.c.b16 %v1617, %v1609
        %v1954 = vpack.c.b16 %v1618, %v1610
        %v1955 = vpack.c.b16 %v1619, %v1611
        %v1956 = vpack.c.b16 %v1620, %v1612
        %v1957 = vpack.c.b16 %v1621, %v1613
        %v1958 = vpack.c.b16 %v1622, %v1614
        %v1959 = vpack.c.b16 %v1631, %v1623
        %v1960 = vpack.c.b16 %v1632, %v1624
        %v1961 = vpack.c.b16 %v1633, %v1625
        %v1962 = vpack.c.b16 %v1634, %v1626
        %v1963 = vpack.c.b16 %v1635, %v1627
        %v1964 = vpack.c.b16 %v1636, %v1628
        %v1965 = vpack.c.b16 %v1637, %v1629
        %v1966 = vpack.c.b16 %v1638, %v1630
        %v1967 = vpack.c.b16 %v1647, %v1639
        %v1968 = vpack.c.b16 %v1648, %v1640
        %v1969 = vpack.c.b16 %v1649, %v1641
        %v1970 = vpack.c.b16 %v1650, %v1642
        %v1971 = vpack.c.b16 %v1651, %v1643
        %v1972 = vpack.c.b16 %v1652, %v1644
        %v1973 = vpack.c.b16 %v1653, %v1645
        %v1974 = vpack.c.b16 %v1654, %v1646
        %v1975 = vpack.c.b16 %v1663, %v1655
        %v1976 = vpack.c.b16 %v1664, %v1656
        %v1977 = vpack.c.b16 %v1665, %v1657
        %v1978 = vpack.c.b16 %v1666, %v1658
        %v1979 = vpack.c.b16 %v1667, %v1659
        %v1980 = vpack.c.b16 %v1668, %v1660
        %v1981 = vpack.c.b16 %v1669, %v1661
        %v1982 = vpack.c.b16 %v1670, %v1662
        %v1983 = vpack.c.b16 %v1679, %v1671
        %v1984 = vpack.c.b16 %v1680, %v1672
        %v1985 = vpack.c.b16 %v1681, %v1673
        %v1986 = vpack.c.b16 %v1682, %v1674
        %v1987 = vpack.c.b16 %v1683, %v1675
        %v1988 = vpack.c.b16 %v1684, %v1676
        %v1989 = vpack.c.b16 %v1685, %v1677
        %v1990 = vpack.c.b16 %v1686, %v1678
        %v1991 = vpack.c.b16 %v1695, %v1687
        %v1992 = vpack.c.b16 %v1696, %v1688
        %v1993 = vpack.c.b16 %v1697, %v1689
        %v1994 = vpack.c.b16 %v1698, %v1690
        %v1995 = vpack.c.b16 %v1699, %v1691
        %v1996 = vpack.c.b16 %v1700, %v1692
        %v1997 = vpack.c.b16 %v1701, %v1693
        %v1998 = vpack.c.b16 %v1702, %v1694
        %v1999 = vpack.c.b16 %v1711, %v1703
        %v2000 = vpack.c.b16 %v1712, %v1704
        %v2001 = vpack.c.b16 %v1713, %v1705
        %v2002 = vpack.c.b16 %v1714, %v1706
        %v2003 = vpack.c.b16 %v1715, %v1707
        %v2004 = vpack.c.b16 %v1716, %v1708
        %v2005 = vpack.c.b16 %v1717, %v1709
        %v2006 = vpack.c.b16 %v1718, %v1710
        %v2007 = vpack.c.b16 %v1727, %v1719
        %v2008 = vpack.c.b16 %v1728, %v1720
        %v2009 = vpack.c.b16 %v1729, %v1721
        %v2010 = vpack.c.b16 %v1730, %v1722
        %v2011 = vpack.c.b16 %v1731, %v1723
        %v2012 = vpack.c.b16 %v1732, %v1724
        %v2013 = vpack.c.b16 %v1733, %v1725
        %v2014 = vpack.c.b16 %v1734, %v1726
        %v2015 = vpack.c.b16 %v1743, %v1735
        %v2016 = vpack.c.b16 %v1744, %v1736
        %v2017 = vpack.c.b16 %v1745, %v1737
        %v2018 = vpack.c.b16 %v1746, %v1738
        %v2019 = vpack.c.b16 %v1747, %v1739
        %v2020 = vpack.c.b16 %v1748, %v1740
        %v2021 = vpack.c.b16 %v1749, %v1741
        %v2022 = vpack.c.b16 %v1750, %v1742
        %v2023 = vpack.c.b16 %v1759, %v1751
        %v2024 = vpack.c.b16 %v1760, %v1752
        %v2025 = vpack.c.b16 %v1761, %v1753
        %v2026 = vpack.c.b16 %v1762, %v1754
        %v2027 = vpack.c.b16 %v1763, %v1755
        %v2028 = vpack.c.b16 %v1764, %v1756
        %v2029 = vpack.c.b16 %v1765, %v1757
        %v2030 = vpack.c.b16 %v1766, %v1758
        %v2031 = vpack.c.b16 %v1775, %v1767
        %v2032 = vpack.c.b16 %v1776, %v1768
        %v2033 = vpack.c.b16 %v1777, %v1769
        %v2034 = vpack.c.b16 %v1778, %v1770
        %v2035 = vpack.c.b16 %v1779, %v1771
        %v2036 = vpack.c.b16 %v1780, %v1772
        %v2037 = vpack.c.b16 %v1781, %v1773
        %v2038 = vpack.c.b16 %v1782, %v1774
        %2295 = vmatpush.bf16.msra.mxu0 %v1839
        %2296 = vmatpush.bf16.msra.mxu0 %v1831
        %2297 = vmatpush.bf16.msra.mxu0 %v1823
        %2298 = vmatpush.bf16.msra.mxu0 %v1815
        %2299 = vmatpush.bf16.msra.mxu0 %v1807
        %2300 = vmatpush.bf16.msra.mxu0 %v1799
        %2301 = vmatpush.bf16.msra.mxu0 %v1791
        %2302 = vmatpush.bf16.msra.mxu0 %v1783
        %2303 = vmatmul.bf16.gmra.mxu0 %v1007
        %v2304 = vpop.f32.mrf.mxu0
        %v2305 = vadd.f32 %v985, %v2304
        %v2306 = vpop.f32.mrf.mxu0
        %2307 = vdwg.mxu0
        %2308 = vmatpush.bf16.msra.mxu0 %v1903
        %2309 = vmatpush.bf16.msra.mxu0 %v1895
        %2310 = vmatpush.bf16.msra.mxu0 %v1887
        %2311 = vmatpush.bf16.msra.mxu0 %v1879
        %2312 = vmatpush.bf16.msra.mxu0 %v1871
        %2313 = vmatpush.bf16.msra.mxu0 %v1863
        %2314 = vmatpush.bf16.msra.mxu0 %v1855
        %2315 = vmatpush.bf16.msra.mxu0 %v1847
        %2316 = vmatmul.bf16.gmra.mxu0 %v1008
        %v2317 = vpop.f32.mrf.mxu0
        %v2318 = vadd.f32 %v2305, %v2317
        %v2319 = vpop.f32.mrf.mxu0
        %2320 = vdwg.mxu0
        %2321 = vmatpush.bf16.msra.mxu0 %v1967
        %2322 = vmatpush.bf16.msra.mxu0 %v1959
        %2323 = vmatpush.bf16.msra.mxu0 %v1951
        %2324 = vmatpush.bf16.msra.mxu0 %v1943
        %2325 = vmatpush.bf16.msra.mxu0 %v1935
        %2326 = vmatpush.bf16.msra.mxu0 %v1927
        %2327 = vmatpush.bf16.msra.mxu0 %v1919
        %2328 = vmatpush.bf16.msra.mxu0 %v1911
        %2329 = vmatmul.bf16.gmra.mxu0 %v1009
        %v2330 = vpop.f32.mrf.mxu0
        %v2331 = vadd.f32 %v2318, %v2330
        %v2332 = vpop.f32.mrf.mxu0
        %2333 = vdwg.mxu0
        %2334 = vmatpush.bf16.msra.mxu0 %v2031
        %2335 = vmatpush.bf16.msra.mxu0 %v2023
        %2336 = vmatpush.bf16.msra.mxu0 %v2015
        %2337 = vmatpush.bf16.msra.mxu0 %v2007
        %2338 = vmatpush.bf16.msra.mxu0 %v1999
        %2339 = vmatpush.bf16.msra.mxu0 %v1991
        %2340 = vmatpush.bf16.msra.mxu0 %v1983
        %2341 = vmatpush.bf16.msra.mxu0 %v1975
        %2342 = vmatmul.bf16.gmra.mxu0 %v1010
        %v2343 = vpop.f32.mrf.mxu0
        %v2344 = vadd.f32 %v2331, %v2343
        %v2345 = vpop.f32.mrf.mxu0
        %2346 = vdwg.mxu0
        %2347 = vmatpush.bf16.msra.mxu0 %v1840
        %2348 = vmatpush.bf16.msra.mxu0 %v1832
        %2349 = vmatpush.bf16.msra.mxu0 %v1824
        %2350 = vmatpush.bf16.msra.mxu0 %v1816
        %2351 = vmatpush.bf16.msra.mxu0 %v1808
        %2352 = vmatpush.bf16.msra.mxu0 %v1800
        %2353 = vmatpush.bf16.msra.mxu0 %v1792
        %2354 = vmatpush.bf16.msra.mxu0 %v1784
        %2355 = vmatmul.bf16.gmra.mxu0 %v1007
        %v2356 = vpop.f32.mrf.mxu0
        %v2357 = vadd.f32 %v986, %v2356
        %v2358 = vpop.f32.mrf.mxu0
        %2359 = vdwg.mxu0
        %2360 = vmatpush.bf16.msra.mxu0 %v1904
        %2361 = vmatpush.bf16.msra.mxu0 %v1896
        %2362 = vmatpush.bf16.msra.mxu0 %v1888
        %2363 = vmatpush.bf16.msra.mxu0 %v1880
        %2364 = vmatpush.bf16.msra.mxu0 %v1872
        %2365 = vmatpush.bf16.msra.mxu0 %v1864
        %2366 = vmatpush.bf16.msra.mxu0 %v1856
        %2367 = vmatpush.bf16.msra.mxu0 %v1848
        %2368 = vmatmul.bf16.gmra.mxu0 %v1008
        %v2369 = vpop.f32.mrf.mxu0
        %v2370 = vadd.f32 %v2357, %v2369
        %v2371 = vpop.f32.mrf.mxu0
        %2372 = vdwg.mxu0
        %2373 = vmatpush.bf16.msra.mxu0 %v1968
        %2374 = vmatpush.bf16.msra.mxu0 %v1960
        %2375 = vmatpush.bf16.msra.mxu0 %v1952
        %2376 = vmatpush.bf16.msra.mxu0 %v1944
        %2377 = vmatpush.bf16.msra.mxu0 %v1936
        %2378 = vmatpush.bf16.msra.mxu0 %v1928
        %2379 = vmatpush.bf16.msra.mxu0 %v1920
        %2380 = vmatpush.bf16.msra.mxu0 %v1912
        %2381 = vmatmul.bf16.gmra.mxu0 %v1009
        %v2382 = vpop.f32.mrf.mxu0
        %v2383 = vadd.f32 %v2370, %v2382
        %v2384 = vpop.f32.mrf.mxu0
        %2385 = vdwg.mxu0
        %2386 = vmatpush.bf16.msra.mxu0 %v2032
        %2387 = vmatpush.bf16.msra.mxu0 %v2024
        %2388 = vmatpush.bf16.msra.mxu0 %v2016
        %2389 = vmatpush.bf16.msra.mxu0 %v2008
        %2390 = vmatpush.bf16.msra.mxu0 %v2000
        %2391 = vmatpush.bf16.msra.mxu0 %v1992
        %2392 = vmatpush.bf16.msra.mxu0 %v1984
        %2393 = vmatpush.bf16.msra.mxu0 %v1976
        %2394 = vmatmul.bf16.gmra.mxu0 %v1010
        %v2395 = vpop.f32.mrf.mxu0
        %v2396 = vadd.f32 %v2383, %v2395
        %v2397 = vpop.f32.mrf.mxu0
        %2398 = vdwg.mxu0
        %2399 = vmatpush.bf16.msra.mxu0 %v1841
        %2400 = vmatpush.bf16.msra.mxu0 %v1833
        %2401 = vmatpush.bf16.msra.mxu0 %v1825
        %2402 = vmatpush.bf16.msra.mxu0 %v1817
        %2403 = vmatpush.bf16.msra.mxu0 %v1809
        %2404 = vmatpush.bf16.msra.mxu0 %v1801
        %2405 = vmatpush.bf16.msra.mxu0 %v1793
        %2406 = vmatpush.bf16.msra.mxu0 %v1785
        %2407 = vmatmul.bf16.gmra.mxu0 %v1007
        %v2408 = vpop.f32.mrf.mxu0
        %v2409 = vadd.f32 %v987, %v2408
        %v2410 = vpop.f32.mrf.mxu0
        %2411 = vdwg.mxu0
        %2412 = vmatpush.bf16.msra.mxu0 %v1905
        %2413 = vmatpush.bf16.msra.mxu0 %v1897
        %2414 = vmatpush.bf16.msra.mxu0 %v1889
        %2415 = vmatpush.bf16.msra.mxu0 %v1881
        %2416 = vmatpush.bf16.msra.mxu0 %v1873
        %2417 = vmatpush.bf16.msra.mxu0 %v1865
        %2418 = vmatpush.bf16.msra.mxu0 %v1857
        %2419 = vmatpush.bf16.msra.mxu0 %v1849
        %2420 = vmatmul.bf16.gmra.mxu0 %v1008
        %v2421 = vpop.f32.mrf.mxu0
        %v2422 = vadd.f32 %v2409, %v2421
        %v2423 = vpop.f32.mrf.mxu0
        %2424 = vdwg.mxu0
        %2425 = vmatpush.bf16.msra.mxu0 %v1969
        %2426 = vmatpush.bf16.msra.mxu0 %v1961
        %2427 = vmatpush.bf16.msra.mxu0 %v1953
        %2428 = vmatpush.bf16.msra.mxu0 %v1945
        %2429 = vmatpush.bf16.msra.mxu0 %v1937
        %2430 = vmatpush.bf16.msra.mxu0 %v1929
        %2431 = vmatpush.bf16.msra.mxu0 %v1921
        %2432 = vmatpush.bf16.msra.mxu0 %v1913
        %2433 = vmatmul.bf16.gmra.mxu0 %v1009
        %v2434 = vpop.f32.mrf.mxu0
        %v2435 = vadd.f32 %v2422, %v2434
        %v2436 = vpop.f32.mrf.mxu0
        %2437 = vdwg.mxu0
        %2438 = vmatpush.bf16.msra.mxu0 %v2033
        %2439 = vmatpush.bf16.msra.mxu0 %v2025
        %2440 = vmatpush.bf16.msra.mxu0 %v2017
        %2441 = vmatpush.bf16.msra.mxu0 %v2009
        %2442 = vmatpush.bf16.msra.mxu0 %v2001
        %2443 = vmatpush.bf16.msra.mxu0 %v1993
        %2444 = vmatpush.bf16.msra.mxu0 %v1985
        %2445 = vmatpush.bf16.msra.mxu0 %v1977
        %2446 = vmatmul.bf16.gmra.mxu0 %v1010
        %v2447 = vpop.f32.mrf.mxu0
        %v2448 = vadd.f32 %v2435, %v2447
        %v2449 = vpop.f32.mrf.mxu0
        %2450 = vdwg.mxu0
        %2451 = vmatpush.bf16.msra.mxu0 %v1842
        %2452 = vmatpush.bf16.msra.mxu0 %v1834
        %2453 = vmatpush.bf16.msra.mxu0 %v1826
        %2454 = vmatpush.bf16.msra.mxu0 %v1818
        %2455 = vmatpush.bf16.msra.mxu0 %v1810
        %2456 = vmatpush.bf16.msra.mxu0 %v1802
        %2457 = vmatpush.bf16.msra.mxu0 %v1794
        %2458 = vmatpush.bf16.msra.mxu0 %v1786
        %2459 = vmatmul.bf16.gmra.mxu0 %v1007
        %v2460 = vpop.f32.mrf.mxu0
        %v2461 = vadd.f32 %v988, %v2460
        %v2462 = vpop.f32.mrf.mxu0
        %2463 = vdwg.mxu0
        %2464 = vmatpush.bf16.msra.mxu0 %v1906
        %2465 = vmatpush.bf16.msra.mxu0 %v1898
        %2466 = vmatpush.bf16.msra.mxu0 %v1890
        %2467 = vmatpush.bf16.msra.mxu0 %v1882
        %2468 = vmatpush.bf16.msra.mxu0 %v1874
        %2469 = vmatpush.bf16.msra.mxu0 %v1866
        %2470 = vmatpush.bf16.msra.mxu0 %v1858
        %2471 = vmatpush.bf16.msra.mxu0 %v1850
        %2472 = vmatmul.bf16.gmra.mxu0 %v1008
        %v2473 = vpop.f32.mrf.mxu0
        %v2474 = vadd.f32 %v2461, %v2473
        %v2475 = vpop.f32.mrf.mxu0
        %2476 = vdwg.mxu0
        %2477 = vmatpush.bf16.msra.mxu0 %v1970
        %2478 = vmatpush.bf16.msra.mxu0 %v1962
        %2479 = vmatpush.bf16.msra.mxu0 %v1954
        %2480 = vmatpush.bf16.msra.mxu0 %v1946
        %2481 = vmatpush.bf16.msra.mxu0 %v1938
        %2482 = vmatpush.bf16.msra.mxu0 %v1930
        %2483 = vmatpush.bf16.msra.mxu0 %v1922
        %2484 = vmatpush.bf16.msra.mxu0 %v1914
        %2485 = vmatmul.bf16.gmra.mxu0 %v1009
        %v2486 = vpop.f32.mrf.mxu0
        %v2487 = vadd.f32 %v2474, %v2486
        %v2488 = vpop.f32.mrf.mxu0
        %2489 = vdwg.mxu0
        %2490 = vmatpush.bf16.msra.mxu0 %v2034
        %2491 = vmatpush.bf16.msra.mxu0 %v2026
        %2492 = vmatpush.bf16.msra.mxu0 %v2018
        %2493 = vmatpush.bf16.msra.mxu0 %v2010
        %2494 = vmatpush.bf16.msra.mxu0 %v2002
        %2495 = vmatpush.bf16.msra.mxu0 %v1994
        %2496 = vmatpush.bf16.msra.mxu0 %v1986
        %2497 = vmatpush.bf16.msra.mxu0 %v1978
        %2498 = vmatmul.bf16.gmra.mxu0 %v1010
        %v2499 = vpop.f32.mrf.mxu0
        %v2500 = vadd.f32 %v2487, %v2499
        %v2501 = vpop.f32.mrf.mxu0
        %2502 = vdwg.mxu0
        %2503 = vmatpush.bf16.msra.mxu0 %v1843
        %2504 = vmatpush.bf16.msra.mxu0 %v1835
        %2505 = vmatpush.bf16.msra.mxu0 %v1827
        %2506 = vmatpush.bf16.msra.mxu0 %v1819
        %2507 = vmatpush.bf16.msra.mxu0 %v1811
        %2508 = vmatpush.bf16.msra.mxu0 %v1803
        %2509 = vmatpush.bf16.msra.mxu0 %v1795
        %2510 = vmatpush.bf16.msra.mxu0 %v1787
        %2511 = vmatmul.bf16.gmra.mxu0 %v1007
        %v2512 = vpop.f32.mrf.mxu0
        %v2513 = vadd.f32 %v989, %v2512
        %v2514 = vpop.f32.mrf.mxu0
        %2515 = vdwg.mxu0
        %2516 = vmatpush.bf16.msra.mxu0 %v1907
        %2517 = vmatpush.bf16.msra.mxu0 %v1899
        %2518 = vmatpush.bf16.msra.mxu0 %v1891
        %2519 = vmatpush.bf16.msra.mxu0 %v1883
        %2520 = vmatpush.bf16.msra.mxu0 %v1875
        %2521 = vmatpush.bf16.msra.mxu0 %v1867
        %2522 = vmatpush.bf16.msra.mxu0 %v1859
        %2523 = vmatpush.bf16.msra.mxu0 %v1851
        %2524 = vmatmul.bf16.gmra.mxu0 %v1008
        %v2525 = vpop.f32.mrf.mxu0
        %v2526 = vadd.f32 %v2513, %v2525
        %v2527 = vpop.f32.mrf.mxu0
        %2528 = vdwg.mxu0
        %2529 = vmatpush.bf16.msra.mxu0 %v1971
        %2530 = vmatpush.bf16.msra.mxu0 %v1963
        %2531 = vmatpush.bf16.msra.mxu0 %v1955
        %2532 = vmatpush.bf16.msra.mxu0 %v1947
        %2533 = vmatpush.bf16.msra.mxu0 %v1939
        %2534 = vmatpush.bf16.msra.mxu0 %v1931
        %2535 = vmatpush.bf16.msra.mxu0 %v1923
        %2536 = vmatpush.bf16.msra.mxu0 %v1915
        %2537 = vmatmul.bf16.gmra.mxu0 %v1009
        %v2538 = vpop.f32.mrf.mxu0
        %v2539 = vadd.f32 %v2526, %v2538
        %v2540 = vpop.f32.mrf.mxu0
        %2541 = vdwg.mxu0
        %2542 = vmatpush.bf16.msra.mxu0 %v2035
        %2543 = vmatpush.bf16.msra.mxu0 %v2027
        %2544 = vmatpush.bf16.msra.mxu0 %v2019
        %2545 = vmatpush.bf16.msra.mxu0 %v2011
        %2546 = vmatpush.bf16.msra.mxu0 %v2003
        %2547 = vmatpush.bf16.msra.mxu0 %v1995
        %2548 = vmatpush.bf16.msra.mxu0 %v1987
        %2549 = vmatpush.bf16.msra.mxu0 %v1979
        %2550 = vmatmul.bf16.gmra.mxu0 %v1010
        %v2551 = vpop.f32.mrf.mxu0
        %v2552 = vadd.f32 %v2539, %v2551
        %v2553 = vpop.f32.mrf.mxu0
        %2554 = vdwg.mxu0
        %2555 = vmatpush.bf16.msra.mxu0 %v1844
        %2556 = vmatpush.bf16.msra.mxu0 %v1836
        %2557 = vmatpush.bf16.msra.mxu0 %v1828
        %2558 = vmatpush.bf16.msra.mxu0 %v1820
        %2559 = vmatpush.bf16.msra.mxu0 %v1812
        %2560 = vmatpush.bf16.msra.mxu0 %v1804
        %2561 = vmatpush.bf16.msra.mxu0 %v1796
        %2562 = vmatpush.bf16.msra.mxu0 %v1788
        %2563 = vmatmul.bf16.gmra.mxu0 %v1007
        %v2564 = vpop.f32.mrf.mxu0
        %v2565 = vadd.f32 %v990, %v2564
        %v2566 = vpop.f32.mrf.mxu0
        %2567 = vdwg.mxu0
        %2568 = vmatpush.bf16.msra.mxu0 %v1908
        %2569 = vmatpush.bf16.msra.mxu0 %v1900
        %2570 = vmatpush.bf16.msra.mxu0 %v1892
        %2571 = vmatpush.bf16.msra.mxu0 %v1884
        %2572 = vmatpush.bf16.msra.mxu0 %v1876
        %2573 = vmatpush.bf16.msra.mxu0 %v1868
        %2574 = vmatpush.bf16.msra.mxu0 %v1860
        %2575 = vmatpush.bf16.msra.mxu0 %v1852
        %2576 = vmatmul.bf16.gmra.mxu0 %v1008
        %v2577 = vpop.f32.mrf.mxu0
        %v2578 = vadd.f32 %v2565, %v2577
        %v2579 = vpop.f32.mrf.mxu0
        %2580 = vdwg.mxu0
        %2581 = vmatpush.bf16.msra.mxu0 %v1972
        %2582 = vmatpush.bf16.msra.mxu0 %v1964
        %2583 = vmatpush.bf16.msra.mxu0 %v1956
        %2584 = vmatpush.bf16.msra.mxu0 %v1948
        %2585 = vmatpush.bf16.msra.mxu0 %v1940
        %2586 = vmatpush.bf16.msra.mxu0 %v1932
        %2587 = vmatpush.bf16.msra.mxu0 %v1924
        %2588 = vmatpush.bf16.msra.mxu0 %v1916
        %2589 = vmatmul.bf16.gmra.mxu0 %v1009
        %v2590 = vpop.f32.mrf.mxu0
        %v2591 = vadd.f32 %v2578, %v2590
        %v2592 = vpop.f32.mrf.mxu0
        %2593 = vdwg.mxu0
        %2594 = vmatpush.bf16.msra.mxu0 %v2036
        %2595 = vmatpush.bf16.msra.mxu0 %v2028
        %2596 = vmatpush.bf16.msra.mxu0 %v2020
        %2597 = vmatpush.bf16.msra.mxu0 %v2012
        %2598 = vmatpush.bf16.msra.mxu0 %v2004
        %2599 = vmatpush.bf16.msra.mxu0 %v1996
        %2600 = vmatpush.bf16.msra.mxu0 %v1988
        %2601 = vmatpush.bf16.msra.mxu0 %v1980
        %2602 = vmatmul.bf16.gmra.mxu0 %v1010
        %v2603 = vpop.f32.mrf.mxu0
        %v2604 = vadd.f32 %v2591, %v2603
        %v2605 = vpop.f32.mrf.mxu0
        %2606 = vdwg.mxu0
        %2607 = vmatpush.bf16.msra.mxu0 %v1845
        %2608 = vmatpush.bf16.msra.mxu0 %v1837
        %2609 = vmatpush.bf16.msra.mxu0 %v1829
        %2610 = vmatpush.bf16.msra.mxu0 %v1821
        %2611 = vmatpush.bf16.msra.mxu0 %v1813
        %2612 = vmatpush.bf16.msra.mxu0 %v1805
        %2613 = vmatpush.bf16.msra.mxu0 %v1797
        %2614 = vmatpush.bf16.msra.mxu0 %v1789
        %2615 = vmatmul.bf16.gmra.mxu0 %v1007
        %v2616 = vpop.f32.mrf.mxu0
        %v2617 = vadd.f32 %v991, %v2616
        %v2618 = vpop.f32.mrf.mxu0
        %2619 = vdwg.mxu0
        %2620 = vmatpush.bf16.msra.mxu0 %v1909
        %2621 = vmatpush.bf16.msra.mxu0 %v1901
        %2622 = vmatpush.bf16.msra.mxu0 %v1893
        %2623 = vmatpush.bf16.msra.mxu0 %v1885
        %2624 = vmatpush.bf16.msra.mxu0 %v1877
        %2625 = vmatpush.bf16.msra.mxu0 %v1869
        %2626 = vmatpush.bf16.msra.mxu0 %v1861
        %2627 = vmatpush.bf16.msra.mxu0 %v1853
        %2628 = vmatmul.bf16.gmra.mxu0 %v1008
        %v2629 = vpop.f32.mrf.mxu0
        %v2630 = vadd.f32 %v2617, %v2629
        %v2631 = vpop.f32.mrf.mxu0
        %2632 = vdwg.mxu0
        %2633 = vmatpush.bf16.msra.mxu0 %v1973
        %2634 = vmatpush.bf16.msra.mxu0 %v1965
        %2635 = vmatpush.bf16.msra.mxu0 %v1957
        %2636 = vmatpush.bf16.msra.mxu0 %v1949
        %2637 = vmatpush.bf16.msra.mxu0 %v1941
        %2638 = vmatpush.bf16.msra.mxu0 %v1933
        %2639 = vmatpush.bf16.msra.mxu0 %v1925
        %2640 = vmatpush.bf16.msra.mxu0 %v1917
        %2641 = vmatmul.bf16.gmra.mxu0 %v1009
        %v2642 = vpop.f32.mrf.mxu0
        %v2643 = vadd.f32 %v2630, %v2642
        %v2644 = vpop.f32.mrf.mxu0
        %2645 = vdwg.mxu0
        %2646 = vmatpush.bf16.msra.mxu0 %v2037
        %2647 = vmatpush.bf16.msra.mxu0 %v2029
        %2648 = vmatpush.bf16.msra.mxu0 %v2021
        %2649 = vmatpush.bf16.msra.mxu0 %v2013
        %2650 = vmatpush.bf16.msra.mxu0 %v2005
        %2651 = vmatpush.bf16.msra.mxu0 %v1997
        %2652 = vmatpush.bf16.msra.mxu0 %v1989
        %2653 = vmatpush.bf16.msra.mxu0 %v1981
        %2654 = vmatmul.bf16.gmra.mxu0 %v1010
        %v2655 = vpop.f32.mrf.mxu0
        %v2656 = vadd.f32 %v2643, %v2655
        %v2657 = vpop.f32.mrf.mxu0
        %2658 = vdwg.mxu0
        %2659 = vmatpush.bf16.msra.mxu0 %v1846
        %2660 = vmatpush.bf16.msra.mxu0 %v1838
        %2661 = vmatpush.bf16.msra.mxu0 %v1830
        %2662 = vmatpush.bf16.msra.mxu0 %v1822
        %2663 = vmatpush.bf16.msra.mxu0 %v1814
        %2664 = vmatpush.bf16.msra.mxu0 %v1806
        %2665 = vmatpush.bf16.msra.mxu0 %v1798
        %2666 = vmatpush.bf16.msra.mxu0 %v1790
        %2667 = vmatmul.bf16.gmra.mxu0 %v1007
        %v2668 = vpop.f32.mrf.mxu0
        %v2669 = vadd.f32 %v992, %v2668
        %v2670 = vpop.f32.mrf.mxu0
        %2671 = vdwg.mxu0
        %2672 = vmatpush.bf16.msra.mxu0 %v1910
        %2673 = vmatpush.bf16.msra.mxu0 %v1902
        %2674 = vmatpush.bf16.msra.mxu0 %v1894
        %2675 = vmatpush.bf16.msra.mxu0 %v1886
        %2676 = vmatpush.bf16.msra.mxu0 %v1878
        %2677 = vmatpush.bf16.msra.mxu0 %v1870
        %2678 = vmatpush.bf16.msra.mxu0 %v1862
        %2679 = vmatpush.bf16.msra.mxu0 %v1854
        %2680 = vmatmul.bf16.gmra.mxu0 %v1008
        %v2681 = vpop.f32.mrf.mxu0
        %v2682 = vadd.f32 %v2669, %v2681
        %v2683 = vpop.f32.mrf.mxu0
        %2684 = vdwg.mxu0
        %2685 = vmatpush.bf16.msra.mxu0 %v1974
        %2686 = vmatpush.bf16.msra.mxu0 %v1966
        %2687 = vmatpush.bf16.msra.mxu0 %v1958
        %2688 = vmatpush.bf16.msra.mxu0 %v1950
        %2689 = vmatpush.bf16.msra.mxu0 %v1942
        %2690 = vmatpush.bf16.msra.mxu0 %v1934
        %2691 = vmatpush.bf16.msra.mxu0 %v1926
        %2692 = vmatpush.bf16.msra.mxu0 %v1918
        %2693 = vmatmul.bf16.gmra.mxu0 %v1009
        %v2694 = vpop.f32.mrf.mxu0
        %v2695 = vadd.f32 %v2682, %v2694
        %v2696 = vpop.f32.mrf.mxu0
        %2697 = vdwg.mxu0
        %2698 = vmatpush.bf16.msra.mxu0 %v2038
        %2699 = vmatpush.bf16.msra.mxu0 %v2030
        %2700 = vmatpush.bf16.msra.mxu0 %v2022
        %2701 = vmatpush.bf16.msra.mxu0 %v2014
        %2702 = vmatpush.bf16.msra.mxu0 %v2006
        %2703 = vmatpush.bf16.msra.mxu0 %v1998
        %2704 = vmatpush.bf16.msra.mxu0 %v1990
        %2705 = vmatpush.bf16.msra.mxu0 %v1982
        %2706 = vmatmul.bf16.gmra.mxu0 %v1010
        %v2707 = vpop.f32.mrf.mxu0
        %v2708 = vadd.f32 %v2695, %v2707
        %v2709 = vpop.f32.mrf.mxu0
        %2710 = vdwg.mxu0
        %v2711 = vtanh.pop %v2344
        %v2712 = vtanh.pop %v2396
        %v2713 = vtanh.pop %v2448
        %v2714 = vtanh.pop %v2500
        %v2715 = vtanh.pop %v2552
        %v2716 = vtanh.pop %v2604
        %v2717 = vtanh.pop %v2656
        %v2718 = vtanh.pop %v2708
        %v2719 = vmul.f32 %v2711, %v717
        %v2720 = vmul.f32 %v2712, %v718
        %v2721 = vmul.f32 %v2713, %v719
        %v2722 = vmul.f32 %v2714, %v720
        %v2723 = vmul.f32 %v2715, %v721
        %v2724 = vmul.f32 %v2716, %v722
        %v2725 = vmul.f32 %v2717, %v723
        %v2726 = vmul.f32 %v2718, %v724
        %v2727 = vpack.c.bf16 %v2719, %v2719
        %v2728 = vpack.c.bf16 %v2720, %v2720
        %v2729 = vpack.c.bf16 %v2721, %v2721
        %v2730 = vpack.c.bf16 %v2722, %v2722
        %v2731 = vpack.c.bf16 %v2723, %v2723
        %v2732 = vpack.c.bf16 %v2724, %v2724
        %v2733 = vpack.c.bf16 %v2725, %v2725
        %v2734 = vpack.c.bf16 %v2726, %v2726
        %v2735 = vld [vmem:[%s365] sm:$0xff]
        %v2736 = vld [vmem:[%s365 + $0x8] sm:$0xff]
        %v2737 = vld [vmem:[%s365 + $0x10] sm:$0xff]
        %v2738 = vld [vmem:[%s365 + $0x18] sm:$0xff]
        %v2739 = vld [vmem:[%s365 + $0x20] sm:$0xff]
        %v2740 = vld [vmem:[%s365 + $0x28] sm:$0xff]
        %v2741 = vld [vmem:[%s365 + $0x30] sm:$0xff]
        %v2742 = vld [vmem:[%s365 + $0x38] sm:$0xff]
        %v2743 = vld [vmem:[%s365 + $0x40] sm:$0xff]
        %v2744 = vld [vmem:[%s365 + $0x48] sm:$0xff]
        %v2745 = vld [vmem:[%s365 + $0x50] sm:$0xff]
        %v2746 = vld [vmem:[%s365 + $0x58] sm:$0xff]
        %v2747 = vld [vmem:[%s365 + $0x60] sm:$0xff]
        %v2748 = vld [vmem:[%s365 + $0x68] sm:$0xff]
        %v2749 = vld [vmem:[%s365 + $0x70] sm:$0xff]
        %v2750 = vld [vmem:[%s365 + $0x78] sm:$0xff]
        %v2751 = vld [vmem:[%s365 + $0x80] sm:$0xff]
        %v2752 = vld [vmem:[%s365 + $0x88] sm:$0xff]
        %v2753 = vld [vmem:[%s365 + $0x90] sm:$0xff]
        %v2754 = vld [vmem:[%s365 + $0x98] sm:$0xff]
        %v2755 = vld [vmem:[%s365 + $0xa0] sm:$0xff]
        %v2756 = vld [vmem:[%s365 + $0xa8] sm:$0xff]
        %v2757 = vld [vmem:[%s365 + $0xb0] sm:$0xff]
        %v2758 = vld [vmem:[%s365 + $0xb8] sm:$0xff]
        %v2759 = vld [vmem:[%s365 + $0xc0] sm:$0xff]
        %v2760 = vld [vmem:[%s365 + $0xc8] sm:$0xff]
        %v2761 = vld [vmem:[%s365 + $0xd0] sm:$0xff]
        %v2762 = vld [vmem:[%s365 + $0xd8] sm:$0xff]
        %v2763 = vld [vmem:[%s365 + $0xe0] sm:$0xff]
        %v2764 = vld [vmem:[%s365 + $0xe8] sm:$0xff]
        %v2765 = vld [vmem:[%s365 + $0xf0] sm:$0xff]
        %v2766 = vld [vmem:[%s365 + $0xf8] sm:$0xff]
        %v2767 = vld [vmem:[%s365 + $0x100] sm:$0xff]
        %v2768 = vld [vmem:[%s365 + $0x108] sm:$0xff]
        %v2769 = vld [vmem:[%s365 + $0x110] sm:$0xff]
        %v2770 = vld [vmem:[%s365 + $0x118] sm:$0xff]
        %v2771 = vld [vmem:[%s365 + $0x120] sm:$0xff]
        %v2772 = vld [vmem:[%s365 + $0x128] sm:$0xff]
        %v2773 = vld [vmem:[%s365 + $0x130] sm:$0xff]
        %v2774 = vld [vmem:[%s365 + $0x138] sm:$0xff]
        %v2775 = vld [vmem:[%s365 + $0x140] sm:$0xff]
        %v2776 = vld [vmem:[%s365 + $0x148] sm:$0xff]
        %v2777 = vld [vmem:[%s365 + $0x150] sm:$0xff]
        %v2778 = vld [vmem:[%s365 + $0x158] sm:$0xff]
        %v2779 = vld [vmem:[%s365 + $0x160] sm:$0xff]
        %v2780 = vld [vmem:[%s365 + $0x168] sm:$0xff]
        %v2781 = vld [vmem:[%s365 + $0x170] sm:$0xff]
        %v2782 = vld [vmem:[%s365 + $0x178] sm:$0xff]
        %v2783 = vld [vmem:[%s365 + $0x180] sm:$0xff]
        %v2784 = vld [vmem:[%s365 + $0x188] sm:$0xff]
        %v2785 = vld [vmem:[%s365 + $0x190] sm:$0xff]
        %v2786 = vld [vmem:[%s365 + $0x198] sm:$0xff]
        %v2787 = vld [vmem:[%s365 + $0x1a0] sm:$0xff]
        %v2788 = vld [vmem:[%s365 + $0x1a8] sm:$0xff]
        %v2789 = vld [vmem:[%s365 + $0x1b0] sm:$0xff]
        %v2790 = vld [vmem:[%s365 + $0x1b8] sm:$0xff]
        %v2791 = vld [vmem:[%s365 + $0x1c0] sm:$0xff]
        %v2792 = vld [vmem:[%s365 + $0x1c8] sm:$0xff]
        %v2793 = vld [vmem:[%s365 + $0x1d0] sm:$0xff]
        %v2794 = vld [vmem:[%s365 + $0x1d8] sm:$0xff]
        %v2795 = vld [vmem:[%s365 + $0x1e0] sm:$0xff]
        %v2796 = vld [vmem:[%s365 + $0x1e8] sm:$0xff]
        %v2797 = vld [vmem:[%s365 + $0x1f0] sm:$0xff]
        %v2798 = vld [vmem:[%s365 + $0x1f8] sm:$0xff]
        %v2799 = vld [vmem:[%s365 + $0x200] sm:$0xff]
        %v2800 = vld [vmem:[%s365 + $0x208] sm:$0xff]
        %v2801 = vld [vmem:[%s365 + $0x210] sm:$0xff]
        %v2802 = vld [vmem:[%s365 + $0x218] sm:$0xff]
        %v2803 = vld [vmem:[%s365 + $0x220] sm:$0xff]
        %v2804 = vld [vmem:[%s365 + $0x228] sm:$0xff]
        %v2805 = vld [vmem:[%s365 + $0x230] sm:$0xff]
        %v2806 = vld [vmem:[%s365 + $0x238] sm:$0xff]
        %v2807 = vld [vmem:[%s365 + $0x240] sm:$0xff]
        %v2808 = vld [vmem:[%s365 + $0x248] sm:$0xff]
        %v2809 = vld [vmem:[%s365 + $0x250] sm:$0xff]
        %v2810 = vld [vmem:[%s365 + $0x258] sm:$0xff]
        %v2811 = vld [vmem:[%s365 + $0x260] sm:$0xff]
        %v2812 = vld [vmem:[%s365 + $0x268] sm:$0xff]
        %v2813 = vld [vmem:[%s365 + $0x270] sm:$0xff]
        %v2814 = vld [vmem:[%s365 + $0x278] sm:$0xff]
        %v2815 = vld [vmem:[%s365 + $0x280] sm:$0xff]
        %v2816 = vld [vmem:[%s365 + $0x288] sm:$0xff]
        %v2817 = vld [vmem:[%s365 + $0x290] sm:$0xff]
        %v2818 = vld [vmem:[%s365 + $0x298] sm:$0xff]
        %v2819 = vld [vmem:[%s365 + $0x2a0] sm:$0xff]
        %v2820 = vld [vmem:[%s365 + $0x2a8] sm:$0xff]
        %v2821 = vld [vmem:[%s365 + $0x2b0] sm:$0xff]
        %v2822 = vld [vmem:[%s365 + $0x2b8] sm:$0xff]
        %v2823 = vld [vmem:[%s365 + $0x2c0] sm:$0xff]
        %v2824 = vld [vmem:[%s365 + $0x2c8] sm:$0xff]
        %v2825 = vld [vmem:[%s365 + $0x2d0] sm:$0xff]
        %v2826 = vld [vmem:[%s365 + $0x2d8] sm:$0xff]
        %v2827 = vld [vmem:[%s365 + $0x2e0] sm:$0xff]
        %v2828 = vld [vmem:[%s365 + $0x2e8] sm:$0xff]
        %v2829 = vld [vmem:[%s365 + $0x2f0] sm:$0xff]
        %v2830 = vld [vmem:[%s365 + $0x2f8] sm:$0xff]
        %v2831 = vld [vmem:[%s365 + $0x300] sm:$0xff]
        %v2832 = vld [vmem:[%s365 + $0x308] sm:$0xff]
        %v2833 = vld [vmem:[%s365 + $0x310] sm:$0xff]
        %v2834 = vld [vmem:[%s365 + $0x318] sm:$0xff]
        %v2835 = vld [vmem:[%s365 + $0x320] sm:$0xff]
        %v2836 = vld [vmem:[%s365 + $0x328] sm:$0xff]
        %v2837 = vld [vmem:[%s365 + $0x330] sm:$0xff]
        %v2838 = vld [vmem:[%s365 + $0x338] sm:$0xff]
        %v2839 = vld [vmem:[%s365 + $0x340] sm:$0xff]
        %v2840 = vld [vmem:[%s365 + $0x348] sm:$0xff]
        %v2841 = vld [vmem:[%s365 + $0x350] sm:$0xff]
        %v2842 = vld [vmem:[%s365 + $0x358] sm:$0xff]
        %v2843 = vld [vmem:[%s365 + $0x360] sm:$0xff]
        %v2844 = vld [vmem:[%s365 + $0x368] sm:$0xff]
        %v2845 = vld [vmem:[%s365 + $0x370] sm:$0xff]
        %v2846 = vld [vmem:[%s365 + $0x378] sm:$0xff]
        %v2847 = vld [vmem:[%s365 + $0x380] sm:$0xff]
        %v2848 = vld [vmem:[%s365 + $0x388] sm:$0xff]
        %v2849 = vld [vmem:[%s365 + $0x390] sm:$0xff]
        %v2850 = vld [vmem:[%s365 + $0x398] sm:$0xff]
        %v2851 = vld [vmem:[%s365 + $0x3a0] sm:$0xff]
        %v2852 = vld [vmem:[%s365 + $0x3a8] sm:$0xff]
        %v2853 = vld [vmem:[%s365 + $0x3b0] sm:$0xff]
        %v2854 = vld [vmem:[%s365 + $0x3b8] sm:$0xff]
        %v2855 = vld [vmem:[%s365 + $0x3c0] sm:$0xff]
        %v2856 = vld [vmem:[%s365 + $0x3c8] sm:$0xff]
        %v2857 = vld [vmem:[%s365 + $0x3d0] sm:$0xff]
        %v2858 = vld [vmem:[%s365 + $0x3d8] sm:$0xff]
        %v2859 = vld [vmem:[%s365 + $0x3e0] sm:$0xff]
        %v2860 = vld [vmem:[%s365 + $0x3e8] sm:$0xff]
        %v2861 = vld [vmem:[%s365 + $0x3f0] sm:$0xff]
        %v2862 = vld [vmem:[%s365 + $0x3f8] sm:$0xff]
        %v2863 = vld [vmem:[%s365 + $0x400] sm:$0xff]
        %v2864 = vld [vmem:[%s365 + $0x408] sm:$0xff]
        %v2865 = vld [vmem:[%s365 + $0x410] sm:$0xff]
        %v2866 = vld [vmem:[%s365 + $0x418] sm:$0xff]
        %v2867 = vld [vmem:[%s365 + $0x420] sm:$0xff]
        %v2868 = vld [vmem:[%s365 + $0x428] sm:$0xff]
        %v2869 = vld [vmem:[%s365 + $0x430] sm:$0xff]
        %v2870 = vld [vmem:[%s365 + $0x438] sm:$0xff]
        %v2871 = vld [vmem:[%s365 + $0x440] sm:$0xff]
        %v2872 = vld [vmem:[%s365 + $0x448] sm:$0xff]
        %v2873 = vld [vmem:[%s365 + $0x450] sm:$0xff]
        %v2874 = vld [vmem:[%s365 + $0x458] sm:$0xff]
        %v2875 = vld [vmem:[%s365 + $0x460] sm:$0xff]
        %v2876 = vld [vmem:[%s365 + $0x468] sm:$0xff]
        %v2877 = vld [vmem:[%s365 + $0x470] sm:$0xff]
        %v2878 = vld [vmem:[%s365 + $0x478] sm:$0xff]
        %v2879 = vld [vmem:[%s365 + $0x480] sm:$0xff]
        %v2880 = vld [vmem:[%s365 + $0x488] sm:$0xff]
        %v2881 = vld [vmem:[%s365 + $0x490] sm:$0xff]
        %v2882 = vld [vmem:[%s365 + $0x498] sm:$0xff]
        %v2883 = vld [vmem:[%s365 + $0x4a0] sm:$0xff]
        %v2884 = vld [vmem:[%s365 + $0x4a8] sm:$0xff]
        %v2885 = vld [vmem:[%s365 + $0x4b0] sm:$0xff]
        %v2886 = vld [vmem:[%s365 + $0x4b8] sm:$0xff]
        %v2887 = vld [vmem:[%s365 + $0x4c0] sm:$0xff]
        %v2888 = vld [vmem:[%s365 + $0x4c8] sm:$0xff]
        %v2889 = vld [vmem:[%s365 + $0x4d0] sm:$0xff]
        %v2890 = vld [vmem:[%s365 + $0x4d8] sm:$0xff]
        %v2891 = vld [vmem:[%s365 + $0x4e0] sm:$0xff]
        %v2892 = vld [vmem:[%s365 + $0x4e8] sm:$0xff]
        %v2893 = vld [vmem:[%s365 + $0x4f0] sm:$0xff]
        %v2894 = vld [vmem:[%s365 + $0x4f8] sm:$0xff]
        %v2895 = vld [vmem:[%s365 + $0x500] sm:$0xff]
        %v2896 = vld [vmem:[%s365 + $0x508] sm:$0xff]
        %v2897 = vld [vmem:[%s365 + $0x510] sm:$0xff]
        %v2898 = vld [vmem:[%s365 + $0x518] sm:$0xff]
        %v2899 = vld [vmem:[%s365 + $0x520] sm:$0xff]
        %v2900 = vld [vmem:[%s365 + $0x528] sm:$0xff]
        %v2901 = vld [vmem:[%s365 + $0x530] sm:$0xff]
        %v2902 = vld [vmem:[%s365 + $0x538] sm:$0xff]
        %v2903 = vld [vmem:[%s365 + $0x540] sm:$0xff]
        %v2904 = vld [vmem:[%s365 + $0x548] sm:$0xff]
        %v2905 = vld [vmem:[%s365 + $0x550] sm:$0xff]
        %v2906 = vld [vmem:[%s365 + $0x558] sm:$0xff]
        %v2907 = vld [vmem:[%s365 + $0x560] sm:$0xff]
        %v2908 = vld [vmem:[%s365 + $0x568] sm:$0xff]
        %v2909 = vld [vmem:[%s365 + $0x570] sm:$0xff]
        %v2910 = vld [vmem:[%s365 + $0x578] sm:$0xff]
        %v2911 = vld [vmem:[%s365 + $0x580] sm:$0xff]
        %v2912 = vld [vmem:[%s365 + $0x588] sm:$0xff]
        %v2913 = vld [vmem:[%s365 + $0x590] sm:$0xff]
        %v2914 = vld [vmem:[%s365 + $0x598] sm:$0xff]
        %v2915 = vld [vmem:[%s365 + $0x5a0] sm:$0xff]
        %v2916 = vld [vmem:[%s365 + $0x5a8] sm:$0xff]
        %v2917 = vld [vmem:[%s365 + $0x5b0] sm:$0xff]
        %v2918 = vld [vmem:[%s365 + $0x5b8] sm:$0xff]
        %v2919 = vld [vmem:[%s365 + $0x5c0] sm:$0xff]
        %v2920 = vld [vmem:[%s365 + $0x5c8] sm:$0xff]
        %v2921 = vld [vmem:[%s365 + $0x5d0] sm:$0xff]
        %v2922 = vld [vmem:[%s365 + $0x5d8] sm:$0xff]
        %v2923 = vld [vmem:[%s365 + $0x5e0] sm:$0xff]
        %v2924 = vld [vmem:[%s365 + $0x5e8] sm:$0xff]
        %v2925 = vld [vmem:[%s365 + $0x5f0] sm:$0xff]
        %v2926 = vld [vmem:[%s365 + $0x5f8] sm:$0xff]
        %v2927 = vld [vmem:[%s365 + $0x600] sm:$0xff]
        %v2928 = vld [vmem:[%s365 + $0x608] sm:$0xff]
        %v2929 = vld [vmem:[%s365 + $0x610] sm:$0xff]
        %v2930 = vld [vmem:[%s365 + $0x618] sm:$0xff]
        %v2931 = vld [vmem:[%s365 + $0x620] sm:$0xff]
        %v2932 = vld [vmem:[%s365 + $0x628] sm:$0xff]
        %v2933 = vld [vmem:[%s365 + $0x630] sm:$0xff]
        %v2934 = vld [vmem:[%s365 + $0x638] sm:$0xff]
        %v2935 = vld [vmem:[%s365 + $0x640] sm:$0xff]
        %v2936 = vld [vmem:[%s365 + $0x648] sm:$0xff]
        %v2937 = vld [vmem:[%s365 + $0x650] sm:$0xff]
        %v2938 = vld [vmem:[%s365 + $0x658] sm:$0xff]
        %v2939 = vld [vmem:[%s365 + $0x660] sm:$0xff]
        %v2940 = vld [vmem:[%s365 + $0x668] sm:$0xff]
        %v2941 = vld [vmem:[%s365 + $0x670] sm:$0xff]
        %v2942 = vld [vmem:[%s365 + $0x678] sm:$0xff]
        %v2943 = vld [vmem:[%s365 + $0x680] sm:$0xff]
        %v2944 = vld [vmem:[%s365 + $0x688] sm:$0xff]
        %v2945 = vld [vmem:[%s365 + $0x690] sm:$0xff]
        %v2946 = vld [vmem:[%s365 + $0x698] sm:$0xff]
        %v2947 = vld [vmem:[%s365 + $0x6a0] sm:$0xff]
        %v2948 = vld [vmem:[%s365 + $0x6a8] sm:$0xff]
        %v2949 = vld [vmem:[%s365 + $0x6b0] sm:$0xff]
        %v2950 = vld [vmem:[%s365 + $0x6b8] sm:$0xff]
        %v2951 = vld [vmem:[%s365 + $0x6c0] sm:$0xff]
        %v2952 = vld [vmem:[%s365 + $0x6c8] sm:$0xff]
        %v2953 = vld [vmem:[%s365 + $0x6d0] sm:$0xff]
        %v2954 = vld [vmem:[%s365 + $0x6d8] sm:$0xff]
        %v2955 = vld [vmem:[%s365 + $0x6e0] sm:$0xff]
        %v2956 = vld [vmem:[%s365 + $0x6e8] sm:$0xff]
        %v2957 = vld [vmem:[%s365 + $0x6f0] sm:$0xff]
        %v2958 = vld [vmem:[%s365 + $0x6f8] sm:$0xff]
        %v2959 = vld [vmem:[%s365 + $0x700] sm:$0xff]
        %v2960 = vld [vmem:[%s365 + $0x708] sm:$0xff]
        %v2961 = vld [vmem:[%s365 + $0x710] sm:$0xff]
        %v2962 = vld [vmem:[%s365 + $0x718] sm:$0xff]
        %v2963 = vld [vmem:[%s365 + $0x720] sm:$0xff]
        %v2964 = vld [vmem:[%s365 + $0x728] sm:$0xff]
        %v2965 = vld [vmem:[%s365 + $0x730] sm:$0xff]
        %v2966 = vld [vmem:[%s365 + $0x738] sm:$0xff]
        %v2967 = vld [vmem:[%s365 + $0x740] sm:$0xff]
        %v2968 = vld [vmem:[%s365 + $0x748] sm:$0xff]
        %v2969 = vld [vmem:[%s365 + $0x750] sm:$0xff]
        %v2970 = vld [vmem:[%s365 + $0x758] sm:$0xff]
        %v2971 = vld [vmem:[%s365 + $0x760] sm:$0xff]
        %v2972 = vld [vmem:[%s365 + $0x768] sm:$0xff]
        %v2973 = vld [vmem:[%s365 + $0x770] sm:$0xff]
        %v2974 = vld [vmem:[%s365 + $0x778] sm:$0xff]
        %v2975 = vld [vmem:[%s365 + $0x780] sm:$0xff]
        %v2976 = vld [vmem:[%s365 + $0x788] sm:$0xff]
        %v2977 = vld [vmem:[%s365 + $0x790] sm:$0xff]
        %v2978 = vld [vmem:[%s365 + $0x798] sm:$0xff]
        %v2979 = vld [vmem:[%s365 + $0x7a0] sm:$0xff]
        %v2980 = vld [vmem:[%s365 + $0x7a8] sm:$0xff]
        %v2981 = vld [vmem:[%s365 + $0x7b0] sm:$0xff]
        %v2982 = vld [vmem:[%s365 + $0x7b8] sm:$0xff]
        %v2983 = vld [vmem:[%s365 + $0x7c0] sm:$0xff]
        %v2984 = vld [vmem:[%s365 + $0x7c8] sm:$0xff]
        %v2985 = vld [vmem:[%s365 + $0x7d0] sm:$0xff]
        %v2986 = vld [vmem:[%s365 + $0x7d8] sm:$0xff]
        %v2987 = vld [vmem:[%s365 + $0x7e0] sm:$0xff]
        %v2988 = vld [vmem:[%s365 + $0x7e8] sm:$0xff]
        %v2989 = vld [vmem:[%s365 + $0x7f0] sm:$0xff]
        %v2990 = vld [vmem:[%s365 + $0x7f8] sm:$0xff]
        %v2991 = vld [vmem:[%s365 + $0x800] sm:$0xff]
        %v2992 = vld [vmem:[%s365 + $0x808] sm:$0xff]
        %v2993 = vld [vmem:[%s365 + $0x810] sm:$0xff]
        %v2994 = vld [vmem:[%s365 + $0x818] sm:$0xff]
        %v2995 = vld [vmem:[%s365 + $0x820] sm:$0xff]
        %v2996 = vld [vmem:[%s365 + $0x828] sm:$0xff]
        %v2997 = vld [vmem:[%s365 + $0x830] sm:$0xff]
        %v2998 = vld [vmem:[%s365 + $0x838] sm:$0xff]
        %v2999 = vld [vmem:[%s365 + $0x840] sm:$0xff]
        %v3000 = vld [vmem:[%s365 + $0x848] sm:$0xff]
        %v3001 = vld [vmem:[%s365 + $0x850] sm:$0xff]
        %v3002 = vld [vmem:[%s365 + $0x858] sm:$0xff]
        %v3003 = vld [vmem:[%s365 + $0x860] sm:$0xff]
        %v3004 = vld [vmem:[%s365 + $0x868] sm:$0xff]
        %v3005 = vld [vmem:[%s365 + $0x870] sm:$0xff]
        %v3006 = vld [vmem:[%s365 + $0x878] sm:$0xff]
        %v3007 = vld [vmem:[%s365 + $0x880] sm:$0xff]
        %v3008 = vld [vmem:[%s365 + $0x888] sm:$0xff]
        %v3009 = vld [vmem:[%s365 + $0x890] sm:$0xff]
        %v3010 = vld [vmem:[%s365 + $0x898] sm:$0xff]
        %v3011 = vld [vmem:[%s365 + $0x8a0] sm:$0xff]
        %v3012 = vld [vmem:[%s365 + $0x8a8] sm:$0xff]
        %v3013 = vld [vmem:[%s365 + $0x8b0] sm:$0xff]
        %v3014 = vld [vmem:[%s365 + $0x8b8] sm:$0xff]
        %v3015 = vld [vmem:[%s365 + $0x8c0] sm:$0xff]
        %v3016 = vld [vmem:[%s365 + $0x8c8] sm:$0xff]
        %v3017 = vld [vmem:[%s365 + $0x8d0] sm:$0xff]
        %v3018 = vld [vmem:[%s365 + $0x8d8] sm:$0xff]
        %v3019 = vld [vmem:[%s365 + $0x8e0] sm:$0xff]
        %v3020 = vld [vmem:[%s365 + $0x8e8] sm:$0xff]
        %v3021 = vld [vmem:[%s365 + $0x8f0] sm:$0xff]
        %v3022 = vld [vmem:[%s365 + $0x8f8] sm:$0xff]
        %v3023 = vld [vmem:[%s365 + $0x900] sm:$0xff]
        %v3024 = vld [vmem:[%s365 + $0x908] sm:$0xff]
        %v3025 = vld [vmem:[%s365 + $0x910] sm:$0xff]
        %v3026 = vld [vmem:[%s365 + $0x918] sm:$0xff]
        %v3027 = vld [vmem:[%s365 + $0x920] sm:$0xff]
        %v3028 = vld [vmem:[%s365 + $0x928] sm:$0xff]
        %v3029 = vld [vmem:[%s365 + $0x930] sm:$0xff]
        %v3030 = vld [vmem:[%s365 + $0x938] sm:$0xff]
        %v3031 = vld [vmem:[%s365 + $0x940] sm:$0xff]
        %v3032 = vld [vmem:[%s365 + $0x948] sm:$0xff]
        %v3033 = vld [vmem:[%s365 + $0x950] sm:$0xff]
        %v3034 = vld [vmem:[%s365 + $0x958] sm:$0xff]
        %v3035 = vld [vmem:[%s365 + $0x960] sm:$0xff]
        %v3036 = vld [vmem:[%s365 + $0x968] sm:$0xff]
        %v3037 = vld [vmem:[%s365 + $0x970] sm:$0xff]
        %v3038 = vld [vmem:[%s365 + $0x978] sm:$0xff]
        %v3039 = vld [vmem:[%s365 + $0x980] sm:$0xff]
        %v3040 = vld [vmem:[%s365 + $0x988] sm:$0xff]
        %v3041 = vld [vmem:[%s365 + $0x990] sm:$0xff]
        %v3042 = vld [vmem:[%s365 + $0x998] sm:$0xff]
        %v3043 = vld [vmem:[%s365 + $0x9a0] sm:$0xff]
        %v3044 = vld [vmem:[%s365 + $0x9a8] sm:$0xff]
        %v3045 = vld [vmem:[%s365 + $0x9b0] sm:$0xff]
        %v3046 = vld [vmem:[%s365 + $0x9b8] sm:$0xff]
        %v3047 = vld [vmem:[%s365 + $0x9c0] sm:$0xff]
        %v3048 = vld [vmem:[%s365 + $0x9c8] sm:$0xff]
        %v3049 = vld [vmem:[%s365 + $0x9d0] sm:$0xff]
        %v3050 = vld [vmem:[%s365 + $0x9d8] sm:$0xff]
        %v3051 = vld [vmem:[%s365 + $0x9e0] sm:$0xff]
        %v3052 = vld [vmem:[%s365 + $0x9e8] sm:$0xff]
        %v3053 = vld [vmem:[%s365 + $0x9f0] sm:$0xff]
        %v3054 = vld [vmem:[%s365 + $0x9f8] sm:$0xff]
        %v3055 = vld [vmem:[%s365 + $0xa00] sm:$0xff]
        %v3056 = vld [vmem:[%s365 + $0xa08] sm:$0xff]
        %v3057 = vld [vmem:[%s365 + $0xa10] sm:$0xff]
        %v3058 = vld [vmem:[%s365 + $0xa18] sm:$0xff]
        %v3059 = vld [vmem:[%s365 + $0xa20] sm:$0xff]
        %v3060 = vld [vmem:[%s365 + $0xa28] sm:$0xff]
        %v3061 = vld [vmem:[%s365 + $0xa30] sm:$0xff]
        %v3062 = vld [vmem:[%s365 + $0xa38] sm:$0xff]
        %v3063 = vld [vmem:[%s365 + $0xa40] sm:$0xff]
        %v3064 = vld [vmem:[%s365 + $0xa48] sm:$0xff]
        %v3065 = vld [vmem:[%s365 + $0xa50] sm:$0xff]
        %v3066 = vld [vmem:[%s365 + $0xa58] sm:$0xff]
        %v3067 = vld [vmem:[%s365 + $0xa60] sm:$0xff]
        %v3068 = vld [vmem:[%s365 + $0xa68] sm:$0xff]
        %v3069 = vld [vmem:[%s365 + $0xa70] sm:$0xff]
        %v3070 = vld [vmem:[%s365 + $0xa78] sm:$0xff]
        %v3071 = vld [vmem:[%s365 + $0xa80] sm:$0xff]
        %v3072 = vld [vmem:[%s365 + $0xa88] sm:$0xff]
        %v3073 = vld [vmem:[%s365 + $0xa90] sm:$0xff]
        %v3074 = vld [vmem:[%s365 + $0xa98] sm:$0xff]
        %v3075 = vld [vmem:[%s365 + $0xaa0] sm:$0xff]
        %v3076 = vld [vmem:[%s365 + $0xaa8] sm:$0xff]
        %v3077 = vld [vmem:[%s365 + $0xab0] sm:$0xff]
        %v3078 = vld [vmem:[%s365 + $0xab8] sm:$0xff]
        %v3079 = vld [vmem:[%s365 + $0xac0] sm:$0xff]
        %v3080 = vld [vmem:[%s365 + $0xac8] sm:$0xff]
        %v3081 = vld [vmem:[%s365 + $0xad0] sm:$0xff]
        %v3082 = vld [vmem:[%s365 + $0xad8] sm:$0xff]
        %v3083 = vld [vmem:[%s365 + $0xae0] sm:$0xff]
        %v3084 = vld [vmem:[%s365 + $0xae8] sm:$0xff]
        %v3085 = vld [vmem:[%s365 + $0xaf0] sm:$0xff]
        %v3086 = vld [vmem:[%s365 + $0xaf8] sm:$0xff]
        %v3087 = vld [vmem:[%s365 + $0xb00] sm:$0xff]
        %v3088 = vld [vmem:[%s365 + $0xb08] sm:$0xff]
        %v3089 = vld [vmem:[%s365 + $0xb10] sm:$0xff]
        %v3090 = vld [vmem:[%s365 + $0xb18] sm:$0xff]
        %v3091 = vld [vmem:[%s365 + $0xb20] sm:$0xff]
        %v3092 = vld [vmem:[%s365 + $0xb28] sm:$0xff]
        %v3093 = vld [vmem:[%s365 + $0xb30] sm:$0xff]
        %v3094 = vld [vmem:[%s365 + $0xb38] sm:$0xff]
        %v3095 = vld [vmem:[%s365 + $0xb40] sm:$0xff]
        %v3096 = vld [vmem:[%s365 + $0xb48] sm:$0xff]
        %v3097 = vld [vmem:[%s365 + $0xb50] sm:$0xff]
        %v3098 = vld [vmem:[%s365 + $0xb58] sm:$0xff]
        %v3099 = vld [vmem:[%s365 + $0xb60] sm:$0xff]
        %v3100 = vld [vmem:[%s365 + $0xb68] sm:$0xff]
        %v3101 = vld [vmem:[%s365 + $0xb70] sm:$0xff]
        %v3102 = vld [vmem:[%s365 + $0xb78] sm:$0xff]
        %v3103 = vld [vmem:[%s365 + $0xb80] sm:$0xff]
        %v3104 = vld [vmem:[%s365 + $0xb88] sm:$0xff]
        %v3105 = vld [vmem:[%s365 + $0xb90] sm:$0xff]
        %v3106 = vld [vmem:[%s365 + $0xb98] sm:$0xff]
        %v3107 = vld [vmem:[%s365 + $0xba0] sm:$0xff]
        %v3108 = vld [vmem:[%s365 + $0xba8] sm:$0xff]
        %v3109 = vld [vmem:[%s365 + $0xbb0] sm:$0xff]
        %v3110 = vld [vmem:[%s365 + $0xbb8] sm:$0xff]
        %v3111 = vld [vmem:[%s365 + $0xbc0] sm:$0xff]
        %v3112 = vld [vmem:[%s365 + $0xbc8] sm:$0xff]
        %v3113 = vld [vmem:[%s365 + $0xbd0] sm:$0xff]
        %v3114 = vld [vmem:[%s365 + $0xbd8] sm:$0xff]
        %v3115 = vld [vmem:[%s365 + $0xbe0] sm:$0xff]
        %v3116 = vld [vmem:[%s365 + $0xbe8] sm:$0xff]
        %v3117 = vld [vmem:[%s365 + $0xbf0] sm:$0xff]
        %v3118 = vld [vmem:[%s365 + $0xbf8] sm:$0xff]
        %v3119 = vld [vmem:[%s375] sm:$0x3f]
        %v3121 = vperm.slane %v3119, 0
        %v3122 = vperm.slane %v3119, 1
        %v3123 = vperm.slane %v3119, 2
        %v3124 = vperm.slane %v3119, 3
        %v3125 = vperm.slane %v3119, 4
        %v3126 = vperm.slane %v3119, 5
        %v3517 = vunpack.c.l.b16 %v2735
        %v3518 = vunpack.c.h.b16 %v2735
        %v3519 = vunpack.c.l.b16 %v2736
        %v3520 = vunpack.c.h.b16 %v2736
        %v3521 = vunpack.c.l.b16 %v2737
        %v3522 = vunpack.c.h.b16 %v2737
        %v3523 = vunpack.c.l.b16 %v2738
        %v3524 = vunpack.c.h.b16 %v2738
        %v3525 = vunpack.c.l.b16 %v2739
        %v3526 = vunpack.c.h.b16 %v2739
        %v3527 = vunpack.c.l.b16 %v2740
        %v3528 = vunpack.c.h.b16 %v2740
        %v3529 = vunpack.c.l.b16 %v2741
        %v3530 = vunpack.c.h.b16 %v2741
        %v3531 = vunpack.c.l.b16 %v2742
        %v3532 = vunpack.c.h.b16 %v2742
        %v3533 = vunpack.c.l.b16 %v2743
        %v3534 = vunpack.c.h.b16 %v2743
        %v3535 = vunpack.c.l.b16 %v2744
        %v3536 = vunpack.c.h.b16 %v2744
        %v3537 = vunpack.c.l.b16 %v2745
        %v3538 = vunpack.c.h.b16 %v2745
        %v3539 = vunpack.c.l.b16 %v2746
        %v3540 = vunpack.c.h.b16 %v2746
        %v3541 = vunpack.c.l.b16 %v2747
        %v3542 = vunpack.c.h.b16 %v2747
        %v3543 = vunpack.c.l.b16 %v2748
        %v3544 = vunpack.c.h.b16 %v2748
        %v3545 = vunpack.c.l.b16 %v2749
        %v3546 = vunpack.c.h.b16 %v2749
        %v3547 = vunpack.c.l.b16 %v2750
        %v3548 = vunpack.c.h.b16 %v2750
        %v3549 = vunpack.c.l.b16 %v2751
        %v3550 = vunpack.c.h.b16 %v2751
        %v3551 = vunpack.c.l.b16 %v2752
        %v3552 = vunpack.c.h.b16 %v2752
        %v3553 = vunpack.c.l.b16 %v2753
        %v3554 = vunpack.c.h.b16 %v2753
        %v3555 = vunpack.c.l.b16 %v2754
        %v3556 = vunpack.c.h.b16 %v2754
        %v3557 = vunpack.c.l.b16 %v2755
        %v3558 = vunpack.c.h.b16 %v2755
        %v3559 = vunpack.c.l.b16 %v2756
        %v3560 = vunpack.c.h.b16 %v2756
        %v3561 = vunpack.c.l.b16 %v2757
        %v3562 = vunpack.c.h.b16 %v2757
        %v3563 = vunpack.c.l.b16 %v2758
        %v3564 = vunpack.c.h.b16 %v2758
        %v3565 = vunpack.c.l.b16 %v2759
        %v3566 = vunpack.c.h.b16 %v2759
        %v3567 = vunpack.c.l.b16 %v2760
        %v3568 = vunpack.c.h.b16 %v2760
        %v3569 = vunpack.c.l.b16 %v2761
        %v3570 = vunpack.c.h.b16 %v2761
        %v3571 = vunpack.c.l.b16 %v2762
        %v3572 = vunpack.c.h.b16 %v2762
        %v3573 = vunpack.c.l.b16 %v2763
        %v3574 = vunpack.c.h.b16 %v2763
        %v3575 = vunpack.c.l.b16 %v2764
        %v3576 = vunpack.c.h.b16 %v2764
        %v3577 = vunpack.c.l.b16 %v2765
        %v3578 = vunpack.c.h.b16 %v2765
        %v3579 = vunpack.c.l.b16 %v2766
        %v3580 = vunpack.c.h.b16 %v2766
        %v3581 = vunpack.c.l.b16 %v2767
        %v3582 = vunpack.c.h.b16 %v2767
        %v3583 = vunpack.c.l.b16 %v2768
        %v3584 = vunpack.c.h.b16 %v2768
        %v3585 = vunpack.c.l.b16 %v2769
        %v3586 = vunpack.c.h.b16 %v2769
        %v3587 = vunpack.c.l.b16 %v2770
        %v3588 = vunpack.c.h.b16 %v2770
        %v3589 = vunpack.c.l.b16 %v2771
        %v3590 = vunpack.c.h.b16 %v2771
        %v3591 = vunpack.c.l.b16 %v2772
        %v3592 = vunpack.c.h.b16 %v2772
        %v3593 = vunpack.c.l.b16 %v2773
        %v3594 = vunpack.c.h.b16 %v2773
        %v3595 = vunpack.c.l.b16 %v2774
        %v3596 = vunpack.c.h.b16 %v2774
        %v3597 = vunpack.c.l.b16 %v2775
        %v3598 = vunpack.c.h.b16 %v2775
        %v3599 = vunpack.c.l.b16 %v2776
        %v3600 = vunpack.c.h.b16 %v2776
        %v3601 = vunpack.c.l.b16 %v2777
        %v3602 = vunpack.c.h.b16 %v2777
        %v3603 = vunpack.c.l.b16 %v2778
        %v3604 = vunpack.c.h.b16 %v2778
        %v3605 = vunpack.c.l.b16 %v2779
        %v3606 = vunpack.c.h.b16 %v2779
        %v3607 = vunpack.c.l.b16 %v2780
        %v3608 = vunpack.c.h.b16 %v2780
        %v3609 = vunpack.c.l.b16 %v2781
        %v3610 = vunpack.c.h.b16 %v2781
        %v3611 = vunpack.c.l.b16 %v2782
        %v3612 = vunpack.c.h.b16 %v2782
        %v3613 = vunpack.c.l.b16 %v2783
        %v3614 = vunpack.c.h.b16 %v2783
        %v3615 = vunpack.c.l.b16 %v2784
        %v3616 = vunpack.c.h.b16 %v2784
        %v3617 = vunpack.c.l.b16 %v2785
        %v3618 = vunpack.c.h.b16 %v2785
        %v3619 = vunpack.c.l.b16 %v2786
        %v3620 = vunpack.c.h.b16 %v2786
        %v3621 = vunpack.c.l.b16 %v2787
        %v3622 = vunpack.c.h.b16 %v2787
        %v3623 = vunpack.c.l.b16 %v2788
        %v3624 = vunpack.c.h.b16 %v2788
        %v3625 = vunpack.c.l.b16 %v2789
        %v3626 = vunpack.c.h.b16 %v2789
        %v3627 = vunpack.c.l.b16 %v2790
        %v3628 = vunpack.c.h.b16 %v2790
        %v3629 = vunpack.c.l.b16 %v2791
        %v3630 = vunpack.c.h.b16 %v2791
        %v3631 = vunpack.c.l.b16 %v2792
        %v3632 = vunpack.c.h.b16 %v2792
        %v3633 = vunpack.c.l.b16 %v2793
        %v3634 = vunpack.c.h.b16 %v2793
        %v3635 = vunpack.c.l.b16 %v2794
        %v3636 = vunpack.c.h.b16 %v2794
        %v3637 = vunpack.c.l.b16 %v2795
        %v3638 = vunpack.c.h.b16 %v2795
        %v3639 = vunpack.c.l.b16 %v2796
        %v3640 = vunpack.c.h.b16 %v2796
        %v3641 = vunpack.c.l.b16 %v2797
        %v3642 = vunpack.c.h.b16 %v2797
        %v3643 = vunpack.c.l.b16 %v2798
        %v3644 = vunpack.c.h.b16 %v2798
        %v3645 = vunpack.c.l.b16 %v2799
        %v3646 = vunpack.c.h.b16 %v2799
        %v3647 = vunpack.c.l.b16 %v2800
        %v3648 = vunpack.c.h.b16 %v2800
        %v3649 = vunpack.c.l.b16 %v2801
        %v3650 = vunpack.c.h.b16 %v2801
        %v3651 = vunpack.c.l.b16 %v2802
        %v3652 = vunpack.c.h.b16 %v2802
        %v3653 = vunpack.c.l.b16 %v2803
        %v3654 = vunpack.c.h.b16 %v2803
        %v3655 = vunpack.c.l.b16 %v2804
        %v3656 = vunpack.c.h.b16 %v2804
        %v3657 = vunpack.c.l.b16 %v2805
        %v3658 = vunpack.c.h.b16 %v2805
        %v3659 = vunpack.c.l.b16 %v2806
        %v3660 = vunpack.c.h.b16 %v2806
        %v3661 = vunpack.c.l.b16 %v2807
        %v3662 = vunpack.c.h.b16 %v2807
        %v3663 = vunpack.c.l.b16 %v2808
        %v3664 = vunpack.c.h.b16 %v2808
        %v3665 = vunpack.c.l.b16 %v2809
        %v3666 = vunpack.c.h.b16 %v2809
        %v3667 = vunpack.c.l.b16 %v2810
        %v3668 = vunpack.c.h.b16 %v2810
        %v3669 = vunpack.c.l.b16 %v2811
        %v3670 = vunpack.c.h.b16 %v2811
        %v3671 = vunpack.c.l.b16 %v2812
        %v3672 = vunpack.c.h.b16 %v2812
        %v3673 = vunpack.c.l.b16 %v2813
        %v3674 = vunpack.c.h.b16 %v2813
        %v3675 = vunpack.c.l.b16 %v2814
        %v3676 = vunpack.c.h.b16 %v2814
        %v3677 = vunpack.c.l.b16 %v2815
        %v3678 = vunpack.c.h.b16 %v2815
        %v3679 = vunpack.c.l.b16 %v2816
        %v3680 = vunpack.c.h.b16 %v2816
        %v3681 = vunpack.c.l.b16 %v2817
        %v3682 = vunpack.c.h.b16 %v2817
        %v3683 = vunpack.c.l.b16 %v2818
        %v3684 = vunpack.c.h.b16 %v2818
        %v3685 = vunpack.c.l.b16 %v2819
        %v3686 = vunpack.c.h.b16 %v2819
        %v3687 = vunpack.c.l.b16 %v2820
        %v3688 = vunpack.c.h.b16 %v2820
        %v3689 = vunpack.c.l.b16 %v2821
        %v3690 = vunpack.c.h.b16 %v2821
        %v3691 = vunpack.c.l.b16 %v2822
        %v3692 = vunpack.c.h.b16 %v2822
        %v3693 = vunpack.c.l.b16 %v2823
        %v3694 = vunpack.c.h.b16 %v2823
        %v3695 = vunpack.c.l.b16 %v2824
        %v3696 = vunpack.c.h.b16 %v2824
        %v3697 = vunpack.c.l.b16 %v2825
        %v3698 = vunpack.c.h.b16 %v2825
        %v3699 = vunpack.c.l.b16 %v2826
        %v3700 = vunpack.c.h.b16 %v2826
        %v3701 = vunpack.c.l.b16 %v2827
        %v3702 = vunpack.c.h.b16 %v2827
        %v3703 = vunpack.c.l.b16 %v2828
        %v3704 = vunpack.c.h.b16 %v2828
        %v3705 = vunpack.c.l.b16 %v2829
        %v3706 = vunpack.c.h.b16 %v2829
        %v3707 = vunpack.c.l.b16 %v2830
        %v3708 = vunpack.c.h.b16 %v2830
        %v3709 = vunpack.c.l.b16 %v2831
        %v3710 = vunpack.c.h.b16 %v2831
        %v3711 = vunpack.c.l.b16 %v2832
        %v3712 = vunpack.c.h.b16 %v2832
        %v3713 = vunpack.c.l.b16 %v2833
        %v3714 = vunpack.c.h.b16 %v2833
        %v3715 = vunpack.c.l.b16 %v2834
        %v3716 = vunpack.c.h.b16 %v2834
        %v3717 = vunpack.c.l.b16 %v2835
        %v3718 = vunpack.c.h.b16 %v2835
        %v3719 = vunpack.c.l.b16 %v2836
        %v3720 = vunpack.c.h.b16 %v2836
        %v3721 = vunpack.c.l.b16 %v2837
        %v3722 = vunpack.c.h.b16 %v2837
        %v3723 = vunpack.c.l.b16 %v2838
        %v3724 = vunpack.c.h.b16 %v2838
        %v3725 = vunpack.c.l.b16 %v2839
        %v3726 = vunpack.c.h.b16 %v2839
        %v3727 = vunpack.c.l.b16 %v2840
        %v3728 = vunpack.c.h.b16 %v2840
        %v3729 = vunpack.c.l.b16 %v2841
        %v3730 = vunpack.c.h.b16 %v2841
        %v3731 = vunpack.c.l.b16 %v2842
        %v3732 = vunpack.c.h.b16 %v2842
        %v3733 = vunpack.c.l.b16 %v2843
        %v3734 = vunpack.c.h.b16 %v2843
        %v3735 = vunpack.c.l.b16 %v2844
        %v3736 = vunpack.c.h.b16 %v2844
        %v3737 = vunpack.c.l.b16 %v2845
        %v3738 = vunpack.c.h.b16 %v2845
        %v3739 = vunpack.c.l.b16 %v2846
        %v3740 = vunpack.c.h.b16 %v2846
        %v3741 = vunpack.c.l.b16 %v2847
        %v3742 = vunpack.c.h.b16 %v2847
        %v3743 = vunpack.c.l.b16 %v2848
        %v3744 = vunpack.c.h.b16 %v2848
        %v3745 = vunpack.c.l.b16 %v2849
        %v3746 = vunpack.c.h.b16 %v2849
        %v3747 = vunpack.c.l.b16 %v2850
        %v3748 = vunpack.c.h.b16 %v2850
        %v3749 = vunpack.c.l.b16 %v2851
        %v3750 = vunpack.c.h.b16 %v2851
        %v3751 = vunpack.c.l.b16 %v2852
        %v3752 = vunpack.c.h.b16 %v2852
        %v3753 = vunpack.c.l.b16 %v2853
        %v3754 = vunpack.c.h.b16 %v2853
        %v3755 = vunpack.c.l.b16 %v2854
        %v3756 = vunpack.c.h.b16 %v2854
        %v3757 = vunpack.c.l.b16 %v2855
        %v3758 = vunpack.c.h.b16 %v2855
        %v3759 = vunpack.c.l.b16 %v2856
        %v3760 = vunpack.c.h.b16 %v2856
        %v3761 = vunpack.c.l.b16 %v2857
        %v3762 = vunpack.c.h.b16 %v2857
        %v3763 = vunpack.c.l.b16 %v2858
        %v3764 = vunpack.c.h.b16 %v2858
        %v3765 = vunpack.c.l.b16 %v2859
        %v3766 = vunpack.c.h.b16 %v2859
        %v3767 = vunpack.c.l.b16 %v2860
        %v3768 = vunpack.c.h.b16 %v2860
        %v3769 = vunpack.c.l.b16 %v2861
        %v3770 = vunpack.c.h.b16 %v2861
        %v3771 = vunpack.c.l.b16 %v2862
        %v3772 = vunpack.c.h.b16 %v2862
        %v3773 = vunpack.c.l.b16 %v2863
        %v3774 = vunpack.c.h.b16 %v2863
        %v3775 = vunpack.c.l.b16 %v2864
        %v3776 = vunpack.c.h.b16 %v2864
        %v3777 = vunpack.c.l.b16 %v2865
        %v3778 = vunpack.c.h.b16 %v2865
        %v3779 = vunpack.c.l.b16 %v2866
        %v3780 = vunpack.c.h.b16 %v2866
        %v3781 = vunpack.c.l.b16 %v2867
        %v3782 = vunpack.c.h.b16 %v2867
        %v3783 = vunpack.c.l.b16 %v2868
        %v3784 = vunpack.c.h.b16 %v2868
        %v3785 = vunpack.c.l.b16 %v2869
        %v3786 = vunpack.c.h.b16 %v2869
        %v3787 = vunpack.c.l.b16 %v2870
        %v3788 = vunpack.c.h.b16 %v2870
        %v3789 = vunpack.c.l.b16 %v2871
        %v3790 = vunpack.c.h.b16 %v2871
        %v3791 = vunpack.c.l.b16 %v2872
        %v3792 = vunpack.c.h.b16 %v2872
        %v3793 = vunpack.c.l.b16 %v2873
        %v3794 = vunpack.c.h.b16 %v2873
        %v3795 = vunpack.c.l.b16 %v2874
        %v3796 = vunpack.c.h.b16 %v2874
        %v3797 = vunpack.c.l.b16 %v2875
        %v3798 = vunpack.c.h.b16 %v2875
        %v3799 = vunpack.c.l.b16 %v2876
        %v3800 = vunpack.c.h.b16 %v2876
        %v3801 = vunpack.c.l.b16 %v2877
        %v3802 = vunpack.c.h.b16 %v2877
        %v3803 = vunpack.c.l.b16 %v2878
        %v3804 = vunpack.c.h.b16 %v2878
        %v3805 = vunpack.c.l.b16 %v2879
        %v3806 = vunpack.c.h.b16 %v2879
        %v3807 = vunpack.c.l.b16 %v2880
        %v3808 = vunpack.c.h.b16 %v2880
        %v3809 = vunpack.c.l.b16 %v2881
        %v3810 = vunpack.c.h.b16 %v2881
        %v3811 = vunpack.c.l.b16 %v2882
        %v3812 = vunpack.c.h.b16 %v2882
        %v3813 = vunpack.c.l.b16 %v2883
        %v3814 = vunpack.c.h.b16 %v2883
        %v3815 = vunpack.c.l.b16 %v2884
        %v3816 = vunpack.c.h.b16 %v2884
        %v3817 = vunpack.c.l.b16 %v2885
        %v3818 = vunpack.c.h.b16 %v2885
        %v3819 = vunpack.c.l.b16 %v2886
        %v3820 = vunpack.c.h.b16 %v2886
        %v3821 = vunpack.c.l.b16 %v2887
        %v3822 = vunpack.c.h.b16 %v2887
        %v3823 = vunpack.c.l.b16 %v2888
        %v3824 = vunpack.c.h.b16 %v2888
        %v3825 = vunpack.c.l.b16 %v2889
        %v3826 = vunpack.c.h.b16 %v2889
        %v3827 = vunpack.c.l.b16 %v2890
        %v3828 = vunpack.c.h.b16 %v2890
        %v3829 = vunpack.c.l.b16 %v2891
        %v3830 = vunpack.c.h.b16 %v2891
        %v3831 = vunpack.c.l.b16 %v2892
        %v3832 = vunpack.c.h.b16 %v2892
        %v3833 = vunpack.c.l.b16 %v2893
        %v3834 = vunpack.c.h.b16 %v2893
        %v3835 = vunpack.c.l.b16 %v2894
        %v3836 = vunpack.c.h.b16 %v2894
        %v3837 = vunpack.c.l.b16 %v2895
        %v3838 = vunpack.c.h.b16 %v2895
        %v3839 = vunpack.c.l.b16 %v2896
        %v3840 = vunpack.c.h.b16 %v2896
        %v3841 = vunpack.c.l.b16 %v2897
        %v3842 = vunpack.c.h.b16 %v2897
        %v3843 = vunpack.c.l.b16 %v2898
        %v3844 = vunpack.c.h.b16 %v2898
        %v3845 = vunpack.c.l.b16 %v2899
        %v3846 = vunpack.c.h.b16 %v2899
        %v3847 = vunpack.c.l.b16 %v2900
        %v3848 = vunpack.c.h.b16 %v2900
        %v3849 = vunpack.c.l.b16 %v2901
        %v3850 = vunpack.c.h.b16 %v2901
        %v3851 = vunpack.c.l.b16 %v2902
        %v3852 = vunpack.c.h.b16 %v2902
        %v3853 = vunpack.c.l.b16 %v2903
        %v3854 = vunpack.c.h.b16 %v2903
        %v3855 = vunpack.c.l.b16 %v2904
        %v3856 = vunpack.c.h.b16 %v2904
        %v3857 = vunpack.c.l.b16 %v2905
        %v3858 = vunpack.c.h.b16 %v2905
        %v3859 = vunpack.c.l.b16 %v2906
        %v3860 = vunpack.c.h.b16 %v2906
        %v3861 = vunpack.c.l.b16 %v2907
        %v3862 = vunpack.c.h.b16 %v2907
        %v3863 = vunpack.c.l.b16 %v2908
        %v3864 = vunpack.c.h.b16 %v2908
        %v3865 = vunpack.c.l.b16 %v2909
        %v3866 = vunpack.c.h.b16 %v2909
        %v3867 = vunpack.c.l.b16 %v2910
        %v3868 = vunpack.c.h.b16 %v2910
        %v3869 = vunpack.c.l.b16 %v2911
        %v3870 = vunpack.c.h.b16 %v2911
        %v3871 = vunpack.c.l.b16 %v2912
        %v3872 = vunpack.c.h.b16 %v2912
        %v3873 = vunpack.c.l.b16 %v2913
        %v3874 = vunpack.c.h.b16 %v2913
        %v3875 = vunpack.c.l.b16 %v2914
        %v3876 = vunpack.c.h.b16 %v2914
        %v3877 = vunpack.c.l.b16 %v2915
        %v3878 = vunpack.c.h.b16 %v2915
        %v3879 = vunpack.c.l.b16 %v2916
        %v3880 = vunpack.c.h.b16 %v2916
        %v3881 = vunpack.c.l.b16 %v2917
        %v3882 = vunpack.c.h.b16 %v2917
        %v3883 = vunpack.c.l.b16 %v2918
        %v3884 = vunpack.c.h.b16 %v2918
        %v3885 = vunpack.c.l.b16 %v2919
        %v3886 = vunpack.c.h.b16 %v2919
        %v3887 = vunpack.c.l.b16 %v2920
        %v3888 = vunpack.c.h.b16 %v2920
        %v3889 = vunpack.c.l.b16 %v2921
        %v3890 = vunpack.c.h.b16 %v2921
        %v3891 = vunpack.c.l.b16 %v2922
        %v3892 = vunpack.c.h.b16 %v2922
        %v3893 = vunpack.c.l.b16 %v2923
        %v3894 = vunpack.c.h.b16 %v2923
        %v3895 = vunpack.c.l.b16 %v2924
        %v3896 = vunpack.c.h.b16 %v2924
        %v3897 = vunpack.c.l.b16 %v2925
        %v3898 = vunpack.c.h.b16 %v2925
        %v3899 = vunpack.c.l.b16 %v2926
        %v3900 = vunpack.c.h.b16 %v2926
        %v3901 = vunpack.c.l.b16 %v2927
        %v3902 = vunpack.c.h.b16 %v2927
        %v3903 = vunpack.c.l.b16 %v2928
        %v3904 = vunpack.c.h.b16 %v2928
        %v3905 = vunpack.c.l.b16 %v2929
        %v3906 = vunpack.c.h.b16 %v2929
        %v3907 = vunpack.c.l.b16 %v2930
        %v3908 = vunpack.c.h.b16 %v2930
        %v3909 = vunpack.c.l.b16 %v2931
        %v3910 = vunpack.c.h.b16 %v2931
        %v3911 = vunpack.c.l.b16 %v2932
        %v3912 = vunpack.c.h.b16 %v2932
        %v3913 = vunpack.c.l.b16 %v2933
        %v3914 = vunpack.c.h.b16 %v2933
        %v3915 = vunpack.c.l.b16 %v2934
        %v3916 = vunpack.c.h.b16 %v2934
        %v3917 = vunpack.c.l.b16 %v2935
        %v3918 = vunpack.c.h.b16 %v2935
        %v3919 = vunpack.c.l.b16 %v2936
        %v3920 = vunpack.c.h.b16 %v2936
        %v3921 = vunpack.c.l.b16 %v2937
        %v3922 = vunpack.c.h.b16 %v2937
        %v3923 = vunpack.c.l.b16 %v2938
        %v3924 = vunpack.c.h.b16 %v2938
        %v3925 = vunpack.c.l.b16 %v2939
        %v3926 = vunpack.c.h.b16 %v2939
        %v3927 = vunpack.c.l.b16 %v2940
        %v3928 = vunpack.c.h.b16 %v2940
        %v3929 = vunpack.c.l.b16 %v2941
        %v3930 = vunpack.c.h.b16 %v2941
        %v3931 = vunpack.c.l.b16 %v2942
        %v3932 = vunpack.c.h.b16 %v2942
        %v3933 = vunpack.c.l.b16 %v2943
        %v3934 = vunpack.c.h.b16 %v2943
        %v3935 = vunpack.c.l.b16 %v2944
        %v3936 = vunpack.c.h.b16 %v2944
        %v3937 = vunpack.c.l.b16 %v2945
        %v3938 = vunpack.c.h.b16 %v2945
        %v3939 = vunpack.c.l.b16 %v2946
        %v3940 = vunpack.c.h.b16 %v2946
        %v3941 = vunpack.c.l.b16 %v2947
        %v3942 = vunpack.c.h.b16 %v2947
        %v3943 = vunpack.c.l.b16 %v2948
        %v3944 = vunpack.c.h.b16 %v2948
        %v3945 = vunpack.c.l.b16 %v2949
        %v3946 = vunpack.c.h.b16 %v2949
        %v3947 = vunpack.c.l.b16 %v2950
        %v3948 = vunpack.c.h.b16 %v2950
        %v3949 = vunpack.c.l.b16 %v2951
        %v3950 = vunpack.c.h.b16 %v2951
        %v3951 = vunpack.c.l.b16 %v2952
        %v3952 = vunpack.c.h.b16 %v2952
        %v3953 = vunpack.c.l.b16 %v2953
        %v3954 = vunpack.c.h.b16 %v2953
        %v3955 = vunpack.c.l.b16 %v2954
        %v3956 = vunpack.c.h.b16 %v2954
        %v3957 = vunpack.c.l.b16 %v2955
        %v3958 = vunpack.c.h.b16 %v2955
        %v3959 = vunpack.c.l.b16 %v2956
        %v3960 = vunpack.c.h.b16 %v2956
        %v3961 = vunpack.c.l.b16 %v2957
        %v3962 = vunpack.c.h.b16 %v2957
        %v3963 = vunpack.c.l.b16 %v2958
        %v3964 = vunpack.c.h.b16 %v2958
        %v3965 = vunpack.c.l.b16 %v2959
        %v3966 = vunpack.c.h.b16 %v2959
        %v3967 = vunpack.c.l.b16 %v2960
        %v3968 = vunpack.c.h.b16 %v2960
        %v3969 = vunpack.c.l.b16 %v2961
        %v3970 = vunpack.c.h.b16 %v2961
        %v3971 = vunpack.c.l.b16 %v2962
        %v3972 = vunpack.c.h.b16 %v2962
        %v3973 = vunpack.c.l.b16 %v2963
        %v3974 = vunpack.c.h.b16 %v2963
        %v3975 = vunpack.c.l.b16 %v2964
        %v3976 = vunpack.c.h.b16 %v2964
        %v3977 = vunpack.c.l.b16 %v2965
        %v3978 = vunpack.c.h.b16 %v2965
        %v3979 = vunpack.c.l.b16 %v2966
        %v3980 = vunpack.c.h.b16 %v2966
        %v3981 = vunpack.c.l.b16 %v2967
        %v3982 = vunpack.c.h.b16 %v2967
        %v3983 = vunpack.c.l.b16 %v2968
        %v3984 = vunpack.c.h.b16 %v2968
        %v3985 = vunpack.c.l.b16 %v2969
        %v3986 = vunpack.c.h.b16 %v2969
        %v3987 = vunpack.c.l.b16 %v2970
        %v3988 = vunpack.c.h.b16 %v2970
        %v3989 = vunpack.c.l.b16 %v2971
        %v3990 = vunpack.c.h.b16 %v2971
        %v3991 = vunpack.c.l.b16 %v2972
        %v3992 = vunpack.c.h.b16 %v2972
        %v3993 = vunpack.c.l.b16 %v2973
        %v3994 = vunpack.c.h.b16 %v2973
        %v3995 = vunpack.c.l.b16 %v2974
        %v3996 = vunpack.c.h.b16 %v2974
        %v3997 = vunpack.c.l.b16 %v2975
        %v3998 = vunpack.c.h.b16 %v2975
        %v3999 = vunpack.c.l.b16 %v2976
        %v4000 = vunpack.c.h.b16 %v2976
        %v4001 = vunpack.c.l.b16 %v2977
        %v4002 = vunpack.c.h.b16 %v2977
        %v4003 = vunpack.c.l.b16 %v2978
        %v4004 = vunpack.c.h.b16 %v2978
        %v4005 = vunpack.c.l.b16 %v2979
        %v4006 = vunpack.c.h.b16 %v2979
        %v4007 = vunpack.c.l.b16 %v2980
        %v4008 = vunpack.c.h.b16 %v2980
        %v4009 = vunpack.c.l.b16 %v2981
        %v4010 = vunpack.c.h.b16 %v2981
        %v4011 = vunpack.c.l.b16 %v2982
        %v4012 = vunpack.c.h.b16 %v2982
        %v4013 = vunpack.c.l.b16 %v2983
        %v4014 = vunpack.c.h.b16 %v2983
        %v4015 = vunpack.c.l.b16 %v2984
        %v4016 = vunpack.c.h.b16 %v2984
        %v4017 = vunpack.c.l.b16 %v2985
        %v4018 = vunpack.c.h.b16 %v2985
        %v4019 = vunpack.c.l.b16 %v2986
        %v4020 = vunpack.c.h.b16 %v2986
        %v4021 = vunpack.c.l.b16 %v2987
        %v4022 = vunpack.c.h.b16 %v2987
        %v4023 = vunpack.c.l.b16 %v2988
        %v4024 = vunpack.c.h.b16 %v2988
        %v4025 = vunpack.c.l.b16 %v2989
        %v4026 = vunpack.c.h.b16 %v2989
        %v4027 = vunpack.c.l.b16 %v2990
        %v4028 = vunpack.c.h.b16 %v2990
        %v4029 = vunpack.c.l.b16 %v2991
        %v4030 = vunpack.c.h.b16 %v2991
        %v4031 = vunpack.c.l.b16 %v2992
        %v4032 = vunpack.c.h.b16 %v2992
        %v4033 = vunpack.c.l.b16 %v2993
        %v4034 = vunpack.c.h.b16 %v2993
        %v4035 = vunpack.c.l.b16 %v2994
        %v4036 = vunpack.c.h.b16 %v2994
        %v4037 = vunpack.c.l.b16 %v2995
        %v4038 = vunpack.c.h.b16 %v2995
        %v4039 = vunpack.c.l.b16 %v2996
        %v4040 = vunpack.c.h.b16 %v2996
        %v4041 = vunpack.c.l.b16 %v2997
        %v4042 = vunpack.c.h.b16 %v2997
        %v4043 = vunpack.c.l.b16 %v2998
        %v4044 = vunpack.c.h.b16 %v2998
        %v4045 = vunpack.c.l.b16 %v2999
        %v4046 = vunpack.c.h.b16 %v2999
        %v4047 = vunpack.c.l.b16 %v3000
        %v4048 = vunpack.c.h.b16 %v3000
        %v4049 = vunpack.c.l.b16 %v3001
        %v4050 = vunpack.c.h.b16 %v3001
        %v4051 = vunpack.c.l.b16 %v3002
        %v4052 = vunpack.c.h.b16 %v3002
        %v4053 = vunpack.c.l.b16 %v3003
        %v4054 = vunpack.c.h.b16 %v3003
        %v4055 = vunpack.c.l.b16 %v3004
        %v4056 = vunpack.c.h.b16 %v3004
        %v4057 = vunpack.c.l.b16 %v3005
        %v4058 = vunpack.c.h.b16 %v3005
        %v4059 = vunpack.c.l.b16 %v3006
        %v4060 = vunpack.c.h.b16 %v3006
        %v4061 = vunpack.c.l.b16 %v3007
        %v4062 = vunpack.c.h.b16 %v3007
        %v4063 = vunpack.c.l.b16 %v3008
        %v4064 = vunpack.c.h.b16 %v3008
        %v4065 = vunpack.c.l.b16 %v3009
        %v4066 = vunpack.c.h.b16 %v3009
        %v4067 = vunpack.c.l.b16 %v3010
        %v4068 = vunpack.c.h.b16 %v3010
        %v4069 = vunpack.c.l.b16 %v3011
        %v4070 = vunpack.c.h.b16 %v3011
        %v4071 = vunpack.c.l.b16 %v3012
        %v4072 = vunpack.c.h.b16 %v3012
        %v4073 = vunpack.c.l.b16 %v3013
        %v4074 = vunpack.c.h.b16 %v3013
        %v4075 = vunpack.c.l.b16 %v3014
        %v4076 = vunpack.c.h.b16 %v3014
        %v4077 = vunpack.c.l.b16 %v3015
        %v4078 = vunpack.c.h.b16 %v3015
        %v4079 = vunpack.c.l.b16 %v3016
        %v4080 = vunpack.c.h.b16 %v3016
        %v4081 = vunpack.c.l.b16 %v3017
        %v4082 = vunpack.c.h.b16 %v3017
        %v4083 = vunpack.c.l.b16 %v3018
        %v4084 = vunpack.c.h.b16 %v3018
        %v4085 = vunpack.c.l.b16 %v3019
        %v4086 = vunpack.c.h.b16 %v3019
        %v4087 = vunpack.c.l.b16 %v3020
        %v4088 = vunpack.c.h.b16 %v3020
        %v4089 = vunpack.c.l.b16 %v3021
        %v4090 = vunpack.c.h.b16 %v3021
        %v4091 = vunpack.c.l.b16 %v3022
        %v4092 = vunpack.c.h.b16 %v3022
        %v4093 = vunpack.c.l.b16 %v3023
        %v4094 = vunpack.c.h.b16 %v3023
        %v4095 = vunpack.c.l.b16 %v3024
        %v4096 = vunpack.c.h.b16 %v3024
        %v4097 = vunpack.c.l.b16 %v3025
        %v4098 = vunpack.c.h.b16 %v3025
        %v4099 = vunpack.c.l.b16 %v3026
        %v4100 = vunpack.c.h.b16 %v3026
        %v4101 = vunpack.c.l.b16 %v3027
        %v4102 = vunpack.c.h.b16 %v3027
        %v4103 = vunpack.c.l.b16 %v3028
        %v4104 = vunpack.c.h.b16 %v3028
        %v4105 = vunpack.c.l.b16 %v3029
        %v4106 = vunpack.c.h.b16 %v3029
        %v4107 = vunpack.c.l.b16 %v3030
        %v4108 = vunpack.c.h.b16 %v3030
        %v4109 = vunpack.c.l.b16 %v3031
        %v4110 = vunpack.c.h.b16 %v3031
        %v4111 = vunpack.c.l.b16 %v3032
        %v4112 = vunpack.c.h.b16 %v3032
        %v4113 = vunpack.c.l.b16 %v3033
        %v4114 = vunpack.c.h.b16 %v3033
        %v4115 = vunpack.c.l.b16 %v3034
        %v4116 = vunpack.c.h.b16 %v3034
        %v4117 = vunpack.c.l.b16 %v3035
        %v4118 = vunpack.c.h.b16 %v3035
        %v4119 = vunpack.c.l.b16 %v3036
        %v4120 = vunpack.c.h.b16 %v3036
        %v4121 = vunpack.c.l.b16 %v3037
        %v4122 = vunpack.c.h.b16 %v3037
        %v4123 = vunpack.c.l.b16 %v3038
        %v4124 = vunpack.c.h.b16 %v3038
        %v4125 = vunpack.c.l.b16 %v3039
        %v4126 = vunpack.c.h.b16 %v3039
        %v4127 = vunpack.c.l.b16 %v3040
        %v4128 = vunpack.c.h.b16 %v3040
        %v4129 = vunpack.c.l.b16 %v3041
        %v4130 = vunpack.c.h.b16 %v3041
        %v4131 = vunpack.c.l.b16 %v3042
        %v4132 = vunpack.c.h.b16 %v3042
        %v4133 = vunpack.c.l.b16 %v3043
        %v4134 = vunpack.c.h.b16 %v3043
        %v4135 = vunpack.c.l.b16 %v3044
        %v4136 = vunpack.c.h.b16 %v3044
        %v4137 = vunpack.c.l.b16 %v3045
        %v4138 = vunpack.c.h.b16 %v3045
        %v4139 = vunpack.c.l.b16 %v3046
        %v4140 = vunpack.c.h.b16 %v3046
        %v4141 = vunpack.c.l.b16 %v3047
        %v4142 = vunpack.c.h.b16 %v3047
        %v4143 = vunpack.c.l.b16 %v3048
        %v4144 = vunpack.c.h.b16 %v3048
        %v4145 = vunpack.c.l.b16 %v3049
        %v4146 = vunpack.c.h.b16 %v3049
        %v4147 = vunpack.c.l.b16 %v3050
        %v4148 = vunpack.c.h.b16 %v3050
        %v4149 = vunpack.c.l.b16 %v3051
        %v4150 = vunpack.c.h.b16 %v3051
        %v4151 = vunpack.c.l.b16 %v3052
        %v4152 = vunpack.c.h.b16 %v3052
        %v4153 = vunpack.c.l.b16 %v3053
        %v4154 = vunpack.c.h.b16 %v3053
        %v4155 = vunpack.c.l.b16 %v3054
        %v4156 = vunpack.c.h.b16 %v3054
        %v4157 = vunpack.c.l.b16 %v3055
        %v4158 = vunpack.c.h.b16 %v3055
        %v4159 = vunpack.c.l.b16 %v3056
        %v4160 = vunpack.c.h.b16 %v3056
        %v4161 = vunpack.c.l.b16 %v3057
        %v4162 = vunpack.c.h.b16 %v3057
        %v4163 = vunpack.c.l.b16 %v3058
        %v4164 = vunpack.c.h.b16 %v3058
        %v4165 = vunpack.c.l.b16 %v3059
        %v4166 = vunpack.c.h.b16 %v3059
        %v4167 = vunpack.c.l.b16 %v3060
        %v4168 = vunpack.c.h.b16 %v3060
        %v4169 = vunpack.c.l.b16 %v3061
        %v4170 = vunpack.c.h.b16 %v3061
        %v4171 = vunpack.c.l.b16 %v3062
        %v4172 = vunpack.c.h.b16 %v3062
        %v4173 = vunpack.c.l.b16 %v3063
        %v4174 = vunpack.c.h.b16 %v3063
        %v4175 = vunpack.c.l.b16 %v3064
        %v4176 = vunpack.c.h.b16 %v3064
        %v4177 = vunpack.c.l.b16 %v3065
        %v4178 = vunpack.c.h.b16 %v3065
        %v4179 = vunpack.c.l.b16 %v3066
        %v4180 = vunpack.c.h.b16 %v3066
        %v4181 = vunpack.c.l.b16 %v3067
        %v4182 = vunpack.c.h.b16 %v3067
        %v4183 = vunpack.c.l.b16 %v3068
        %v4184 = vunpack.c.h.b16 %v3068
        %v4185 = vunpack.c.l.b16 %v3069
        %v4186 = vunpack.c.h.b16 %v3069
        %v4187 = vunpack.c.l.b16 %v3070
        %v4188 = vunpack.c.h.b16 %v3070
        %v4189 = vunpack.c.l.b16 %v3071
        %v4190 = vunpack.c.h.b16 %v3071
        %v4191 = vunpack.c.l.b16 %v3072
        %v4192 = vunpack.c.h.b16 %v3072
        %v4193 = vunpack.c.l.b16 %v3073
        %v4194 = vunpack.c.h.b16 %v3073
        %v4195 = vunpack.c.l.b16 %v3074
        %v4196 = vunpack.c.h.b16 %v3074
        %v4197 = vunpack.c.l.b16 %v3075
        %v4198 = vunpack.c.h.b16 %v3075
        %v4199 = vunpack.c.l.b16 %v3076
        %v4200 = vunpack.c.h.b16 %v3076
        %v4201 = vunpack.c.l.b16 %v3077
        %v4202 = vunpack.c.h.b16 %v3077
        %v4203 = vunpack.c.l.b16 %v3078
        %v4204 = vunpack.c.h.b16 %v3078
        %v4205 = vunpack.c.l.b16 %v3079
        %v4206 = vunpack.c.h.b16 %v3079
        %v4207 = vunpack.c.l.b16 %v3080
        %v4208 = vunpack.c.h.b16 %v3080
        %v4209 = vunpack.c.l.b16 %v3081
        %v4210 = vunpack.c.h.b16 %v3081
        %v4211 = vunpack.c.l.b16 %v3082
        %v4212 = vunpack.c.h.b16 %v3082
        %v4213 = vunpack.c.l.b16 %v3083
        %v4214 = vunpack.c.h.b16 %v3083
        %v4215 = vunpack.c.l.b16 %v3084
        %v4216 = vunpack.c.h.b16 %v3084
        %v4217 = vunpack.c.l.b16 %v3085
        %v4218 = vunpack.c.h.b16 %v3085
        %v4219 = vunpack.c.l.b16 %v3086
        %v4220 = vunpack.c.h.b16 %v3086
        %v4221 = vunpack.c.l.b16 %v3087
        %v4222 = vunpack.c.h.b16 %v3087
        %v4223 = vunpack.c.l.b16 %v3088
        %v4224 = vunpack.c.h.b16 %v3088
        %v4225 = vunpack.c.l.b16 %v3089
        %v4226 = vunpack.c.h.b16 %v3089
        %v4227 = vunpack.c.l.b16 %v3090
        %v4228 = vunpack.c.h.b16 %v3090
        %v4229 = vunpack.c.l.b16 %v3091
        %v4230 = vunpack.c.h.b16 %v3091
        %v4231 = vunpack.c.l.b16 %v3092
        %v4232 = vunpack.c.h.b16 %v3092
        %v4233 = vunpack.c.l.b16 %v3093
        %v4234 = vunpack.c.h.b16 %v3093
        %v4235 = vunpack.c.l.b16 %v3094
        %v4236 = vunpack.c.h.b16 %v3094
        %v4237 = vunpack.c.l.b16 %v3095
        %v4238 = vunpack.c.h.b16 %v3095
        %v4239 = vunpack.c.l.b16 %v3096
        %v4240 = vunpack.c.h.b16 %v3096
        %v4241 = vunpack.c.l.b16 %v3097
        %v4242 = vunpack.c.h.b16 %v3097
        %v4243 = vunpack.c.l.b16 %v3098
        %v4244 = vunpack.c.h.b16 %v3098
        %v4245 = vunpack.c.l.b16 %v3099
        %v4246 = vunpack.c.h.b16 %v3099
        %v4247 = vunpack.c.l.b16 %v3100
        %v4248 = vunpack.c.h.b16 %v3100
        %v4249 = vunpack.c.l.b16 %v3101
        %v4250 = vunpack.c.h.b16 %v3101
        %v4251 = vunpack.c.l.b16 %v3102
        %v4252 = vunpack.c.h.b16 %v3102
        %v4253 = vunpack.c.l.b16 %v3103
        %v4254 = vunpack.c.h.b16 %v3103
        %v4255 = vunpack.c.l.b16 %v3104
        %v4256 = vunpack.c.h.b16 %v3104
        %v4257 = vunpack.c.l.b16 %v3105
        %v4258 = vunpack.c.h.b16 %v3105
        %v4259 = vunpack.c.l.b16 %v3106
        %v4260 = vunpack.c.h.b16 %v3106
        %v4261 = vunpack.c.l.b16 %v3107
        %v4262 = vunpack.c.h.b16 %v3107
        %v4263 = vunpack.c.l.b16 %v3108
        %v4264 = vunpack.c.h.b16 %v3108
        %v4265 = vunpack.c.l.b16 %v3109
        %v4266 = vunpack.c.h.b16 %v3109
        %v4267 = vunpack.c.l.b16 %v3110
        %v4268 = vunpack.c.h.b16 %v3110
        %v4269 = vunpack.c.l.b16 %v3111
        %v4270 = vunpack.c.h.b16 %v3111
        %v4271 = vunpack.c.l.b16 %v3112
        %v4272 = vunpack.c.h.b16 %v3112
        %v4273 = vunpack.c.l.b16 %v3113
        %v4274 = vunpack.c.h.b16 %v3113
        %v4275 = vunpack.c.l.b16 %v3114
        %v4276 = vunpack.c.h.b16 %v3114
        %v4277 = vunpack.c.l.b16 %v3115
        %v4278 = vunpack.c.h.b16 %v3115
        %v4279 = vunpack.c.l.b16 %v3116
        %v4280 = vunpack.c.h.b16 %v3116
        %v4281 = vunpack.c.l.b16 %v3117
        %v4282 = vunpack.c.h.b16 %v3117
        %v4283 = vunpack.c.l.b16 %v3118
        %v4284 = vunpack.c.h.b16 %v3118
        %v4285 = vpack.c.b16 %v3523, %v3517
        %v4286 = vpack.c.b16 %v3524, %v3518
        %v4287 = vpack.c.b16 %v3525, %v3519
        %v4288 = vpack.c.b16 %v3526, %v3520
        %v4289 = vpack.c.b16 %v3527, %v3521
        %v4290 = vpack.c.b16 %v3528, %v3522
        %v4291 = vpack.c.b16 %v3535, %v3529
        %v4292 = vpack.c.b16 %v3536, %v3530
        %v4293 = vpack.c.b16 %v3537, %v3531
        %v4294 = vpack.c.b16 %v3538, %v3532
        %v4295 = vpack.c.b16 %v3539, %v3533
        %v4296 = vpack.c.b16 %v3540, %v3534
        %v4297 = vpack.c.b16 %v3547, %v3541
        %v4298 = vpack.c.b16 %v3548, %v3542
        %v4299 = vpack.c.b16 %v3549, %v3543
        %v4300 = vpack.c.b16 %v3550, %v3544
        %v4301 = vpack.c.b16 %v3551, %v3545
        %v4302 = vpack.c.b16 %v3552, %v3546
        %v4303 = vpack.c.b16 %v3559, %v3553
        %v4304 = vpack.c.b16 %v3560, %v3554
        %v4305 = vpack.c.b16 %v3561, %v3555
        %v4306 = vpack.c.b16 %v3562, %v3556
        %v4307 = vpack.c.b16 %v3563, %v3557
        %v4308 = vpack.c.b16 %v3564, %v3558
        %v4309 = vpack.c.b16 %v3571, %v3565
        %v4310 = vpack.c.b16 %v3572, %v3566
        %v4311 = vpack.c.b16 %v3573, %v3567
        %v4312 = vpack.c.b16 %v3574, %v3568
        %v4313 = vpack.c.b16 %v3575, %v3569
        %v4314 = vpack.c.b16 %v3576, %v3570
        %v4315 = vpack.c.b16 %v3583, %v3577
        %v4316 = vpack.c.b16 %v3584, %v3578
        %v4317 = vpack.c.b16 %v3585, %v3579
        %v4318 = vpack.c.b16 %v3586, %v3580
        %v4319 = vpack.c.b16 %v3587, %v3581
        %v4320 = vpack.c.b16 %v3588, %v3582
        %v4321 = vpack.c.b16 %v3595, %v3589
        %v4322 = vpack.c.b16 %v3596, %v3590
        %v4323 = vpack.c.b16 %v3597, %v3591
        %v4324 = vpack.c.b16 %v3598, %v3592
        %v4325 = vpack.c.b16 %v3599, %v3593
        %v4326 = vpack.c.b16 %v3600, %v3594
        %v4327 = vpack.c.b16 %v3607, %v3601
        %v4328 = vpack.c.b16 %v3608, %v3602
        %v4329 = vpack.c.b16 %v3609, %v3603
        %v4330 = vpack.c.b16 %v3610, %v3604
        %v4331 = vpack.c.b16 %v3611, %v3605
        %v4332 = vpack.c.b16 %v3612, %v3606
        %v4333 = vpack.c.b16 %v3619, %v3613
        %v4334 = vpack.c.b16 %v3620, %v3614
        %v4335 = vpack.c.b16 %v3621, %v3615
        %v4336 = vpack.c.b16 %v3622, %v3616
        %v4337 = vpack.c.b16 %v3623, %v3617
        %v4338 = vpack.c.b16 %v3624, %v3618
        %v4339 = vpack.c.b16 %v3631, %v3625
        %v4340 = vpack.c.b16 %v3632, %v3626
        %v4341 = vpack.c.b16 %v3633, %v3627
        %v4342 = vpack.c.b16 %v3634, %v3628
        %v4343 = vpack.c.b16 %v3635, %v3629
        %v4344 = vpack.c.b16 %v3636, %v3630
        %v4345 = vpack.c.b16 %v3643, %v3637
        %v4346 = vpack.c.b16 %v3644, %v3638
        %v4347 = vpack.c.b16 %v3645, %v3639
        %v4348 = vpack.c.b16 %v3646, %v3640
        %v4349 = vpack.c.b16 %v3647, %v3641
        %v4350 = vpack.c.b16 %v3648, %v3642
        %v4351 = vpack.c.b16 %v3655, %v3649
        %v4352 = vpack.c.b16 %v3656, %v3650
        %v4353 = vpack.c.b16 %v3657, %v3651
        %v4354 = vpack.c.b16 %v3658, %v3652
        %v4355 = vpack.c.b16 %v3659, %v3653
        %v4356 = vpack.c.b16 %v3660, %v3654
        %v4357 = vpack.c.b16 %v3667, %v3661
        %v4358 = vpack.c.b16 %v3668, %v3662
        %v4359 = vpack.c.b16 %v3669, %v3663
        %v4360 = vpack.c.b16 %v3670, %v3664
        %v4361 = vpack.c.b16 %v3671, %v3665
        %v4362 = vpack.c.b16 %v3672, %v3666
        %v4363 = vpack.c.b16 %v3679, %v3673
        %v4364 = vpack.c.b16 %v3680, %v3674
        %v4365 = vpack.c.b16 %v3681, %v3675
        %v4366 = vpack.c.b16 %v3682, %v3676
        %v4367 = vpack.c.b16 %v3683, %v3677
        %v4368 = vpack.c.b16 %v3684, %v3678
        %v4369 = vpack.c.b16 %v3691, %v3685
        %v4370 = vpack.c.b16 %v3692, %v3686
        %v4371 = vpack.c.b16 %v3693, %v3687
        %v4372 = vpack.c.b16 %v3694, %v3688
        %v4373 = vpack.c.b16 %v3695, %v3689
        %v4374 = vpack.c.b16 %v3696, %v3690
        %v4375 = vpack.c.b16 %v3703, %v3697
        %v4376 = vpack.c.b16 %v3704, %v3698
        %v4377 = vpack.c.b16 %v3705, %v3699
        %v4378 = vpack.c.b16 %v3706, %v3700
        %v4379 = vpack.c.b16 %v3707, %v3701
        %v4380 = vpack.c.b16 %v3708, %v3702
        %v4381 = vpack.c.b16 %v3715, %v3709
        %v4382 = vpack.c.b16 %v3716, %v3710
        %v4383 = vpack.c.b16 %v3717, %v3711
        %v4384 = vpack.c.b16 %v3718, %v3712
        %v4385 = vpack.c.b16 %v3719, %v3713
        %v4386 = vpack.c.b16 %v3720, %v3714
        %v4387 = vpack.c.b16 %v3727, %v3721
        %v4388 = vpack.c.b16 %v3728, %v3722
        %v4389 = vpack.c.b16 %v3729, %v3723
        %v4390 = vpack.c.b16 %v3730, %v3724
        %v4391 = vpack.c.b16 %v3731, %v3725
        %v4392 = vpack.c.b16 %v3732, %v3726
        %v4393 = vpack.c.b16 %v3739, %v3733
        %v4394 = vpack.c.b16 %v3740, %v3734
        %v4395 = vpack.c.b16 %v3741, %v3735
        %v4396 = vpack.c.b16 %v3742, %v3736
        %v4397 = vpack.c.b16 %v3743, %v3737
        %v4398 = vpack.c.b16 %v3744, %v3738
        %v4399 = vpack.c.b16 %v3751, %v3745
        %v4400 = vpack.c.b16 %v3752, %v3746
        %v4401 = vpack.c.b16 %v3753, %v3747
        %v4402 = vpack.c.b16 %v3754, %v3748
        %v4403 = vpack.c.b16 %v3755, %v3749
        %v4404 = vpack.c.b16 %v3756, %v3750
        %v4405 = vpack.c.b16 %v3763, %v3757
        %v4406 = vpack.c.b16 %v3764, %v3758
        %v4407 = vpack.c.b16 %v3765, %v3759
        %v4408 = vpack.c.b16 %v3766, %v3760
        %v4409 = vpack.c.b16 %v3767, %v3761
        %v4410 = vpack.c.b16 %v3768, %v3762
        %v4411 = vpack.c.b16 %v3775, %v3769
        %v4412 = vpack.c.b16 %v3776, %v3770
        %v4413 = vpack.c.b16 %v3777, %v3771
        %v4414 = vpack.c.b16 %v3778, %v3772
        %v4415 = vpack.c.b16 %v3779, %v3773
        %v4416 = vpack.c.b16 %v3780, %v3774
        %v4417 = vpack.c.b16 %v3787, %v3781
        %v4418 = vpack.c.b16 %v3788, %v3782
        %v4419 = vpack.c.b16 %v3789, %v3783
        %v4420 = vpack.c.b16 %v3790, %v3784
        %v4421 = vpack.c.b16 %v3791, %v3785
        %v4422 = vpack.c.b16 %v3792, %v3786
        %v4423 = vpack.c.b16 %v3799, %v3793
        %v4424 = vpack.c.b16 %v3800, %v3794
        %v4425 = vpack.c.b16 %v3801, %v3795
        %v4426 = vpack.c.b16 %v3802, %v3796
        %v4427 = vpack.c.b16 %v3803, %v3797
        %v4428 = vpack.c.b16 %v3804, %v3798
        %v4429 = vpack.c.b16 %v3811, %v3805
        %v4430 = vpack.c.b16 %v3812, %v3806
        %v4431 = vpack.c.b16 %v3813, %v3807
        %v4432 = vpack.c.b16 %v3814, %v3808
        %v4433 = vpack.c.b16 %v3815, %v3809
        %v4434 = vpack.c.b16 %v3816, %v3810
        %v4435 = vpack.c.b16 %v3823, %v3817
        %v4436 = vpack.c.b16 %v3824, %v3818
        %v4437 = vpack.c.b16 %v3825, %v3819
        %v4438 = vpack.c.b16 %v3826, %v3820
        %v4439 = vpack.c.b16 %v3827, %v3821
        %v4440 = vpack.c.b16 %v3828, %v3822
        %v4441 = vpack.c.b16 %v3835, %v3829
        %v4442 = vpack.c.b16 %v3836, %v3830
        %v4443 = vpack.c.b16 %v3837, %v3831
        %v4444 = vpack.c.b16 %v3838, %v3832
        %v4445 = vpack.c.b16 %v3839, %v3833
        %v4446 = vpack.c.b16 %v3840, %v3834
        %v4447 = vpack.c.b16 %v3847, %v3841
        %v4448 = vpack.c.b16 %v3848, %v3842
        %v4449 = vpack.c.b16 %v3849, %v3843
        %v4450 = vpack.c.b16 %v3850, %v3844
        %v4451 = vpack.c.b16 %v3851, %v3845
        %v4452 = vpack.c.b16 %v3852, %v3846
        %v4453 = vpack.c.b16 %v3859, %v3853
        %v4454 = vpack.c.b16 %v3860, %v3854
        %v4455 = vpack.c.b16 %v3861, %v3855
        %v4456 = vpack.c.b16 %v3862, %v3856
        %v4457 = vpack.c.b16 %v3863, %v3857
        %v4458 = vpack.c.b16 %v3864, %v3858
        %v4459 = vpack.c.b16 %v3871, %v3865
        %v4460 = vpack.c.b16 %v3872, %v3866
        %v4461 = vpack.c.b16 %v3873, %v3867
        %v4462 = vpack.c.b16 %v3874, %v3868
        %v4463 = vpack.c.b16 %v3875, %v3869
        %v4464 = vpack.c.b16 %v3876, %v3870
        %v4465 = vpack.c.b16 %v3883, %v3877
        %v4466 = vpack.c.b16 %v3884, %v3878
        %v4467 = vpack.c.b16 %v3885, %v3879
        %v4468 = vpack.c.b16 %v3886, %v3880
        %v4469 = vpack.c.b16 %v3887, %v3881
        %v4470 = vpack.c.b16 %v3888, %v3882
        %v4471 = vpack.c.b16 %v3895, %v3889
        %v4472 = vpack.c.b16 %v3896, %v3890
        %v4473 = vpack.c.b16 %v3897, %v3891
        %v4474 = vpack.c.b16 %v3898, %v3892
        %v4475 = vpack.c.b16 %v3899, %v3893
        %v4476 = vpack.c.b16 %v3900, %v3894
        %v4477 = vpack.c.b16 %v3907, %v3901
        %v4478 = vpack.c.b16 %v3908, %v3902
        %v4479 = vpack.c.b16 %v3909, %v3903
        %v4480 = vpack.c.b16 %v3910, %v3904
        %v4481 = vpack.c.b16 %v3911, %v3905
        %v4482 = vpack.c.b16 %v3912, %v3906
        %v4483 = vpack.c.b16 %v3919, %v3913
        %v4484 = vpack.c.b16 %v3920, %v3914
        %v4485 = vpack.c.b16 %v3921, %v3915
        %v4486 = vpack.c.b16 %v3922, %v3916
        %v4487 = vpack.c.b16 %v3923, %v3917
        %v4488 = vpack.c.b16 %v3924, %v3918
        %v4489 = vpack.c.b16 %v3931, %v3925
        %v4490 = vpack.c.b16 %v3932, %v3926
        %v4491 = vpack.c.b16 %v3933, %v3927
        %v4492 = vpack.c.b16 %v3934, %v3928
        %v4493 = vpack.c.b16 %v3935, %v3929
        %v4494 = vpack.c.b16 %v3936, %v3930
        %v4495 = vpack.c.b16 %v3943, %v3937
        %v4496 = vpack.c.b16 %v3944, %v3938
        %v4497 = vpack.c.b16 %v3945, %v3939
        %v4498 = vpack.c.b16 %v3946, %v3940
        %v4499 = vpack.c.b16 %v3947, %v3941
        %v4500 = vpack.c.b16 %v3948, %v3942
        %v4501 = vpack.c.b16 %v3955, %v3949
        %v4502 = vpack.c.b16 %v3956, %v3950
        %v4503 = vpack.c.b16 %v3957, %v3951
        %v4504 = vpack.c.b16 %v3958, %v3952
        %v4505 = vpack.c.b16 %v3959, %v3953
        %v4506 = vpack.c.b16 %v3960, %v3954
        %v4507 = vpack.c.b16 %v3967, %v3961
        %v4508 = vpack.c.b16 %v3968, %v3962
        %v4509 = vpack.c.b16 %v3969, %v3963
        %v4510 = vpack.c.b16 %v3970, %v3964
        %v4511 = vpack.c.b16 %v3971, %v3965
        %v4512 = vpack.c.b16 %v3972, %v3966
        %v4513 = vpack.c.b16 %v3979, %v3973
        %v4514 = vpack.c.b16 %v3980, %v3974
        %v4515 = vpack.c.b16 %v3981, %v3975
        %v4516 = vpack.c.b16 %v3982, %v3976
        %v4517 = vpack.c.b16 %v3983, %v3977
        %v4518 = vpack.c.b16 %v3984, %v3978
        %v4519 = vpack.c.b16 %v3991, %v3985
        %v4520 = vpack.c.b16 %v3992, %v3986
        %v4521 = vpack.c.b16 %v3993, %v3987
        %v4522 = vpack.c.b16 %v3994, %v3988
        %v4523 = vpack.c.b16 %v3995, %v3989
        %v4524 = vpack.c.b16 %v3996, %v3990
        %v4525 = vpack.c.b16 %v4003, %v3997
        %v4526 = vpack.c.b16 %v4004, %v3998
        %v4527 = vpack.c.b16 %v4005, %v3999
        %v4528 = vpack.c.b16 %v4006, %v4000
        %v4529 = vpack.c.b16 %v4007, %v4001
        %v4530 = vpack.c.b16 %v4008, %v4002
        %v4531 = vpack.c.b16 %v4015, %v4009
        %v4532 = vpack.c.b16 %v4016, %v4010
        %v4533 = vpack.c.b16 %v4017, %v4011
        %v4534 = vpack.c.b16 %v4018, %v4012
        %v4535 = vpack.c.b16 %v4019, %v4013
        %v4536 = vpack.c.b16 %v4020, %v4014
        %v4537 = vpack.c.b16 %v4027, %v4021
        %v4538 = vpack.c.b16 %v4028, %v4022
        %v4539 = vpack.c.b16 %v4029, %v4023
        %v4540 = vpack.c.b16 %v4030, %v4024
        %v4541 = vpack.c.b16 %v4031, %v4025
        %v4542 = vpack.c.b16 %v4032, %v4026
        %v4543 = vpack.c.b16 %v4039, %v4033
        %v4544 = vpack.c.b16 %v4040, %v4034
        %v4545 = vpack.c.b16 %v4041, %v4035
        %v4546 = vpack.c.b16 %v4042, %v4036
        %v4547 = vpack.c.b16 %v4043, %v4037
        %v4548 = vpack.c.b16 %v4044, %v4038
        %v4549 = vpack.c.b16 %v4051, %v4045
        %v4550 = vpack.c.b16 %v4052, %v4046
        %v4551 = vpack.c.b16 %v4053, %v4047
        %v4552 = vpack.c.b16 %v4054, %v4048
        %v4553 = vpack.c.b16 %v4055, %v4049
        %v4554 = vpack.c.b16 %v4056, %v4050
        %v4555 = vpack.c.b16 %v4063, %v4057
        %v4556 = vpack.c.b16 %v4064, %v4058
        %v4557 = vpack.c.b16 %v4065, %v4059
        %v4558 = vpack.c.b16 %v4066, %v4060
        %v4559 = vpack.c.b16 %v4067, %v4061
        %v4560 = vpack.c.b16 %v4068, %v4062
        %v4561 = vpack.c.b16 %v4075, %v4069
        %v4562 = vpack.c.b16 %v4076, %v4070
        %v4563 = vpack.c.b16 %v4077, %v4071
        %v4564 = vpack.c.b16 %v4078, %v4072
        %v4565 = vpack.c.b16 %v4079, %v4073
        %v4566 = vpack.c.b16 %v4080, %v4074
        %v4567 = vpack.c.b16 %v4087, %v4081
        %v4568 = vpack.c.b16 %v4088, %v4082
        %v4569 = vpack.c.b16 %v4089, %v4083
        %v4570 = vpack.c.b16 %v4090, %v4084
        %v4571 = vpack.c.b16 %v4091, %v4085
        %v4572 = vpack.c.b16 %v4092, %v4086
        %v4573 = vpack.c.b16 %v4099, %v4093
        %v4574 = vpack.c.b16 %v4100, %v4094
        %v4575 = vpack.c.b16 %v4101, %v4095
        %v4576 = vpack.c.b16 %v4102, %v4096
        %v4577 = vpack.c.b16 %v4103, %v4097
        %v4578 = vpack.c.b16 %v4104, %v4098
        %v4579 = vpack.c.b16 %v4111, %v4105
        %v4580 = vpack.c.b16 %v4112, %v4106
        %v4581 = vpack.c.b16 %v4113, %v4107
        %v4582 = vpack.c.b16 %v4114, %v4108
        %v4583 = vpack.c.b16 %v4115, %v4109
        %v4584 = vpack.c.b16 %v4116, %v4110
        %v4585 = vpack.c.b16 %v4123, %v4117
        %v4586 = vpack.c.b16 %v4124, %v4118
        %v4587 = vpack.c.b16 %v4125, %v4119
        %v4588 = vpack.c.b16 %v4126, %v4120
        %v4589 = vpack.c.b16 %v4127, %v4121
        %v4590 = vpack.c.b16 %v4128, %v4122
        %v4591 = vpack.c.b16 %v4135, %v4129
        %v4592 = vpack.c.b16 %v4136, %v4130
        %v4593 = vpack.c.b16 %v4137, %v4131
        %v4594 = vpack.c.b16 %v4138, %v4132
        %v4595 = vpack.c.b16 %v4139, %v4133
        %v4596 = vpack.c.b16 %v4140, %v4134
        %v4597 = vpack.c.b16 %v4147, %v4141
        %v4598 = vpack.c.b16 %v4148, %v4142
        %v4599 = vpack.c.b16 %v4149, %v4143
        %v4600 = vpack.c.b16 %v4150, %v4144
        %v4601 = vpack.c.b16 %v4151, %v4145
        %v4602 = vpack.c.b16 %v4152, %v4146
        %v4603 = vpack.c.b16 %v4159, %v4153
        %v4604 = vpack.c.b16 %v4160, %v4154
        %v4605 = vpack.c.b16 %v4161, %v4155
        %v4606 = vpack.c.b16 %v4162, %v4156
        %v4607 = vpack.c.b16 %v4163, %v4157
        %v4608 = vpack.c.b16 %v4164, %v4158
        %v4609 = vpack.c.b16 %v4171, %v4165
        %v4610 = vpack.c.b16 %v4172, %v4166
        %v4611 = vpack.c.b16 %v4173, %v4167
        %v4612 = vpack.c.b16 %v4174, %v4168
        %v4613 = vpack.c.b16 %v4175, %v4169
        %v4614 = vpack.c.b16 %v4176, %v4170
        %v4615 = vpack.c.b16 %v4183, %v4177
        %v4616 = vpack.c.b16 %v4184, %v4178
        %v4617 = vpack.c.b16 %v4185, %v4179
        %v4618 = vpack.c.b16 %v4186, %v4180
        %v4619 = vpack.c.b16 %v4187, %v4181
        %v4620 = vpack.c.b16 %v4188, %v4182
        %v4621 = vpack.c.b16 %v4195, %v4189
        %v4622 = vpack.c.b16 %v4196, %v4190
        %v4623 = vpack.c.b16 %v4197, %v4191
        %v4624 = vpack.c.b16 %v4198, %v4192
        %v4625 = vpack.c.b16 %v4199, %v4193
        %v4626 = vpack.c.b16 %v4200, %v4194
        %v4627 = vpack.c.b16 %v4207, %v4201
        %v4628 = vpack.c.b16 %v4208, %v4202
        %v4629 = vpack.c.b16 %v4209, %v4203
        %v4630 = vpack.c.b16 %v4210, %v4204
        %v4631 = vpack.c.b16 %v4211, %v4205
        %v4632 = vpack.c.b16 %v4212, %v4206
        %v4633 = vpack.c.b16 %v4219, %v4213
        %v4634 = vpack.c.b16 %v4220, %v4214
        %v4635 = vpack.c.b16 %v4221, %v4215
        %v4636 = vpack.c.b16 %v4222, %v4216
        %v4637 = vpack.c.b16 %v4223, %v4217
        %v4638 = vpack.c.b16 %v4224, %v4218
        %v4639 = vpack.c.b16 %v4231, %v4225
        %v4640 = vpack.c.b16 %v4232, %v4226
        %v4641 = vpack.c.b16 %v4233, %v4227
        %v4642 = vpack.c.b16 %v4234, %v4228
        %v4643 = vpack.c.b16 %v4235, %v4229
        %v4644 = vpack.c.b16 %v4236, %v4230
        %v4645 = vpack.c.b16 %v4243, %v4237
        %v4646 = vpack.c.b16 %v4244, %v4238
        %v4647 = vpack.c.b16 %v4245, %v4239
        %v4648 = vpack.c.b16 %v4246, %v4240
        %v4649 = vpack.c.b16 %v4247, %v4241
        %v4650 = vpack.c.b16 %v4248, %v4242
        %v4651 = vpack.c.b16 %v4255, %v4249
        %v4652 = vpack.c.b16 %v4256, %v4250
        %v4653 = vpack.c.b16 %v4257, %v4251
        %v4654 = vpack.c.b16 %v4258, %v4252
        %v4655 = vpack.c.b16 %v4259, %v4253
        %v4656 = vpack.c.b16 %v4260, %v4254
        %v4657 = vpack.c.b16 %v4267, %v4261
        %v4658 = vpack.c.b16 %v4268, %v4262
        %v4659 = vpack.c.b16 %v4269, %v4263
        %v4660 = vpack.c.b16 %v4270, %v4264
        %v4661 = vpack.c.b16 %v4271, %v4265
        %v4662 = vpack.c.b16 %v4272, %v4266
        %v4663 = vpack.c.b16 %v4279, %v4273
        %v4664 = vpack.c.b16 %v4280, %v4274
        %v4665 = vpack.c.b16 %v4281, %v4275
        %v4666 = vpack.c.b16 %v4282, %v4276
        %v4667 = vpack.c.b16 %v4283, %v4277
        %v4668 = vpack.c.b16 %v4284, %v4278
        %5053 = vmatpush.bf16.msra.mxu0 %v4327
        %5054 = vmatpush.bf16.msra.mxu0 %v4321
        %5055 = vmatpush.bf16.msra.mxu0 %v4315
        %5056 = vmatpush.bf16.msra.mxu0 %v4309
        %5057 = vmatpush.bf16.msra.mxu0 %v4303
        %5058 = vmatpush.bf16.msra.mxu0 %v4297
        %5059 = vmatpush.bf16.msra.mxu0 %v4291
        %5060 = vmatpush.bf16.msra.mxu0 %v4285
        %5061 = vmatmul.bf16.gmra.mxu0 %v2727
        %v5062 = vpop.f32.mrf.mxu0
        %v5063 = vadd.f32 %v3121, %v5062
        %v5064 = vpop.f32.mrf.mxu0
        %5065 = vdwg.mxu0
        %5066 = vmatpush.bf16.msra.mxu0 %v4375
        %5067 = vmatpush.bf16.msra.mxu0 %v4369
        %5068 = vmatpush.bf16.msra.mxu0 %v4363
        %5069 = vmatpush.bf16.msra.mxu0 %v4357
        %5070 = vmatpush.bf16.msra.mxu0 %v4351
        %5071 = vmatpush.bf16.msra.mxu0 %v4345
        %5072 = vmatpush.bf16.msra.mxu0 %v4339
        %5073 = vmatpush.bf16.msra.mxu0 %v4333
        %5074 = vmatmul.bf16.gmra.mxu0 %v2728
        %v5075 = vpop.f32.mrf.mxu0
        %v5076 = vadd.f32 %v5063, %v5075
        %v5077 = vpop.f32.mrf.mxu0
        %5078 = vdwg.mxu0
        %5079 = vmatpush.bf16.msra.mxu0 %v4423
        %5080 = vmatpush.bf16.msra.mxu0 %v4417
        %5081 = vmatpush.bf16.msra.mxu0 %v4411
        %5082 = vmatpush.bf16.msra.mxu0 %v4405
        %5083 = vmatpush.bf16.msra.mxu0 %v4399
        %5084 = vmatpush.bf16.msra.mxu0 %v4393
        %5085 = vmatpush.bf16.msra.mxu0 %v4387
        %5086 = vmatpush.bf16.msra.mxu0 %v4381
        %5087 = vmatmul.bf16.gmra.mxu0 %v2729
        %v5088 = vpop.f32.mrf.mxu0
        %v5089 = vadd.f32 %v5076, %v5088
        %v5090 = vpop.f32.mrf.mxu0
        %5091 = vdwg.mxu0
        %5092 = vmatpush.bf16.msra.mxu0 %v4471
        %5093 = vmatpush.bf16.msra.mxu0 %v4465
        %5094 = vmatpush.bf16.msra.mxu0 %v4459
        %5095 = vmatpush.bf16.msra.mxu0 %v4453
        %5096 = vmatpush.bf16.msra.mxu0 %v4447
        %5097 = vmatpush.bf16.msra.mxu0 %v4441
        %5098 = vmatpush.bf16.msra.mxu0 %v4435
        %5099 = vmatpush.bf16.msra.mxu0 %v4429
        %5100 = vmatmul.bf16.gmra.mxu0 %v2730
        %v5101 = vpop.f32.mrf.mxu0
        %v5102 = vadd.f32 %v5089, %v5101
        %v5103 = vpop.f32.mrf.mxu0
        %5104 = vdwg.mxu0
        %5105 = vmatpush.bf16.msra.mxu0 %v4519
        %5106 = vmatpush.bf16.msra.mxu0 %v4513
        %5107 = vmatpush.bf16.msra.mxu0 %v4507
        %5108 = vmatpush.bf16.msra.mxu0 %v4501
        %5109 = vmatpush.bf16.msra.mxu0 %v4495
        %5110 = vmatpush.bf16.msra.mxu0 %v4489
        %5111 = vmatpush.bf16.msra.mxu0 %v4483
        %5112 = vmatpush.bf16.msra.mxu0 %v4477
        %5113 = vmatmul.bf16.gmra.mxu0 %v2731
        %v5114 = vpop.f32.mrf.mxu0
        %v5115 = vadd.f32 %v5102, %v5114
        %v5116 = vpop.f32.mrf.mxu0
        %5117 = vdwg.mxu0
        %5118 = vmatpush.bf16.msra.mxu0 %v4567
        %5119 = vmatpush.bf16.msra.mxu0 %v4561
        %5120 = vmatpush.bf16.msra.mxu0 %v4555
        %5121 = vmatpush.bf16.msra.mxu0 %v4549
        %5122 = vmatpush.bf16.msra.mxu0 %v4543
        %5123 = vmatpush.bf16.msra.mxu0 %v4537
        %5124 = vmatpush.bf16.msra.mxu0 %v4531
        %5125 = vmatpush.bf16.msra.mxu0 %v4525
        %5126 = vmatmul.bf16.gmra.mxu0 %v2732
        %v5127 = vpop.f32.mrf.mxu0
        %v5128 = vadd.f32 %v5115, %v5127
        %v5129 = vpop.f32.mrf.mxu0
        %5130 = vdwg.mxu0
        %5131 = vmatpush.bf16.msra.mxu0 %v4615
        %5132 = vmatpush.bf16.msra.mxu0 %v4609
        %5133 = vmatpush.bf16.msra.mxu0 %v4603
        %5134 = vmatpush.bf16.msra.mxu0 %v4597
        %5135 = vmatpush.bf16.msra.mxu0 %v4591
        %5136 = vmatpush.bf16.msra.mxu0 %v4585
        %5137 = vmatpush.bf16.msra.mxu0 %v4579
        %5138 = vmatpush.bf16.msra.mxu0 %v4573
        %5139 = vmatmul.bf16.gmra.mxu0 %v2733
        %v5140 = vpop.f32.mrf.mxu0
        %v5141 = vadd.f32 %v5128, %v5140
        %v5142 = vpop.f32.mrf.mxu0
        %5143 = vdwg.mxu0
        %5144 = vmatpush.bf16.msra.mxu0 %v4663
        %5145 = vmatpush.bf16.msra.mxu0 %v4657
        %5146 = vmatpush.bf16.msra.mxu0 %v4651
        %5147 = vmatpush.bf16.msra.mxu0 %v4645
        %5148 = vmatpush.bf16.msra.mxu0 %v4639
        %5149 = vmatpush.bf16.msra.mxu0 %v4633
        %5150 = vmatpush.bf16.msra.mxu0 %v4627
        %5151 = vmatpush.bf16.msra.mxu0 %v4621
        %5152 = vmatmul.bf16.gmra.mxu0 %v2734
        %v5153 = vpop.f32.mrf.mxu0
        %v5154 = vadd.f32 %v5141, %v5153
        %v5155 = vpop.f32.mrf.mxu0
        %5156 = vdwg.mxu0
        %5157 = vmatpush.bf16.msra.mxu0 %v4328
        %5158 = vmatpush.bf16.msra.mxu0 %v4322
        %5159 = vmatpush.bf16.msra.mxu0 %v4316
        %5160 = vmatpush.bf16.msra.mxu0 %v4310
        %5161 = vmatpush.bf16.msra.mxu0 %v4304
        %5162 = vmatpush.bf16.msra.mxu0 %v4298
        %5163 = vmatpush.bf16.msra.mxu0 %v4292
        %5164 = vmatpush.bf16.msra.mxu0 %v4286
        %5165 = vmatmul.bf16.gmra.mxu0 %v2727
        %v5166 = vpop.f32.mrf.mxu0
        %v5167 = vadd.f32 %v3122, %v5166
        %v5168 = vpop.f32.mrf.mxu0
        %5169 = vdwg.mxu0
        %5170 = vmatpush.bf16.msra.mxu0 %v4376
        %5171 = vmatpush.bf16.msra.mxu0 %v4370
        %5172 = vmatpush.bf16.msra.mxu0 %v4364
        %5173 = vmatpush.bf16.msra.mxu0 %v4358
        %5174 = vmatpush.bf16.msra.mxu0 %v4352
        %5175 = vmatpush.bf16.msra.mxu0 %v4346
        %5176 = vmatpush.bf16.msra.mxu0 %v4340
        %5177 = vmatpush.bf16.msra.mxu0 %v4334
        %5178 = vmatmul.bf16.gmra.mxu0 %v2728
        %v5179 = vpop.f32.mrf.mxu0
        %v5180 = vadd.f32 %v5167, %v5179
        %v5181 = vpop.f32.mrf.mxu0
        %5182 = vdwg.mxu0
        %5183 = vmatpush.bf16.msra.mxu0 %v4424
        %5184 = vmatpush.bf16.msra.mxu0 %v4418
        %5185 = vmatpush.bf16.msra.mxu0 %v4412
        %5186 = vmatpush.bf16.msra.mxu0 %v4406
        %5187 = vmatpush.bf16.msra.mxu0 %v4400
        %5188 = vmatpush.bf16.msra.mxu0 %v4394
        %5189 = vmatpush.bf16.msra.mxu0 %v4388
        %5190 = vmatpush.bf16.msra.mxu0 %v4382
        %5191 = vmatmul.bf16.gmra.mxu0 %v2729
        %v5192 = vpop.f32.mrf.mxu0
        %v5193 = vadd.f32 %v5180, %v5192
        %v5194 = vpop.f32.mrf.mxu0
        %5195 = vdwg.mxu0
        %5196 = vmatpush.bf16.msra.mxu0 %v4472
        %5197 = vmatpush.bf16.msra.mxu0 %v4466
        %5198 = vmatpush.bf16.msra.mxu0 %v4460
        %5199 = vmatpush.bf16.msra.mxu0 %v4454
        %5200 = vmatpush.bf16.msra.mxu0 %v4448
        %5201 = vmatpush.bf16.msra.mxu0 %v4442
        %5202 = vmatpush.bf16.msra.mxu0 %v4436
        %5203 = vmatpush.bf16.msra.mxu0 %v4430
        %5204 = vmatmul.bf16.gmra.mxu0 %v2730
        %v5205 = vpop.f32.mrf.mxu0
        %v5206 = vadd.f32 %v5193, %v5205
        %v5207 = vpop.f32.mrf.mxu0
        %5208 = vdwg.mxu0
        %5209 = vmatpush.bf16.msra.mxu0 %v4520
        %5210 = vmatpush.bf16.msra.mxu0 %v4514
        %5211 = vmatpush.bf16.msra.mxu0 %v4508
        %5212 = vmatpush.bf16.msra.mxu0 %v4502
        %5213 = vmatpush.bf16.msra.mxu0 %v4496
        %5214 = vmatpush.bf16.msra.mxu0 %v4490
        %5215 = vmatpush.bf16.msra.mxu0 %v4484
        %5216 = vmatpush.bf16.msra.mxu0 %v4478
        %5217 = vmatmul.bf16.gmra.mxu0 %v2731
        %v5218 = vpop.f32.mrf.mxu0
        %v5219 = vadd.f32 %v5206, %v5218
        %v5220 = vpop.f32.mrf.mxu0
        %5221 = vdwg.mxu0
        %5222 = vmatpush.bf16.msra.mxu0 %v4568
        %5223 = vmatpush.bf16.msra.mxu0 %v4562
        %5224 = vmatpush.bf16.msra.mxu0 %v4556
        %5225 = vmatpush.bf16.msra.mxu0 %v4550
        %5226 = vmatpush.bf16.msra.mxu0 %v4544
        %5227 = vmatpush.bf16.msra.mxu0 %v4538
        %5228 = vmatpush.bf16.msra.mxu0 %v4532
        %5229 = vmatpush.bf16.msra.mxu0 %v4526
        %5230 = vmatmul.bf16.gmra.mxu0 %v2732
        %v5231 = vpop.f32.mrf.mxu0
        %v5232 = vadd.f32 %v5219, %v5231
        %v5233 = vpop.f32.mrf.mxu0
        %5234 = vdwg.mxu0
        %5235 = vmatpush.bf16.msra.mxu0 %v4616
        %5236 = vmatpush.bf16.msra.mxu0 %v4610
        %5237 = vmatpush.bf16.msra.mxu0 %v4604
        %5238 = vmatpush.bf16.msra.mxu0 %v4598
        %5239 = vmatpush.bf16.msra.mxu0 %v4592
        %5240 = vmatpush.bf16.msra.mxu0 %v4586
        %5241 = vmatpush.bf16.msra.mxu0 %v4580
        %5242 = vmatpush.bf16.msra.mxu0 %v4574
        %5243 = vmatmul.bf16.gmra.mxu0 %v2733
        %v5244 = vpop.f32.mrf.mxu0
        %v5245 = vadd.f32 %v5232, %v5244
        %v5246 = vpop.f32.mrf.mxu0
        %5247 = vdwg.mxu0
        %5248 = vmatpush.bf16.msra.mxu0 %v4664
        %5249 = vmatpush.bf16.msra.mxu0 %v4658
        %5250 = vmatpush.bf16.msra.mxu0 %v4652
        %5251 = vmatpush.bf16.msra.mxu0 %v4646
        %5252 = vmatpush.bf16.msra.mxu0 %v4640
        %5253 = vmatpush.bf16.msra.mxu0 %v4634
        %5254 = vmatpush.bf16.msra.mxu0 %v4628
        %5255 = vmatpush.bf16.msra.mxu0 %v4622
        %5256 = vmatmul.bf16.gmra.mxu0 %v2734
        %v5257 = vpop.f32.mrf.mxu0
        %v5258 = vadd.f32 %v5245, %v5257
        %v5259 = vpop.f32.mrf.mxu0
        %5260 = vdwg.mxu0
        %5261 = vmatpush.bf16.msra.mxu0 %v4329
        %5262 = vmatpush.bf16.msra.mxu0 %v4323
        %5263 = vmatpush.bf16.msra.mxu0 %v4317
        %5264 = vmatpush.bf16.msra.mxu0 %v4311
        %5265 = vmatpush.bf16.msra.mxu0 %v4305
        %5266 = vmatpush.bf16.msra.mxu0 %v4299
        %5267 = vmatpush.bf16.msra.mxu0 %v4293
        %5268 = vmatpush.bf16.msra.mxu0 %v4287
        %5269 = vmatmul.bf16.gmra.mxu0 %v2727
        %v5270 = vpop.f32.mrf.mxu0
        %v5271 = vadd.f32 %v3123, %v5270
        %v5272 = vpop.f32.mrf.mxu0
        %5273 = vdwg.mxu0
        %5274 = vmatpush.bf16.msra.mxu0 %v4377
        %5275 = vmatpush.bf16.msra.mxu0 %v4371
        %5276 = vmatpush.bf16.msra.mxu0 %v4365
        %5277 = vmatpush.bf16.msra.mxu0 %v4359
        %5278 = vmatpush.bf16.msra.mxu0 %v4353
        %5279 = vmatpush.bf16.msra.mxu0 %v4347
        %5280 = vmatpush.bf16.msra.mxu0 %v4341
        %5281 = vmatpush.bf16.msra.mxu0 %v4335
        %5282 = vmatmul.bf16.gmra.mxu0 %v2728
        %v5283 = vpop.f32.mrf.mxu0
        %v5284 = vadd.f32 %v5271, %v5283
        %v5285 = vpop.f32.mrf.mxu0
        %5286 = vdwg.mxu0
        %5287 = vmatpush.bf16.msra.mxu0 %v4425
        %5288 = vmatpush.bf16.msra.mxu0 %v4419
        %5289 = vmatpush.bf16.msra.mxu0 %v4413
        %5290 = vmatpush.bf16.msra.mxu0 %v4407
        %5291 = vmatpush.bf16.msra.mxu0 %v4401
        %5292 = vmatpush.bf16.msra.mxu0 %v4395
        %5293 = vmatpush.bf16.msra.mxu0 %v4389
        %5294 = vmatpush.bf16.msra.mxu0 %v4383
        %5295 = vmatmul.bf16.gmra.mxu0 %v2729
        %v5296 = vpop.f32.mrf.mxu0
        %v5297 = vadd.f32 %v5284, %v5296
        %v5298 = vpop.f32.mrf.mxu0
        %5299 = vdwg.mxu0
        %5300 = vmatpush.bf16.msra.mxu0 %v4473
        %5301 = vmatpush.bf16.msra.mxu0 %v4467
        %5302 = vmatpush.bf16.msra.mxu0 %v4461
        %5303 = vmatpush.bf16.msra.mxu0 %v4455
        %5304 = vmatpush.bf16.msra.mxu0 %v4449
        %5305 = vmatpush.bf16.msra.mxu0 %v4443
        %5306 = vmatpush.bf16.msra.mxu0 %v4437
        %5307 = vmatpush.bf16.msra.mxu0 %v4431
        %5308 = vmatmul.bf16.gmra.mxu0 %v2730
        %v5309 = vpop.f32.mrf.mxu0
        %v5310 = vadd.f32 %v5297, %v5309
        %v5311 = vpop.f32.mrf.mxu0
        %5312 = vdwg.mxu0
        %5313 = vmatpush.bf16.msra.mxu0 %v4521
        %5314 = vmatpush.bf16.msra.mxu0 %v4515
        %5315 = vmatpush.bf16.msra.mxu0 %v4509
        %5316 = vmatpush.bf16.msra.mxu0 %v4503
        %5317 = vmatpush.bf16.msra.mxu0 %v4497
        %5318 = vmatpush.bf16.msra.mxu0 %v4491
        %5319 = vmatpush.bf16.msra.mxu0 %v4485
        %5320 = vmatpush.bf16.msra.mxu0 %v4479
        %5321 = vmatmul.bf16.gmra.mxu0 %v2731
        %v5322 = vpop.f32.mrf.mxu0
        %v5323 = vadd.f32 %v5310, %v5322
        %v5324 = vpop.f32.mrf.mxu0
        %5325 = vdwg.mxu0
        %5326 = vmatpush.bf16.msra.mxu0 %v4569
        %5327 = vmatpush.bf16.msra.mxu0 %v4563
        %5328 = vmatpush.bf16.msra.mxu0 %v4557
        %5329 = vmatpush.bf16.msra.mxu0 %v4551
        %5330 = vmatpush.bf16.msra.mxu0 %v4545
        %5331 = vmatpush.bf16.msra.mxu0 %v4539
        %5332 = vmatpush.bf16.msra.mxu0 %v4533
        %5333 = vmatpush.bf16.msra.mxu0 %v4527
        %5334 = vmatmul.bf16.gmra.mxu0 %v2732
        %v5335 = vpop.f32.mrf.mxu0
        %v5336 = vadd.f32 %v5323, %v5335
        %v5337 = vpop.f32.mrf.mxu0
        %5338 = vdwg.mxu0
        %5339 = vmatpush.bf16.msra.mxu0 %v4617
        %5340 = vmatpush.bf16.msra.mxu0 %v4611
        %5341 = vmatpush.bf16.msra.mxu0 %v4605
        %5342 = vmatpush.bf16.msra.mxu0 %v4599
        %5343 = vmatpush.bf16.msra.mxu0 %v4593
        %5344 = vmatpush.bf16.msra.mxu0 %v4587
        %5345 = vmatpush.bf16.msra.mxu0 %v4581
        %5346 = vmatpush.bf16.msra.mxu0 %v4575
        %5347 = vmatmul.bf16.gmra.mxu0 %v2733
        %v5348 = vpop.f32.mrf.mxu0
        %v5349 = vadd.f32 %v5336, %v5348
        %v5350 = vpop.f32.mrf.mxu0
        %5351 = vdwg.mxu0
        %5352 = vmatpush.bf16.msra.mxu0 %v4665
        %5353 = vmatpush.bf16.msra.mxu0 %v4659
        %5354 = vmatpush.bf16.msra.mxu0 %v4653
        %5355 = vmatpush.bf16.msra.mxu0 %v4647
        %5356 = vmatpush.bf16.msra.mxu0 %v4641
        %5357 = vmatpush.bf16.msra.mxu0 %v4635
        %5358 = vmatpush.bf16.msra.mxu0 %v4629
        %5359 = vmatpush.bf16.msra.mxu0 %v4623
        %5360 = vmatmul.bf16.gmra.mxu0 %v2734
        %v5361 = vpop.f32.mrf.mxu0
        %v5362 = vadd.f32 %v5349, %v5361
        %v5363 = vpop.f32.mrf.mxu0
        %5364 = vdwg.mxu0
        %5365 = vmatpush.bf16.msra.mxu0 %v4330
        %5366 = vmatpush.bf16.msra.mxu0 %v4324
        %5367 = vmatpush.bf16.msra.mxu0 %v4318
        %5368 = vmatpush.bf16.msra.mxu0 %v4312
        %5369 = vmatpush.bf16.msra.mxu0 %v4306
        %5370 = vmatpush.bf16.msra.mxu0 %v4300
        %5371 = vmatpush.bf16.msra.mxu0 %v4294
        %5372 = vmatpush.bf16.msra.mxu0 %v4288
        %5373 = vmatmul.bf16.gmra.mxu0 %v2727
        %v5374 = vpop.f32.mrf.mxu0
        %v5375 = vadd.f32 %v3124, %v5374
        %v5376 = vpop.f32.mrf.mxu0
        %5377 = vdwg.mxu0
        %5378 = vmatpush.bf16.msra.mxu0 %v4378
        %5379 = vmatpush.bf16.msra.mxu0 %v4372
        %5380 = vmatpush.bf16.msra.mxu0 %v4366
        %5381 = vmatpush.bf16.msra.mxu0 %v4360
        %5382 = vmatpush.bf16.msra.mxu0 %v4354
        %5383 = vmatpush.bf16.msra.mxu0 %v4348
        %5384 = vmatpush.bf16.msra.mxu0 %v4342
        %5385 = vmatpush.bf16.msra.mxu0 %v4336
        %5386 = vmatmul.bf16.gmra.mxu0 %v2728
        %v5387 = vpop.f32.mrf.mxu0
        %v5388 = vadd.f32 %v5375, %v5387
        %v5389 = vpop.f32.mrf.mxu0
        %5390 = vdwg.mxu0
        %5391 = vmatpush.bf16.msra.mxu0 %v4426
        %5392 = vmatpush.bf16.msra.mxu0 %v4420
        %5393 = vmatpush.bf16.msra.mxu0 %v4414
        %5394 = vmatpush.bf16.msra.mxu0 %v4408
        %5395 = vmatpush.bf16.msra.mxu0 %v4402
        %5396 = vmatpush.bf16.msra.mxu0 %v4396
        %5397 = vmatpush.bf16.msra.mxu0 %v4390
        %5398 = vmatpush.bf16.msra.mxu0 %v4384
        %5399 = vmatmul.bf16.gmra.mxu0 %v2729
        %v5400 = vpop.f32.mrf.mxu0
        %v5401 = vadd.f32 %v5388, %v5400
        %v5402 = vpop.f32.mrf.mxu0
        %5403 = vdwg.mxu0
        %5404 = vmatpush.bf16.msra.mxu0 %v4474
        %5405 = vmatpush.bf16.msra.mxu0 %v4468
        %5406 = vmatpush.bf16.msra.mxu0 %v4462
        %5407 = vmatpush.bf16.msra.mxu0 %v4456
        %5408 = vmatpush.bf16.msra.mxu0 %v4450
        %5409 = vmatpush.bf16.msra.mxu0 %v4444
        %5410 = vmatpush.bf16.msra.mxu0 %v4438
        %5411 = vmatpush.bf16.msra.mxu0 %v4432
        %5412 = vmatmul.bf16.gmra.mxu0 %v2730
        %v5413 = vpop.f32.mrf.mxu0
        %v5414 = vadd.f32 %v5401, %v5413
        %v5415 = vpop.f32.mrf.mxu0
        %5416 = vdwg.mxu0
        %5417 = vmatpush.bf16.msra.mxu0 %v4522
        %5418 = vmatpush.bf16.msra.mxu0 %v4516
        %5419 = vmatpush.bf16.msra.mxu0 %v4510
        %5420 = vmatpush.bf16.msra.mxu0 %v4504
        %5421 = vmatpush.bf16.msra.mxu0 %v4498
        %5422 = vmatpush.bf16.msra.mxu0 %v4492
        %5423 = vmatpush.bf16.msra.mxu0 %v4486
        %5424 = vmatpush.bf16.msra.mxu0 %v4480
        %5425 = vmatmul.bf16.gmra.mxu0 %v2731
        %v5426 = vpop.f32.mrf.mxu0
        %v5427 = vadd.f32 %v5414, %v5426
        %v5428 = vpop.f32.mrf.mxu0
        %5429 = vdwg.mxu0
        %5430 = vmatpush.bf16.msra.mxu0 %v4570
        %5431 = vmatpush.bf16.msra.mxu0 %v4564
        %5432 = vmatpush.bf16.msra.mxu0 %v4558
        %5433 = vmatpush.bf16.msra.mxu0 %v4552
        %5434 = vmatpush.bf16.msra.mxu0 %v4546
        %5435 = vmatpush.bf16.msra.mxu0 %v4540
        %5436 = vmatpush.bf16.msra.mxu0 %v4534
        %5437 = vmatpush.bf16.msra.mxu0 %v4528
        %5438 = vmatmul.bf16.gmra.mxu0 %v2732
        %v5439 = vpop.f32.mrf.mxu0
        %v5440 = vadd.f32 %v5427, %v5439
        %v5441 = vpop.f32.mrf.mxu0
        %5442 = vdwg.mxu0
        %5443 = vmatpush.bf16.msra.mxu0 %v4618
        %5444 = vmatpush.bf16.msra.mxu0 %v4612
        %5445 = vmatpush.bf16.msra.mxu0 %v4606
        %5446 = vmatpush.bf16.msra.mxu0 %v4600
        %5447 = vmatpush.bf16.msra.mxu0 %v4594
        %5448 = vmatpush.bf16.msra.mxu0 %v4588
        %5449 = vmatpush.bf16.msra.mxu0 %v4582
        %5450 = vmatpush.bf16.msra.mxu0 %v4576
        %5451 = vmatmul.bf16.gmra.mxu0 %v2733
        %v5452 = vpop.f32.mrf.mxu0
        %v5453 = vadd.f32 %v5440, %v5452
        %v5454 = vpop.f32.mrf.mxu0
        %5455 = vdwg.mxu0
        %5456 = vmatpush.bf16.msra.mxu0 %v4666
        %5457 = vmatpush.bf16.msra.mxu0 %v4660
        %5458 = vmatpush.bf16.msra.mxu0 %v4654
        %5459 = vmatpush.bf16.msra.mxu0 %v4648
        %5460 = vmatpush.bf16.msra.mxu0 %v4642
        %5461 = vmatpush.bf16.msra.mxu0 %v4636
        %5462 = vmatpush.bf16.msra.mxu0 %v4630
        %5463 = vmatpush.bf16.msra.mxu0 %v4624
        %5464 = vmatmul.bf16.gmra.mxu0 %v2734
        %v5465 = vpop.f32.mrf.mxu0
        %v5466 = vadd.f32 %v5453, %v5465
        %v5467 = vpop.f32.mrf.mxu0
        %5468 = vdwg.mxu0
        %5469 = vmatpush.bf16.msra.mxu0 %v4331
        %5470 = vmatpush.bf16.msra.mxu0 %v4325
        %5471 = vmatpush.bf16.msra.mxu0 %v4319
        %5472 = vmatpush.bf16.msra.mxu0 %v4313
        %5473 = vmatpush.bf16.msra.mxu0 %v4307
        %5474 = vmatpush.bf16.msra.mxu0 %v4301
        %5475 = vmatpush.bf16.msra.mxu0 %v4295
        %5476 = vmatpush.bf16.msra.mxu0 %v4289
        %5477 = vmatmul.bf16.gmra.mxu0 %v2727
        %v5478 = vpop.f32.mrf.mxu0
        %v5479 = vadd.f32 %v3125, %v5478
        %v5480 = vpop.f32.mrf.mxu0
        %5481 = vdwg.mxu0
        %5482 = vmatpush.bf16.msra.mxu0 %v4379
        %5483 = vmatpush.bf16.msra.mxu0 %v4373
        %5484 = vmatpush.bf16.msra.mxu0 %v4367
        %5485 = vmatpush.bf16.msra.mxu0 %v4361
        %5486 = vmatpush.bf16.msra.mxu0 %v4355
        %5487 = vmatpush.bf16.msra.mxu0 %v4349
        %5488 = vmatpush.bf16.msra.mxu0 %v4343
        %5489 = vmatpush.bf16.msra.mxu0 %v4337
        %5490 = vmatmul.bf16.gmra.mxu0 %v2728
        %v5491 = vpop.f32.mrf.mxu0
        %v5492 = vadd.f32 %v5479, %v5491
        %v5493 = vpop.f32.mrf.mxu0
        %5494 = vdwg.mxu0
        %5495 = vmatpush.bf16.msra.mxu0 %v4427
        %5496 = vmatpush.bf16.msra.mxu0 %v4421
        %5497 = vmatpush.bf16.msra.mxu0 %v4415
        %5498 = vmatpush.bf16.msra.mxu0 %v4409
        %5499 = vmatpush.bf16.msra.mxu0 %v4403
        %5500 = vmatpush.bf16.msra.mxu0 %v4397
        %5501 = vmatpush.bf16.msra.mxu0 %v4391
        %5502 = vmatpush.bf16.msra.mxu0 %v4385
        %5503 = vmatmul.bf16.gmra.mxu0 %v2729
        %v5504 = vpop.f32.mrf.mxu0
        %v5505 = vadd.f32 %v5492, %v5504
        %v5506 = vpop.f32.mrf.mxu0
        %5507 = vdwg.mxu0
        %5508 = vmatpush.bf16.msra.mxu0 %v4475
        %5509 = vmatpush.bf16.msra.mxu0 %v4469
        %5510 = vmatpush.bf16.msra.mxu0 %v4463
        %5511 = vmatpush.bf16.msra.mxu0 %v4457
        %5512 = vmatpush.bf16.msra.mxu0 %v4451
        %5513 = vmatpush.bf16.msra.mxu0 %v4445
        %5514 = vmatpush.bf16.msra.mxu0 %v4439
        %5515 = vmatpush.bf16.msra.mxu0 %v4433
        %5516 = vmatmul.bf16.gmra.mxu0 %v2730
        %v5517 = vpop.f32.mrf.mxu0
        %v5518 = vadd.f32 %v5505, %v5517
        %v5519 = vpop.f32.mrf.mxu0
        %5520 = vdwg.mxu0
        %5521 = vmatpush.bf16.msra.mxu0 %v4523
        %5522 = vmatpush.bf16.msra.mxu0 %v4517
        %5523 = vmatpush.bf16.msra.mxu0 %v4511
        %5524 = vmatpush.bf16.msra.mxu0 %v4505
        %5525 = vmatpush.bf16.msra.mxu0 %v4499
        %5526 = vmatpush.bf16.msra.mxu0 %v4493
        %5527 = vmatpush.bf16.msra.mxu0 %v4487
        %5528 = vmatpush.bf16.msra.mxu0 %v4481
        %5529 = vmatmul.bf16.gmra.mxu0 %v2731
        %v5530 = vpop.f32.mrf.mxu0
        %v5531 = vadd.f32 %v5518, %v5530
        %v5532 = vpop.f32.mrf.mxu0
        %5533 = vdwg.mxu0
        %5534 = vmatpush.bf16.msra.mxu0 %v4571
        %5535 = vmatpush.bf16.msra.mxu0 %v4565
        %5536 = vmatpush.bf16.msra.mxu0 %v4559
        %5537 = vmatpush.bf16.msra.mxu0 %v4553
        %5538 = vmatpush.bf16.msra.mxu0 %v4547
        %5539 = vmatpush.bf16.msra.mxu0 %v4541
        %5540 = vmatpush.bf16.msra.mxu0 %v4535
        %5541 = vmatpush.bf16.msra.mxu0 %v4529
        %5542 = vmatmul.bf16.gmra.mxu0 %v2732
        %v5543 = vpop.f32.mrf.mxu0
        %v5544 = vadd.f32 %v5531, %v5543
        %v5545 = vpop.f32.mrf.mxu0
        %5546 = vdwg.mxu0
        %5547 = vmatpush.bf16.msra.mxu0 %v4619
        %5548 = vmatpush.bf16.msra.mxu0 %v4613
        %5549 = vmatpush.bf16.msra.mxu0 %v4607
        %5550 = vmatpush.bf16.msra.mxu0 %v4601
        %5551 = vmatpush.bf16.msra.mxu0 %v4595
        %5552 = vmatpush.bf16.msra.mxu0 %v4589
        %5553 = vmatpush.bf16.msra.mxu0 %v4583
        %5554 = vmatpush.bf16.msra.mxu0 %v4577
        %5555 = vmatmul.bf16.gmra.mxu0 %v2733
        %v5556 = vpop.f32.mrf.mxu0
        %v5557 = vadd.f32 %v5544, %v5556
        %v5558 = vpop.f32.mrf.mxu0
        %5559 = vdwg.mxu0
        %5560 = vmatpush.bf16.msra.mxu0 %v4667
        %5561 = vmatpush.bf16.msra.mxu0 %v4661
        %5562 = vmatpush.bf16.msra.mxu0 %v4655
        %5563 = vmatpush.bf16.msra.mxu0 %v4649
        %5564 = vmatpush.bf16.msra.mxu0 %v4643
        %5565 = vmatpush.bf16.msra.mxu0 %v4637
        %5566 = vmatpush.bf16.msra.mxu0 %v4631
        %5567 = vmatpush.bf16.msra.mxu0 %v4625
        %5568 = vmatmul.bf16.gmra.mxu0 %v2734
        %v5569 = vpop.f32.mrf.mxu0
        %v5570 = vadd.f32 %v5557, %v5569
        %v5571 = vpop.f32.mrf.mxu0
        %5572 = vdwg.mxu0
        %5573 = vmatpush.bf16.msra.mxu0 %v4332
        %5574 = vmatpush.bf16.msra.mxu0 %v4326
        %5575 = vmatpush.bf16.msra.mxu0 %v4320
        %5576 = vmatpush.bf16.msra.mxu0 %v4314
        %5577 = vmatpush.bf16.msra.mxu0 %v4308
        %5578 = vmatpush.bf16.msra.mxu0 %v4302
        %5579 = vmatpush.bf16.msra.mxu0 %v4296
        %5580 = vmatpush.bf16.msra.mxu0 %v4290
        %5581 = vmatmul.bf16.gmra.mxu0 %v2727
        %v5582 = vpop.f32.mrf.mxu0
        %v5583 = vadd.f32 %v3126, %v5582
        %v5584 = vpop.f32.mrf.mxu0
        %5585 = vdwg.mxu0
        %5586 = vmatpush.bf16.msra.mxu0 %v4380
        %5587 = vmatpush.bf16.msra.mxu0 %v4374
        %5588 = vmatpush.bf16.msra.mxu0 %v4368
        %5589 = vmatpush.bf16.msra.mxu0 %v4362
        %5590 = vmatpush.bf16.msra.mxu0 %v4356
        %5591 = vmatpush.bf16.msra.mxu0 %v4350
        %5592 = vmatpush.bf16.msra.mxu0 %v4344
        %5593 = vmatpush.bf16.msra.mxu0 %v4338
        %5594 = vmatmul.bf16.gmra.mxu0 %v2728
        %v5595 = vpop.f32.mrf.mxu0
        %v5596 = vadd.f32 %v5583, %v5595
        %v5597 = vpop.f32.mrf.mxu0
        %5598 = vdwg.mxu0
        %5599 = vmatpush.bf16.msra.mxu0 %v4428
        %5600 = vmatpush.bf16.msra.mxu0 %v4422
        %5601 = vmatpush.bf16.msra.mxu0 %v4416
        %5602 = vmatpush.bf16.msra.mxu0 %v4410
        %5603 = vmatpush.bf16.msra.mxu0 %v4404
        %5604 = vmatpush.bf16.msra.mxu0 %v4398
        %5605 = vmatpush.bf16.msra.mxu0 %v4392
        %5606 = vmatpush.bf16.msra.mxu0 %v4386
        %5607 = vmatmul.bf16.gmra.mxu0 %v2729
        %v5608 = vpop.f32.mrf.mxu0
        %v5609 = vadd.f32 %v5596, %v5608
        %v5610 = vpop.f32.mrf.mxu0
        %5611 = vdwg.mxu0
        %5612 = vmatpush.bf16.msra.mxu0 %v4476
        %5613 = vmatpush.bf16.msra.mxu0 %v4470
        %5614 = vmatpush.bf16.msra.mxu0 %v4464
        %5615 = vmatpush.bf16.msra.mxu0 %v4458
        %5616 = vmatpush.bf16.msra.mxu0 %v4452
        %5617 = vmatpush.bf16.msra.mxu0 %v4446
        %5618 = vmatpush.bf16.msra.mxu0 %v4440
        %5619 = vmatpush.bf16.msra.mxu0 %v4434
        %5620 = vmatmul.bf16.gmra.mxu0 %v2730
        %v5621 = vpop.f32.mrf.mxu0
        %v5622 = vadd.f32 %v5609, %v5621
        %v5623 = vpop.f32.mrf.mxu0
        %5624 = vdwg.mxu0
        %5625 = vmatpush.bf16.msra.mxu0 %v4524
        %5626 = vmatpush.bf16.msra.mxu0 %v4518
        %5627 = vmatpush.bf16.msra.mxu0 %v4512
        %5628 = vmatpush.bf16.msra.mxu0 %v4506
        %5629 = vmatpush.bf16.msra.mxu0 %v4500
        %5630 = vmatpush.bf16.msra.mxu0 %v4494
        %5631 = vmatpush.bf16.msra.mxu0 %v4488
        %5632 = vmatpush.bf16.msra.mxu0 %v4482
        %5633 = vmatmul.bf16.gmra.mxu0 %v2731
        %v5634 = vpop.f32.mrf.mxu0
        %v5635 = vadd.f32 %v5622, %v5634
        %v5636 = vpop.f32.mrf.mxu0
        %5637 = vdwg.mxu0
        %5638 = vmatpush.bf16.msra.mxu0 %v4572
        %5639 = vmatpush.bf16.msra.mxu0 %v4566
        %5640 = vmatpush.bf16.msra.mxu0 %v4560
        %5641 = vmatpush.bf16.msra.mxu0 %v4554
        %5642 = vmatpush.bf16.msra.mxu0 %v4548
        %5643 = vmatpush.bf16.msra.mxu0 %v4542
        %5644 = vmatpush.bf16.msra.mxu0 %v4536
        %5645 = vmatpush.bf16.msra.mxu0 %v4530
        %5646 = vmatmul.bf16.gmra.mxu0 %v2732
        %v5647 = vpop.f32.mrf.mxu0
        %v5648 = vadd.f32 %v5635, %v5647
        %v5649 = vpop.f32.mrf.mxu0
        %5650 = vdwg.mxu0
        %5651 = vmatpush.bf16.msra.mxu0 %v4620
        %5652 = vmatpush.bf16.msra.mxu0 %v4614
        %5653 = vmatpush.bf16.msra.mxu0 %v4608
        %5654 = vmatpush.bf16.msra.mxu0 %v4602
        %5655 = vmatpush.bf16.msra.mxu0 %v4596
        %5656 = vmatpush.bf16.msra.mxu0 %v4590
        %5657 = vmatpush.bf16.msra.mxu0 %v4584
        %5658 = vmatpush.bf16.msra.mxu0 %v4578
        %5659 = vmatmul.bf16.gmra.mxu0 %v2733
        %v5660 = vpop.f32.mrf.mxu0
        %v5661 = vadd.f32 %v5648, %v5660
        %v5662 = vpop.f32.mrf.mxu0
        %5663 = vdwg.mxu0
        %5664 = vmatpush.bf16.msra.mxu0 %v4668
        %5665 = vmatpush.bf16.msra.mxu0 %v4662
        %5666 = vmatpush.bf16.msra.mxu0 %v4656
        %5667 = vmatpush.bf16.msra.mxu0 %v4650
        %5668 = vmatpush.bf16.msra.mxu0 %v4644
        %5669 = vmatpush.bf16.msra.mxu0 %v4638
        %5670 = vmatpush.bf16.msra.mxu0 %v4632
        %5671 = vmatpush.bf16.msra.mxu0 %v4626
        %5672 = vmatmul.bf16.gmra.mxu0 %v2734
        %v5673 = vpop.f32.mrf.mxu0
        %v5674 = vadd.f32 %v5661, %v5673
        %v5675 = vpop.f32.mrf.mxu0
        %5676 = vdwg.mxu0
        %5677 = vst [vmem:[%s411] sm:$0xff] %v5154
        %5678 = vst [vmem:[%s411 + $0x8] sm:$0xff] %v5258
        %5679 = vst [vmem:[%s411 + $0x10] sm:$0xff] %v5362
        %5680 = vst [vmem:[%s411 + $0x18] sm:$0xff] %v5466
        %5681 = vst [vmem:[%s411 + $0x20] sm:$0xff] %v5570
        %5682 = vst [vmem:[%s411 + $0x28] sm:$0xff] %v5674
        %s5683 = sand.u32 %s192, 1
        %s5684 = scalar_lea.sflag [#allocation4], %s5683
        %s5685 = sand.u32 %s192, 1
        %s5686 = smul.addr %s5685, 48
        %s5687 = scalar_lea.vmem [#allocation14], %s5686
        // Predicated region
        $region77: #{tpu_custom_call.1} parent=47 // pred_check
          %p5688 = pneg %p202
        $region78: #{tpu_custom_call.1} parent=47 // pred_check_branch
          %5690 = sbr.rel (%p5688) target = $region80
        $region79: #{tpu_custom_call.1} parent=47 // pred_region
          %s5691 = smul.u32 6, %s27
          %5693 = vsyncadd %s5684, 0
          %s5694 = smul.addr %s5691, 8
          %s5695 = scalar_lea.hbm %s7, %s5694
          %s5697 = sshll.u32 %s5687, 4
          %s5698 = int_to_ptr.vmem [resolvable:$true] %s5697
          %s5699 = sshll.u32 %s5695, 4
          %s5700 = int_to_ptr.hbm [resolvable:$true] %s5699
          %5702 = dma.vmem_to_hbm [thread:$0]  %s5698, 768, %s5700, %s5684
        $region80: #{tpu_custom_call.1} parent=47 // pred_fallthru
          _
      $region48: #{tpu_custom_call.1} parent=5 // pred_fallthru
        _
      %p5703 = scmp.le.s32.totalorder 2, %s22
      // Predicated region
      $region81: #{tpu_custom_call.1} parent=5 // pred_check
        %p5704 = pneg %p5703
      $region82: #{tpu_custom_call.1} parent=5 // pred_check_branch
        %5706 = sbr.rel (%p5704) target = $region84
      $region83: #{tpu_custom_call.1} parent=5 // pred_region
        %s5707 = ssub.s32 %s22, 2
        // Predicated region
        $region85: #{tpu_custom_call.1} parent=83 // pred_check
          %p5708 = pneg %p208
        $region86: #{tpu_custom_call.1} parent=83 // pred_check_branch
          %5710 = sbr.rel (%p5708) target = $region88
        $region87: #{tpu_custom_call.1} parent=83 // pred_region
          %s5711 = sand.u32 %s193, 1
          %s5712 = scalar_lea.sflag [#allocation4], %s5711
          %s5713 = sand.u32 %s193, 1
          %s5714 = smul.addr %s5713, 48
          %s5715 = scalar_lea.vmem [#allocation14], %s5714
          %5717 = dma.done %s5712, 768
        $region88: #{tpu_custom_call.1} parent=83 // pred_fallthru
          _
      $region84: #{tpu_custom_call.1} parent=5 // pred_fallthru
        _
    $region6: #{tpu_custom_call.1} parent=1 // loop_footer
      %s26 = sadd.s32 1, %s22
    $region7: #{tpu_custom_call.1} parent=1 // loop_footer_branch
      %21 = sbr.rel target = $region3
    $region8: #{tpu_custom_call.1} parent=1 // loop_exit
      _
    %5718 = vsyncpa [#allocation3], 1
    %s5719 = scalar_lea.sflag [#allocation3], 1
    %5720 = vsyncpa %s5719, 1
    %5721 = vsyncpa [#allocation6], 1
    %5722 = vsyncpa [#allocation9], 1
    %5723 = vsyncpa [#allocation12], 1
    %s5724 = scalar_lea.sflag [#allocation12], 1
    %5725 = vsyncpa %s5724, 1
    %5726 = vsyncpa [#allocation4], 1
    %s5727 = scalar_lea.sflag [#allocation4], 1
    %5728 = vsyncpa %s5727, 1

</llo_original>
